<compile_context>
chip_gen: v7x
topology: tpu7x:2x2x1
jax: 0.10.0
libtpu: 0.0.40
codegen_flags: <defaults>
</compile_context>

<pallas_src>
import numpy as np
import jax
import jax.numpy as jnp
from jax.experimental import pallas as pl
from jax.experimental.pallas import tpu as pltpu

LEAKY_SLOPE = 0.01   # torch.nn.LeakyReLU default negative_slope


# ----------------------------------------------------------------------------
# Bilinear interpolation matrix, PyTorch F.interpolate(mode='bilinear',
# align_corners=False) source-index formula (clamped to >= 0).
# ----------------------------------------------------------------------------
def _interp_matrix(out_size, in_size):
    A = np.zeros((out_size, in_size), dtype=np.float32)
    scale = in_size / out_size
    for i in range(out_size):
        src = max((i + 0.5) * scale - 0.5, 0.0)
        j0 = min(int(np.floor(src)), in_size - 1)
        lam = src - j0
        j1 = min(j0 + 1, in_size - 1)
        A[i, j0] += 1.0 - lam
        A[i, j1] += lam
    return A


# ----------------------------------------------------------------------------
# In-kernel separable bilinear resize of a flat (C, Hin*Win) slab.
# ----------------------------------------------------------------------------
def _bilinear_resize(x, awT_ref, cfg, cat_sc, res_sc):
    C = x.shape[0]
    Hin, Win = cfg["Hin"], cfg["Win"]
    Hout, Wout = cfg["Hout"], cfg["Wout"]

    # Explicit (C, Hin*Win) -> (Hin*C, Win) relayout through VMEM scratch
    # (static-slice stores only; no exotic reshape lowering).
    for hi in range(Hin):
        cat_sc[hi * C:(hi + 1) * C, 0:Win] = x[:, hi * Win:(hi + 1) * Win]
    xrows = cat_sc[0:Hin * C, 0:Win].astype(jnp.bfloat16)

    # W-resize: one MXU matmul for all rows & channels (bf16 ops, f32 acc).
    zw = jnp.dot(xrows, awT_ref[...], preferred_element_type=jnp.float32)

    # H-resize: bilinear => <= 2 static taps per output row; assemble the
    # lane-dense (C, Hout*Wout) slab in the resize scratch.
    for ho, taps in enumerate(cfg["h_taps"]):
        acc = None
        for hi, wt in taps:
            blk = zw[hi * C:(hi + 1) * C, :]
            term = blk if wt == 1.0 else blk * wt
            acc = term if acc is None else acc + term
        res_sc[0:C, ho * Wout:(ho + 1) * Wout] = acc
    return res_sc[0:C, 0:Hout * Wout]


# ----------------------------------------------------------------------------
# In-kernel fused 3x3 'same' conv (stride 1, zero pad 1, no bias) on flat
# (C, H*W) slabs: ONE (Cout, 9*Cin_tot) @ (9*Cin_tot, HW) matmul via im2col.
# ----------------------------------------------------------------------------
def _conv3x3_fused(xs, w_ref, left_m, right_m, W, pad, cat_sc, leaky):
    HW = xs[0].shape[1]

    # One lane-aligned zero-padded copy per input (handles the vertical image
    # boundary; requires pad >= W+1, asserted host-side).
    padded = []
    for xk in xs:
        Ck = xk.shape[0]
        z = jnp.zeros((Ck, pad), jnp.float32)
        padded.append((jnp.concatenate([z, xk, z], axis=1), Ck))

    # Stage the im2col slab (tap-major, inputs/channels-minor) in VMEM scratch.
    row = 0
    for dy in range(3):
        for dx in range(3):
            oy, ox = dy - 1, dx - 1
            start = pad + oy * W + ox                # static, >= 0
            for pk, Ck in padded:
                sl = pk[:, start:start + HW]
                if ox == -1:
                    sl = sl * left_m                 # zero output column 0
                elif ox == 1:
                    sl = sl * right_m                # zero output column W-1
                cat_sc[row:row + Ck, 0:HW] = sl
                row += Ck

    col = cat_sc[0:row, 0:HW].astype(jnp.bfloat16)
    acc = jnp.dot(w_ref[...], col, preferred_element_type=jnp.float32)
    if leaky:
        acc = jnp.where(acc >= 0, acc, LEAKY_SLOPE * acc)
    return acc


# ----------------------------------------------------------------------------
# Fused whole-decoder kernel (one grid step = `nb` batch elements).
# ----------------------------------------------------------------------------
def _make_decoder_kernel(stage_cfgs, nb):
    def kernel(*refs):
        *in_refs, out_ref, cat_sc, res_sc = refs
        for b in range(nb):                          # images per step (static)
            it = iter(in_refs)
            x = next(it)[b]                          # (C0, H0*W0) f32
            for cfg in stage_cfgs:
                enc_ref = next(it)
                awT_ref = next(it)
                mask_ref = next(it)
                wup_ref = next(it)
                wc_refs = [next(it) for _ in range(cfg["n_convs"])]
                W, pad = cfg["Wout"], cfg["pad"]

                # 1) separable bilinear resize
                x = _bilinear_resize(x, awT_ref, cfg, cat_sc, res_sc)
                left_m = mask_ref[0:1, :]
                right_m = mask_ref[1:2, :]

                # 2) upconv (3x3, no activation): one fused matmul
                x = _conv3x3_fused([x], wup_ref, left_m, right_m, W, pad,
                                   cat_sc, leaky=False)

                # 3+4) ConvBlock; skip-concat folded into the first conv's
                #      im2col rows + packed weight.
                x = _conv3x3_fused([x, enc_ref[b]], wc_refs[0], left_m, right_m,
                                   W, pad, cat_sc, leaky=True)
                for wc_ref in wc_refs[1:]:
                    x = _conv3x3_fused([x], wc_ref, left_m, right_m, W, pad,
                                       cat_sc, leaky=True)
            out_ref[b] = x
    return kernel


@jax.jit
def _decoder_forward(x, encoder_features, upconv_packed, dec_packed):
    x = x.astype(jnp.float32)
    N, C0, H0, W0 = x.shape
    n_stages = len(upconv_packed)

    # Two fat grid steps when the batch divides evenly (grid multiple of 2 for
    # the two v7x TensorCores; amortizes per-step overhead on v5e/v6e).
    n_steps = 2 if (N % 2 == 0 and N >= 2) else 1
    nb = N // n_steps

    inputs = [x.reshape(N, C0, H0 * W0)]
    in_specs = [pl.BlockSpec((nb, C0, H0 * W0), lambda g: (g, 0, 0))]
    stage_cfgs = []
    Hin, Win = H0, W0
    c_x = C0
    c_last, Hout, Wout = C0, H0, W0
    cat_rows, cat_cols = 8, 128
    res_rows, res_cols = 8, 128

    for i in range(n_stages):
        enc = encoder_features[i].astype(jnp.float32)
        _, Cenc, Hout, Wout = enc.shape
        HWout = Hout * Wout
        pad = ((Wout + 1 + 127) // 128) * 128        # lane-aligned, >= Wout+1
        assert pad >= Wout + 1

        # separable bilinear operators (align_corners=False semantics)
        awT = jnp.asarray(_interp_matrix(Wout, Win).T, dtype=jnp.bfloat16)
        Ah = _interp_matrix(Hout, Hin)
        h_taps = tuple(tuple((int(j), float(Ah[o, j]))
                             for j in np.nonzero(Ah[o])[0])
                       for o in range(Hout))
        # column masks: row 0 zeros image column 0, row 1 zeros column W-1
        colidx = np.arange(HWout) % Wout
        masks = jnp.asarray(
            np.stack([colidx != 0, colidx != Wout - 1]).astype(np.float32))

        wup = upconv_packed[i]
        wcs = dec_packed[i]
        inputs += [enc.reshape(N, Cenc, HWout), awT, masks, wup, *wcs]
        in_specs += [
            pl.BlockSpec((nb, Cenc, HWout), lambda g: (g, 0, 0)),
            pl.BlockSpec(awT.shape, lambda g: (0, 0)),
            pl.BlockSpec((2, HWout), lambda g: (0, 0)),
            pl.BlockSpec(wup.shape, lambda g: (0, 0)),
        ] + [pl.BlockSpec(w.shape, lambda g: (0, 0)) for w in wcs]

        stage_cfgs.append(dict(Hin=Hin, Win=Win, Hout=Hout, Wout=Wout, pad=pad,
                               h_taps=h_taps, n_convs=len(wcs)))

        cat_rows = max([cat_rows, Hin * c_x]
                       + [int(w.shape[1]) for w in (wup, *wcs)])
        cat_cols = max(cat_cols, HWout)
        res_rows = max(res_rows, c_x)
        res_cols = max(res_cols, HWout)

        c_x = int(wcs[-1].shape[0])
        c_last = c_x
        Hin, Win = Hout, Wout

    cat_rows = ((cat_rows + 7) // 8) * 8

    out_flat = pl.pallas_call(
        _make_decoder_kernel(tuple(stage_cfgs), nb),
        out_shape=jax.ShapeDtypeStruct((N, c_last, Hout * Wout), jnp.float32),
        grid=(n_steps,),
        in_specs=in_specs,
        out_specs=pl.BlockSpec((nb, c_last, Hout * Wout), lambda g: (g, 0, 0)),
        scratch_shapes=[
            pltpu.VMEM((cat_rows, cat_cols), jnp.float32),   # im2col / row staging
            pltpu.VMEM((res_rows, res_cols), jnp.float32),   # resized-slab staging
        ],
        compiler_params=pltpu.CompilerParams(
            dimension_semantics=("parallel",)),
    )(*inputs)
    return out_flat.reshape(N, c_last, Hout, Wout)


# ----------------------------------------------------------------------------
# Decoder (matches networks/unet.py::Decoder forward, dim=2, k=3, bias=False,
# padding_mode='zeros').
# ----------------------------------------------------------------------------
class Decoder:
    def __init__(self, dim, n_ch_in, n_dec_stages, n_convs_per_stage, n_filters,
                 kernel_size=3, key=None):
        assert dim == 2 and kernel_size == 3, "this Pallas port covers dim=2, k=3"
        # TODO(synk): dim=1/3 (linear/trilinear + Conv1d/Conv3d) variants not ported.
        del n_filters  # unused by the reference forward pass
        n_ch_list = [int(n_ch_in * (1 / 2) ** ne) for ne in range(n_dec_stages)]
        self.n_ch_list = n_ch_list
        key = jax.random.PRNGKey(0) if key is None else key

        self.upconv_w = []   # (Cout, Cin, 3, 3) per stage (PyTorch OIHW layout)
        self.dec_w = []      # list of per-conv OIHW weights per stage
        for i in range(len(n_ch_list) - 1):
            cin, cout = n_ch_list[i], n_ch_list[i + 1]
            key, k = jax.random.split(key)
            self.upconv_w.append(
                jax.random.normal(k, (cout, cin, 3, 3), jnp.float32)
                * (1.0 / np.sqrt(cin * 9)))
            stage_ws = []
            c_prev = cin                 # ConvBlock(n_ch_list[i] -> n_ch_list[i+1])
            for _ in range(n_convs_per_stage):
                key, k = jax.random.split(key)
                stage_ws.append(
                    jax.random.normal(k, (cout, c_prev, 3, 3), jnp.float32)
                    * (1.0 / np.sqrt(c_prev * 9)))
                c_prev = cout
            self.dec_w.append(stage_ws)

        # Host-side packing: one lane-dense (Cout, 9*Cin) bf16 matrix per conv,
        # tap-major / channel-minor, matching the in-kernel im2col row order.
        def pack(w):
            co, ci = int(w.shape[0]), int(w.shape[1])
            return (jnp.transpose(w, (0, 2, 3, 1))
                    .reshape(co, 9 * ci).astype(jnp.bfloat16))
        self.upconv_packed = tuple(pack(w) for w in self.upconv_w)
        self.dec_packed = tuple(tuple(pack(w) for w in ws) for ws in self.dec_w)

    def __call__(self, x, encoder_features):
        return _decoder_forward(x, tuple(encoder_features),
                                self.upconv_packed, self.dec_packed)


# ----------------------------------------------------------------------------
# Plain-JAX (non-Pallas) reference of the same forward pass, for verification.
# ----------------------------------------------------------------------------
def _reference_forward(x, encoder_features, upconv_w, dec_w):
    hp = jax.lax.Precision.HIGHEST
    for i in range(len(upconv_w)):
        enc = encoder_features[i]
        Hout, Wout = int(enc.shape[2]), int(enc.shape[3])
        Ah = jnp.asarray(_interp_matrix(Hout, int(x.shape[2])))
        Aw = jnp.asarray(_interp_matrix(Wout, int(x.shape[3])))
        x = jnp.einsum('oh,nchw,pw->ncop', Ah, x, Aw, precision=hp)
        x = jax.lax.conv_general_dilated(
            x, upconv_w[i], window_strides=(1, 1), padding=((1, 1), (1, 1)),
            dimension_numbers=('NCHW', 'OIHW', 'NCHW'), precision=hp)
        x = jnp.concatenate([x, enc], axis=1)
        for w in dec_w[i]:
            x = jax.lax.conv_general_dilated(
                x, w, window_strides=(1, 1), padding=((1, 1), (1, 1)),
                dimension_numbers=('NCHW', 'OIHW', 'NCHW'), precision=hp)
            x = jnp.where(x >= 0, x, LEAKY_SLOPE * x)
    return x


# ----------------------------------------------------------------------------
if __name__ == "__main__":
    key = jax.random.PRNGKey(0)
    kx, ke0, ke1, kw = jax.random.split(key, 4)

    N = 2
    n_ch_in, n_dec_stages, n_convs_per_stage = 8, 3, 2   # n_ch_list = [8, 4, 2]

    x = jax.random.normal(kx, (N, n_ch_in, 8, 8), jnp.float32)
    encoder_features = [
        jax.random.normal(ke0, (N, 4, 16, 16), jnp.float32),
        jax.random.normal(ke1, (N, 2, 32, 32), jnp.float32),
    ]

    dec = Decoder(dim=2, n_ch_in=n_ch_in, n_dec_stages=n_dec_stages,
                  n_convs_per_stage=n_convs_per_stage, n_filters=None, key=kw)

    out = jax.block_until_ready(dec(x, encoder_features))
    assert out.shape == (N, 2, 32, 32), out.shape
    assert bool(jnp.all(jnp.isfinite(out)))

    # numerical cross-check against the full-f32 plain-JAX reference
    ref = jax.block_until_ready(
        _reference_forward(x, encoder_features, dec.upconv_w, dec.dec_w))
    err = float(jnp.max(jnp.abs(out - ref)))
    scale = max(1.0, float(jnp.max(jnp.abs(ref))))
    # MXU operands are bf16 (f32 accumulation), so allow a few % of the output
    # dynamic range of drift vs the f32-HIGHEST reference.
    assert err <= 0.05 * scale + 0.01, \
        f"mismatch vs reference: max abs err = {err} (scale={scale})"

    print("KERNEL_OK")
</pallas_src>

<mosaic_0001>
module attributes {stable_mosaic.version = 11 : i64} {
  func.func @kernel(%arg0: i32, %arg1: memref<1x8x64xf32, #tpu.memory_space<vmem>>, %arg2: memref<1x4x256xf32, #tpu.memory_space<vmem>>, %arg3: memref<8x16xbf16, #tpu.memory_space<vmem>>, %arg4: memref<2x256xf32, #tpu.memory_space<vmem>>, %arg5: memref<4x72xbf16, #tpu.memory_space<vmem>>, %arg6: memref<4x72xbf16, #tpu.memory_space<vmem>>, %arg7: memref<4x36xbf16, #tpu.memory_space<vmem>>, %arg8: memref<1x2x1024xf32, #tpu.memory_space<vmem>>, %arg9: memref<16x32xbf16, #tpu.memory_space<vmem>>, %arg10: memref<2x1024xf32, #tpu.memory_space<vmem>>, %arg11: memref<2x36xbf16, #tpu.memory_space<vmem>>, %arg12: memref<2x36xbf16, #tpu.memory_space<vmem>>, %arg13: memref<2x18xbf16, #tpu.memory_space<vmem>>, %arg14: memref<1x2x1024xf32, #tpu.memory_space<vmem>>, %arg15: memref<72x1024xf32, #tpu.memory_space<vmem>>, %arg16: memref<8x1024xf32, #tpu.memory_space<vmem>>) attributes {dimension_semantics = [#tpu.dimension_semantics<parallel>], iteration_bounds = array<i64: 2>, scalar_prefetch = 0 : i64, scratch_operands = 2 : i64, tpu.core_type = #tpu.core_type<tc>, window_params = [{transform_indices = @transform_0, window_bounds = array<i64: 1, 8, 64>}, {transform_indices = @transform_1, window_bounds = array<i64: 1, 4, 256>}, {pipeline_mode = #tpu.pipeline_mode<synchronous>, transform_indices = @transform_2, window_bounds = array<i64: 8, 16>}, {pipeline_mode = #tpu.pipeline_mode<synchronous>, transform_indices = @transform_3, window_bounds = array<i64: 2, 256>}, {pipeline_mode = #tpu.pipeline_mode<synchronous>, transform_indices = @transform_4, window_bounds = array<i64: 4, 72>}, {pipeline_mode = #tpu.pipeline_mode<synchronous>, transform_indices = @transform_5, window_bounds = array<i64: 4, 72>}, {pipeline_mode = #tpu.pipeline_mode<synchronous>, transform_indices = @transform_6, window_bounds = array<i64: 4, 36>}, {transform_indices = @transform_7, window_bounds = array<i64: 1, 2, 1024>}, {pipeline_mode = #tpu.pipeline_mode<synchronous>, transform_indices = @transform_8, window_bounds = array<i64: 16, 32>}, {pipeline_mode = #tpu.pipeline_mode<synchronous>, transform_indices = @transform_9, window_bounds = array<i64: 2, 1024>}, {pipeline_mode = #tpu.pipeline_mode<synchronous>, transform_indices = @transform_10, window_bounds = array<i64: 2, 36>}, {pipeline_mode = #tpu.pipeline_mode<synchronous>, transform_indices = @transform_11, window_bounds = array<i64: 2, 36>}, {pipeline_mode = #tpu.pipeline_mode<synchronous>, transform_indices = @transform_12, window_bounds = array<i64: 2, 18>}, {transform_indices = @transform_13, window_bounds = array<i64: 1, 2, 1024>}]} {
    %c0 = arith.constant 0 : index
    %c0_0 = arith.constant 0 : index
    %c0_1 = arith.constant 0 : index
    %0 = vector.load %arg1[%c0, %c0_0, %c0_1] : memref<1x8x64xf32, #tpu.memory_space<vmem>>, vector<1x8x64xf32>
    %1 = vector.shape_cast %0 : vector<1x8x64xf32> to vector<8x64xf32>
    %2 = vector.extract_strided_slice %1 {offsets = [0, 0], sizes = [8, 8], strides = [1, 1]} : vector<8x64xf32> to vector<8x8xf32>
    %c0_2 = arith.constant 0 : index
    %c0_3 = arith.constant 0 : index
    %3 = vector.load %arg15[%c0_2, %c0_3] : memref<72x1024xf32, #tpu.memory_space<vmem>>, vector<8x8xf32>
    tpu.vector_store %arg15[%c0_2, %c0_3], %2 {strides = array<i32>} : memref<72x1024xf32, #tpu.memory_space<vmem>>, vector<8x8xf32>,
    %4 = vector.extract_strided_slice %1 {offsets = [0, 8], sizes = [8, 8], strides = [1, 1]} : vector<8x64xf32> to vector<8x8xf32>
    %c8 = arith.constant 8 : index
    %c0_4 = arith.constant 0 : index
    %5 = vector.load %arg15[%c8, %c0_4] : memref<72x1024xf32, #tpu.memory_space<vmem>>, vector<8x8xf32>
    tpu.vector_store %arg15[%c8, %c0_4], %4 {strides = array<i32>} : memref<72x1024xf32, #tpu.memory_space<vmem>>, vector<8x8xf32>,
    %6 = vector.extract_strided_slice %1 {offsets = [0, 16], sizes = [8, 8], strides = [1, 1]} : vector<8x64xf32> to vector<8x8xf32>
    %c16 = arith.constant 16 : index
    %c0_5 = arith.constant 0 : index
    %7 = vector.load %arg15[%c16, %c0_5] : memref<72x1024xf32, #tpu.memory_space<vmem>>, vector<8x8xf32>
    tpu.vector_store %arg15[%c16, %c0_5], %6 {strides = array<i32>} : memref<72x1024xf32, #tpu.memory_space<vmem>>, vector<8x8xf32>,
    %8 = vector.extract_strided_slice %1 {offsets = [0, 24], sizes = [8, 8], strides = [1, 1]} : vector<8x64xf32> to vector<8x8xf32>
    %c24 = arith.constant 24 : index
    %c0_6 = arith.constant 0 : index
    %9 = vector.load %arg15[%c24, %c0_6] : memref<72x1024xf32, #tpu.memory_space<vmem>>, vector<8x8xf32>
    tpu.vector_store %arg15[%c24, %c0_6], %8 {strides = array<i32>} : memref<72x1024xf32, #tpu.memory_space<vmem>>, vector<8x8xf32>,
    %10 = vector.extract_strided_slice %1 {offsets = [0, 32], sizes = [8, 8], strides = [1, 1]} : vector<8x64xf32> to vector<8x8xf32>
    %c32 = arith.constant 32 : index
    %c0_7 = arith.constant 0 : index
    %11 = vector.load %arg15[%c32, %c0_7] : memref<72x1024xf32, #tpu.memory_space<vmem>>, vector<8x8xf32>
    tpu.vector_store %arg15[%c32, %c0_7], %10 {strides = array<i32>} : memref<72x1024xf32, #tpu.memory_space<vmem>>, vector<8x8xf32>,
    %12 = vector.extract_strided_slice %1 {offsets = [0, 40], sizes = [8, 8], strides = [1, 1]} : vector<8x64xf32> to vector<8x8xf32>
    %c40 = arith.constant 40 : index
    %c0_8 = arith.constant 0 : index
    %13 = vector.load %arg15[%c40, %c0_8] : memref<72x1024xf32, #tpu.memory_space<vmem>>, vector<8x8xf32>
    tpu.vector_store %arg15[%c40, %c0_8], %12 {strides = array<i32>} : memref<72x1024xf32, #tpu.memory_space<vmem>>, vector<8x8xf32>,
    %14 = vector.extract_strided_slice %1 {offsets = [0, 48], sizes = [8, 8], strides = [1, 1]} : vector<8x64xf32> to vector<8x8xf32>
    %c48 = arith.constant 48 : index
    %c0_9 = arith.constant 0 : index
    %15 = vector.load %arg15[%c48, %c0_9] : memref<72x1024xf32, #tpu.memory_space<vmem>>, vector<8x8xf32>
    tpu.vector_store %arg15[%c48, %c0_9], %14 {strides = array<i32>} : memref<72x1024xf32, #tpu.memory_space<vmem>>, vector<8x8xf32>,
    %16 = vector.extract_strided_slice %1 {offsets = [0, 56], sizes = [8, 8], strides = [1, 1]} : vector<8x64xf32> to vector<8x8xf32>
    %c56 = arith.constant 56 : index
    %c0_10 = arith.constant 0 : index
    %17 = vector.load %arg15[%c56, %c0_10] : memref<72x1024xf32, #tpu.memory_space<vmem>>, vector<8x8xf32>
    tpu.vector_store %arg15[%c56, %c0_10], %16 {strides = array<i32>} : memref<72x1024xf32, #tpu.memory_space<vmem>>, vector<8x8xf32>,
    %c0_11 = arith.constant 0 : index
    %c0_12 = arith.constant 0 : index
    %18 = vector.load %arg15[%c0_11, %c0_12] : memref<72x1024xf32, #tpu.memory_space<vmem>>, vector<64x8xf32>
    %19 = arith.truncf %18 : vector<64x8xf32> to vector<64x8xbf16>
    %c0_13 = arith.constant 0 : index
    %c0_14 = arith.constant 0 : index
    %20 = vector.load %arg3[%c0_13, %c0_14] : memref<8x16xbf16, #tpu.memory_space<vmem>>, vector<8x16xbf16>
    %cst = arith.constant dense<0.000000e+00> : vector<64x16xf32>
    %21 = tpu.matmul %19, %20, %cst {dimension_numbers = #tpu.dot_dimension_numbers<[1], [0], [0], [1], [0, 0, 1, 1], [], []>} : vector<64x8xbf16>, vector<8x16xbf16>, vector<64x16xf32> -> vector<64x16xf32>
    %22 = vector.extract_strided_slice %21 {offsets = [0, 0], sizes = [8, 16], strides = [1, 1]} : vector<64x16xf32> to vector<8x16xf32>
    %c0_15 = arith.constant 0 : index
    %c0_16 = arith.constant 0 : index
    %23 = vector.load %arg16[%c0_15, %c0_16] : memref<8x1024xf32, #tpu.memory_space<vmem>>, vector<8x16xf32>
    tpu.vector_store %arg16[%c0_15, %c0_16], %22 {strides = array<i32>} : memref<8x1024xf32, #tpu.memory_space<vmem>>, vector<8x16xf32>,
    %24 = vector.extract_strided_slice %21 {offsets = [0, 0], sizes = [8, 16], strides = [1, 1]} : vector<64x16xf32> to vector<8x16xf32>
    %cst_17 = arith.constant 7.500000e-01 : f32
    %25 = vector.broadcast %cst_17 : f32 to vector<8x16xf32>
    %26 = arith.mulf %24, %25 : vector<8x16xf32>
    %27 = vector.extract_strided_slice %21 {offsets = [8, 0], sizes = [8, 16], strides = [1, 1]} : vector<64x16xf32> to vector<8x16xf32>
    %cst_18 = arith.constant 2.500000e-01 : f32
    %28 = vector.broadcast %cst_18 : f32 to vector<8x16xf32>
    %29 = arith.mulf %27, %28 : vector<8x16xf32>
    %30 = arith.addf %26, %29 : vector<8x16xf32>
    %c0_19 = arith.constant 0 : index
    %c16_20 = arith.constant 16 : index
    %31 = vector.load %arg16[%c0_19, %c16_20] : memref<8x1024xf32, #tpu.memory_space<vmem>>, vector<8x16xf32>
    tpu.vector_store %arg16[%c0_19, %c16_20], %30 {strides = array<i32>} : memref<8x1024xf32, #tpu.memory_space<vmem>>, vector<8x16xf32>,
    %32 = vector.extract_strided_slice %21 {offsets = [0, 0], sizes = [8, 16], strides = [1, 1]} : vector<64x16xf32> to vector<8x16xf32>
    %cst_21 = arith.constant 2.500000e-01 : f32
    %33 = vector.broadcast %cst_21 : f32 to vector<8x16xf32>
    %34 = arith.mulf %32, %33 : vector<8x16xf32>
    %35 = vector.extract_strided_slice %21 {offsets = [8, 0], sizes = [8, 16], strides = [1, 1]} : vector<64x16xf32> to vector<8x16xf32>
    %cst_22 = arith.constant 7.500000e-01 : f32
    %36 = vector.broadcast %cst_22 : f32 to vector<8x16xf32>
    %37 = arith.mulf %35, %36 : vector<8x16xf32>
    %38 = arith.addf %34, %37 : vector<8x16xf32>
    %c0_23 = arith.constant 0 : index
    %c32_24 = arith.constant 32 : index
    %39 = vector.load %arg16[%c0_23, %c32_24] : memref<8x1024xf32, #tpu.memory_space<vmem>>, vector<8x16xf32>
    tpu.vector_store %arg16[%c0_23, %c32_24], %38 {strides = array<i32>} : memref<8x1024xf32, #tpu.memory_space<vmem>>, vector<8x16xf32>,
    %40 = vector.extract_strided_slice %21 {offsets = [8, 0], sizes = [8, 16], strides = [1, 1]} : vector<64x16xf32> to vector<8x16xf32>
    %cst_25 = arith.constant 7.500000e-01 : f32
    %41 = vector.broadcast %cst_25 : f32 to vector<8x16xf32>
    %42 = arith.mulf %40, %41 : vector<8x16xf32>
    %43 = vector.extract_strided_slice %21 {offsets = [16, 0], sizes = [8, 16], strides = [1, 1]} : vector<64x16xf32> to vector<8x16xf32>
    %cst_26 = arith.constant 2.500000e-01 : f32
    %44 = vector.broadcast %cst_26 : f32 to vector<8x16xf32>
    %45 = arith.mulf %43, %44 : vector<8x16xf32>
    %46 = arith.addf %42, %45 : vector<8x16xf32>
    %c0_27 = arith.constant 0 : index
    %c48_28 = arith.constant 48 : index
    %47 = vector.load %arg16[%c0_27, %c48_28] : memref<8x1024xf32, #tpu.memory_space<vmem>>, vector<8x16xf32>
    tpu.vector_store %arg16[%c0_27, %c48_28], %46 {strides = array<i32>} : memref<8x1024xf32, #tpu.memory_space<vmem>>, vector<8x16xf32>,
    %48 = vector.extract_strided_slice %21 {offsets = [8, 0], sizes = [8, 16], strides = [1, 1]} : vector<64x16xf32> to vector<8x16xf32>
    %cst_29 = arith.constant 2.500000e-01 : f32
    %49 = vector.broadcast %cst_29 : f32 to vector<8x16xf32>
    %50 = arith.mulf %48, %49 : vector<8x16xf32>
    %51 = vector.extract_strided_slice %21 {offsets = [16, 0], sizes = [8, 16], strides = [1, 1]} : vector<64x16xf32> to vector<8x16xf32>
    %cst_30 = arith.constant 7.500000e-01 : f32
    %52 = vector.broadcast %cst_30 : f32 to vector<8x16xf32>
    %53 = arith.mulf %51, %52 : vector<8x16xf32>
    %54 = arith.addf %50, %53 : vector<8x16xf32>
    %c0_31 = arith.constant 0 : index
    %c64 = arith.constant 64 : index
    %55 = vector.load %arg16[%c0_31, %c64] : memref<8x1024xf32, #tpu.memory_space<vmem>>, vector<8x16xf32>
    tpu.vector_store %arg16[%c0_31, %c64], %54 {strides = array<i32>} : memref<8x1024xf32, #tpu.memory_space<vmem>>, vector<8x16xf32>,
    %56 = vector.extract_strided_slice %21 {offsets = [16, 0], sizes = [8, 16], strides = [1, 1]} : vector<64x16xf32> to vector<8x16xf32>
    %cst_32 = arith.constant 7.500000e-01 : f32
    %57 = vector.broadcast %cst_32 : f32 to vector<8x16xf32>
    %58 = arith.mulf %56, %57 : vector<8x16xf32>
    %59 = vector.extract_strided_slice %21 {offsets = [24, 0], sizes = [8, 16], strides = [1, 1]} : vector<64x16xf32> to vector<8x16xf32>
    %cst_33 = arith.constant 2.500000e-01 : f32
    %60 = vector.broadcast %cst_33 : f32 to vector<8x16xf32>
    %61 = arith.mulf %59, %60 : vector<8x16xf32>
    %62 = arith.addf %58, %61 : vector<8x16xf32>
    %c0_34 = arith.constant 0 : index
    %c80 = arith.constant 80 : index
    %63 = vector.load %arg16[%c0_34, %c80] : memref<8x1024xf32, #tpu.memory_space<vmem>>, vector<8x16xf32>
    tpu.vector_store %arg16[%c0_34, %c80], %62 {strides = array<i32>} : memref<8x1024xf32, #tpu.memory_space<vmem>>, vector<8x16xf32>,
    %64 = vector.extract_strided_slice %21 {offsets = [16, 0], sizes = [8, 16], strides = [1, 1]} : vector<64x16xf32> to vector<8x16xf32>
    %cst_35 = arith.constant 2.500000e-01 : f32
    %65 = vector.broadcast %cst_35 : f32 to vector<8x16xf32>
    %66 = arith.mulf %64, %65 : vector<8x16xf32>
    %67 = vector.extract_strided_slice %21 {offsets = [24, 0], sizes = [8, 16], strides = [1, 1]} : vector<64x16xf32> to vector<8x16xf32>
    %cst_36 = arith.constant 7.500000e-01 : f32
    %68 = vector.broadcast %cst_36 : f32 to vector<8x16xf32>
    %69 = arith.mulf %67, %68 : vector<8x16xf32>
    %70 = arith.addf %66, %69 : vector<8x16xf32>
    %c0_37 = arith.constant 0 : index
    %c96 = arith.constant 96 : index
    %71 = vector.load %arg16[%c0_37, %c96] : memref<8x1024xf32, #tpu.memory_space<vmem>>, vector<8x16xf32>
    tpu.vector_store %arg16[%c0_37, %c96], %70 {strides = array<i32>} : memref<8x1024xf32, #tpu.memory_space<vmem>>, vector<8x16xf32>,
    %72 = vector.extract_strided_slice %21 {offsets = [24, 0], sizes = [8, 16], strides = [1, 1]} : vector<64x16xf32> to vector<8x16xf32>
    %cst_38 = arith.constant 7.500000e-01 : f32
    %73 = vector.broadcast %cst_38 : f32 to vector<8x16xf32>
    %74 = arith.mulf %72, %73 : vector<8x16xf32>
    %75 = vector.extract_strided_slice %21 {offsets = [32, 0], sizes = [8, 16], strides = [1, 1]} : vector<64x16xf32> to vector<8x16xf32>
    %cst_39 = arith.constant 2.500000e-01 : f32
    %76 = vector.broadcast %cst_39 : f32 to vector<8x16xf32>
    %77 = arith.mulf %75, %76 : vector<8x16xf32>
    %78 = arith.addf %74, %77 : vector<8x16xf32>
    %c0_40 = arith.constant 0 : index
    %c112 = arith.constant 112 : index
    %79 = vector.load %arg16[%c0_40, %c112] : memref<8x1024xf32, #tpu.memory_space<vmem>>, vector<8x16xf32>
    tpu.vector_store %arg16[%c0_40, %c112], %78 {strides = array<i32>} : memref<8x1024xf32, #tpu.memory_space<vmem>>, vector<8x16xf32>,
    %80 = vector.extract_strided_slice %21 {offsets = [24, 0], sizes = [8, 16], strides = [1, 1]} : vector<64x16xf32> to vector<8x16xf32>
    %cst_41 = arith.constant 2.500000e-01 : f32
    %81 = vector.broadcast %cst_41 : f32 to vector<8x16xf32>
    %82 = arith.mulf %80, %81 : vector<8x16xf32>
    %83 = vector.extract_strided_slice %21 {offsets = [32, 0], sizes = [8, 16], strides = [1, 1]} : vector<64x16xf32> to vector<8x16xf32>
    %cst_42 = arith.constant 7.500000e-01 : f32
    %84 = vector.broadcast %cst_42 : f32 to vector<8x16xf32>
    %85 = arith.mulf %83, %84 : vector<8x16xf32>
    %86 = arith.addf %82, %85 : vector<8x16xf32>
    %c0_43 = arith.constant 0 : index
    %c128 = arith.constant 128 : index
    %87 = vector.load %arg16[%c0_43, %c128] : memref<8x1024xf32, #tpu.memory_space<vmem>>, vector<8x16xf32>
    tpu.vector_store %arg16[%c0_43, %c128], %86 {strides = array<i32>} : memref<8x1024xf32, #tpu.memory_space<vmem>>, vector<8x16xf32>,
    %88 = vector.extract_strided_slice %21 {offsets = [32, 0], sizes = [8, 16], strides = [1, 1]} : vector<64x16xf32> to vector<8x16xf32>
    %cst_44 = arith.constant 7.500000e-01 : f32
    %89 = vector.broadcast %cst_44 : f32 to vector<8x16xf32>
    %90 = arith.mulf %88, %89 : vector<8x16xf32>
    %91 = vector.extract_strided_slice %21 {offsets = [40, 0], sizes = [8, 16], strides = [1, 1]} : vector<64x16xf32> to vector<8x16xf32>
    %cst_45 = arith.constant 2.500000e-01 : f32
    %92 = vector.broadcast %cst_45 : f32 to vector<8x16xf32>
    %93 = arith.mulf %91, %92 : vector<8x16xf32>
    %94 = arith.addf %90, %93 : vector<8x16xf32>
    %c0_46 = arith.constant 0 : index
    %c144 = arith.constant 144 : index
    %95 = vector.load %arg16[%c0_46, %c144] : memref<8x1024xf32, #tpu.memory_space<vmem>>, vector<8x16xf32>
    tpu.vector_store %arg16[%c0_46, %c144], %94 {strides = array<i32>} : memref<8x1024xf32, #tpu.memory_space<vmem>>, vector<8x16xf32>,
    %96 = vector.extract_strided_slice %21 {offsets = [32, 0], sizes = [8, 16], strides = [1, 1]} : vector<64x16xf32> to vector<8x16xf32>
    %cst_47 = arith.constant 2.500000e-01 : f32
    %97 = vector.broadcast %cst_47 : f32 to vector<8x16xf32>
    %98 = arith.mulf %96, %97 : vector<8x16xf32>
    %99 = vector.extract_strided_slice %21 {offsets = [40, 0], sizes = [8, 16], strides = [1, 1]} : vector<64x16xf32> to vector<8x16xf32>
    %cst_48 = arith.constant 7.500000e-01 : f32
    %100 = vector.broadcast %cst_48 : f32 to vector<8x16xf32>
    %101 = arith.mulf %99, %100 : vector<8x16xf32>
    %102 = arith.addf %98, %101 : vector<8x16xf32>
    %c0_49 = arith.constant 0 : index
    %c160 = arith.constant 160 : index
    %103 = vector.load %arg16[%c0_49, %c160] : memref<8x1024xf32, #tpu.memory_space<vmem>>, vector<8x16xf32>
    tpu.vector_store %arg16[%c0_49, %c160], %102 {strides = array<i32>} : memref<8x1024xf32, #tpu.memory_space<vmem>>, vector<8x16xf32>,
    %104 = vector.extract_strided_slice %21 {offsets = [40, 0], sizes = [8, 16], strides = [1, 1]} : vector<64x16xf32> to vector<8x16xf32>
    %cst_50 = arith.constant 7.500000e-01 : f32
    %105 = vector.broadcast %cst_50 : f32 to vector<8x16xf32>
    %106 = arith.mulf %104, %105 : vector<8x16xf32>
    %107 = vector.extract_strided_slice %21 {offsets = [48, 0], sizes = [8, 16], strides = [1, 1]} : vector<64x16xf32> to vector<8x16xf32>
    %cst_51 = arith.constant 2.500000e-01 : f32
    %108 = vector.broadcast %cst_51 : f32 to vector<8x16xf32>
    %109 = arith.mulf %107, %108 : vector<8x16xf32>
    %110 = arith.addf %106, %109 : vector<8x16xf32>
    %c0_52 = arith.constant 0 : index
    %c176 = arith.constant 176 : index
    %111 = vector.load %arg16[%c0_52, %c176] : memref<8x1024xf32, #tpu.memory_space<vmem>>, vector<8x16xf32>
    tpu.vector_store %arg16[%c0_52, %c176], %110 {strides = array<i32>} : memref<8x1024xf32, #tpu.memory_space<vmem>>, vector<8x16xf32>,
    %112 = vector.extract_strided_slice %21 {offsets = [40, 0], sizes = [8, 16], strides = [1, 1]} : vector<64x16xf32> to vector<8x16xf32>
    %cst_53 = arith.constant 2.500000e-01 : f32
    %113 = vector.broadcast %cst_53 : f32 to vector<8x16xf32>
    %114 = arith.mulf %112, %113 : vector<8x16xf32>
    %115 = vector.extract_strided_slice %21 {offsets = [48, 0], sizes = [8, 16], strides = [1, 1]} : vector<64x16xf32> to vector<8x16xf32>
    %cst_54 = arith.constant 7.500000e-01 : f32
    %116 = vector.broadcast %cst_54 : f32 to vector<8x16xf32>
    %117 = arith.mulf %115, %116 : vector<8x16xf32>
    %118 = arith.addf %114, %117 : vector<8x16xf32>
    %c0_55 = arith.constant 0 : index
    %c192 = arith.constant 192 : index
    %119 = vector.load %arg16[%c0_55, %c192] : memref<8x1024xf32, #tpu.memory_space<vmem>>, vector<8x16xf32>
    tpu.vector_store %arg16[%c0_55, %c192], %118 {strides = array<i32>} : memref<8x1024xf32, #tpu.memory_space<vmem>>, vector<8x16xf32>,
    %120 = vector.extract_strided_slice %21 {offsets = [48, 0], sizes = [8, 16], strides = [1, 1]} : vector<64x16xf32> to vector<8x16xf32>
    %cst_56 = arith.constant 7.500000e-01 : f32
    %121 = vector.broadcast %cst_56 : f32 to vector<8x16xf32>
    %122 = arith.mulf %120, %121 : vector<8x16xf32>
    %123 = vector.extract_strided_slice %21 {offsets = [56, 0], sizes = [8, 16], strides = [1, 1]} : vector<64x16xf32> to vector<8x16xf32>
    %cst_57 = arith.constant 2.500000e-01 : f32
    %124 = vector.broadcast %cst_57 : f32 to vector<8x16xf32>
    %125 = arith.mulf %123, %124 : vector<8x16xf32>
    %126 = arith.addf %122, %125 : vector<8x16xf32>
    %c0_58 = arith.constant 0 : index
    %c208 = arith.constant 208 : index
    %127 = vector.load %arg16[%c0_58, %c208] : memref<8x1024xf32, #tpu.memory_space<vmem>>, vector<8x16xf32>
    tpu.vector_store %arg16[%c0_58, %c208], %126 {strides = array<i32>} : memref<8x1024xf32, #tpu.memory_space<vmem>>, vector<8x16xf32>,
    %128 = vector.extract_strided_slice %21 {offsets = [48, 0], sizes = [8, 16], strides = [1, 1]} : vector<64x16xf32> to vector<8x16xf32>
    %cst_59 = arith.constant 2.500000e-01 : f32
    %129 = vector.broadcast %cst_59 : f32 to vector<8x16xf32>
    %130 = arith.mulf %128, %129 : vector<8x16xf32>
    %131 = vector.extract_strided_slice %21 {offsets = [56, 0], sizes = [8, 16], strides = [1, 1]} : vector<64x16xf32> to vector<8x16xf32>
    %cst_60 = arith.constant 7.500000e-01 : f32
    %132 = vector.broadcast %cst_60 : f32 to vector<8x16xf32>
    %133 = arith.mulf %131, %132 : vector<8x16xf32>
    %134 = arith.addf %130, %133 : vector<8x16xf32>
    %c0_61 = arith.constant 0 : index
    %c224 = arith.constant 224 : index
    %135 = vector.load %arg16[%c0_61, %c224] : memref<8x1024xf32, #tpu.memory_space<vmem>>, vector<8x16xf32>
    tpu.vector_store %arg16[%c0_61, %c224], %134 {strides = array<i32>} : memref<8x1024xf32, #tpu.memory_space<vmem>>, vector<8x16xf32>,
    %136 = vector.extract_strided_slice %21 {offsets = [56, 0], sizes = [8, 16], strides = [1, 1]} : vector<64x16xf32> to vector<8x16xf32>
    %c0_62 = arith.constant 0 : index
    %c240 = arith.constant 240 : index
    %137 = vector.load %arg16[%c0_62, %c240] : memref<8x1024xf32, #tpu.memory_space<vmem>>, vector<8x16xf32>
    tpu.vector_store %arg16[%c0_62, %c240], %136 {strides = array<i32>} : memref<8x1024xf32, #tpu.memory_space<vmem>>, vector<8x16xf32>,
    %c0_63 = arith.constant 0 : index
    %c0_64 = arith.constant 0 : index
    %138 = vector.load %arg16[%c0_63, %c0_64] : memref<8x1024xf32, #tpu.memory_space<vmem>>, vector<8x256xf32>
    %c0_65 = arith.constant 0 : index
    %c0_66 = arith.constant 0 : index
    %139 = vector.load %arg4[%c0_65, %c0_66] : memref<2x256xf32, #tpu.memory_space<vmem>>, vector<1x256xf32>
    %c1 = arith.constant 1 : index
    %c0_67 = arith.constant 0 : index
    %140 = vector.load %arg4[%c1, %c0_67] : memref<2x256xf32, #tpu.memory_space<vmem>>, vector<1x256xf32>
    %cst_68 = arith.constant 0.000000e+00 : f32
    %141 = vector.broadcast %cst_68 : f32 to vector<8x128xf32>
    %142 = tpu.concatenate %141, %138, %141 in 1 : vector<8x128xf32>, vector<8x256xf32>, vector<8x128xf32> -> vector<8x512xf32>
    %143 = vector.extract_strided_slice %142 {offsets = [0, 111], sizes = [8, 256], strides = [1, 1]} : vector<8x512xf32> to vector<8x256xf32>
    %144 = vector.broadcast %139 : vector<1x256xf32> to vector<8x256xf32>
    %145 = arith.mulf %143, %144 : vector<8x256xf32>
    %c0_69 = arith.constant 0 : index
    %c0_70 = arith.constant 0 : index
    %146 = vector.load %arg15[%c0_69, %c0_70] : memref<72x1024xf32, #tpu.memory_space<vmem>>, vector<8x256xf32>
    tpu.vector_store %arg15[%c0_69, %c0_70], %145 {strides = array<i32>} : memref<72x1024xf32, #tpu.memory_space<vmem>>, vector<8x256xf32>,
    %147 = vector.extract_strided_slice %142 {offsets = [0, 112], sizes = [8, 256], strides = [1, 1]} : vector<8x512xf32> to vector<8x256xf32>
    %c8_71 = arith.constant 8 : index
    %c0_72 = arith.constant 0 : index
    %148 = vector.load %arg15[%c8_71, %c0_72] : memref<72x1024xf32, #tpu.memory_space<vmem>>, vector<8x256xf32>
    tpu.vector_store %arg15[%c8_71, %c0_72], %147 {strides = array<i32>} : memref<72x1024xf32, #tpu.memory_space<vmem>>, vector<8x256xf32>,
    %149 = vector.extract_strided_slice %142 {offsets = [0, 113], sizes = [8, 256], strides = [1, 1]} : vector<8x512xf32> to vector<8x256xf32>
    %150 = vector.broadcast %140 : vector<1x256xf32> to vector<8x256xf32>
    %151 = arith.mulf %149, %150 : vector<8x256xf32>
    %c16_73 = arith.constant 16 : index
    %c0_74 = arith.constant 0 : index
    %152 = vector.load %arg15[%c16_73, %c0_74] : memref<72x1024xf32, #tpu.memory_space<vmem>>, vector<8x256xf32>
    tpu.vector_store %arg15[%c16_73, %c0_74], %151 {strides = array<i32>} : memref<72x1024xf32, #tpu.memory_space<vmem>>, vector<8x256xf32>,
    %153 = vector.extract_strided_slice %142 {offsets = [0, 127], sizes = [8, 256], strides = [1, 1]} : vector<8x512xf32> to vector<8x256xf32>
    %154 = vector.broadcast %139 : vector<1x256xf32> to vector<8x256xf32>
    %155 = arith.mulf %153, %154 : vector<8x256xf32>
    %c24_75 = arith.constant 24 : index
    %c0_76 = arith.constant 0 : index
    %156 = vector.load %arg15[%c24_75, %c0_76] : memref<72x1024xf32, #tpu.memory_space<vmem>>, vector<8x256xf32>
    tpu.vector_store %arg15[%c24_75, %c0_76], %155 {strides = array<i32>} : memref<72x1024xf32, #tpu.memory_space<vmem>>, vector<8x256xf32>,
    %157 = vector.extract_strided_slice %142 {offsets = [0, 128], sizes = [8, 256], strides = [1, 1]} : vector<8x512xf32> to vector<8x256xf32>
    %c32_77 = arith.constant 32 : index
    %c0_78 = arith.constant 0 : index
    %158 = vector.load %arg15[%c32_77, %c0_78] : memref<72x1024xf32, #tpu.memory_space<vmem>>, vector<8x256xf32>
    tpu.vector_store %arg15[%c32_77, %c0_78], %157 {strides = array<i32>} : memref<72x1024xf32, #tpu.memory_space<vmem>>, vector<8x256xf32>,
    %159 = vector.extract_strided_slice %142 {offsets = [0, 129], sizes = [8, 256], strides = [1, 1]} : vector<8x512xf32> to vector<8x256xf32>
    %160 = vector.broadcast %140 : vector<1x256xf32> to vector<8x256xf32>
    %161 = arith.mulf %159, %160 : vector<8x256xf32>
    %c40_79 = arith.constant 40 : index
    %c0_80 = arith.constant 0 : index
    %162 = vector.load %arg15[%c40_79, %c0_80] : memref<72x1024xf32, #tpu.memory_space<vmem>>, vector<8x256xf32>
    tpu.vector_store %arg15[%c40_79, %c0_80], %161 {strides = array<i32>} : memref<72x1024xf32, #tpu.memory_space<vmem>>, vector<8x256xf32>,
    %163 = vector.extract_strided_slice %142 {offsets = [0, 143], sizes = [8, 256], strides = [1, 1]} : vector<8x512xf32> to vector<8x256xf32>
    %164 = vector.broadcast %139 : vector<1x256xf32> to vector<8x256xf32>
    %165 = arith.mulf %163, %164 : vector<8x256xf32>
    %c48_81 = arith.constant 48 : index
    %c0_82 = arith.constant 0 : index
    %166 = vector.load %arg15[%c48_81, %c0_82] : memref<72x1024xf32, #tpu.memory_space<vmem>>, vector<8x256xf32>
    tpu.vector_store %arg15[%c48_81, %c0_82], %165 {strides = array<i32>} : memref<72x1024xf32, #tpu.memory_space<vmem>>, vector<8x256xf32>,
    %167 = vector.extract_strided_slice %142 {offsets = [0, 144], sizes = [8, 256], strides = [1, 1]} : vector<8x512xf32> to vector<8x256xf32>
    %c56_83 = arith.constant 56 : index
    %c0_84 = arith.constant 0 : index
    %168 = vector.load %arg15[%c56_83, %c0_84] : memref<72x1024xf32, #tpu.memory_space<vmem>>, vector<8x256xf32>
    tpu.vector_store %arg15[%c56_83, %c0_84], %167 {strides = array<i32>} : memref<72x1024xf32, #tpu.memory_space<vmem>>, vector<8x256xf32>,
    %169 = vector.extract_strided_slice %142 {offsets = [0, 145], sizes = [8, 256], strides = [1, 1]} : vector<8x512xf32> to vector<8x256xf32>
    %170 = vector.broadcast %140 : vector<1x256xf32> to vector<8x256xf32>
    %171 = arith.mulf %169, %170 : vector<8x256xf32>
    %c64_85 = arith.constant 64 : index
    %c0_86 = arith.constant 0 : index
    %172 = vector.load %arg15[%c64_85, %c0_86] : memref<72x1024xf32, #tpu.memory_space<vmem>>, vector<8x256xf32>
    tpu.vector_store %arg15[%c64_85, %c0_86], %171 {strides = array<i32>} : memref<72x1024xf32, #tpu.memory_space<vmem>>, vector<8x256xf32>,
    %c0_87 = arith.constant 0 : index
    %c0_88 = arith.constant 0 : index
    %173 = vector.load %arg15[%c0_87, %c0_88] : memref<72x1024xf32, #tpu.memory_space<vmem>>, vector<72x256xf32>
    %174 = arith.truncf %173 : vector<72x256xf32> to vector<72x256xbf16>
    %c0_89 = arith.constant 0 : index
    %c0_90 = arith.constant 0 : index
    %175 = vector.load %arg5[%c0_89, %c0_90] : memref<4x72xbf16, #tpu.memory_space<vmem>>, vector<4x72xbf16>
    %cst_91 = arith.constant dense<0.000000e+00> : vector<4x256xf32>
    %176 = tpu.matmul %175, %174, %cst_91 {dimension_numbers = #tpu.dot_dimension_numbers<[1], [0], [0], [1], [0, 0, 1, 1], [], []>} : vector<4x72xbf16>, vector<72x256xbf16>, vector<4x256xf32> -> vector<4x256xf32>
    %c0_92 = arith.constant 0 : index
    %c0_93 = arith.constant 0 : index
    %c0_94 = arith.constant 0 : index
    %177 = vector.load %arg2[%c0_92, %c0_93, %c0_94] : memref<1x4x256xf32, #tpu.memory_space<vmem>>, vector<1x4x256xf32>
    %178 = vector.shape_cast %177 : vector<1x4x256xf32> to vector<4x256xf32>
    %cst_95 = arith.constant 0.000000e+00 : f32
    %179 = vector.broadcast %cst_95 : f32 to vector<4x128xf32>
    %180 = tpu.concatenate %179, %176, %179 in 1 : vector<4x128xf32>, vector<4x256xf32>, vector<4x128xf32> -> vector<4x512xf32>
    %cst_96 = arith.constant 0.000000e+00 : f32
    %181 = vector.broadcast %cst_96 : f32 to vector<4x128xf32>
    %182 = tpu.concatenate %181, %178, %181 in 1 : vector<4x128xf32>, vector<4x256xf32>, vector<4x128xf32> -> vector<4x512xf32>
    %183 = vector.extract_strided_slice %180 {offsets = [0, 111], sizes = [4, 256], strides = [1, 1]} : vector<4x512xf32> to vector<4x256xf32>
    %184 = vector.broadcast %139 : vector<1x256xf32> to vector<4x256xf32>
    %185 = arith.mulf %183, %184 : vector<4x256xf32>
    %c0_97 = arith.constant 0 : index
    %c0_98 = arith.constant 0 : index
    %186 = vector.load %arg15[%c0_97, %c0_98] : memref<72x1024xf32, #tpu.memory_space<vmem>>, vector<4x256xf32>
    tpu.vector_store %arg15[%c0_97, %c0_98], %185 {strides = array<i32>} : memref<72x1024xf32, #tpu.memory_space<vmem>>, vector<4x256xf32>,
    %187 = vector.extract_strided_slice %182 {offsets = [0, 111], sizes = [4, 256], strides = [1, 1]} : vector<4x512xf32> to vector<4x256xf32>
    %188 = vector.broadcast %139 : vector<1x256xf32> to vector<4x256xf32>
    %189 = arith.mulf %187, %188 : vector<4x256xf32>
    %c4 = arith.constant 4 : index
    %c0_99 = arith.constant 0 : index
    %190 = vector.load %arg15[%c4, %c0_99] : memref<72x1024xf32, #tpu.memory_space<vmem>>, vector<4x256xf32>
    tpu.vector_store %arg15[%c4, %c0_99], %189 {strides = array<i32>} : memref<72x1024xf32, #tpu.memory_space<vmem>>, vector<4x256xf32>,
    %191 = vector.extract_strided_slice %180 {offsets = [0, 112], sizes = [4, 256], strides = [1, 1]} : vector<4x512xf32> to vector<4x256xf32>
    %c8_100 = arith.constant 8 : index
    %c0_101 = arith.constant 0 : index
    %192 = vector.load %arg15[%c8_100, %c0_101] : memref<72x1024xf32, #tpu.memory_space<vmem>>, vector<4x256xf32>
    tpu.vector_store %arg15[%c8_100, %c0_101], %191 {strides = array<i32>} : memref<72x1024xf32, #tpu.memory_space<vmem>>, vector<4x256xf32>,
    %193 = vector.extract_strided_slice %182 {offsets = [0, 112], sizes = [4, 256], strides = [1, 1]} : vector<4x512xf32> to vector<4x256xf32>
    %c12 = arith.constant 12 : index
    %c0_102 = arith.constant 0 : index
    %194 = vector.load %arg15[%c12, %c0_102] : memref<72x1024xf32, #tpu.memory_space<vmem>>, vector<4x256xf32>
    tpu.vector_store %arg15[%c12, %c0_102], %193 {strides = array<i32>} : memref<72x1024xf32, #tpu.memory_space<vmem>>, vector<4x256xf32>,
    %195 = vector.extract_strided_slice %180 {offsets = [0, 113], sizes = [4, 256], strides = [1, 1]} : vector<4x512xf32> to vector<4x256xf32>
    %196 = vector.broadcast %140 : vector<1x256xf32> to vector<4x256xf32>
    %197 = arith.mulf %195, %196 : vector<4x256xf32>
    %c16_103 = arith.constant 16 : index
    %c0_104 = arith.constant 0 : index
    %198 = vector.load %arg15[%c16_103, %c0_104] : memref<72x1024xf32, #tpu.memory_space<vmem>>, vector<4x256xf32>
    tpu.vector_store %arg15[%c16_103, %c0_104], %197 {strides = array<i32>} : memref<72x1024xf32, #tpu.memory_space<vmem>>, vector<4x256xf32>,
    %199 = vector.extract_strided_slice %182 {offsets = [0, 113], sizes = [4, 256], strides = [1, 1]} : vector<4x512xf32> to vector<4x256xf32>
    %200 = vector.broadcast %140 : vector<1x256xf32> to vector<4x256xf32>
    %201 = arith.mulf %199, %200 : vector<4x256xf32>
    %c20 = arith.constant 20 : index
    %c0_105 = arith.constant 0 : index
    %202 = vector.load %arg15[%c20, %c0_105] : memref<72x1024xf32, #tpu.memory_space<vmem>>, vector<4x256xf32>
    tpu.vector_store %arg15[%c20, %c0_105], %201 {strides = array<i32>} : memref<72x1024xf32, #tpu.memory_space<vmem>>, vector<4x256xf32>,
    %203 = vector.extract_strided_slice %180 {offsets = [0, 127], sizes = [4, 256], strides = [1, 1]} : vector<4x512xf32> to vector<4x256xf32>
    %204 = vector.broadcast %139 : vector<1x256xf32> to vector<4x256xf32>
    %205 = arith.mulf %203, %204 : vector<4x256xf32>
    %c24_106 = arith.constant 24 : index
    %c0_107 = arith.constant 0 : index
    %206 = vector.load %arg15[%c24_106, %c0_107] : memref<72x1024xf32, #tpu.memory_space<vmem>>, vector<4x256xf32>
    tpu.vector_store %arg15[%c24_106, %c0_107], %205 {strides = array<i32>} : memref<72x1024xf32, #tpu.memory_space<vmem>>, vector<4x256xf32>,
    %207 = vector.extract_strided_slice %182 {offsets = [0, 127], sizes = [4, 256], strides = [1, 1]} : vector<4x512xf32> to vector<4x256xf32>
    %208 = vector.broadcast %139 : vector<1x256xf32> to vector<4x256xf32>
    %209 = arith.mulf %207, %208 : vector<4x256xf32>
    %c28 = arith.constant 28 : index
    %c0_108 = arith.constant 0 : index
    %210 = vector.load %arg15[%c28, %c0_108] : memref<72x1024xf32, #tpu.memory_space<vmem>>, vector<4x256xf32>
    tpu.vector_store %arg15[%c28, %c0_108], %209 {strides = array<i32>} : memref<72x1024xf32, #tpu.memory_space<vmem>>, vector<4x256xf32>,
    %211 = vector.extract_strided_slice %180 {offsets = [0, 128], sizes = [4, 256], strides = [1, 1]} : vector<4x512xf32> to vector<4x256xf32>
    %c32_109 = arith.constant 32 : index
    %c0_110 = arith.constant 0 : index
    %212 = vector.load %arg15[%c32_109, %c0_110] : memref<72x1024xf32, #tpu.memory_space<vmem>>, vector<4x256xf32>
    tpu.vector_store %arg15[%c32_109, %c0_110], %211 {strides = array<i32>} : memref<72x1024xf32, #tpu.memory_space<vmem>>, vector<4x256xf32>,
    %213 = vector.extract_strided_slice %182 {offsets = [0, 128], sizes = [4, 256], strides = [1, 1]} : vector<4x512xf32> to vector<4x256xf32>
    %c36 = arith.constant 36 : index
    %c0_111 = arith.constant 0 : index
    %214 = vector.load %arg15[%c36, %c0_111] : memref<72x1024xf32, #tpu.memory_space<vmem>>, vector<4x256xf32>
    tpu.vector_store %arg15[%c36, %c0_111], %213 {strides = array<i32>} : memref<72x1024xf32, #tpu.memory_space<vmem>>, vector<4x256xf32>,
    %215 = vector.extract_strided_slice %180 {offsets = [0, 129], sizes = [4, 256], strides = [1, 1]} : vector<4x512xf32> to vector<4x256xf32>
    %216 = vector.broadcast %140 : vector<1x256xf32> to vector<4x256xf32>
    %217 = arith.mulf %215, %216 : vector<4x256xf32>
    %c40_112 = arith.constant 40 : index
    %c0_113 = arith.constant 0 : index
    %218 = vector.load %arg15[%c40_112, %c0_113] : memref<72x1024xf32, #tpu.memory_space<vmem>>, vector<4x256xf32>
    tpu.vector_store %arg15[%c40_112, %c0_113], %217 {strides = array<i32>} : memref<72x1024xf32, #tpu.memory_space<vmem>>, vector<4x256xf32>,
    %219 = vector.extract_strided_slice %182 {offsets = [0, 129], sizes = [4, 256], strides = [1, 1]} : vector<4x512xf32> to vector<4x256xf32>
    %220 = vector.broadcast %140 : vector<1x256xf32> to vector<4x256xf32>
    %221 = arith.mulf %219, %220 : vector<4x256xf32>
    %c44 = arith.constant 44 : index
    %c0_114 = arith.constant 0 : index
    %222 = vector.load %arg15[%c44, %c0_114] : memref<72x1024xf32, #tpu.memory_space<vmem>>, vector<4x256xf32>
    tpu.vector_store %arg15[%c44, %c0_114], %221 {strides = array<i32>} : memref<72x1024xf32, #tpu.memory_space<vmem>>, vector<4x256xf32>,
    %223 = vector.extract_strided_slice %180 {offsets = [0, 143], sizes = [4, 256], strides = [1, 1]} : vector<4x512xf32> to vector<4x256xf32>
    %224 = vector.broadcast %139 : vector<1x256xf32> to vector<4x256xf32>
    %225 = arith.mulf %223, %224 : vector<4x256xf32>
    %c48_115 = arith.constant 48 : index
    %c0_116 = arith.constant 0 : index
    %226 = vector.load %arg15[%c48_115, %c0_116] : memref<72x1024xf32, #tpu.memory_space<vmem>>, vector<4x256xf32>
    tpu.vector_store %arg15[%c48_115, %c0_116], %225 {strides = array<i32>} : memref<72x1024xf32, #tpu.memory_space<vmem>>, vector<4x256xf32>,
    %227 = vector.extract_strided_slice %182 {offsets = [0, 143], sizes = [4, 256], strides = [1, 1]} : vector<4x512xf32> to vector<4x256xf32>
    %228 = vector.broadcast %139 : vector<1x256xf32> to vector<4x256xf32>
    %229 = arith.mulf %227, %228 : vector<4x256xf32>
    %c52 = arith.constant 52 : index
    %c0_117 = arith.constant 0 : index
    %230 = vector.load %arg15[%c52, %c0_117] : memref<72x1024xf32, #tpu.memory_space<vmem>>, vector<4x256xf32>
    tpu.vector_store %arg15[%c52, %c0_117], %229 {strides = array<i32>} : memref<72x1024xf32, #tpu.memory_space<vmem>>, vector<4x256xf32>,
    %231 = vector.extract_strided_slice %180 {offsets = [0, 144], sizes = [4, 256], strides = [1, 1]} : vector<4x512xf32> to vector<4x256xf32>
    %c56_118 = arith.constant 56 : index
    %c0_119 = arith.constant 0 : index
    %232 = vector.load %arg15[%c56_118, %c0_119] : memref<72x1024xf32, #tpu.memory_space<vmem>>, vector<4x256xf32>
    tpu.vector_store %arg15[%c56_118, %c0_119], %231 {strides = array<i32>} : memref<72x1024xf32, #tpu.memory_space<vmem>>, vector<4x256xf32>,
    %233 = vector.extract_strided_slice %182 {offsets = [0, 144], sizes = [4, 256], strides = [1, 1]} : vector<4x512xf32> to vector<4x256xf32>
    %c60 = arith.constant 60 : index
    %c0_120 = arith.constant 0 : index
    %234 = vector.load %arg15[%c60, %c0_120] : memref<72x1024xf32, #tpu.memory_space<vmem>>, vector<4x256xf32>
    tpu.vector_store %arg15[%c60, %c0_120], %233 {strides = array<i32>} : memref<72x1024xf32, #tpu.memory_space<vmem>>, vector<4x256xf32>,
    %235 = vector.extract_strided_slice %180 {offsets = [0, 145], sizes = [4, 256], strides = [1, 1]} : vector<4x512xf32> to vector<4x256xf32>
    %236 = vector.broadcast %140 : vector<1x256xf32> to vector<4x256xf32>
    %237 = arith.mulf %235, %236 : vector<4x256xf32>
    %c64_121 = arith.constant 64 : index
    %c0_122 = arith.constant 0 : index
    %238 = vector.load %arg15[%c64_121, %c0_122] : memref<72x1024xf32, #tpu.memory_space<vmem>>, vector<4x256xf32>
    tpu.vector_store %arg15[%c64_121, %c0_122], %237 {strides = array<i32>} : memref<72x1024xf32, #tpu.memory_space<vmem>>, vector<4x256xf32>,
    %239 = vector.extract_strided_slice %182 {offsets = [0, 145], sizes = [4, 256], strides = [1, 1]} : vector<4x512xf32> to vector<4x256xf32>
    %240 = vector.broadcast %140 : vector<1x256xf32> to vector<4x256xf32>
    %241 = arith.mulf %239, %240 : vector<4x256xf32>
    %c68 = arith.constant 68 : index
    %c0_123 = arith.constant 0 : index
    %242 = vector.load %arg15[%c68, %c0_123] : memref<72x1024xf32, #tpu.memory_space<vmem>>, vector<4x256xf32>
    tpu.vector_store %arg15[%c68, %c0_123], %241 {strides = array<i32>} : memref<72x1024xf32, #tpu.memory_space<vmem>>, vector<4x256xf32>,
    %c0_124 = arith.constant 0 : index
    %c0_125 = arith.constant 0 : index
    %243 = vector.load %arg15[%c0_124, %c0_125] : memref<72x1024xf32, #tpu.memory_space<vmem>>, vector<72x256xf32>
    %244 = arith.truncf %243 : vector<72x256xf32> to vector<72x256xbf16>
    %c0_126 = arith.constant 0 : index
    %c0_127 = arith.constant 0 : index
    %245 = vector.load %arg6[%c0_126, %c0_127] : memref<4x72xbf16, #tpu.memory_space<vmem>>, vector<4x72xbf16>
    %cst_128 = arith.constant dense<0.000000e+00> : vector<4x256xf32>
    %246 = tpu.matmul %245, %244, %cst_128 {dimension_numbers = #tpu.dot_dimension_numbers<[1], [0], [0], [1], [0, 0, 1, 1], [], []>} : vector<4x72xbf16>, vector<72x256xbf16>, vector<4x256xf32> -> vector<4x256xf32>
    %cst_129 = arith.constant 0.000000e+00 : f32
    %247 = vector.broadcast %cst_129 : f32 to vector<4x256xf32>
    %248 = arith.cmpf oge, %246, %247 : vector<4x256xf32>
    %cst_130 = arith.constant 0.00999999977 : f32
    %249 = vector.broadcast %cst_130 : f32 to vector<4x256xf32>
    %250 = arith.mulf %249, %246 : vector<4x256xf32>
    %251 = arith.select %248, %246, %250 : vector<4x256xi1>, vector<4x256xf32>
    %cst_131 = arith.constant 0.000000e+00 : f32
    %252 = vector.broadcast %cst_131 : f32 to vector<4x128xf32>
    %253 = tpu.concatenate %252, %251, %252 in 1 : vector<4x128xf32>, vector<4x256xf32>, vector<4x128xf32> -> vector<4x512xf32>
    %254 = vector.extract_strided_slice %253 {offsets = [0, 111], sizes = [4, 256], strides = [1, 1]} : vector<4x512xf32> to vector<4x256xf32>
    %255 = vector.broadcast %139 : vector<1x256xf32> to vector<4x256xf32>
    %256 = arith.mulf %254, %255 : vector<4x256xf32>
    %c0_132 = arith.constant 0 : index
    %c0_133 = arith.constant 0 : index
    %257 = vector.load %arg15[%c0_132, %c0_133] : memref<72x1024xf32, #tpu.memory_space<vmem>>, vector<4x256xf32>
    tpu.vector_store %arg15[%c0_132, %c0_133], %256 {strides = array<i32>} : memref<72x1024xf32, #tpu.memory_space<vmem>>, vector<4x256xf32>,
    %258 = vector.extract_strided_slice %253 {offsets = [0, 112], sizes = [4, 256], strides = [1, 1]} : vector<4x512xf32> to vector<4x256xf32>
    %c4_134 = arith.constant 4 : index
    %c0_135 = arith.constant 0 : index
    %259 = vector.load %arg15[%c4_134, %c0_135] : memref<72x1024xf32, #tpu.memory_space<vmem>>, vector<4x256xf32>
    tpu.vector_store %arg15[%c4_134, %c0_135], %258 {strides = array<i32>} : memref<72x1024xf32, #tpu.memory_space<vmem>>, vector<4x256xf32>,
    %260 = vector.extract_strided_slice %253 {offsets = [0, 113], sizes = [4, 256], strides = [1, 1]} : vector<4x512xf32> to vector<4x256xf32>
    %261 = vector.broadcast %140 : vector<1x256xf32> to vector<4x256xf32>
    %262 = arith.mulf %260, %261 : vector<4x256xf32>
    %c8_136 = arith.constant 8 : index
    %c0_137 = arith.constant 0 : index
    %263 = vector.load %arg15[%c8_136, %c0_137] : memref<72x1024xf32, #tpu.memory_space<vmem>>, vector<4x256xf32>
    tpu.vector_store %arg15[%c8_136, %c0_137], %262 {strides = array<i32>} : memref<72x1024xf32, #tpu.memory_space<vmem>>, vector<4x256xf32>,
    %264 = vector.extract_strided_slice %253 {offsets = [0, 127], sizes = [4, 256], strides = [1, 1]} : vector<4x512xf32> to vector<4x256xf32>
    %265 = vector.broadcast %139 : vector<1x256xf32> to vector<4x256xf32>
    %266 = arith.mulf %264, %265 : vector<4x256xf32>
    %c12_138 = arith.constant 12 : index
    %c0_139 = arith.constant 0 : index
    %267 = vector.load %arg15[%c12_138, %c0_139] : memref<72x1024xf32, #tpu.memory_space<vmem>>, vector<4x256xf32>
    tpu.vector_store %arg15[%c12_138, %c0_139], %266 {strides = array<i32>} : memref<72x1024xf32, #tpu.memory_space<vmem>>, vector<4x256xf32>,
    %268 = vector.extract_strided_slice %253 {offsets = [0, 128], sizes = [4, 256], strides = [1, 1]} : vector<4x512xf32> to vector<4x256xf32>
    %c16_140 = arith.constant 16 : index
    %c0_141 = arith.constant 0 : index
    %269 = vector.load %arg15[%c16_140, %c0_141] : memref<72x1024xf32, #tpu.memory_space<vmem>>, vector<4x256xf32>
    tpu.vector_store %arg15[%c16_140, %c0_141], %268 {strides = array<i32>} : memref<72x1024xf32, #tpu.memory_space<vmem>>, vector<4x256xf32>,
    %270 = vector.extract_strided_slice %253 {offsets = [0, 129], sizes = [4, 256], strides = [1, 1]} : vector<4x512xf32> to vector<4x256xf32>
    %271 = vector.broadcast %140 : vector<1x256xf32> to vector<4x256xf32>
    %272 = arith.mulf %270, %271 : vector<4x256xf32>
    %c20_142 = arith.constant 20 : index
    %c0_143 = arith.constant 0 : index
    %273 = vector.load %arg15[%c20_142, %c0_143] : memref<72x1024xf32, #tpu.memory_space<vmem>>, vector<4x256xf32>
    tpu.vector_store %arg15[%c20_142, %c0_143], %272 {strides = array<i32>} : memref<72x1024xf32, #tpu.memory_space<vmem>>, vector<4x256xf32>,
    %274 = vector.extract_strided_slice %253 {offsets = [0, 143], sizes = [4, 256], strides = [1, 1]} : vector<4x512xf32> to vector<4x256xf32>
    %275 = vector.broadcast %139 : vector<1x256xf32> to vector<4x256xf32>
    %276 = arith.mulf %274, %275 : vector<4x256xf32>
    %c24_144 = arith.constant 24 : index
    %c0_145 = arith.constant 0 : index
    %277 = vector.load %arg15[%c24_144, %c0_145] : memref<72x1024xf32, #tpu.memory_space<vmem>>, vector<4x256xf32>
    tpu.vector_store %arg15[%c24_144, %c0_145], %276 {strides = array<i32>} : memref<72x1024xf32, #tpu.memory_space<vmem>>, vector<4x256xf32>,
    %278 = vector.extract_strided_slice %253 {offsets = [0, 144], sizes = [4, 256], strides = [1, 1]} : vector<4x512xf32> to vector<4x256xf32>
    %c28_146 = arith.constant 28 : index
    %c0_147 = arith.constant 0 : index
    %279 = vector.load %arg15[%c28_146, %c0_147] : memref<72x1024xf32, #tpu.memory_space<vmem>>, vector<4x256xf32>
    tpu.vector_store %arg15[%c28_146, %c0_147], %278 {strides = array<i32>} : memref<72x1024xf32, #tpu.memory_space<vmem>>, vector<4x256xf32>,
    %280 = vector.extract_strided_slice %253 {offsets = [0, 145], sizes = [4, 256], strides = [1, 1]} : vector<4x512xf32> to vector<4x256xf32>
    %281 = vector.broadcast %140 : vector<1x256xf32> to vector<4x256xf32>
    %282 = arith.mulf %280, %281 : vector<4x256xf32>
    %c32_148 = arith.constant 32 : index
    %c0_149 = arith.constant 0 : index
    %283 = vector.load %arg15[%c32_148, %c0_149] : memref<72x1024xf32, #tpu.memory_space<vmem>>, vector<4x256xf32>
    tpu.vector_store %arg15[%c32_148, %c0_149], %282 {strides = array<i32>} : memref<72x1024xf32, #tpu.memory_space<vmem>>, vector<4x256xf32>,
    %c0_150 = arith.constant 0 : index
    %c0_151 = arith.constant 0 : index
    %284 = vector.load %arg15[%c0_150, %c0_151] : memref<72x1024xf32, #tpu.memory_space<vmem>>, vector<36x256xf32>
    %285 = arith.truncf %284 : vector<36x256xf32> to vector<36x256xbf16>
    %c0_152 = arith.constant 0 : index
    %c0_153 = arith.constant 0 : index
    %286 = vector.load %arg7[%c0_152, %c0_153] : memref<4x36xbf16, #tpu.memory_space<vmem>>, vector<4x36xbf16>
    %cst_154 = arith.constant dense<0.000000e+00> : vector<4x256xf32>
    %287 = tpu.matmul %286, %285, %cst_154 {dimension_numbers = #tpu.dot_dimension_numbers<[1], [0], [0], [1], [0, 0, 1, 1], [], []>} : vector<4x36xbf16>, vector<36x256xbf16>, vector<4x256xf32> -> vector<4x256xf32>
    %cst_155 = arith.constant 0.000000e+00 : f32
    %288 = vector.broadcast %cst_155 : f32 to vector<4x256xf32>
    %289 = arith.cmpf oge, %287, %288 : vector<4x256xf32>
    %cst_156 = arith.constant 0.00999999977 : f32
    %290 = vector.broadcast %cst_156 : f32 to vector<4x256xf32>
    %291 = arith.mulf %290, %287 : vector<4x256xf32>
    %292 = arith.select %289, %287, %291 : vector<4x256xi1>, vector<4x256xf32>
    %293 = vector.extract_strided_slice %292 {offsets = [0, 0], sizes = [4, 16], strides = [1, 1]} : vector<4x256xf32> to vector<4x16xf32>
    %c0_157 = arith.constant 0 : index
    %c0_158 = arith.constant 0 : index
    %294 = vector.load %arg15[%c0_157, %c0_158] : memref<72x1024xf32, #tpu.memory_space<vmem>>, vector<4x16xf32>
    tpu.vector_store %arg15[%c0_157, %c0_158], %293 {strides = array<i32>} : memref<72x1024xf32, #tpu.memory_space<vmem>>, vector<4x16xf32>,
    %295 = vector.extract_strided_slice %292 {offsets = [0, 16], sizes = [4, 16], strides = [1, 1]} : vector<4x256xf32> to vector<4x16xf32>
    %c4_159 = arith.constant 4 : index
    %c0_160 = arith.constant 0 : index
    %296 = vector.load %arg15[%c4_159, %c0_160] : memref<72x1024xf32, #tpu.memory_space<vmem>>, vector<4x16xf32>
    tpu.vector_store %arg15[%c4_159, %c0_160], %295 {strides = array<i32>} : memref<72x1024xf32, #tpu.memory_space<vmem>>, vector<4x16xf32>,
    %297 = vector.extract_strided_slice %292 {offsets = [0, 32], sizes = [4, 16], strides = [1, 1]} : vector<4x256xf32> to vector<4x16xf32>
    %c8_161 = arith.constant 8 : index
    %c0_162 = arith.constant 0 : index
    %298 = vector.load %arg15[%c8_161, %c0_162] : memref<72x1024xf32, #tpu.memory_space<vmem>>, vector<4x16xf32>
    tpu.vector_store %arg15[%c8_161, %c0_162], %297 {strides = array<i32>} : memref<72x1024xf32, #tpu.memory_space<vmem>>, vector<4x16xf32>,
    %299 = vector.extract_strided_slice %292 {offsets = [0, 48], sizes = [4, 16], strides = [1, 1]} : vector<4x256xf32> to vector<4x16xf32>
    %c12_163 = arith.constant 12 : index
    %c0_164 = arith.constant 0 : index
    %300 = vector.load %arg15[%c12_163, %c0_164] : memref<72x1024xf32, #tpu.memory_space<vmem>>, vector<4x16xf32>
    tpu.vector_store %arg15[%c12_163, %c0_164], %299 {strides = array<i32>} : memref<72x1024xf32, #tpu.memory_space<vmem>>, vector<4x16xf32>,
    %301 = vector.extract_strided_slice %292 {offsets = [0, 64], sizes = [4, 16], strides = [1, 1]} : vector<4x256xf32> to vector<4x16xf32>
    %c16_165 = arith.constant 16 : index
    %c0_166 = arith.constant 0 : index
    %302 = vector.load %arg15[%c16_165, %c0_166] : memref<72x1024xf32, #tpu.memory_space<vmem>>, vector<4x16xf32>
    tpu.vector_store %arg15[%c16_165, %c0_166], %301 {strides = array<i32>} : memref<72x1024xf32, #tpu.memory_space<vmem>>, vector<4x16xf32>,
    %303 = vector.extract_strided_slice %292 {offsets = [0, 80], sizes = [4, 16], strides = [1, 1]} : vector<4x256xf32> to vector<4x16xf32>
    %c20_167 = arith.constant 20 : index
    %c0_168 = arith.constant 0 : index
    %304 = vector.load %arg15[%c20_167, %c0_168] : memref<72x1024xf32, #tpu.memory_space<vmem>>, vector<4x16xf32>
    tpu.vector_store %arg15[%c20_167, %c0_168], %303 {strides = array<i32>} : memref<72x1024xf32, #tpu.memory_space<vmem>>, vector<4x16xf32>,
    %305 = vector.extract_strided_slice %292 {offsets = [0, 96], sizes = [4, 16], strides = [1, 1]} : vector<4x256xf32> to vector<4x16xf32>
    %c24_169 = arith.constant 24 : index
    %c0_170 = arith.constant 0 : index
    %306 = vector.load %arg15[%c24_169, %c0_170] : memref<72x1024xf32, #tpu.memory_space<vmem>>, vector<4x16xf32>
    tpu.vector_store %arg15[%c24_169, %c0_170], %305 {strides = array<i32>} : memref<72x1024xf32, #tpu.memory_space<vmem>>, vector<4x16xf32>,
    %307 = vector.extract_strided_slice %292 {offsets = [0, 112], sizes = [4, 16], strides = [1, 1]} : vector<4x256xf32> to vector<4x16xf32>
    %c28_171 = arith.constant 28 : index
    %c0_172 = arith.constant 0 : index
    %308 = vector.load %arg15[%c28_171, %c0_172] : memref<72x1024xf32, #tpu.memory_space<vmem>>, vector<4x16xf32>
    tpu.vector_store %arg15[%c28_171, %c0_172], %307 {strides = array<i32>} : memref<72x1024xf32, #tpu.memory_space<vmem>>, vector<4x16xf32>,
    %309 = vector.extract_strided_slice %292 {offsets = [0, 128], sizes = [4, 16], strides = [1, 1]} : vector<4x256xf32> to vector<4x16xf32>
    %c32_173 = arith.constant 32 : index
    %c0_174 = arith.constant 0 : index
    %310 = vector.load %arg15[%c32_173, %c0_174] : memref<72x1024xf32, #tpu.memory_space<vmem>>, vector<4x16xf32>
    tpu.vector_store %arg15[%c32_173, %c0_174], %309 {strides = array<i32>} : memref<72x1024xf32, #tpu.memory_space<vmem>>, vector<4x16xf32>,
    %311 = vector.extract_strided_slice %292 {offsets = [0, 144], sizes = [4, 16], strides = [1, 1]} : vector<4x256xf32> to vector<4x16xf32>
    %c36_175 = arith.constant 36 : index
    %c0_176 = arith.constant 0 : index
    %312 = vector.load %arg15[%c36_175, %c0_176] : memref<72x1024xf32, #tpu.memory_space<vmem>>, vector<4x16xf32>
    tpu.vector_store %arg15[%c36_175, %c0_176], %311 {strides = array<i32>} : memref<72x1024xf32, #tpu.memory_space<vmem>>, vector<4x16xf32>,
    %313 = vector.extract_strided_slice %292 {offsets = [0, 160], sizes = [4, 16], strides = [1, 1]} : vector<4x256xf32> to vector<4x16xf32>
    %c40_177 = arith.constant 40 : index
    %c0_178 = arith.constant 0 : index
    %314 = vector.load %arg15[%c40_177, %c0_178] : memref<72x1024xf32, #tpu.memory_space<vmem>>, vector<4x16xf32>
    tpu.vector_store %arg15[%c40_177, %c0_178], %313 {strides = array<i32>} : memref<72x1024xf32, #tpu.memory_space<vmem>>, vector<4x16xf32>,
    %315 = vector.extract_strided_slice %292 {offsets = [0, 176], sizes = [4, 16], strides = [1, 1]} : vector<4x256xf32> to vector<4x16xf32>
    %c44_179 = arith.constant 44 : index
    %c0_180 = arith.constant 0 : index
    %316 = vector.load %arg15[%c44_179, %c0_180] : memref<72x1024xf32, #tpu.memory_space<vmem>>, vector<4x16xf32>
    tpu.vector_store %arg15[%c44_179, %c0_180], %315 {strides = array<i32>} : memref<72x1024xf32, #tpu.memory_space<vmem>>, vector<4x16xf32>,
    %317 = vector.extract_strided_slice %292 {offsets = [0, 192], sizes = [4, 16], strides = [1, 1]} : vector<4x256xf32> to vector<4x16xf32>
    %c48_181 = arith.constant 48 : index
    %c0_182 = arith.constant 0 : index
    %318 = vector.load %arg15[%c48_181, %c0_182] : memref<72x1024xf32, #tpu.memory_space<vmem>>, vector<4x16xf32>
    tpu.vector_store %arg15[%c48_181, %c0_182], %317 {strides = array<i32>} : memref<72x1024xf32, #tpu.memory_space<vmem>>, vector<4x16xf32>,
    %319 = vector.extract_strided_slice %292 {offsets = [0, 208], sizes = [4, 16], strides = [1, 1]} : vector<4x256xf32> to vector<4x16xf32>
    %c52_183 = arith.constant 52 : index
    %c0_184 = arith.constant 0 : index
    %320 = vector.load %arg15[%c52_183, %c0_184] : memref<72x1024xf32, #tpu.memory_space<vmem>>, vector<4x16xf32>
    tpu.vector_store %arg15[%c52_183, %c0_184], %319 {strides = array<i32>} : memref<72x1024xf32, #tpu.memory_space<vmem>>, vector<4x16xf32>,
    %321 = vector.extract_strided_slice %292 {offsets = [0, 224], sizes = [4, 16], strides = [1, 1]} : vector<4x256xf32> to vector<4x16xf32>
    %c56_185 = arith.constant 56 : index
    %c0_186 = arith.constant 0 : index
    %322 = vector.load %arg15[%c56_185, %c0_186] : memref<72x1024xf32, #tpu.memory_space<vmem>>, vector<4x16xf32>
    tpu.vector_store %arg15[%c56_185, %c0_186], %321 {strides = array<i32>} : memref<72x1024xf32, #tpu.memory_space<vmem>>, vector<4x16xf32>,
    %323 = vector.extract_strided_slice %292 {offsets = [0, 240], sizes = [4, 16], strides = [1, 1]} : vector<4x256xf32> to vector<4x16xf32>
    %c60_187 = arith.constant 60 : index
    %c0_188 = arith.constant 0 : index
    %324 = vector.load %arg15[%c60_187, %c0_188] : memref<72x1024xf32, #tpu.memory_space<vmem>>, vector<4x16xf32>
    tpu.vector_store %arg15[%c60_187, %c0_188], %323 {strides = array<i32>} : memref<72x1024xf32, #tpu.memory_space<vmem>>, vector<4x16xf32>,
    %c0_189 = arith.constant 0 : index
    %c0_190 = arith.constant 0 : index
    %325 = vector.load %arg15[%c0_189, %c0_190] : memref<72x1024xf32, #tpu.memory_space<vmem>>, vector<64x16xf32>
    %326 = arith.truncf %325 : vector<64x16xf32> to vector<64x16xbf16>
    %c0_191 = arith.constant 0 : index
    %c0_192 = arith.constant 0 : index
    %327 = vector.load %arg9[%c0_191, %c0_192] : memref<16x32xbf16, #tpu.memory_space<vmem>>, vector<16x32xbf16>
    %cst_193 = arith.constant dense<0.000000e+00> : vector<64x32xf32>
    %328 = tpu.matmul %326, %327, %cst_193 {dimension_numbers = #tpu.dot_dimension_numbers<[1], [0], [0], [1], [0, 0, 1, 1], [], []>} : vector<64x16xbf16>, vector<16x32xbf16>, vector<64x32xf32> -> vector<64x32xf32>
    %329 = vector.extract_strided_slice %328 {offsets = [0, 0], sizes = [4, 32], strides = [1, 1]} : vector<64x32xf32> to vector<4x32xf32>
    %c0_194 = arith.constant 0 : index
    %c0_195 = arith.constant 0 : index
    %330 = vector.load %arg16[%c0_194, %c0_195] : memref<8x1024xf32, #tpu.memory_space<vmem>>, vector<4x32xf32>
    tpu.vector_store %arg16[%c0_194, %c0_195], %329 {strides = array<i32>} : memref<8x1024xf32, #tpu.memory_space<vmem>>, vector<4x32xf32>,
    %331 = vector.extract_strided_slice %328 {offsets = [0, 0], sizes = [4, 32], strides = [1, 1]} : vector<64x32xf32> to vector<4x32xf32>
    %cst_196 = arith.constant 7.500000e-01 : f32
    %332 = vector.broadcast %cst_196 : f32 to vector<4x32xf32>
    %333 = arith.mulf %331, %332 : vector<4x32xf32>
    %334 = vector.extract_strided_slice %328 {offsets = [4, 0], sizes = [4, 32], strides = [1, 1]} : vector<64x32xf32> to vector<4x32xf32>
    %cst_197 = arith.constant 2.500000e-01 : f32
    %335 = vector.broadcast %cst_197 : f32 to vector<4x32xf32>
    %336 = arith.mulf %334, %335 : vector<4x32xf32>
    %337 = arith.addf %333, %336 : vector<4x32xf32>
    %c0_198 = arith.constant 0 : index
    %c32_199 = arith.constant 32 : index
    %338 = vector.load %arg16[%c0_198, %c32_199] : memref<8x1024xf32, #tpu.memory_space<vmem>>, vector<4x32xf32>
    tpu.vector_store %arg16[%c0_198, %c32_199], %337 {strides = array<i32>} : memref<8x1024xf32, #tpu.memory_space<vmem>>, vector<4x32xf32>,
    %339 = vector.extract_strided_slice %328 {offsets = [0, 0], sizes = [4, 32], strides = [1, 1]} : vector<64x32xf32> to vector<4x32xf32>
    %cst_200 = arith.constant 2.500000e-01 : f32
    %340 = vector.broadcast %cst_200 : f32 to vector<4x32xf32>
    %341 = arith.mulf %339, %340 : vector<4x32xf32>
    %342 = vector.extract_strided_slice %328 {offsets = [4, 0], sizes = [4, 32], strides = [1, 1]} : vector<64x32xf32> to vector<4x32xf32>
    %cst_201 = arith.constant 7.500000e-01 : f32
    %343 = vector.broadcast %cst_201 : f32 to vector<4x32xf32>
    %344 = arith.mulf %342, %343 : vector<4x32xf32>
    %345 = arith.addf %341, %344 : vector<4x32xf32>
    %c0_202 = arith.constant 0 : index
    %c64_203 = arith.constant 64 : index
    %346 = vector.load %arg16[%c0_202, %c64_203] : memref<8x1024xf32, #tpu.memory_space<vmem>>, vector<4x32xf32>
    tpu.vector_store %arg16[%c0_202, %c64_203], %345 {strides = array<i32>} : memref<8x1024xf32, #tpu.memory_space<vmem>>, vector<4x32xf32>,
    %347 = vector.extract_strided_slice %328 {offsets = [4, 0], sizes = [4, 32], strides = [1, 1]} : vector<64x32xf32> to vector<4x32xf32>
    %cst_204 = arith.constant 7.500000e-01 : f32
    %348 = vector.broadcast %cst_204 : f32 to vector<4x32xf32>
    %349 = arith.mulf %347, %348 : vector<4x32xf32>
    %350 = vector.extract_strided_slice %328 {offsets = [8, 0], sizes = [4, 32], strides = [1, 1]} : vector<64x32xf32> to vector<4x32xf32>
    %cst_205 = arith.constant 2.500000e-01 : f32
    %351 = vector.broadcast %cst_205 : f32 to vector<4x32xf32>
    %352 = arith.mulf %350, %351 : vector<4x32xf32>
    %353 = arith.addf %349, %352 : vector<4x32xf32>
    %c0_206 = arith.constant 0 : index
    %c96_207 = arith.constant 96 : index
    %354 = vector.load %arg16[%c0_206, %c96_207] : memref<8x1024xf32, #tpu.memory_space<vmem>>, vector<4x32xf32>
    tpu.vector_store %arg16[%c0_206, %c96_207], %353 {strides = array<i32>} : memref<8x1024xf32, #tpu.memory_space<vmem>>, vector<4x32xf32>,
    %355 = vector.extract_strided_slice %328 {offsets = [4, 0], sizes = [4, 32], strides = [1, 1]} : vector<64x32xf32> to vector<4x32xf32>
    %cst_208 = arith.constant 2.500000e-01 : f32
    %356 = vector.broadcast %cst_208 : f32 to vector<4x32xf32>
    %357 = arith.mulf %355, %356 : vector<4x32xf32>
    %358 = vector.extract_strided_slice %328 {offsets = [8, 0], sizes = [4, 32], strides = [1, 1]} : vector<64x32xf32> to vector<4x32xf32>
    %cst_209 = arith.constant 7.500000e-01 : f32
    %359 = vector.broadcast %cst_209 : f32 to vector<4x32xf32>
    %360 = arith.mulf %358, %359 : vector<4x32xf32>
    %361 = arith.addf %357, %360 : vector<4x32xf32>
    %c0_210 = arith.constant 0 : index
    %c128_211 = arith.constant 128 : index
    %362 = vector.load %arg16[%c0_210, %c128_211] : memref<8x1024xf32, #tpu.memory_space<vmem>>, vector<4x32xf32>
    tpu.vector_store %arg16[%c0_210, %c128_211], %361 {strides = array<i32>} : memref<8x1024xf32, #tpu.memory_space<vmem>>, vector<4x32xf32>,
    %363 = vector.extract_strided_slice %328 {offsets = [8, 0], sizes = [4, 32], strides = [1, 1]} : vector<64x32xf32> to vector<4x32xf32>
    %cst_212 = arith.constant 7.500000e-01 : f32
    %364 = vector.broadcast %cst_212 : f32 to vector<4x32xf32>
    %365 = arith.mulf %363, %364 : vector<4x32xf32>
    %366 = vector.extract_strided_slice %328 {offsets = [12, 0], sizes = [4, 32], strides = [1, 1]} : vector<64x32xf32> to vector<4x32xf32>
    %cst_213 = arith.constant 2.500000e-01 : f32
    %367 = vector.broadcast %cst_213 : f32 to vector<4x32xf32>
    %368 = arith.mulf %366, %367 : vector<4x32xf32>
    %369 = arith.addf %365, %368 : vector<4x32xf32>
    %c0_214 = arith.constant 0 : index
    %c160_215 = arith.constant 160 : index
    %370 = vector.load %arg16[%c0_214, %c160_215] : memref<8x1024xf32, #tpu.memory_space<vmem>>, vector<4x32xf32>
    tpu.vector_store %arg16[%c0_214, %c160_215], %369 {strides = array<i32>} : memref<8x1024xf32, #tpu.memory_space<vmem>>, vector<4x32xf32>,
    %371 = vector.extract_strided_slice %328 {offsets = [8, 0], sizes = [4, 32], strides = [1, 1]} : vector<64x32xf32> to vector<4x32xf32>
    %cst_216 = arith.constant 2.500000e-01 : f32
    %372 = vector.broadcast %cst_216 : f32 to vector<4x32xf32>
    %373 = arith.mulf %371, %372 : vector<4x32xf32>
    %374 = vector.extract_strided_slice %328 {offsets = [12, 0], sizes = [4, 32], strides = [1, 1]} : vector<64x32xf32> to vector<4x32xf32>
    %cst_217 = arith.constant 7.500000e-01 : f32
    %375 = vector.broadcast %cst_217 : f32 to vector<4x32xf32>
    %376 = arith.mulf %374, %375 : vector<4x32xf32>
    %377 = arith.addf %373, %376 : vector<4x32xf32>
    %c0_218 = arith.constant 0 : index
    %c192_219 = arith.constant 192 : index
    %378 = vector.load %arg16[%c0_218, %c192_219] : memref<8x1024xf32, #tpu.memory_space<vmem>>, vector<4x32xf32>
    tpu.vector_store %arg16[%c0_218, %c192_219], %377 {strides = array<i32>} : memref<8x1024xf32, #tpu.memory_space<vmem>>, vector<4x32xf32>,
    %379 = vector.extract_strided_slice %328 {offsets = [12, 0], sizes = [4, 32], strides = [1, 1]} : vector<64x32xf32> to vector<4x32xf32>
    %cst_220 = arith.constant 7.500000e-01 : f32
    %380 = vector.broadcast %cst_220 : f32 to vector<4x32xf32>
    %381 = arith.mulf %379, %380 : vector<4x32xf32>
    %382 = vector.extract_strided_slice %328 {offsets = [16, 0], sizes = [4, 32], strides = [1, 1]} : vector<64x32xf32> to vector<4x32xf32>
    %cst_221 = arith.constant 2.500000e-01 : f32
    %383 = vector.broadcast %cst_221 : f32 to vector<4x32xf32>
    %384 = arith.mulf %382, %383 : vector<4x32xf32>
    %385 = arith.addf %381, %384 : vector<4x32xf32>
    %c0_222 = arith.constant 0 : index
    %c224_223 = arith.constant 224 : index
    %386 = vector.load %arg16[%c0_222, %c224_223] : memref<8x1024xf32, #tpu.memory_space<vmem>>, vector<4x32xf32>
    tpu.vector_store %arg16[%c0_222, %c224_223], %385 {strides = array<i32>} : memref<8x1024xf32, #tpu.memory_space<vmem>>, vector<4x32xf32>,
    %387 = vector.extract_strided_slice %328 {offsets = [12, 0], sizes = [4, 32], strides = [1, 1]} : vector<64x32xf32> to vector<4x32xf32>
    %cst_224 = arith.constant 2.500000e-01 : f32
    %388 = vector.broadcast %cst_224 : f32 to vector<4x32xf32>
    %389 = arith.mulf %387, %388 : vector<4x32xf32>
    %390 = vector.extract_strided_slice %328 {offsets = [16, 0], sizes = [4, 32], strides = [1, 1]} : vector<64x32xf32> to vector<4x32xf32>
    %cst_225 = arith.constant 7.500000e-01 : f32
    %391 = vector.broadcast %cst_225 : f32 to vector<4x32xf32>
    %392 = arith.mulf %390, %391 : vector<4x32xf32>
    %393 = arith.addf %389, %392 : vector<4x32xf32>
    %c0_226 = arith.constant 0 : index
    %c256 = arith.constant 256 : index
    %394 = vector.load %arg16[%c0_226, %c256] : memref<8x1024xf32, #tpu.memory_space<vmem>>, vector<4x32xf32>
    tpu.vector_store %arg16[%c0_226, %c256], %393 {strides = array<i32>} : memref<8x1024xf32, #tpu.memory_space<vmem>>, vector<4x32xf32>,
    %395 = vector.extract_strided_slice %328 {offsets = [16, 0], sizes = [4, 32], strides = [1, 1]} : vector<64x32xf32> to vector<4x32xf32>
    %cst_227 = arith.constant 7.500000e-01 : f32
    %396 = vector.broadcast %cst_227 : f32 to vector<4x32xf32>
    %397 = arith.mulf %395, %396 : vector<4x32xf32>
    %398 = vector.extract_strided_slice %328 {offsets = [20, 0], sizes = [4, 32], strides = [1, 1]} : vector<64x32xf32> to vector<4x32xf32>
    %cst_228 = arith.constant 2.500000e-01 : f32
    %399 = vector.broadcast %cst_228 : f32 to vector<4x32xf32>
    %400 = arith.mulf %398, %399 : vector<4x32xf32>
    %401 = arith.addf %397, %400 : vector<4x32xf32>
    %c0_229 = arith.constant 0 : index
    %c288 = arith.constant 288 : index
    %402 = vector.load %arg16[%c0_229, %c288] : memref<8x1024xf32, #tpu.memory_space<vmem>>, vector<4x32xf32>
    tpu.vector_store %arg16[%c0_229, %c288], %401 {strides = array<i32>} : memref<8x1024xf32, #tpu.memory_space<vmem>>, vector<4x32xf32>,
    %403 = vector.extract_strided_slice %328 {offsets = [16, 0], sizes = [4, 32], strides = [1, 1]} : vector<64x32xf32> to vector<4x32xf32>
    %cst_230 = arith.constant 2.500000e-01 : f32
    %404 = vector.broadcast %cst_230 : f32 to vector<4x32xf32>
    %405 = arith.mulf %403, %404 : vector<4x32xf32>
    %406 = vector.extract_strided_slice %328 {offsets = [20, 0], sizes = [4, 32], strides = [1, 1]} : vector<64x32xf32> to vector<4x32xf32>
    %cst_231 = arith.constant 7.500000e-01 : f32
    %407 = vector.broadcast %cst_231 : f32 to vector<4x32xf32>
    %408 = arith.mulf %406, %407 : vector<4x32xf32>
    %409 = arith.addf %405, %408 : vector<4x32xf32>
    %c0_232 = arith.constant 0 : index
    %c320 = arith.constant 320 : index
    %410 = vector.load %arg16[%c0_232, %c320] : memref<8x1024xf32, #tpu.memory_space<vmem>>, vector<4x32xf32>
    tpu.vector_store %arg16[%c0_232, %c320], %409 {strides = array<i32>} : memref<8x1024xf32, #tpu.memory_space<vmem>>, vector<4x32xf32>,
    %411 = vector.extract_strided_slice %328 {offsets = [20, 0], sizes = [4, 32], strides = [1, 1]} : vector<64x32xf32> to vector<4x32xf32>
    %cst_233 = arith.constant 7.500000e-01 : f32
    %412 = vector.broadcast %cst_233 : f32 to vector<4x32xf32>
    %413 = arith.mulf %411, %412 : vector<4x32xf32>
    %414 = vector.extract_strided_slice %328 {offsets = [24, 0], sizes = [4, 32], strides = [1, 1]} : vector<64x32xf32> to vector<4x32xf32>
    %cst_234 = arith.constant 2.500000e-01 : f32
    %415 = vector.broadcast %cst_234 : f32 to vector<4x32xf32>
    %416 = arith.mulf %414, %415 : vector<4x32xf32>
    %417 = arith.addf %413, %416 : vector<4x32xf32>
    %c0_235 = arith.constant 0 : index
    %c352 = arith.constant 352 : index
    %418 = vector.load %arg16[%c0_235, %c352] : memref<8x1024xf32, #tpu.memory_space<vmem>>, vector<4x32xf32>
    tpu.vector_store %arg16[%c0_235, %c352], %417 {strides = array<i32>} : memref<8x1024xf32, #tpu.memory_space<vmem>>, vector<4x32xf32>,
    %419 = vector.extract_strided_slice %328 {offsets = [20, 0], sizes = [4, 32], strides = [1, 1]} : vector<64x32xf32> to vector<4x32xf32>
    %cst_236 = arith.constant 2.500000e-01 : f32
    %420 = vector.broadcast %cst_236 : f32 to vector<4x32xf32>
    %421 = arith.mulf %419, %420 : vector<4x32xf32>
    %422 = vector.extract_strided_slice %328 {offsets = [24, 0], sizes = [4, 32], strides = [1, 1]} : vector<64x32xf32> to vector<4x32xf32>
    %cst_237 = arith.constant 7.500000e-01 : f32
    %423 = vector.broadcast %cst_237 : f32 to vector<4x32xf32>
    %424 = arith.mulf %422, %423 : vector<4x32xf32>
    %425 = arith.addf %421, %424 : vector<4x32xf32>
    %c0_238 = arith.constant 0 : index
    %c384 = arith.constant 384 : index
    %426 = vector.load %arg16[%c0_238, %c384] : memref<8x1024xf32, #tpu.memory_space<vmem>>, vector<4x32xf32>
    tpu.vector_store %arg16[%c0_238, %c384], %425 {strides = array<i32>} : memref<8x1024xf32, #tpu.memory_space<vmem>>, vector<4x32xf32>,
    %427 = vector.extract_strided_slice %328 {offsets = [24, 0], sizes = [4, 32], strides = [1, 1]} : vector<64x32xf32> to vector<4x32xf32>
    %cst_239 = arith.constant 7.500000e-01 : f32
    %428 = vector.broadcast %cst_239 : f32 to vector<4x32xf32>
    %429 = arith.mulf %427, %428 : vector<4x32xf32>
    %430 = vector.extract_strided_slice %328 {offsets = [28, 0], sizes = [4, 32], strides = [1, 1]} : vector<64x32xf32> to vector<4x32xf32>
    %cst_240 = arith.constant 2.500000e-01 : f32
    %431 = vector.broadcast %cst_240 : f32 to vector<4x32xf32>
    %432 = arith.mulf %430, %431 : vector<4x32xf32>
    %433 = arith.addf %429, %432 : vector<4x32xf32>
    %c0_241 = arith.constant 0 : index
    %c416 = arith.constant 416 : index
    %434 = vector.load %arg16[%c0_241, %c416] : memref<8x1024xf32, #tpu.memory_space<vmem>>, vector<4x32xf32>
    tpu.vector_store %arg16[%c0_241, %c416], %433 {strides = array<i32>} : memref<8x1024xf32, #tpu.memory_space<vmem>>, vector<4x32xf32>,
    %435 = vector.extract_strided_slice %328 {offsets = [24, 0], sizes = [4, 32], strides = [1, 1]} : vector<64x32xf32> to vector<4x32xf32>
    %cst_242 = arith.constant 2.500000e-01 : f32
    %436 = vector.broadcast %cst_242 : f32 to vector<4x32xf32>
    %437 = arith.mulf %435, %436 : vector<4x32xf32>
    %438 = vector.extract_strided_slice %328 {offsets = [28, 0], sizes = [4, 32], strides = [1, 1]} : vector<64x32xf32> to vector<4x32xf32>
    %cst_243 = arith.constant 7.500000e-01 : f32
    %439 = vector.broadcast %cst_243 : f32 to vector<4x32xf32>
    %440 = arith.mulf %438, %439 : vector<4x32xf32>
    %441 = arith.addf %437, %440 : vector<4x32xf32>
    %c0_244 = arith.constant 0 : index
    %c448 = arith.constant 448 : index
    %442 = vector.load %arg16[%c0_244, %c448] : memref<8x1024xf32, #tpu.memory_space<vmem>>, vector<4x32xf32>
    tpu.vector_store %arg16[%c0_244, %c448], %441 {strides = array<i32>} : memref<8x1024xf32, #tpu.memory_space<vmem>>, vector<4x32xf32>,
    %443 = vector.extract_strided_slice %328 {offsets = [28, 0], sizes = [4, 32], strides = [1, 1]} : vector<64x32xf32> to vector<4x32xf32>
    %cst_245 = arith.constant 7.500000e-01 : f32
    %444 = vector.broadcast %cst_245 : f32 to vector<4x32xf32>
    %445 = arith.mulf %443, %444 : vector<4x32xf32>
    %446 = vector.extract_strided_slice %328 {offsets = [32, 0], sizes = [4, 32], strides = [1, 1]} : vector<64x32xf32> to vector<4x32xf32>
    %cst_246 = arith.constant 2.500000e-01 : f32
    %447 = vector.broadcast %cst_246 : f32 to vector<4x32xf32>
    %448 = arith.mulf %446, %447 : vector<4x32xf32>
    %449 = arith.addf %445, %448 : vector<4x32xf32>
    %c0_247 = arith.constant 0 : index
    %c480 = arith.constant 480 : index
    %450 = vector.load %arg16[%c0_247, %c480] : memref<8x1024xf32, #tpu.memory_space<vmem>>, vector<4x32xf32>
    tpu.vector_store %arg16[%c0_247, %c480], %449 {strides = array<i32>} : memref<8x1024xf32, #tpu.memory_space<vmem>>, vector<4x32xf32>,
    %451 = vector.extract_strided_slice %328 {offsets = [28, 0], sizes = [4, 32], strides = [1, 1]} : vector<64x32xf32> to vector<4x32xf32>
    %cst_248 = arith.constant 2.500000e-01 : f32
    %452 = vector.broadcast %cst_248 : f32 to vector<4x32xf32>
    %453 = arith.mulf %451, %452 : vector<4x32xf32>
    %454 = vector.extract_strided_slice %328 {offsets = [32, 0], sizes = [4, 32], strides = [1, 1]} : vector<64x32xf32> to vector<4x32xf32>
    %cst_249 = arith.constant 7.500000e-01 : f32
    %455 = vector.broadcast %cst_249 : f32 to vector<4x32xf32>
    %456 = arith.mulf %454, %455 : vector<4x32xf32>
    %457 = arith.addf %453, %456 : vector<4x32xf32>
    %c0_250 = arith.constant 0 : index
    %c512 = arith.constant 512 : index
    %458 = vector.load %arg16[%c0_250, %c512] : memref<8x1024xf32, #tpu.memory_space<vmem>>, vector<4x32xf32>
    tpu.vector_store %arg16[%c0_250, %c512], %457 {strides = array<i32>} : memref<8x1024xf32, #tpu.memory_space<vmem>>, vector<4x32xf32>,
    %459 = vector.extract_strided_slice %328 {offsets = [32, 0], sizes = [4, 32], strides = [1, 1]} : vector<64x32xf32> to vector<4x32xf32>
    %cst_251 = arith.constant 7.500000e-01 : f32
    %460 = vector.broadcast %cst_251 : f32 to vector<4x32xf32>
    %461 = arith.mulf %459, %460 : vector<4x32xf32>
    %462 = vector.extract_strided_slice %328 {offsets = [36, 0], sizes = [4, 32], strides = [1, 1]} : vector<64x32xf32> to vector<4x32xf32>
    %cst_252 = arith.constant 2.500000e-01 : f32
    %463 = vector.broadcast %cst_252 : f32 to vector<4x32xf32>
    %464 = arith.mulf %462, %463 : vector<4x32xf32>
    %465 = arith.addf %461, %464 : vector<4x32xf32>
    %c0_253 = arith.constant 0 : index
    %c544 = arith.constant 544 : index
    %466 = vector.load %arg16[%c0_253, %c544] : memref<8x1024xf32, #tpu.memory_space<vmem>>, vector<4x32xf32>
    tpu.vector_store %arg16[%c0_253, %c544], %465 {strides = array<i32>} : memref<8x1024xf32, #tpu.memory_space<vmem>>, vector<4x32xf32>,
    %467 = vector.extract_strided_slice %328 {offsets = [32, 0], sizes = [4, 32], strides = [1, 1]} : vector<64x32xf32> to vector<4x32xf32>
    %cst_254 = arith.constant 2.500000e-01 : f32
    %468 = vector.broadcast %cst_254 : f32 to vector<4x32xf32>
    %469 = arith.mulf %467, %468 : vector<4x32xf32>
    %470 = vector.extract_strided_slice %328 {offsets = [36, 0], sizes = [4, 32], strides = [1, 1]} : vector<64x32xf32> to vector<4x32xf32>
    %cst_255 = arith.constant 7.500000e-01 : f32
    %471 = vector.broadcast %cst_255 : f32 to vector<4x32xf32>
    %472 = arith.mulf %470, %471 : vector<4x32xf32>
    %473 = arith.addf %469, %472 : vector<4x32xf32>
    %c0_256 = arith.constant 0 : index
    %c576 = arith.constant 576 : index
    %474 = vector.load %arg16[%c0_256, %c576] : memref<8x1024xf32, #tpu.memory_space<vmem>>, vector<4x32xf32>
    tpu.vector_store %arg16[%c0_256, %c576], %473 {strides = array<i32>} : memref<8x1024xf32, #tpu.memory_space<vmem>>, vector<4x32xf32>,
    %475 = vector.extract_strided_slice %328 {offsets = [36, 0], sizes = [4, 32], strides = [1, 1]} : vector<64x32xf32> to vector<4x32xf32>
    %cst_257 = arith.constant 7.500000e-01 : f32
    %476 = vector.broadcast %cst_257 : f32 to vector<4x32xf32>
    %477 = arith.mulf %475, %476 : vector<4x32xf32>
    %478 = vector.extract_strided_slice %328 {offsets = [40, 0], sizes = [4, 32], strides = [1, 1]} : vector<64x32xf32> to vector<4x32xf32>
    %cst_258 = arith.constant 2.500000e-01 : f32
    %479 = vector.broadcast %cst_258 : f32 to vector<4x32xf32>
    %480 = arith.mulf %478, %479 : vector<4x32xf32>
    %481 = arith.addf %477, %480 : vector<4x32xf32>
    %c0_259 = arith.constant 0 : index
    %c608 = arith.constant 608 : index
    %482 = vector.load %arg16[%c0_259, %c608] : memref<8x1024xf32, #tpu.memory_space<vmem>>, vector<4x32xf32>
    tpu.vector_store %arg16[%c0_259, %c608], %481 {strides = array<i32>} : memref<8x1024xf32, #tpu.memory_space<vmem>>, vector<4x32xf32>,
    %483 = vector.extract_strided_slice %328 {offsets = [36, 0], sizes = [4, 32], strides = [1, 1]} : vector<64x32xf32> to vector<4x32xf32>
    %cst_260 = arith.constant 2.500000e-01 : f32
    %484 = vector.broadcast %cst_260 : f32 to vector<4x32xf32>
    %485 = arith.mulf %483, %484 : vector<4x32xf32>
    %486 = vector.extract_strided_slice %328 {offsets = [40, 0], sizes = [4, 32], strides = [1, 1]} : vector<64x32xf32> to vector<4x32xf32>
    %cst_261 = arith.constant 7.500000e-01 : f32
    %487 = vector.broadcast %cst_261 : f32 to vector<4x32xf32>
    %488 = arith.mulf %486, %487 : vector<4x32xf32>
    %489 = arith.addf %485, %488 : vector<4x32xf32>
    %c0_262 = arith.constant 0 : index
    %c640 = arith.constant 640 : index
    %490 = vector.load %arg16[%c0_262, %c640] : memref<8x1024xf32, #tpu.memory_space<vmem>>, vector<4x32xf32>
    tpu.vector_store %arg16[%c0_262, %c640], %489 {strides = array<i32>} : memref<8x1024xf32, #tpu.memory_space<vmem>>, vector<4x32xf32>,
    %491 = vector.extract_strided_slice %328 {offsets = [40, 0], sizes = [4, 32], strides = [1, 1]} : vector<64x32xf32> to vector<4x32xf32>
    %cst_263 = arith.constant 7.500000e-01 : f32
    %492 = vector.broadcast %cst_263 : f32 to vector<4x32xf32>
    %493 = arith.mulf %491, %492 : vector<4x32xf32>
    %494 = vector.extract_strided_slice %328 {offsets = [44, 0], sizes = [4, 32], strides = [1, 1]} : vector<64x32xf32> to vector<4x32xf32>
    %cst_264 = arith.constant 2.500000e-01 : f32
    %495 = vector.broadcast %cst_264 : f32 to vector<4x32xf32>
    %496 = arith.mulf %494, %495 : vector<4x32xf32>
    %497 = arith.addf %493, %496 : vector<4x32xf32>
    %c0_265 = arith.constant 0 : index
    %c672 = arith.constant 672 : index
    %498 = vector.load %arg16[%c0_265, %c672] : memref<8x1024xf32, #tpu.memory_space<vmem>>, vector<4x32xf32>
    tpu.vector_store %arg16[%c0_265, %c672], %497 {strides = array<i32>} : memref<8x1024xf32, #tpu.memory_space<vmem>>, vector<4x32xf32>,
    %499 = vector.extract_strided_slice %328 {offsets = [40, 0], sizes = [4, 32], strides = [1, 1]} : vector<64x32xf32> to vector<4x32xf32>
    %cst_266 = arith.constant 2.500000e-01 : f32
    %500 = vector.broadcast %cst_266 : f32 to vector<4x32xf32>
    %501 = arith.mulf %499, %500 : vector<4x32xf32>
    %502 = vector.extract_strided_slice %328 {offsets = [44, 0], sizes = [4, 32], strides = [1, 1]} : vector<64x32xf32> to vector<4x32xf32>
    %cst_267 = arith.constant 7.500000e-01 : f32
    %503 = vector.broadcast %cst_267 : f32 to vector<4x32xf32>
    %504 = arith.mulf %502, %503 : vector<4x32xf32>
    %505 = arith.addf %501, %504 : vector<4x32xf32>
    %c0_268 = arith.constant 0 : index
    %c704 = arith.constant 704 : index
    %506 = vector.load %arg16[%c0_268, %c704] : memref<8x1024xf32, #tpu.memory_space<vmem>>, vector<4x32xf32>
    tpu.vector_store %arg16[%c0_268, %c704], %505 {strides = array<i32>} : memref<8x1024xf32, #tpu.memory_space<vmem>>, vector<4x32xf32>,
    %507 = vector.extract_strided_slice %328 {offsets = [44, 0], sizes = [4, 32], strides = [1, 1]} : vector<64x32xf32> to vector<4x32xf32>
    %cst_269 = arith.constant 7.500000e-01 : f32
    %508 = vector.broadcast %cst_269 : f32 to vector<4x32xf32>
    %509 = arith.mulf %507, %508 : vector<4x32xf32>
    %510 = vector.extract_strided_slice %328 {offsets = [48, 0], sizes = [4, 32], strides = [1, 1]} : vector<64x32xf32> to vector<4x32xf32>
    %cst_270 = arith.constant 2.500000e-01 : f32
    %511 = vector.broadcast %cst_270 : f32 to vector<4x32xf32>
    %512 = arith.mulf %510, %511 : vector<4x32xf32>
    %513 = arith.addf %509, %512 : vector<4x32xf32>
    %c0_271 = arith.constant 0 : index
    %c736 = arith.constant 736 : index
    %514 = vector.load %arg16[%c0_271, %c736] : memref<8x1024xf32, #tpu.memory_space<vmem>>, vector<4x32xf32>
    tpu.vector_store %arg16[%c0_271, %c736], %513 {strides = array<i32>} : memref<8x1024xf32, #tpu.memory_space<vmem>>, vector<4x32xf32>,
    %515 = vector.extract_strided_slice %328 {offsets = [44, 0], sizes = [4, 32], strides = [1, 1]} : vector<64x32xf32> to vector<4x32xf32>
    %cst_272 = arith.constant 2.500000e-01 : f32
    %516 = vector.broadcast %cst_272 : f32 to vector<4x32xf32>
    %517 = arith.mulf %515, %516 : vector<4x32xf32>
    %518 = vector.extract_strided_slice %328 {offsets = [48, 0], sizes = [4, 32], strides = [1, 1]} : vector<64x32xf32> to vector<4x32xf32>
    %cst_273 = arith.constant 7.500000e-01 : f32
    %519 = vector.broadcast %cst_273 : f32 to vector<4x32xf32>
    %520 = arith.mulf %518, %519 : vector<4x32xf32>
    %521 = arith.addf %517, %520 : vector<4x32xf32>
    %c0_274 = arith.constant 0 : index
    %c768 = arith.constant 768 : index
    %522 = vector.load %arg16[%c0_274, %c768] : memref<8x1024xf32, #tpu.memory_space<vmem>>, vector<4x32xf32>
    tpu.vector_store %arg16[%c0_274, %c768], %521 {strides = array<i32>} : memref<8x1024xf32, #tpu.memory_space<vmem>>, vector<4x32xf32>,
    %523 = vector.extract_strided_slice %328 {offsets = [48, 0], sizes = [4, 32], strides = [1, 1]} : vector<64x32xf32> to vector<4x32xf32>
    %cst_275 = arith.constant 7.500000e-01 : f32
    %524 = vector.broadcast %cst_275 : f32 to vector<4x32xf32>
    %525 = arith.mulf %523, %524 : vector<4x32xf32>
    %526 = vector.extract_strided_slice %328 {offsets = [52, 0], sizes = [4, 32], strides = [1, 1]} : vector<64x32xf32> to vector<4x32xf32>
    %cst_276 = arith.constant 2.500000e-01 : f32
    %527 = vector.broadcast %cst_276 : f32 to vector<4x32xf32>
    %528 = arith.mulf %526, %527 : vector<4x32xf32>
    %529 = arith.addf %525, %528 : vector<4x32xf32>
    %c0_277 = arith.constant 0 : index
    %c800 = arith.constant 800 : index
    %530 = vector.load %arg16[%c0_277, %c800] : memref<8x1024xf32, #tpu.memory_space<vmem>>, vector<4x32xf32>
    tpu.vector_store %arg16[%c0_277, %c800], %529 {strides = array<i32>} : memref<8x1024xf32, #tpu.memory_space<vmem>>, vector<4x32xf32>,
    %531 = vector.extract_strided_slice %328 {offsets = [48, 0], sizes = [4, 32], strides = [1, 1]} : vector<64x32xf32> to vector<4x32xf32>
    %cst_278 = arith.constant 2.500000e-01 : f32
    %532 = vector.broadcast %cst_278 : f32 to vector<4x32xf32>
    %533 = arith.mulf %531, %532 : vector<4x32xf32>
    %534 = vector.extract_strided_slice %328 {offsets = [52, 0], sizes = [4, 32], strides = [1, 1]} : vector<64x32xf32> to vector<4x32xf32>
    %cst_279 = arith.constant 7.500000e-01 : f32
    %535 = vector.broadcast %cst_279 : f32 to vector<4x32xf32>
    %536 = arith.mulf %534, %535 : vector<4x32xf32>
    %537 = arith.addf %533, %536 : vector<4x32xf32>
    %c0_280 = arith.constant 0 : index
    %c832 = arith.constant 832 : index
    %538 = vector.load %arg16[%c0_280, %c832] : memref<8x1024xf32, #tpu.memory_space<vmem>>, vector<4x32xf32>
    tpu.vector_store %arg16[%c0_280, %c832], %537 {strides = array<i32>} : memref<8x1024xf32, #tpu.memory_space<vmem>>, vector<4x32xf32>,
    %539 = vector.extract_strided_slice %328 {offsets = [52, 0], sizes = [4, 32], strides = [1, 1]} : vector<64x32xf32> to vector<4x32xf32>
    %cst_281 = arith.constant 7.500000e-01 : f32
    %540 = vector.broadcast %cst_281 : f32 to vector<4x32xf32>
    %541 = arith.mulf %539, %540 : vector<4x32xf32>
    %542 = vector.extract_strided_slice %328 {offsets = [56, 0], sizes = [4, 32], strides = [1, 1]} : vector<64x32xf32> to vector<4x32xf32>
    %cst_282 = arith.constant 2.500000e-01 : f32
    %543 = vector.broadcast %cst_282 : f32 to vector<4x32xf32>
    %544 = arith.mulf %542, %543 : vector<4x32xf32>
    %545 = arith.addf %541, %544 : vector<4x32xf32>
    %c0_283 = arith.constant 0 : index
    %c864 = arith.constant 864 : index
    %546 = vector.load %arg16[%c0_283, %c864] : memref<8x1024xf32, #tpu.memory_space<vmem>>, vector<4x32xf32>
    tpu.vector_store %arg16[%c0_283, %c864], %545 {strides = array<i32>} : memref<8x1024xf32, #tpu.memory_space<vmem>>, vector<4x32xf32>,
    %547 = vector.extract_strided_slice %328 {offsets = [52, 0], sizes = [4, 32], strides = [1, 1]} : vector<64x32xf32> to vector<4x32xf32>
    %cst_284 = arith.constant 2.500000e-01 : f32
    %548 = vector.broadcast %cst_284 : f32 to vector<4x32xf32>
    %549 = arith.mulf %547, %548 : vector<4x32xf32>
    %550 = vector.extract_strided_slice %328 {offsets = [56, 0], sizes = [4, 32], strides = [1, 1]} : vector<64x32xf32> to vector<4x32xf32>
    %cst_285 = arith.constant 7.500000e-01 : f32
    %551 = vector.broadcast %cst_285 : f32 to vector<4x32xf32>
    %552 = arith.mulf %550, %551 : vector<4x32xf32>
    %553 = arith.addf %549, %552 : vector<4x32xf32>
    %c0_286 = arith.constant 0 : index
    %c896 = arith.constant 896 : index
    %554 = vector.load %arg16[%c0_286, %c896] : memref<8x1024xf32, #tpu.memory_space<vmem>>, vector<4x32xf32>
    tpu.vector_store %arg16[%c0_286, %c896], %553 {strides = array<i32>} : memref<8x1024xf32, #tpu.memory_space<vmem>>, vector<4x32xf32>,
    %555 = vector.extract_strided_slice %328 {offsets = [56, 0], sizes = [4, 32], strides = [1, 1]} : vector<64x32xf32> to vector<4x32xf32>
    %cst_287 = arith.constant 7.500000e-01 : f32
    %556 = vector.broadcast %cst_287 : f32 to vector<4x32xf32>
    %557 = arith.mulf %555, %556 : vector<4x32xf32>
    %558 = vector.extract_strided_slice %328 {offsets = [60, 0], sizes = [4, 32], strides = [1, 1]} : vector<64x32xf32> to vector<4x32xf32>
    %cst_288 = arith.constant 2.500000e-01 : f32
    %559 = vector.broadcast %cst_288 : f32 to vector<4x32xf32>
    %560 = arith.mulf %558, %559 : vector<4x32xf32>
    %561 = arith.addf %557, %560 : vector<4x32xf32>
    %c0_289 = arith.constant 0 : index
    %c928 = arith.constant 928 : index
    %562 = vector.load %arg16[%c0_289, %c928] : memref<8x1024xf32, #tpu.memory_space<vmem>>, vector<4x32xf32>
    tpu.vector_store %arg16[%c0_289, %c928], %561 {strides = array<i32>} : memref<8x1024xf32, #tpu.memory_space<vmem>>, vector<4x32xf32>,
    %563 = vector.extract_strided_slice %328 {offsets = [56, 0], sizes = [4, 32], strides = [1, 1]} : vector<64x32xf32> to vector<4x32xf32>
    %cst_290 = arith.constant 2.500000e-01 : f32
    %564 = vector.broadcast %cst_290 : f32 to vector<4x32xf32>
    %565 = arith.mulf %563, %564 : vector<4x32xf32>
    %566 = vector.extract_strided_slice %328 {offsets = [60, 0], sizes = [4, 32], strides = [1, 1]} : vector<64x32xf32> to vector<4x32xf32>
    %cst_291 = arith.constant 7.500000e-01 : f32
    %567 = vector.broadcast %cst_291 : f32 to vector<4x32xf32>
    %568 = arith.mulf %566, %567 : vector<4x32xf32>
    %569 = arith.addf %565, %568 : vector<4x32xf32>
    %c0_292 = arith.constant 0 : index
    %c960 = arith.constant 960 : index
    %570 = vector.load %arg16[%c0_292, %c960] : memref<8x1024xf32, #tpu.memory_space<vmem>>, vector<4x32xf32>
    tpu.vector_store %arg16[%c0_292, %c960], %569 {strides = array<i32>} : memref<8x1024xf32, #tpu.memory_space<vmem>>, vector<4x32xf32>,
    %571 = vector.extract_strided_slice %328 {offsets = [60, 0], sizes = [4, 32], strides = [1, 1]} : vector<64x32xf32> to vector<4x32xf32>
    %c0_293 = arith.constant 0 : index
    %c992 = arith.constant 992 : index
    %572 = vector.load %arg16[%c0_293, %c992] : memref<8x1024xf32, #tpu.memory_space<vmem>>, vector<4x32xf32>
    tpu.vector_store %arg16[%c0_293, %c992], %571 {strides = array<i32>} : memref<8x1024xf32, #tpu.memory_space<vmem>>, vector<4x32xf32>,
    %c0_294 = arith.constant 0 : index
    %c0_295 = arith.constant 0 : index
    %573 = vector.load %arg16[%c0_294, %c0_295] : memref<8x1024xf32, #tpu.memory_space<vmem>>, vector<4x1024xf32>
    %c0_296 = arith.constant 0 : index
    %c0_297 = arith.constant 0 : index
    %574 = vector.load %arg10[%c0_296, %c0_297] : memref<2x1024xf32, #tpu.memory_space<vmem>>, vector<1x1024xf32>
    %c1_298 = arith.constant 1 : index
    %c0_299 = arith.constant 0 : index
    %575 = vector.load %arg10[%c1_298, %c0_299] : memref<2x1024xf32, #tpu.memory_space<vmem>>, vector<1x1024xf32>
    %cst_300 = arith.constant 0.000000e+00 : f32
    %576 = vector.broadcast %cst_300 : f32 to vector<4x128xf32>
    %577 = tpu.concatenate %576, %573, %576 in 1 : vector<4x128xf32>, vector<4x1024xf32>, vector<4x128xf32> -> vector<4x1280xf32>
    %578 = vector.extract_strided_slice %577 {offsets = [0, 95], sizes = [4, 1024], strides = [1, 1]} : vector<4x1280xf32> to vector<4x1024xf32>
    %579 = vector.broadcast %574 : vector<1x1024xf32> to vector<4x1024xf32>
    %580 = arith.mulf %578, %579 : vector<4x1024xf32>
    %c0_301 = arith.constant 0 : index
    %c0_302 = arith.constant 0 : index
    %581 = vector.load %arg15[%c0_301, %c0_302] : memref<72x1024xf32, #tpu.memory_space<vmem>>, vector<4x1024xf32>
    tpu.vector_store %arg15[%c0_301, %c0_302], %580 {strides = array<i32>} : memref<72x1024xf32, #tpu.memory_space<vmem>>, vector<4x1024xf32>,
    %582 = vector.extract_strided_slice %577 {offsets = [0, 96], sizes = [4, 1024], strides = [1, 1]} : vector<4x1280xf32> to vector<4x1024xf32>
    %c4_303 = arith.constant 4 : index
    %c0_304 = arith.constant 0 : index
    %583 = vector.load %arg15[%c4_303, %c0_304] : memref<72x1024xf32, #tpu.memory_space<vmem>>, vector<4x1024xf32>
    tpu.vector_store %arg15[%c4_303, %c0_304], %582 {strides = array<i32>} : memref<72x1024xf32, #tpu.memory_space<vmem>>, vector<4x1024xf32>,
    %584 = vector.extract_strided_slice %577 {offsets = [0, 97], sizes = [4, 1024], strides = [1, 1]} : vector<4x1280xf32> to vector<4x1024xf32>
    %585 = vector.broadcast %575 : vector<1x1024xf32> to vector<4x1024xf32>
    %586 = arith.mulf %584, %585 : vector<4x1024xf32>
    %c8_305 = arith.constant 8 : index
    %c0_306 = arith.constant 0 : index
    %587 = vector.load %arg15[%c8_305, %c0_306] : memref<72x1024xf32, #tpu.memory_space<vmem>>, vector<4x1024xf32>
    tpu.vector_store %arg15[%c8_305, %c0_306], %586 {strides = array<i32>} : memref<72x1024xf32, #tpu.memory_space<vmem>>, vector<4x1024xf32>,
    %588 = vector.extract_strided_slice %577 {offsets = [0, 127], sizes = [4, 1024], strides = [1, 1]} : vector<4x1280xf32> to vector<4x1024xf32>
    %589 = vector.broadcast %574 : vector<1x1024xf32> to vector<4x1024xf32>
    %590 = arith.mulf %588, %589 : vector<4x1024xf32>
    %c12_307 = arith.constant 12 : index
    %c0_308 = arith.constant 0 : index
    %591 = vector.load %arg15[%c12_307, %c0_308] : memref<72x1024xf32, #tpu.memory_space<vmem>>, vector<4x1024xf32>
    tpu.vector_store %arg15[%c12_307, %c0_308], %590 {strides = array<i32>} : memref<72x1024xf32, #tpu.memory_space<vmem>>, vector<4x1024xf32>,
    %592 = vector.extract_strided_slice %577 {offsets = [0, 128], sizes = [4, 1024], strides = [1, 1]} : vector<4x1280xf32> to vector<4x1024xf32>
    %c16_309 = arith.constant 16 : index
    %c0_310 = arith.constant 0 : index
    %593 = vector.load %arg15[%c16_309, %c0_310] : memref<72x1024xf32, #tpu.memory_space<vmem>>, vector<4x1024xf32>
    tpu.vector_store %arg15[%c16_309, %c0_310], %592 {strides = array<i32>} : memref<72x1024xf32, #tpu.memory_space<vmem>>, vector<4x1024xf32>,
    %594 = vector.extract_strided_slice %577 {offsets = [0, 129], sizes = [4, 1024], strides = [1, 1]} : vector<4x1280xf32> to vector<4x1024xf32>
    %595 = vector.broadcast %575 : vector<1x1024xf32> to vector<4x1024xf32>
    %596 = arith.mulf %594, %595 : vector<4x1024xf32>
    %c20_311 = arith.constant 20 : index
    %c0_312 = arith.constant 0 : index
    %597 = vector.load %arg15[%c20_311, %c0_312] : memref<72x1024xf32, #tpu.memory_space<vmem>>, vector<4x1024xf32>
    tpu.vector_store %arg15[%c20_311, %c0_312], %596 {strides = array<i32>} : memref<72x1024xf32, #tpu.memory_space<vmem>>, vector<4x1024xf32>,
    %598 = vector.extract_strided_slice %577 {offsets = [0, 159], sizes = [4, 1024], strides = [1, 1]} : vector<4x1280xf32> to vector<4x1024xf32>
    %599 = vector.broadcast %574 : vector<1x1024xf32> to vector<4x1024xf32>
    %600 = arith.mulf %598, %599 : vector<4x1024xf32>
    %c24_313 = arith.constant 24 : index
    %c0_314 = arith.constant 0 : index
    %601 = vector.load %arg15[%c24_313, %c0_314] : memref<72x1024xf32, #tpu.memory_space<vmem>>, vector<4x1024xf32>
    tpu.vector_store %arg15[%c24_313, %c0_314], %600 {strides = array<i32>} : memref<72x1024xf32, #tpu.memory_space<vmem>>, vector<4x1024xf32>,
    %602 = vector.extract_strided_slice %577 {offsets = [0, 160], sizes = [4, 1024], strides = [1, 1]} : vector<4x1280xf32> to vector<4x1024xf32>
    %c28_315 = arith.constant 28 : index
    %c0_316 = arith.constant 0 : index
    %603 = vector.load %arg15[%c28_315, %c0_316] : memref<72x1024xf32, #tpu.memory_space<vmem>>, vector<4x1024xf32>
    tpu.vector_store %arg15[%c28_315, %c0_316], %602 {strides = array<i32>} : memref<72x1024xf32, #tpu.memory_space<vmem>>, vector<4x1024xf32>,
    %604 = vector.extract_strided_slice %577 {offsets = [0, 161], sizes = [4, 1024], strides = [1, 1]} : vector<4x1280xf32> to vector<4x1024xf32>
    %605 = vector.broadcast %575 : vector<1x1024xf32> to vector<4x1024xf32>
    %606 = arith.mulf %604, %605 : vector<4x1024xf32>
    %c32_317 = arith.constant 32 : index
    %c0_318 = arith.constant 0 : index
    %607 = vector.load %arg15[%c32_317, %c0_318] : memref<72x1024xf32, #tpu.memory_space<vmem>>, vector<4x1024xf32>
    tpu.vector_store %arg15[%c32_317, %c0_318], %606 {strides = array<i32>} : memref<72x1024xf32, #tpu.memory_space<vmem>>, vector<4x1024xf32>,
    %c0_319 = arith.constant 0 : index
    %c0_320 = arith.constant 0 : index
    %608 = vector.load %arg15[%c0_319, %c0_320] : memref<72x1024xf32, #tpu.memory_space<vmem>>, vector<36x1024xf32>
    %609 = arith.truncf %608 : vector<36x1024xf32> to vector<36x1024xbf16>
    %c0_321 = arith.constant 0 : index
    %c0_322 = arith.constant 0 : index
    %610 = vector.load %arg11[%c0_321, %c0_322] : memref<2x36xbf16, #tpu.memory_space<vmem>>, vector<2x36xbf16>
    %cst_323 = arith.constant dense<0.000000e+00> : vector<2x1024xf32>
    %611 = tpu.matmul %610, %609, %cst_323 {dimension_numbers = #tpu.dot_dimension_numbers<[1], [0], [0], [1], [0, 0, 1, 1], [], []>} : vector<2x36xbf16>, vector<36x1024xbf16>, vector<2x1024xf32> -> vector<2x1024xf32>
    %c0_324 = arith.constant 0 : index
    %c0_325 = arith.constant 0 : index
    %c0_326 = arith.constant 0 : index
    %612 = vector.load %arg8[%c0_324, %c0_325, %c0_326] : memref<1x2x1024xf32, #tpu.memory_space<vmem>>, vector<1x2x1024xf32>
    %613 = vector.shape_cast %612 : vector<1x2x1024xf32> to vector<2x1024xf32>
    %cst_327 = arith.constant 0.000000e+00 : f32
    %614 = vector.broadcast %cst_327 : f32 to vector<2x128xf32>
    %615 = tpu.concatenate %614, %611, %614 in 1 : vector<2x128xf32>, vector<2x1024xf32>, vector<2x128xf32> -> vector<2x1280xf32>
    %cst_328 = arith.constant 0.000000e+00 : f32
    %616 = vector.broadcast %cst_328 : f32 to vector<2x128xf32>
    %617 = tpu.concatenate %616, %613, %616 in 1 : vector<2x128xf32>, vector<2x1024xf32>, vector<2x128xf32> -> vector<2x1280xf32>
    %618 = vector.extract_strided_slice %615 {offsets = [0, 95], sizes = [2, 1024], strides = [1, 1]} : vector<2x1280xf32> to vector<2x1024xf32>
    %619 = vector.broadcast %574 : vector<1x1024xf32> to vector<2x1024xf32>
    %620 = arith.mulf %618, %619 : vector<2x1024xf32>
    %c0_329 = arith.constant 0 : index
    %c0_330 = arith.constant 0 : index
    %621 = vector.load %arg15[%c0_329, %c0_330] : memref<72x1024xf32, #tpu.memory_space<vmem>>, vector<2x1024xf32>
    tpu.vector_store %arg15[%c0_329, %c0_330], %620 {strides = array<i32>} : memref<72x1024xf32, #tpu.memory_space<vmem>>, vector<2x1024xf32>,
    %622 = vector.extract_strided_slice %617 {offsets = [0, 95], sizes = [2, 1024], strides = [1, 1]} : vector<2x1280xf32> to vector<2x1024xf32>
    %623 = vector.broadcast %574 : vector<1x1024xf32> to vector<2x1024xf32>
    %624 = arith.mulf %622, %623 : vector<2x1024xf32>
    %c2 = arith.constant 2 : index
    %c0_331 = arith.constant 0 : index
    %625 = vector.load %arg15[%c2, %c0_331] : memref<72x1024xf32, #tpu.memory_space<vmem>>, vector<2x1024xf32>
    tpu.vector_store %arg15[%c2, %c0_331], %624 {strides = array<i32>} : memref<72x1024xf32, #tpu.memory_space<vmem>>, vector<2x1024xf32>,
    %626 = vector.extract_strided_slice %615 {offsets = [0, 96], sizes = [2, 1024], strides = [1, 1]} : vector<2x1280xf32> to vector<2x1024xf32>
    %c4_332 = arith.constant 4 : index
    %c0_333 = arith.constant 0 : index
    %627 = vector.load %arg15[%c4_332, %c0_333] : memref<72x1024xf32, #tpu.memory_space<vmem>>, vector<2x1024xf32>
    tpu.vector_store %arg15[%c4_332, %c0_333], %626 {strides = array<i32>} : memref<72x1024xf32, #tpu.memory_space<vmem>>, vector<2x1024xf32>,
    %628 = vector.extract_strided_slice %617 {offsets = [0, 96], sizes = [2, 1024], strides = [1, 1]} : vector<2x1280xf32> to vector<2x1024xf32>
    %c6 = arith.constant 6 : index
    %c0_334 = arith.constant 0 : index
    %629 = vector.load %arg15[%c6, %c0_334] : memref<72x1024xf32, #tpu.memory_space<vmem>>, vector<2x1024xf32>
    tpu.vector_store %arg15[%c6, %c0_334], %628 {strides = array<i32>} : memref<72x1024xf32, #tpu.memory_space<vmem>>, vector<2x1024xf32>,
    %630 = vector.extract_strided_slice %615 {offsets = [0, 97], sizes = [2, 1024], strides = [1, 1]} : vector<2x1280xf32> to vector<2x1024xf32>
    %631 = vector.broadcast %575 : vector<1x1024xf32> to vector<2x1024xf32>
    %632 = arith.mulf %630, %631 : vector<2x1024xf32>
    %c8_335 = arith.constant 8 : index
    %c0_336 = arith.constant 0 : index
    %633 = vector.load %arg15[%c8_335, %c0_336] : memref<72x1024xf32, #tpu.memory_space<vmem>>, vector<2x1024xf32>
    tpu.vector_store %arg15[%c8_335, %c0_336], %632 {strides = array<i32>} : memref<72x1024xf32, #tpu.memory_space<vmem>>, vector<2x1024xf32>,
    %634 = vector.extract_strided_slice %617 {offsets = [0, 97], sizes = [2, 1024], strides = [1, 1]} : vector<2x1280xf32> to vector<2x1024xf32>
    %635 = vector.broadcast %575 : vector<1x1024xf32> to vector<2x1024xf32>
    %636 = arith.mulf %634, %635 : vector<2x1024xf32>
    %c10 = arith.constant 10 : index
    %c0_337 = arith.constant 0 : index
    %637 = vector.load %arg15[%c10, %c0_337] : memref<72x1024xf32, #tpu.memory_space<vmem>>, vector<2x1024xf32>
    tpu.vector_store %arg15[%c10, %c0_337], %636 {strides = array<i32>} : memref<72x1024xf32, #tpu.memory_space<vmem>>, vector<2x1024xf32>,
    %638 = vector.extract_strided_slice %615 {offsets = [0, 127], sizes = [2, 1024], strides = [1, 1]} : vector<2x1280xf32> to vector<2x1024xf32>
    %639 = vector.broadcast %574 : vector<1x1024xf32> to vector<2x1024xf32>
    %640 = arith.mulf %638, %639 : vector<2x1024xf32>
    %c12_338 = arith.constant 12 : index
    %c0_339 = arith.constant 0 : index
    %641 = vector.load %arg15[%c12_338, %c0_339] : memref<72x1024xf32, #tpu.memory_space<vmem>>, vector<2x1024xf32>
    tpu.vector_store %arg15[%c12_338, %c0_339], %640 {strides = array<i32>} : memref<72x1024xf32, #tpu.memory_space<vmem>>, vector<2x1024xf32>,
    %642 = vector.extract_strided_slice %617 {offsets = [0, 127], sizes = [2, 1024], strides = [1, 1]} : vector<2x1280xf32> to vector<2x1024xf32>
    %643 = vector.broadcast %574 : vector<1x1024xf32> to vector<2x1024xf32>
    %644 = arith.mulf %642, %643 : vector<2x1024xf32>
    %c14 = arith.constant 14 : index
    %c0_340 = arith.constant 0 : index
    %645 = vector.load %arg15[%c14, %c0_340] : memref<72x1024xf32, #tpu.memory_space<vmem>>, vector<2x1024xf32>
    tpu.vector_store %arg15[%c14, %c0_340], %644 {strides = array<i32>} : memref<72x1024xf32, #tpu.memory_space<vmem>>, vector<2x1024xf32>,
    %646 = vector.extract_strided_slice %615 {offsets = [0, 128], sizes = [2, 1024], strides = [1, 1]} : vector<2x1280xf32> to vector<2x1024xf32>
    %c16_341 = arith.constant 16 : index
    %c0_342 = arith.constant 0 : index
    %647 = vector.load %arg15[%c16_341, %c0_342] : memref<72x1024xf32, #tpu.memory_space<vmem>>, vector<2x1024xf32>
    tpu.vector_store %arg15[%c16_341, %c0_342], %646 {strides = array<i32>} : memref<72x1024xf32, #tpu.memory_space<vmem>>, vector<2x1024xf32>,
    %648 = vector.extract_strided_slice %617 {offsets = [0, 128], sizes = [2, 1024], strides = [1, 1]} : vector<2x1280xf32> to vector<2x1024xf32>
    %c18 = arith.constant 18 : index
    %c0_343 = arith.constant 0 : index
    %649 = vector.load %arg15[%c18, %c0_343] : memref<72x1024xf32, #tpu.memory_space<vmem>>, vector<2x1024xf32>
    tpu.vector_store %arg15[%c18, %c0_343], %648 {strides = array<i32>} : memref<72x1024xf32, #tpu.memory_space<vmem>>, vector<2x1024xf32>,
    %650 = vector.extract_strided_slice %615 {offsets = [0, 129], sizes = [2, 1024], strides = [1, 1]} : vector<2x1280xf32> to vector<2x1024xf32>
    %651 = vector.broadcast %575 : vector<1x1024xf32> to vector<2x1024xf32>
    %652 = arith.mulf %650, %651 : vector<2x1024xf32>
    %c20_344 = arith.constant 20 : index
    %c0_345 = arith.constant 0 : index
    %653 = vector.load %arg15[%c20_344, %c0_345] : memref<72x1024xf32, #tpu.memory_space<vmem>>, vector<2x1024xf32>
    tpu.vector_store %arg15[%c20_344, %c0_345], %652 {strides = array<i32>} : memref<72x1024xf32, #tpu.memory_space<vmem>>, vector<2x1024xf32>,
    %654 = vector.extract_strided_slice %617 {offsets = [0, 129], sizes = [2, 1024], strides = [1, 1]} : vector<2x1280xf32> to vector<2x1024xf32>
    %655 = vector.broadcast %575 : vector<1x1024xf32> to vector<2x1024xf32>
    %656 = arith.mulf %654, %655 : vector<2x1024xf32>
    %c22 = arith.constant 22 : index
    %c0_346 = arith.constant 0 : index
    %657 = vector.load %arg15[%c22, %c0_346] : memref<72x1024xf32, #tpu.memory_space<vmem>>, vector<2x1024xf32>
    tpu.vector_store %arg15[%c22, %c0_346], %656 {strides = array<i32>} : memref<72x1024xf32, #tpu.memory_space<vmem>>, vector<2x1024xf32>,
    %658 = vector.extract_strided_slice %615 {offsets = [0, 159], sizes = [2, 1024], strides = [1, 1]} : vector<2x1280xf32> to vector<2x1024xf32>
    %659 = vector.broadcast %574 : vector<1x1024xf32> to vector<2x1024xf32>
    %660 = arith.mulf %658, %659 : vector<2x1024xf32>
    %c24_347 = arith.constant 24 : index
    %c0_348 = arith.constant 0 : index
    %661 = vector.load %arg15[%c24_347, %c0_348] : memref<72x1024xf32, #tpu.memory_space<vmem>>, vector<2x1024xf32>
    tpu.vector_store %arg15[%c24_347, %c0_348], %660 {strides = array<i32>} : memref<72x1024xf32, #tpu.memory_space<vmem>>, vector<2x1024xf32>,
    %662 = vector.extract_strided_slice %617 {offsets = [0, 159], sizes = [2, 1024], strides = [1, 1]} : vector<2x1280xf32> to vector<2x1024xf32>
    %663 = vector.broadcast %574 : vector<1x1024xf32> to vector<2x1024xf32>
    %664 = arith.mulf %662, %663 : vector<2x1024xf32>
    %c26 = arith.constant 26 : index
    %c0_349 = arith.constant 0 : index
    %665 = vector.load %arg15[%c26, %c0_349] : memref<72x1024xf32, #tpu.memory_space<vmem>>, vector<2x1024xf32>
    tpu.vector_store %arg15[%c26, %c0_349], %664 {strides = array<i32>} : memref<72x1024xf32, #tpu.memory_space<vmem>>, vector<2x1024xf32>,
    %666 = vector.extract_strided_slice %615 {offsets = [0, 160], sizes = [2, 1024], strides = [1, 1]} : vector<2x1280xf32> to vector<2x1024xf32>
    %c28_350 = arith.constant 28 : index
    %c0_351 = arith.constant 0 : index
    %667 = vector.load %arg15[%c28_350, %c0_351] : memref<72x1024xf32, #tpu.memory_space<vmem>>, vector<2x1024xf32>
    tpu.vector_store %arg15[%c28_350, %c0_351], %666 {strides = array<i32>} : memref<72x1024xf32, #tpu.memory_space<vmem>>, vector<2x1024xf32>,
    %668 = vector.extract_strided_slice %617 {offsets = [0, 160], sizes = [2, 1024], strides = [1, 1]} : vector<2x1280xf32> to vector<2x1024xf32>
    %c30 = arith.constant 30 : index
    %c0_352 = arith.constant 0 : index
    %669 = vector.load %arg15[%c30, %c0_352] : memref<72x1024xf32, #tpu.memory_space<vmem>>, vector<2x1024xf32>
    tpu.vector_store %arg15[%c30, %c0_352], %668 {strides = array<i32>} : memref<72x1024xf32, #tpu.memory_space<vmem>>, vector<2x1024xf32>,
    %670 = vector.extract_strided_slice %615 {offsets = [0, 161], sizes = [2, 1024], strides = [1, 1]} : vector<2x1280xf32> to vector<2x1024xf32>
    %671 = vector.broadcast %575 : vector<1x1024xf32> to vector<2x1024xf32>
    %672 = arith.mulf %670, %671 : vector<2x1024xf32>
    %c32_353 = arith.constant 32 : index
    %c0_354 = arith.constant 0 : index
    %673 = vector.load %arg15[%c32_353, %c0_354] : memref<72x1024xf32, #tpu.memory_space<vmem>>, vector<2x1024xf32>
    tpu.vector_store %arg15[%c32_353, %c0_354], %672 {strides = array<i32>} : memref<72x1024xf32, #tpu.memory_space<vmem>>, vector<2x1024xf32>,
    %674 = vector.extract_strided_slice %617 {offsets = [0, 161], sizes = [2, 1024], strides = [1, 1]} : vector<2x1280xf32> to vector<2x1024xf32>
    %675 = vector.broadcast %575 : vector<1x1024xf32> to vector<2x1024xf32>
    %676 = arith.mulf %674, %675 : vector<2x1024xf32>
    %c34 = arith.constant 34 : index
    %c0_355 = arith.constant 0 : index
    %677 = vector.load %arg15[%c34, %c0_355] : memref<72x1024xf32, #tpu.memory_space<vmem>>, vector<2x1024xf32>
    tpu.vector_store %arg15[%c34, %c0_355], %676 {strides = array<i32>} : memref<72x1024xf32, #tpu.memory_space<vmem>>, vector<2x1024xf32>,
    %c0_356 = arith.constant 0 : index
    %c0_357 = arith.constant 0 : index
    %678 = vector.load %arg15[%c0_356, %c0_357] : memref<72x1024xf32, #tpu.memory_space<vmem>>, vector<36x1024xf32>
    %679 = arith.truncf %678 : vector<36x1024xf32> to vector<36x1024xbf16>
    %c0_358 = arith.constant 0 : index
    %c0_359 = arith.constant 0 : index
    %680 = vector.load %arg12[%c0_358, %c0_359] : memref<2x36xbf16, #tpu.memory_space<vmem>>, vector<2x36xbf16>
    %cst_360 = arith.constant dense<0.000000e+00> : vector<2x1024xf32>
    %681 = tpu.matmul %680, %679, %cst_360 {dimension_numbers = #tpu.dot_dimension_numbers<[1], [0], [0], [1], [0, 0, 1, 1], [], []>} : vector<2x36xbf16>, vector<36x1024xbf16>, vector<2x1024xf32> -> vector<2x1024xf32>
    %cst_361 = arith.constant 0.000000e+00 : f32
    %682 = vector.broadcast %cst_361 : f32 to vector<2x1024xf32>
    %683 = arith.cmpf oge, %681, %682 : vector<2x1024xf32>
    %cst_362 = arith.constant 0.00999999977 : f32
    %684 = vector.broadcast %cst_362 : f32 to vector<2x1024xf32>
    %685 = arith.mulf %684, %681 : vector<2x1024xf32>
    %686 = arith.select %683, %681, %685 : vector<2x1024xi1>, vector<2x1024xf32>
    %cst_363 = arith.constant 0.000000e+00 : f32
    %687 = vector.broadcast %cst_363 : f32 to vector<2x128xf32>
    %688 = tpu.concatenate %687, %686, %687 in 1 : vector<2x128xf32>, vector<2x1024xf32>, vector<2x128xf32> -> vector<2x1280xf32>
    %689 = vector.extract_strided_slice %688 {offsets = [0, 95], sizes = [2, 1024], strides = [1, 1]} : vector<2x1280xf32> to vector<2x1024xf32>
    %690 = vector.broadcast %574 : vector<1x1024xf32> to vector<2x1024xf32>
    %691 = arith.mulf %689, %690 : vector<2x1024xf32>
    %c0_364 = arith.constant 0 : index
    %c0_365 = arith.constant 0 : index
    %692 = vector.load %arg15[%c0_364, %c0_365] : memref<72x1024xf32, #tpu.memory_space<vmem>>, vector<2x1024xf32>
    tpu.vector_store %arg15[%c0_364, %c0_365], %691 {strides = array<i32>} : memref<72x1024xf32, #tpu.memory_space<vmem>>, vector<2x1024xf32>,
    %693 = vector.extract_strided_slice %688 {offsets = [0, 96], sizes = [2, 1024], strides = [1, 1]} : vector<2x1280xf32> to vector<2x1024xf32>
    %c2_366 = arith.constant 2 : index
    %c0_367 = arith.constant 0 : index
    %694 = vector.load %arg15[%c2_366, %c0_367] : memref<72x1024xf32, #tpu.memory_space<vmem>>, vector<2x1024xf32>
    tpu.vector_store %arg15[%c2_366, %c0_367], %693 {strides = array<i32>} : memref<72x1024xf32, #tpu.memory_space<vmem>>, vector<2x1024xf32>,
    %695 = vector.extract_strided_slice %688 {offsets = [0, 97], sizes = [2, 1024], strides = [1, 1]} : vector<2x1280xf32> to vector<2x1024xf32>
    %696 = vector.broadcast %575 : vector<1x1024xf32> to vector<2x1024xf32>
    %697 = arith.mulf %695, %696 : vector<2x1024xf32>
    %c4_368 = arith.constant 4 : index
    %c0_369 = arith.constant 0 : index
    %698 = vector.load %arg15[%c4_368, %c0_369] : memref<72x1024xf32, #tpu.memory_space<vmem>>, vector<2x1024xf32>
    tpu.vector_store %arg15[%c4_368, %c0_369], %697 {strides = array<i32>} : memref<72x1024xf32, #tpu.memory_space<vmem>>, vector<2x1024xf32>,
    %699 = vector.extract_strided_slice %688 {offsets = [0, 127], sizes = [2, 1024], strides = [1, 1]} : vector<2x1280xf32> to vector<2x1024xf32>
    %700 = vector.broadcast %574 : vector<1x1024xf32> to vector<2x1024xf32>
    %701 = arith.mulf %699, %700 : vector<2x1024xf32>
    %c6_370 = arith.constant 6 : index
    %c0_371 = arith.constant 0 : index
    %702 = vector.load %arg15[%c6_370, %c0_371] : memref<72x1024xf32, #tpu.memory_space<vmem>>, vector<2x1024xf32>
    tpu.vector_store %arg15[%c6_370, %c0_371], %701 {strides = array<i32>} : memref<72x1024xf32, #tpu.memory_space<vmem>>, vector<2x1024xf32>,
    %703 = vector.extract_strided_slice %688 {offsets = [0, 128], sizes = [2, 1024], strides = [1, 1]} : vector<2x1280xf32> to vector<2x1024xf32>
    %c8_372 = arith.constant 8 : index
    %c0_373 = arith.constant 0 : index
    %704 = vector.load %arg15[%c8_372, %c0_373] : memref<72x1024xf32, #tpu.memory_space<vmem>>, vector<2x1024xf32>
    tpu.vector_store %arg15[%c8_372, %c0_373], %703 {strides = array<i32>} : memref<72x1024xf32, #tpu.memory_space<vmem>>, vector<2x1024xf32>,
    %705 = vector.extract_strided_slice %688 {offsets = [0, 129], sizes = [2, 1024], strides = [1, 1]} : vector<2x1280xf32> to vector<2x1024xf32>
    %706 = vector.broadcast %575 : vector<1x1024xf32> to vector<2x1024xf32>
    %707 = arith.mulf %705, %706 : vector<2x1024xf32>
    %c10_374 = arith.constant 10 : index
    %c0_375 = arith.constant 0 : index
    %708 = vector.load %arg15[%c10_374, %c0_375] : memref<72x1024xf32, #tpu.memory_space<vmem>>, vector<2x1024xf32>
    tpu.vector_store %arg15[%c10_374, %c0_375], %707 {strides = array<i32>} : memref<72x1024xf32, #tpu.memory_space<vmem>>, vector<2x1024xf32>,
    %709 = vector.extract_strided_slice %688 {offsets = [0, 159], sizes = [2, 1024], strides = [1, 1]} : vector<2x1280xf32> to vector<2x1024xf32>
    %710 = vector.broadcast %574 : vector<1x1024xf32> to vector<2x1024xf32>
    %711 = arith.mulf %709, %710 : vector<2x1024xf32>
    %c12_376 = arith.constant 12 : index
    %c0_377 = arith.constant 0 : index
    %712 = vector.load %arg15[%c12_376, %c0_377] : memref<72x1024xf32, #tpu.memory_space<vmem>>, vector<2x1024xf32>
    tpu.vector_store %arg15[%c12_376, %c0_377], %711 {strides = array<i32>} : memref<72x1024xf32, #tpu.memory_space<vmem>>, vector<2x1024xf32>,
    %713 = vector.extract_strided_slice %688 {offsets = [0, 160], sizes = [2, 1024], strides = [1, 1]} : vector<2x1280xf32> to vector<2x1024xf32>
    %c14_378 = arith.constant 14 : index
    %c0_379 = arith.constant 0 : index
    %714 = vector.load %arg15[%c14_378, %c0_379] : memref<72x1024xf32, #tpu.memory_space<vmem>>, vector<2x1024xf32>
    tpu.vector_store %arg15[%c14_378, %c0_379], %713 {strides = array<i32>} : memref<72x1024xf32, #tpu.memory_space<vmem>>, vector<2x1024xf32>,
    %715 = vector.extract_strided_slice %688 {offsets = [0, 161], sizes = [2, 1024], strides = [1, 1]} : vector<2x1280xf32> to vector<2x1024xf32>
    %716 = vector.broadcast %575 : vector<1x1024xf32> to vector<2x1024xf32>
    %717 = arith.mulf %715, %716 : vector<2x1024xf32>
    %c16_380 = arith.constant 16 : index
    %c0_381 = arith.constant 0 : index
    %718 = vector.load %arg15[%c16_380, %c0_381] : memref<72x1024xf32, #tpu.memory_space<vmem>>, vector<2x1024xf32>
    tpu.vector_store %arg15[%c16_380, %c0_381], %717 {strides = array<i32>} : memref<72x1024xf32, #tpu.memory_space<vmem>>, vector<2x1024xf32>,
    %c0_382 = arith.constant 0 : index
    %c0_383 = arith.constant 0 : index
    %719 = vector.load %arg15[%c0_382, %c0_383] : memref<72x1024xf32, #tpu.memory_space<vmem>>, vector<18x1024xf32>
    %720 = arith.truncf %719 : vector<18x1024xf32> to vector<18x1024xbf16>
    %c0_384 = arith.constant 0 : index
    %c0_385 = arith.constant 0 : index
    %721 = vector.load %arg13[%c0_384, %c0_385] : memref<2x18xbf16, #tpu.memory_space<vmem>>, vector<2x18xbf16>
    %cst_386 = arith.constant dense<0.000000e+00> : vector<2x1024xf32>
    %722 = tpu.matmul %721, %720, %cst_386 {dimension_numbers = #tpu.dot_dimension_numbers<[1], [0], [0], [1], [0, 0, 1, 1], [], []>} : vector<2x18xbf16>, vector<18x1024xbf16>, vector<2x1024xf32> -> vector<2x1024xf32>
    %cst_387 = arith.constant 0.000000e+00 : f32
    %723 = vector.broadcast %cst_387 : f32 to vector<2x1024xf32>
    %724 = arith.cmpf oge, %722, %723 : vector<2x1024xf32>
    %cst_388 = arith.constant 0.00999999977 : f32
    %725 = vector.broadcast %cst_388 : f32 to vector<2x1024xf32>
    %726 = arith.mulf %725, %722 : vector<2x1024xf32>
    %727 = arith.select %724, %722, %726 : vector<2x1024xi1>, vector<2x1024xf32>
    %c0_389 = arith.constant 0 : index
    %c0_390 = arith.constant 0 : index
    %c0_391 = arith.constant 0 : index
    %728 = vector.load %arg14[%c0_389, %c0_390, %c0_391] : memref<1x2x1024xf32, #tpu.memory_space<vmem>>, vector<1x2x1024xf32>
    %729 = vector.shape_cast %728 : vector<1x2x1024xf32> to vector<2x1024xf32>
    %730 = vector.shape_cast %727 : vector<2x1024xf32> to vector<1x2x1024xf32>
    tpu.vector_store %arg14[%c0_389, %c0_390, %c0_391], %730 {strides = array<i32>} : memref<1x2x1024xf32, #tpu.memory_space<vmem>>, vector<1x2x1024xf32>,
    return
  }
  func.func @transform_0(%arg0: i32) -> (i32, i32, i32) {
    %c0_i32 = arith.constant 0 : i32
    %c0_i32_0 = arith.constant 0 : i32
    %c0_i32_1 = arith.constant 0 : i32
    return %arg0, %c0_i32, %c0_i32_0 : i32, i32, i32
  }
  func.func @transform_1(%arg0: i32) -> (i32, i32, i32) {
    %c0_i32 = arith.constant 0 : i32
    %c0_i32_0 = arith.constant 0 : i32
    %c0_i32_1 = arith.constant 0 : i32
    return %arg0, %c0_i32, %c0_i32_0 : i32, i32, i32
  }
  func.func @transform_2(%arg0: i32) -> (i32, i32) {
    %c0_i32 = arith.constant 0 : i32
    %c0_i32_0 = arith.constant 0 : i32
    %c0_i32_1 = arith.constant 0 : i32
    return %c0_i32, %c0_i32_0 : i32, i32
  }
  func.func @transform_3(%arg0: i32) -> (i32, i32) {
    %c0_i32 = arith.constant 0 : i32
    %c0_i32_0 = arith.constant 0 : i32
    %c0_i32_1 = arith.constant 0 : i32
    return %c0_i32, %c0_i32_0 : i32, i32
  }
  func.func @transform_4(%arg0: i32) -> (i32, i32) {
    %c0_i32 = arith.constant 0 : i32
    %c0_i32_0 = arith.constant 0 : i32
    %c0_i32_1 = arith.constant 0 : i32
    return %c0_i32, %c0_i32_0 : i32, i32
  }
  func.func @transform_5(%arg0: i32) -> (i32, i32) {
    %c0_i32 = arith.constant 0 : i32
    %c0_i32_0 = arith.constant 0 : i32
    %c0_i32_1 = arith.constant 0 : i32
    return %c0_i32, %c0_i32_0 : i32, i32
  }
  func.func @transform_6(%arg0: i32) -> (i32, i32) {
    %c0_i32 = arith.constant 0 : i32
    %c0_i32_0 = arith.constant 0 : i32
    %c0_i32_1 = arith.constant 0 : i32
    return %c0_i32, %c0_i32_0 : i32, i32
  }
  func.func @transform_7(%arg0: i32) -> (i32, i32, i32) {
    %c0_i32 = arith.constant 0 : i32
    %c0_i32_0 = arith.constant 0 : i32
    %c0_i32_1 = arith.constant 0 : i32
    return %arg0, %c0_i32, %c0_i32_0 : i32, i32, i32
  }
  func.func @transform_8(%arg0: i32) -> (i32, i32) {
    %c0_i32 = arith.constant 0 : i32
    %c0_i32_0 = arith.constant 0 : i32
    %c0_i32_1 = arith.constant 0 : i32
    return %c0_i32, %c0_i32_0 : i32, i32
  }
  func.func @transform_9(%arg0: i32) -> (i32, i32) {
    %c0_i32 = arith.constant 0 : i32
    %c0_i32_0 = arith.constant 0 : i32
    %c0_i32_1 = arith.constant 0 : i32
    return %c0_i32, %c0_i32_0 : i32, i32
  }
  func.func @transform_10(%arg0: i32) -> (i32, i32) {
    %c0_i32 = arith.constant 0 : i32
    %c0_i32_0 = arith.constant 0 : i32
    %c0_i32_1 = arith.constant 0 : i32
    return %c0_i32, %c0_i32_0 : i32, i32
  }
  func.func @transform_11(%arg0: i32) -> (i32, i32) {
    %c0_i32 = arith.constant 0 : i32
    %c0_i32_0 = arith.constant 0 : i32
    %c0_i32_1 = arith.constant 0 : i32
    return %c0_i32, %c0_i32_0 : i32, i32
  }
  func.func @transform_12(%arg0: i32) -> (i32, i32) {
    %c0_i32 = arith.constant 0 : i32
    %c0_i32_0 = arith.constant 0 : i32
    %c0_i32_1 = arith.constant 0 : i32
    return %c0_i32, %c0_i32_0 : i32, i32
  }
  func.func @transform_13(%arg0: i32) -> (i32, i32, i32) {
    %c0_i32 = arith.constant 0 : i32
    %c0_i32_0 = arith.constant 0 : i32
    %c0_i32_1 = arith.constant 0 : i32
    return %arg0, %c0_i32, %c0_i32_0 : i32, i32, i32
  }
}

</mosaic_0001>

<llo_original>
// kernel: _decoder_forward.1
$region0: #{_decoder_forward.1}
  #allocation0 [shape = 'u32[]', space=smem, size = 0x4, offset = 0x4, fixed_abs, tag = 'smem constant byte address 0x4 - core index']
  #allocation1 [shape = 'u32[144,128]{1,0:T(1,128)}', space=vmem, size = 0x12000, scoped, tag = 'internal scratch']
  #allocation2 [shape = 'f32[72,1024]{1,0:T(8,128)}', space=vmem, size = 0x48000, scoped, tag = 'scratch operand']
  #allocation3 [shape = 'f32[8,1024]{1,0:T(8,128)}', space=vmem, size = 0x8000, scoped, tag = 'scratch operand']
  %s0 = inlined_call_operand.vmem [shape: f32[2,8,64], index: 0, kind: input, shape index: {}]
  %s1 = inlined_call_operand.vmem [shape: f32[2,4,256], index: 1, kind: input, shape index: {}]
  %s2 = inlined_call_operand.vmem [shape: bf16[8,16], index: 2, kind: input, shape index: {}]
  %s3 = inlined_call_operand.vmem [shape: f32[2,256], index: 3, kind: input, shape index: {}]
  %s4 = inlined_call_operand.vmem [shape: bf16[4,72], index: 4, kind: input, shape index: {}]
  %s5 = inlined_call_operand.vmem [shape: bf16[4,72], index: 5, kind: input, shape index: {}]
  %s6 = inlined_call_operand.vmem [shape: bf16[4,36], index: 6, kind: input, shape index: {}]
  %s7 = inlined_call_operand.vmem [shape: f32[2,2,1024], index: 7, kind: input, shape index: {}]
  %s8 = inlined_call_operand.vmem [shape: bf16[16,32], index: 8, kind: input, shape index: {}]
  %s9 = inlined_call_operand.vmem [shape: f32[2,1024], index: 9, kind: input, shape index: {}]
  %s10 = inlined_call_operand.vmem [shape: bf16[2,36], index: 10, kind: input, shape index: {}]
  %s11 = inlined_call_operand.vmem [shape: bf16[2,36], index: 11, kind: input, shape index: {}]
  %s12 = inlined_call_operand.vmem [shape: bf16[2,18], index: 12, kind: input, shape index: {}]
  %s13 = inlined_call_operand.vmem [shape: f32[2,2,1024], index: 13, kind: output, shape index: {}]
  %s14 = sld [smem:[#allocation0]]
  $region85: #{_decoder_forward.1} parent=0
    _
  %s16 = ssub.s32 1, %s14
  %s17 = scalar_select 0, %s16, %s14
  loop: start=0, step=1, limit=4
  $region2: #{_decoder_forward.1} parent=0 // loop_pre_header
    _
  $region3: #{_decoder_forward.1} parent=0 // loop_header
    %s19 = sphi 0, %s23
    %p20 = scmp.ge.s32.totalorder %s19, 4
    %s29 = sphi 0, %s31
    %s32 = sphi 0, %s29
    %s33 = sphi 0, %s32
    %s49 = sphi 0, %s33
    %s55 = sphi 0, %s57
    %s58 = sphi 0, %s55
    %s59 = sphi 0, %s58
    %s75 = sphi 0, %s59
    %s79 = sphi 0, %s79
    %s81 = sphi 0, %s79
    %s82 = sphi 0, %s81
    %s96 = sphi 0, %s82
    %s100 = sphi 0, %s100
    %s102 = sphi 0, %s100
    %s103 = sphi 0, %s102
    %s117 = sphi 0, %s103
    %s121 = sphi 0, %s121
    %s123 = sphi 0, %s121
    %s124 = sphi 0, %s123
    %s138 = sphi 0, %s124
    %s142 = sphi 0, %s142
    %s144 = sphi 0, %s142
    %s145 = sphi 0, %s144
    %s159 = sphi 0, %s145
    %s163 = sphi 0, %s163
    %s165 = sphi 0, %s163
    %s166 = sphi 0, %s165
    %s180 = sphi 0, %s166
    %s186 = sphi 0, %s188
    %s189 = sphi 0, %s186
    %s190 = sphi 0, %s189
    %s206 = sphi 0, %s190
    %s210 = sphi 0, %s210
    %s212 = sphi 0, %s210
    %s213 = sphi 0, %s212
    %s227 = sphi 0, %s213
    %s231 = sphi 0, %s231
    %s233 = sphi 0, %s231
    %s234 = sphi 0, %s233
    %s248 = sphi 0, %s234
    %s252 = sphi 0, %s252
    %s254 = sphi 0, %s252
    %s255 = sphi 0, %s254
    %s269 = sphi 0, %s255
    %s273 = sphi 0, %s273
    %s275 = sphi 0, %s273
    %s276 = sphi 0, %s275
    %s290 = sphi 0, %s276
    %s294 = sphi 0, %s294
    %s296 = sphi 0, %s294
    %s297 = sphi 0, %s296
    %s311 = sphi 0, %s297
    %s317 = sphi 0, %s319
    %s320 = sphi 0, %s317
    %s321 = sphi 0, %s320
    %s337 = sphi 0, %s321
  $region4: #{_decoder_forward.1} parent=0 // loop_header_branch
    %22 = sbr.rel (%p20) target = $region8
  $region5: #{_decoder_forward.1} parent=0 // loop_body
    %s24 = ssub.s32 %s19, 1
    %s25 = ssub.s32 %s19, 2
    %s26 = sadd.s32 %s19, 1
    %s27 = ssub.s32 %s19, %s26
    %p28 = scmp.eq.s32.totalorder %s27, 0
    %s30 = sadd.s32 %s29, 1
    %s31 = scalar_select %p28, %s29, %s30
    %p34 = pneg %p28
    %p35 = scmp.eq.s32.totalorder %s19, 1
    %p36 = por %p34, %p35
    %p37 = scmp.ne.s32.totalorder %s29, %s32
    %p38 = scmp.eq.s32.totalorder %s19, 0
    %p39 = por %p37, %p38
    %p40 = scmp.ne.s32.totalorder %s29, %s32
    %p41 = scmp.eq.s32.totalorder %s24, 1
    %p42 = por %p40, %p41
    %p43 = scmp.ne.s32.totalorder %s32, %s33
    %p44 = scmp.eq.s32.totalorder %s24, 0
    %p45 = por %p43, %p44
    %p46 = scmp.ne.s32.totalorder %s32, %s33
    %p47 = scmp.eq.s32.totalorder %s25, 1
    %p48 = por %p46, %p47
    %p50 = scmp.ne.s32.totalorder %s33, %s49
    %p51 = scmp.eq.s32.totalorder %s25, 0
    %p52 = por %p50, %p51
    %s53 = ssub.s32 %s19, %s26
    %p54 = scmp.eq.s32.totalorder %s53, 0
    %s56 = sadd.s32 %s55, 1
    %s57 = scalar_select %p54, %s55, %s56
    %p60 = pneg %p54
    %p61 = scmp.eq.s32.totalorder %s19, 1
    %p62 = por %p60, %p61
    %p63 = scmp.ne.s32.totalorder %s55, %s58
    %p64 = scmp.eq.s32.totalorder %s19, 0
    %p65 = por %p63, %p64
    %p66 = scmp.ne.s32.totalorder %s55, %s58
    %p67 = scmp.eq.s32.totalorder %s24, 1
    %p68 = por %p66, %p67
    %p69 = scmp.ne.s32.totalorder %s58, %s59
    %p70 = scmp.eq.s32.totalorder %s24, 0
    %p71 = por %p69, %p70
    %p72 = scmp.ne.s32.totalorder %s58, %s59
    %p73 = scmp.eq.s32.totalorder %s25, 1
    %p74 = por %p72, %p73
    %p76 = scmp.ne.s32.totalorder %s59, %s75
    %p77 = scmp.eq.s32.totalorder %s25, 0
    %p78 = por %p76, %p77
    %s80 = sadd.s32 %s79, 1
    %p83 = scmp.eq.s32.totalorder %s19, 1
    %p84 = scmp.ne.s32.totalorder %s79, %s81
    %p85 = scmp.eq.s32.totalorder %s19, 0
    %p86 = por %p84, %p85
    %p87 = scmp.ne.s32.totalorder %s79, %s81
    %p88 = scmp.eq.s32.totalorder %s24, 1
    %p89 = por %p87, %p88
    %p90 = scmp.ne.s32.totalorder %s81, %s82
    %p91 = scmp.eq.s32.totalorder %s24, 0
    %p92 = por %p90, %p91
    %p93 = scmp.ne.s32.totalorder %s81, %s82
    %p94 = scmp.eq.s32.totalorder %s25, 1
    %p95 = por %p93, %p94
    %p97 = scmp.ne.s32.totalorder %s82, %s96
    %p98 = scmp.eq.s32.totalorder %s25, 0
    %p99 = por %p97, %p98
    %s101 = sadd.s32 %s100, 1
    %p104 = scmp.eq.s32.totalorder %s19, 1
    %p105 = scmp.ne.s32.totalorder %s100, %s102
    %p106 = scmp.eq.s32.totalorder %s19, 0
    %p107 = por %p105, %p106
    %p108 = scmp.ne.s32.totalorder %s100, %s102
    %p109 = scmp.eq.s32.totalorder %s24, 1
    %p110 = por %p108, %p109
    %p111 = scmp.ne.s32.totalorder %s102, %s103
    %p112 = scmp.eq.s32.totalorder %s24, 0
    %p113 = por %p111, %p112
    %p114 = scmp.ne.s32.totalorder %s102, %s103
    %p115 = scmp.eq.s32.totalorder %s25, 1
    %p116 = por %p114, %p115
    %p118 = scmp.ne.s32.totalorder %s103, %s117
    %p119 = scmp.eq.s32.totalorder %s25, 0
    %p120 = por %p118, %p119
    %s122 = sadd.s32 %s121, 1
    %p125 = scmp.eq.s32.totalorder %s19, 1
    %p126 = scmp.ne.s32.totalorder %s121, %s123
    %p127 = scmp.eq.s32.totalorder %s19, 0
    %p128 = por %p126, %p127
    %p129 = scmp.ne.s32.totalorder %s121, %s123
    %p130 = scmp.eq.s32.totalorder %s24, 1
    %p131 = por %p129, %p130
    %p132 = scmp.ne.s32.totalorder %s123, %s124
    %p133 = scmp.eq.s32.totalorder %s24, 0
    %p134 = por %p132, %p133
    %p135 = scmp.ne.s32.totalorder %s123, %s124
    %p136 = scmp.eq.s32.totalorder %s25, 1
    %p137 = por %p135, %p136
    %p139 = scmp.ne.s32.totalorder %s124, %s138
    %p140 = scmp.eq.s32.totalorder %s25, 0
    %p141 = por %p139, %p140
    %s143 = sadd.s32 %s142, 1
    %p146 = scmp.eq.s32.totalorder %s19, 1
    %p147 = scmp.ne.s32.totalorder %s142, %s144
    %p148 = scmp.eq.s32.totalorder %s19, 0
    %p149 = por %p147, %p148
    %p150 = scmp.ne.s32.totalorder %s142, %s144
    %p151 = scmp.eq.s32.totalorder %s24, 1
    %p152 = por %p150, %p151
    %p153 = scmp.ne.s32.totalorder %s144, %s145
    %p154 = scmp.eq.s32.totalorder %s24, 0
    %p155 = por %p153, %p154
    %p156 = scmp.ne.s32.totalorder %s144, %s145
    %p157 = scmp.eq.s32.totalorder %s25, 1
    %p158 = por %p156, %p157
    %p160 = scmp.ne.s32.totalorder %s145, %s159
    %p161 = scmp.eq.s32.totalorder %s25, 0
    %p162 = por %p160, %p161
    %s164 = sadd.s32 %s163, 1
    %p167 = scmp.eq.s32.totalorder %s19, 1
    %p168 = scmp.ne.s32.totalorder %s163, %s165
    %p169 = scmp.eq.s32.totalorder %s19, 0
    %p170 = por %p168, %p169
    %p171 = scmp.ne.s32.totalorder %s163, %s165
    %p172 = scmp.eq.s32.totalorder %s24, 1
    %p173 = por %p171, %p172
    %p174 = scmp.ne.s32.totalorder %s165, %s166
    %p175 = scmp.eq.s32.totalorder %s24, 0
    %p176 = por %p174, %p175
    %p177 = scmp.ne.s32.totalorder %s165, %s166
    %p178 = scmp.eq.s32.totalorder %s25, 1
    %p179 = por %p177, %p178
    %p181 = scmp.ne.s32.totalorder %s166, %s180
    %p182 = scmp.eq.s32.totalorder %s25, 0
    %p183 = por %p181, %p182
    %s184 = ssub.s32 %s19, %s26
    %p185 = scmp.eq.s32.totalorder %s184, 0
    %s187 = sadd.s32 %s186, 1
    %s188 = scalar_select %p185, %s186, %s187
    %p191 = pneg %p185
    %p192 = scmp.eq.s32.totalorder %s19, 1
    %p193 = por %p191, %p192
    %p194 = scmp.ne.s32.totalorder %s186, %s189
    %p195 = scmp.eq.s32.totalorder %s19, 0
    %p196 = por %p194, %p195
    %p197 = scmp.ne.s32.totalorder %s186, %s189
    %p198 = scmp.eq.s32.totalorder %s24, 1
    %p199 = por %p197, %p198
    %p200 = scmp.ne.s32.totalorder %s189, %s190
    %p201 = scmp.eq.s32.totalorder %s24, 0
    %p202 = por %p200, %p201
    %p203 = scmp.ne.s32.totalorder %s189, %s190
    %p204 = scmp.eq.s32.totalorder %s25, 1
    %p205 = por %p203, %p204
    %p207 = scmp.ne.s32.totalorder %s190, %s206
    %p208 = scmp.eq.s32.totalorder %s25, 0
    %p209 = por %p207, %p208
    %s211 = sadd.s32 %s210, 1
    %p214 = scmp.eq.s32.totalorder %s19, 1
    %p215 = scmp.ne.s32.totalorder %s210, %s212
    %p216 = scmp.eq.s32.totalorder %s19, 0
    %p217 = por %p215, %p216
    %p218 = scmp.ne.s32.totalorder %s210, %s212
    %p219 = scmp.eq.s32.totalorder %s24, 1
    %p220 = por %p218, %p219
    %p221 = scmp.ne.s32.totalorder %s212, %s213
    %p222 = scmp.eq.s32.totalorder %s24, 0
    %p223 = por %p221, %p222
    %p224 = scmp.ne.s32.totalorder %s212, %s213
    %p225 = scmp.eq.s32.totalorder %s25, 1
    %p226 = por %p224, %p225
    %p228 = scmp.ne.s32.totalorder %s213, %s227
    %p229 = scmp.eq.s32.totalorder %s25, 0
    %p230 = por %p228, %p229
    %s232 = sadd.s32 %s231, 1
    %p235 = scmp.eq.s32.totalorder %s19, 1
    %p236 = scmp.ne.s32.totalorder %s231, %s233
    %p237 = scmp.eq.s32.totalorder %s19, 0
    %p238 = por %p236, %p237
    %p239 = scmp.ne.s32.totalorder %s231, %s233
    %p240 = scmp.eq.s32.totalorder %s24, 1
    %p241 = por %p239, %p240
    %p242 = scmp.ne.s32.totalorder %s233, %s234
    %p243 = scmp.eq.s32.totalorder %s24, 0
    %p244 = por %p242, %p243
    %p245 = scmp.ne.s32.totalorder %s233, %s234
    %p246 = scmp.eq.s32.totalorder %s25, 1
    %p247 = por %p245, %p246
    %p249 = scmp.ne.s32.totalorder %s234, %s248
    %p250 = scmp.eq.s32.totalorder %s25, 0
    %p251 = por %p249, %p250
    %s253 = sadd.s32 %s252, 1
    %p256 = scmp.eq.s32.totalorder %s19, 1
    %p257 = scmp.ne.s32.totalorder %s252, %s254
    %p258 = scmp.eq.s32.totalorder %s19, 0
    %p259 = por %p257, %p258
    %p260 = scmp.ne.s32.totalorder %s252, %s254
    %p261 = scmp.eq.s32.totalorder %s24, 1
    %p262 = por %p260, %p261
    %p263 = scmp.ne.s32.totalorder %s254, %s255
    %p264 = scmp.eq.s32.totalorder %s24, 0
    %p265 = por %p263, %p264
    %p266 = scmp.ne.s32.totalorder %s254, %s255
    %p267 = scmp.eq.s32.totalorder %s25, 1
    %p268 = por %p266, %p267
    %p270 = scmp.ne.s32.totalorder %s255, %s269
    %p271 = scmp.eq.s32.totalorder %s25, 0
    %p272 = por %p270, %p271
    %s274 = sadd.s32 %s273, 1
    %p277 = scmp.eq.s32.totalorder %s19, 1
    %p278 = scmp.ne.s32.totalorder %s273, %s275
    %p279 = scmp.eq.s32.totalorder %s19, 0
    %p280 = por %p278, %p279
    %p281 = scmp.ne.s32.totalorder %s273, %s275
    %p282 = scmp.eq.s32.totalorder %s24, 1
    %p283 = por %p281, %p282
    %p284 = scmp.ne.s32.totalorder %s275, %s276
    %p285 = scmp.eq.s32.totalorder %s24, 0
    %p286 = por %p284, %p285
    %p287 = scmp.ne.s32.totalorder %s275, %s276
    %p288 = scmp.eq.s32.totalorder %s25, 1
    %p289 = por %p287, %p288
    %p291 = scmp.ne.s32.totalorder %s276, %s290
    %p292 = scmp.eq.s32.totalorder %s25, 0
    %p293 = por %p291, %p292
    %s295 = sadd.s32 %s294, 1
    %p298 = scmp.eq.s32.totalorder %s19, 1
    %p299 = scmp.ne.s32.totalorder %s294, %s296
    %p300 = scmp.eq.s32.totalorder %s19, 0
    %p301 = por %p299, %p300
    %p302 = scmp.ne.s32.totalorder %s294, %s296
    %p303 = scmp.eq.s32.totalorder %s24, 1
    %p304 = por %p302, %p303
    %p305 = scmp.ne.s32.totalorder %s296, %s297
    %p306 = scmp.eq.s32.totalorder %s24, 0
    %p307 = por %p305, %p306
    %p308 = scmp.ne.s32.totalorder %s296, %s297
    %p309 = scmp.eq.s32.totalorder %s25, 1
    %p310 = por %p308, %p309
    %p312 = scmp.ne.s32.totalorder %s297, %s311
    %p313 = scmp.eq.s32.totalorder %s25, 0
    %p314 = por %p312, %p313
    %s315 = ssub.s32 %s19, %s26
    %p316 = scmp.eq.s32.totalorder %s315, 0
    %s318 = sadd.s32 %s317, 1
    %s319 = scalar_select %p316, %s317, %s318
    %p322 = pneg %p316
    %p323 = scmp.eq.s32.totalorder %s19, 1
    %p324 = por %p322, %p323
    %p325 = scmp.ne.s32.totalorder %s317, %s320
    %p326 = scmp.eq.s32.totalorder %s19, 0
    %p327 = por %p325, %p326
    %p328 = scmp.ne.s32.totalorder %s317, %s320
    %p329 = scmp.eq.s32.totalorder %s24, 1
    %p330 = por %p328, %p329
    %p331 = scmp.ne.s32.totalorder %s320, %s321
    %p332 = scmp.eq.s32.totalorder %s24, 0
    %p333 = por %p331, %p332
    %p334 = scmp.ne.s32.totalorder %s320, %s321
    %p335 = scmp.eq.s32.totalorder %s25, 1
    %p336 = por %p334, %p335
    %p338 = scmp.ne.s32.totalorder %s321, %s337
    %p339 = scmp.eq.s32.totalorder %s25, 0
    %p340 = por %p338, %p339
    %p341 = scmp.le.s32.totalorder 1, %s19
    %p342 = scmp.lt.s32.totalorder %s19, 3
    %p343 = pnand %p341, %p342
    %p344 = pneg %p343
    // Predicated region
    $region9: #{_decoder_forward.1} parent=5 // pred_check
      _
    $region10: #{_decoder_forward.1} parent=5 // pred_check_branch
      %346 = sbr.rel (%p343) target = $region12
    $region11: #{_decoder_forward.1} parent=5 // pred_region
      %s347 = ssub.s32 %s19, 1
      // Predicated region
      $region13: #{_decoder_forward.1} parent=11 // pred_check
        %p348 = pneg %p92
      $region14: #{_decoder_forward.1} parent=11 // pred_check_branch
        %350 = sbr.rel (%p348) target = $region16
      $region15: #{_decoder_forward.1} parent=11 // pred_region
        _
      $region16: #{_decoder_forward.1} parent=11 // pred_fallthru
        _
      // Predicated region
      $region17: #{_decoder_forward.1} parent=11 // pred_check
        %p351 = pneg %p113
      $region18: #{_decoder_forward.1} parent=11 // pred_check_branch
        %353 = sbr.rel (%p351) target = $region20
      $region19: #{_decoder_forward.1} parent=11 // pred_region
        _
      $region20: #{_decoder_forward.1} parent=11 // pred_fallthru
        _
      // Predicated region
      $region21: #{_decoder_forward.1} parent=11 // pred_check
        %p354 = pneg %p134
      $region22: #{_decoder_forward.1} parent=11 // pred_check_branch
        %356 = sbr.rel (%p354) target = $region24
      $region23: #{_decoder_forward.1} parent=11 // pred_region
        _
      $region24: #{_decoder_forward.1} parent=11 // pred_fallthru
        _
      // Predicated region
      $region25: #{_decoder_forward.1} parent=11 // pred_check
        %p357 = pneg %p155
      $region26: #{_decoder_forward.1} parent=11 // pred_check_branch
        %359 = sbr.rel (%p357) target = $region28
      $region27: #{_decoder_forward.1} parent=11 // pred_region
        _
      $region28: #{_decoder_forward.1} parent=11 // pred_fallthru
        _
      // Predicated region
      $region29: #{_decoder_forward.1} parent=11 // pred_check
        %p360 = pneg %p176
      $region30: #{_decoder_forward.1} parent=11 // pred_check_branch
        %362 = sbr.rel (%p360) target = $region32
      $region31: #{_decoder_forward.1} parent=11 // pred_region
        _
      $region32: #{_decoder_forward.1} parent=11 // pred_fallthru
        _
      // Predicated region
      $region33: #{_decoder_forward.1} parent=11 // pred_check
        %p363 = pneg %p223
      $region34: #{_decoder_forward.1} parent=11 // pred_check_branch
        %365 = sbr.rel (%p363) target = $region36
      $region35: #{_decoder_forward.1} parent=11 // pred_region
        _
      $region36: #{_decoder_forward.1} parent=11 // pred_fallthru
        _
      // Predicated region
      $region37: #{_decoder_forward.1} parent=11 // pred_check
        %p366 = pneg %p244
      $region38: #{_decoder_forward.1} parent=11 // pred_check_branch
        %368 = sbr.rel (%p366) target = $region40
      $region39: #{_decoder_forward.1} parent=11 // pred_region
        _
      $region40: #{_decoder_forward.1} parent=11 // pred_fallthru
        _
      // Predicated region
      $region41: #{_decoder_forward.1} parent=11 // pred_check
        %p369 = pneg %p265
      $region42: #{_decoder_forward.1} parent=11 // pred_check_branch
        %371 = sbr.rel (%p369) target = $region44
      $region43: #{_decoder_forward.1} parent=11 // pred_region
        _
      $region44: #{_decoder_forward.1} parent=11 // pred_fallthru
        _
      // Predicated region
      $region45: #{_decoder_forward.1} parent=11 // pred_check
        %p372 = pneg %p286
      $region46: #{_decoder_forward.1} parent=11 // pred_check_branch
        %374 = sbr.rel (%p372) target = $region48
      $region47: #{_decoder_forward.1} parent=11 // pred_region
        _
      $region48: #{_decoder_forward.1} parent=11 // pred_fallthru
        _
      // Predicated region
      $region49: #{_decoder_forward.1} parent=11 // pred_check
        %p375 = pneg %p307
      $region50: #{_decoder_forward.1} parent=11 // pred_check_branch
        %377 = sbr.rel (%p375) target = $region52
      $region51: #{_decoder_forward.1} parent=11 // pred_region
        _
      $region52: #{_decoder_forward.1} parent=11 // pred_fallthru
        _
    $region12: #{_decoder_forward.1} parent=5 // pred_fallthru
      _
    %p378 = scmp.lt.s32.totalorder %s19, 2
    // Predicated region
    $region53: #{_decoder_forward.1} parent=5 // pred_check
      %p379 = pneg %p378
    $region54: #{_decoder_forward.1} parent=5 // pred_check_branch
      %381 = sbr.rel (%p379) target = $region56
    $region55: #{_decoder_forward.1} parent=5 // pred_region
      // Predicated region
      $region57: #{_decoder_forward.1} parent=55 // pred_check
        %p382 = pneg %p39
      $region58: #{_decoder_forward.1} parent=55 // pred_check_branch
        %384 = sbr.rel (%p382) target = $region60
      $region59: #{_decoder_forward.1} parent=55 // pred_region
        %p385 = scmp.lt.s32.totalorder %s19, 1
        %s386 = scalar_select %p385, %s19, 1
        %s387 = smul.addr %s386, 8
        %s388 = scalar_lea.vmem %s0, %s387
      $region60: #{_decoder_forward.1} parent=55 // pred_fallthru
        _
      // Predicated region
      $region61: #{_decoder_forward.1} parent=55 // pred_check
        %p389 = pneg %p65
      $region62: #{_decoder_forward.1} parent=55 // pred_check_branch
        %391 = sbr.rel (%p389) target = $region64
      $region63: #{_decoder_forward.1} parent=55 // pred_region
        %p392 = scmp.lt.s32.totalorder %s19, 1
        %s393 = scalar_select %p392, %s19, 1
        %s394 = smul.addr %s393, 2
        %s395 = smul.addr %s394, 4
        %s396 = scalar_lea.vmem %s1, %s395
      $region64: #{_decoder_forward.1} parent=55 // pred_fallthru
        _
      // Predicated region
      $region65: #{_decoder_forward.1} parent=55 // pred_check
        %p397 = pneg %p196
      $region66: #{_decoder_forward.1} parent=55 // pred_check_branch
        %399 = sbr.rel (%p397) target = $region68
      $region67: #{_decoder_forward.1} parent=55 // pred_region
        %p400 = scmp.lt.s32.totalorder %s19, 1
        %s401 = scalar_select %p400, %s19, 1
        %s402 = smul.addr %s401, 8
        %s403 = smul.addr %s402, 2
        %s404 = scalar_lea.vmem %s7, %s403
      $region68: #{_decoder_forward.1} parent=55 // pred_fallthru
        _
    $region56: #{_decoder_forward.1} parent=5 // pred_fallthru
      _
    %p405 = scmp.le.s32.totalorder 1, %s19
    %p406 = scmp.lt.s32.totalorder %s19, 3
    %p407 = pnand %p405, %p406
    %p408 = pneg %p407
    // Predicated region
    $region69: #{_decoder_forward.1} parent=5 // pred_check
      _
    $region70: #{_decoder_forward.1} parent=5 // pred_check_branch
      %410 = sbr.rel (%p407) target = $region72
    $region71: #{_decoder_forward.1} parent=5 // pred_region
      %s411 = ssub.s32 %s19, 1
      %p412 = scmp.lt.s32.totalorder %s24, 1
      %s413 = scalar_select %p412, %s24, 1
      %s414 = smul.addr %s413, 8
      %s415 = scalar_lea.vmem %s0, %s414
      %p416 = pneg %p45
      %p417 = pneg %p42
      %p418 = scmp.lt.s32.totalorder %s24, 1
      %s419 = scalar_select %p418, %s24, 1
      %s420 = smul.addr %s419, 2
      %s421 = smul.addr %s420, 4
      %s422 = scalar_lea.vmem %s1, %s421
      %p423 = pneg %p71
      %p424 = pneg %p68
      %p425 = pneg %p92
      %p426 = pneg %p89
      %p427 = pneg %p113
      %p428 = pneg %p110
      %p429 = pneg %p134
      %p430 = pneg %p131
      %p431 = pneg %p155
      %p432 = pneg %p152
      %p433 = pneg %p176
      %p434 = pneg %p173
      %p435 = scmp.lt.s32.totalorder %s24, 1
      %s436 = scalar_select %p435, %s24, 1
      %s437 = smul.addr %s436, 8
      %s438 = smul.addr %s437, 2
      %s439 = scalar_lea.vmem %s7, %s438
      %p440 = pneg %p202
      %p441 = pneg %p199
      %p442 = pneg %p223
      %p443 = pneg %p220
      %p444 = pneg %p244
      %p445 = pneg %p241
      %p446 = pneg %p265
      %p447 = pneg %p262
      %p448 = pneg %p286
      %p449 = pneg %p283
      %p450 = pneg %p307
      %p451 = pneg %p304
      %p452 = pneg %p333
      %p453 = pneg %p330
      %p454 = scmp.lt.s32.totalorder %s24, 1
      %s455 = scalar_select %p454, %s24, 1
      %s456 = smul.addr %s455, 8
      %s457 = smul.addr %s456, 2
      %s458 = scalar_lea.vmem %s13, %s457
      %p459 = scmp.lt.s32.totalorder %s24, 1
      %s460 = scalar_select %p459, %s24, 1
      %s461 = smul.addr %s460, 8
      %s462 = scalar_lea.vmem %s0, %s461
      %p463 = scmp.lt.s32.totalorder %s24, 1
      %s464 = scalar_select %p463, %s24, 1
      %s465 = smul.addr %s464, 2
      %s466 = smul.addr %s465, 4
      %s467 = scalar_lea.vmem %s1, %s466
      %p468 = scmp.lt.s32.totalorder %s24, 1
      %s469 = scalar_select %p468, %s24, 1
      %s470 = smul.addr %s469, 8
      %s471 = smul.addr %s470, 2
      %s472 = scalar_lea.vmem %s7, %s471
      %p473 = scmp.lt.s32.totalorder %s24, 1
      %s474 = scalar_select %p473, %s24, 1
      %s475 = smul.addr %s474, 8
      %s476 = smul.addr %s475, 2
      %s477 = scalar_lea.vmem %s13, %s476
      %v479 = vld [vmem:[%s462] sm:$0xff]
      %vm480 = vcmask 64512
      %481 = vst.msk [vmem:[#allocation2] sm:$0xff] %vm480, %v479
      %483 = vrot.lane.b32.xlu0 %v479, 120
      %v484 = vpop.permute.xlu0 %483
      %486 = vst.msk [vmem:[#allocation2 + $0x40] sm:$0xff] %vm480, %v484
      %487 = vrot.lane.b32.xlu0 %v479, 112
      %v488 = vpop.permute.xlu0 %487
      %490 = vst.msk [vmem:[#allocation2 + $0x80] sm:$0xff] %vm480, %v488
      %491 = vrot.lane.b32.xlu0 %v479, 104
      %v492 = vpop.permute.xlu0 %491
      %494 = vst.msk [vmem:[#allocation2 + $0xc0] sm:$0xff] %vm480, %v492
      %495 = vrot.lane.b32.xlu0 %v479, 96
      %v496 = vpop.permute.xlu0 %495
      %498 = vst.msk [vmem:[#allocation2 + $0x100] sm:$0xff] %vm480, %v496
      %499 = vrot.lane.b32.xlu0 %v479, 88
      %v500 = vpop.permute.xlu0 %499
      %502 = vst.msk [vmem:[#allocation2 + $0x140] sm:$0xff] %vm480, %v500
      %503 = vrot.lane.b32.xlu0 %v479, 80
      %v504 = vpop.permute.xlu0 %503
      %506 = vst.msk [vmem:[#allocation2 + $0x180] sm:$0xff] %vm480, %v504
      %507 = vrot.lane.b32.xlu0 %v479, 72
      %v508 = vpop.permute.xlu0 %507
      %510 = vst.msk [vmem:[#allocation2 + $0x1c0] sm:$0xff] %vm480, %v508
      %v511 = vld [vmem:[#allocation2] sm:$0xff]
      %v512 = vld [vmem:[#allocation2 + $0x40] sm:$0xff]
      %v513 = vld [vmem:[#allocation2 + $0x80] sm:$0xff]
      %v514 = vld [vmem:[#allocation2 + $0xc0] sm:$0xff]
      %v515 = vld [vmem:[#allocation2 + $0x100] sm:$0xff]
      %v516 = vld [vmem:[#allocation2 + $0x140] sm:$0xff]
      %v517 = vld [vmem:[#allocation2 + $0x180] sm:$0xff]
      %v518 = vld [vmem:[#allocation2 + $0x1c0] sm:$0xff]
      %v519 = vpack.c.bf16 %v512, %v511
      %v520 = vpack.c.bf16 %v514, %v513
      %v521 = vpack.c.bf16 %v516, %v515
      %v522 = vpack.c.bf16 %v518, %v517
      %v523 = vld [vmem:[%s2] sm:$0xf]
      %v525 = vsel %vm480, %v519, 0
      %v528 = vsel %vm480, %v520, 0
      %v531 = vsel %vm480, %v521, 0
      %v534 = vsel %vm480, %v522, 0
      %vm536 = vcmask 1043456
      %v538 = vsel %vm536, %v523, 0
      %540 = vmatprep.subr.bf16.mxu0 0
      %541 = vmatpush1.bf16.msra.mxu0 %v538
      %542 = vmatprep.subr.bf16.mxu0 0
      %543 = vmatpush1.bf16.msra.mxu0 0
      %544 = vmatprep.subr.bf16.mxu0 0
      %545 = vmatpush1.bf16.msra.mxu0 0
      %546 = vmatprep.subr.bf16.mxu0 0
      %547 = vmatpush1.bf16.msra.mxu0 0
      %548 = vmatprep.subr.bf16.mxu0 0
      %549 = vmatpush1.bf16.msra.mxu0 0
      %550 = vmatprep.subr.bf16.mxu0 0
      %551 = vmatpush1.bf16.msra.mxu0 0
      %552 = vmatprep.subr.bf16.mxu0 0
      %553 = vmatpush1.bf16.msra.mxu0 0
      %554 = vmatprep.subr.bf16.mxu0 0
      %555 = vmatpush1.bf16.msra.mxu0 0
      %556 = vmatprep.subr.bf16.mxu0 0
      %557 = vmatpush1.bf16.msra.mxu0 0
      %558 = vmatprep.subr.bf16.mxu0 0
      %559 = vmatpush1.bf16.msra.mxu0 0
      %560 = vmatprep.subr.bf16.mxu0 0
      %561 = vmatpush1.bf16.msra.mxu0 0
      %562 = vmatprep.subr.bf16.mxu0 0
      %563 = vmatpush1.bf16.msra.mxu0 0
      %564 = vmatprep.subr.bf16.mxu0 0
      %565 = vmatpush1.bf16.msra.mxu0 0
      %566 = vmatprep.subr.bf16.mxu0 0
      %567 = vmatpush1.bf16.msra.mxu0 0
      %568 = vmatprep.subr.bf16.mxu0 0
      %569 = vmatpush1.bf16.msra.mxu0 0
      %570 = vmatprep.subr.bf16.mxu0 0
      %571 = vmatpush1.bf16.msra.mxu0 0
      %572 = vmatprep.mubr.bf16.mxu0 0
      %573 = vmatmul.mubr.bf16.gmra.mrb[0].mxu0 %v525
      %v574 = vpop.f32.mrb[0].mxu0
      %v575 = vadd.f32 0.0, %v574
      %v576 = vpop.f32.mrb[0].mxu0
      %v577 = vpop.f32.mrb[0].mxu0
      %v578 = vadd.f32 0.0, %v577
      %v579 = vpop.f32.mrb[0].mxu0
      %580 = vmatprep.mubr.bf16.mxu0 0
      %581 = vmatmul.mubr.bf16.gmra.mrb[0].mxu0 %v528
      %v582 = vpop.f32.mrb[0].mxu0
      %v583 = vadd.f32 0.0, %v582
      %v584 = vpop.f32.mrb[0].mxu0
      %v585 = vpop.f32.mrb[0].mxu0
      %v586 = vadd.f32 0.0, %v585
      %v587 = vpop.f32.mrb[0].mxu0
      %588 = vmatprep.mubr.bf16.mxu0 0
      %589 = vmatmul.mubr.bf16.gmra.mrb[0].mxu0 %v531
      %v590 = vpop.f32.mrb[0].mxu0
      %v591 = vadd.f32 0.0, %v590
      %v592 = vpop.f32.mrb[0].mxu0
      %v593 = vpop.f32.mrb[0].mxu0
      %v594 = vadd.f32 0.0, %v593
      %v595 = vpop.f32.mrb[0].mxu0
      %596 = vmatprep.mubr.bf16.mxu0 0
      %597 = vmatmul.mubr.bf16.gmra.mrb[0].mxu0 %v534
      %v598 = vpop.f32.mrb[0].mxu0
      %v599 = vadd.f32 0.0, %v598
      %v600 = vpop.f32.mrb[0].mxu0
      %v601 = vpop.f32.mrb[0].mxu0
      %v602 = vadd.f32 0.0, %v601
      %v603 = vpop.f32.mrb[0].mxu0
      %604 = vdwg.mxu0
      %vm605 = vcmask 130048
      %606 = vst.msk [vmem:[#allocation3] sm:$0xff] %vm605, %v575
      %v607 = vmul.f32 %v575, 0.75
      %v608 = vmul.f32 %v578, 0.25
      %v609 = vadd.f32 %v607, %v608
      %611 = vrot.lane.b32.xlu0 %v609, 16
      %v612 = vpop.permute.xlu0 %611
      %vm614 = vcmask 261248
      %615 = vst.msk [vmem:[#allocation3] sm:$0xff] %vm614, %v612
      %v616 = vmul.f32 %v575, 0.25
      %v617 = vmul.f32 %v578, 0.75
      %v618 = vadd.f32 %v616, %v617
      %620 = vrot.lane.b32.xlu0 %v618, 32
      %v621 = vpop.permute.xlu0 %620
      %vm623 = vcmask 392448
      %624 = vst.msk [vmem:[#allocation3] sm:$0xff] %vm623, %v621
      %v625 = vmul.f32 %v583, 0.25
      %v626 = vadd.f32 %v617, %v625
      %628 = vrot.lane.b32.xlu0 %v626, 48
      %v629 = vpop.permute.xlu0 %628
      %vm631 = vcmask 523648
      %632 = vst.msk [vmem:[#allocation3] sm:$0xff] %vm631, %v629
      %v633 = vmul.f32 %v583, 0.75
      %v634 = vadd.f32 %v608, %v633
      %636 = vrot.lane.b32.xlu0 %v634, 64
      %v637 = vpop.permute.xlu0 %636
      %vm639 = vcmask 654848
      %640 = vst.msk [vmem:[#allocation3] sm:$0xff] %vm639, %v637
      %v641 = vmul.f32 %v586, 0.25
      %v642 = vadd.f32 %v633, %v641
      %644 = vrot.lane.b32.xlu0 %v642, 80
      %v645 = vpop.permute.xlu0 %644
      %vm647 = vcmask 786048
      %648 = vst.msk [vmem:[#allocation3] sm:$0xff] %vm647, %v645
      %v649 = vmul.f32 %v586, 0.75
      %v650 = vadd.f32 %v625, %v649
      %652 = vrot.lane.b32.xlu0 %v650, 96
      %v653 = vpop.permute.xlu0 %652
      %vm655 = vcmask 917248
      %656 = vst.msk [vmem:[#allocation3] sm:$0xff] %vm655, %v653
      %v657 = vmul.f32 %v591, 0.25
      %v658 = vadd.f32 %v649, %v657
      %660 = vrot.lane.b32.xlu0 %v658, 112
      %v661 = vpop.permute.xlu0 %660
      %vm663 = vcmask 1048448
      %664 = vst.msk [vmem:[#allocation3] sm:$0xff] %vm663, %v661
      %v665 = vmul.f32 %v591, 0.75
      %v666 = vadd.f32 %v641, %v665
      %667 = vst.msk [vmem:[#allocation3 + $0x8] sm:$0xff] %vm605, %v666
      %v668 = vmul.f32 %v594, 0.25
      %v669 = vadd.f32 %v665, %v668
      %671 = vrot.lane.b32.xlu0 %v669, 16
      %v672 = vpop.permute.xlu0 %671
      %674 = vst.msk [vmem:[#allocation3 + $0x8] sm:$0xff] %vm614, %v672
      %v675 = vmul.f32 %v594, 0.75
      %v676 = vadd.f32 %v657, %v675
      %678 = vrot.lane.b32.xlu0 %v676, 32
      %v679 = vpop.permute.xlu0 %678
      %681 = vst.msk [vmem:[#allocation3 + $0x8] sm:$0xff] %vm623, %v679
      %v682 = vmul.f32 %v599, 0.25
      %v683 = vadd.f32 %v675, %v682
      %685 = vrot.lane.b32.xlu0 %v683, 48
      %v686 = vpop.permute.xlu0 %685
      %688 = vst.msk [vmem:[#allocation3 + $0x8] sm:$0xff] %vm631, %v686
      %v689 = vmul.f32 %v599, 0.75
      %v690 = vadd.f32 %v668, %v689
      %692 = vrot.lane.b32.xlu0 %v690, 64
      %v693 = vpop.permute.xlu0 %692
      %695 = vst.msk [vmem:[#allocation3 + $0x8] sm:$0xff] %vm639, %v693
      %v696 = vmul.f32 %v602, 0.25
      %v697 = vadd.f32 %v689, %v696
      %699 = vrot.lane.b32.xlu0 %v697, 80
      %v700 = vpop.permute.xlu0 %699
      %702 = vst.msk [vmem:[#allocation3 + $0x8] sm:$0xff] %vm647, %v700
      %v703 = vmul.f32 %v602, 0.75
      %v704 = vadd.f32 %v682, %v703
      %706 = vrot.lane.b32.xlu0 %v704, 96
      %v707 = vpop.permute.xlu0 %706
      %709 = vst.msk [vmem:[#allocation3 + $0x8] sm:$0xff] %vm655, %v707
      %711 = vrot.lane.b32.xlu0 %v602, 112
      %v712 = vpop.permute.xlu0 %711
      %714 = vst.msk [vmem:[#allocation3 + $0x8] sm:$0xff] %vm663, %v712
      %v715 = vld [vmem:[#allocation3] sm:$0xff]
      %v716 = vld [vmem:[#allocation3 + $0x8] sm:$0xff]
      %v717 = vld [vmem:[%s3] ss:$2 sm:$0x3]
      %s718 = scalar_lea.vmem %s3, 1
      %v719 = vld [vmem:[%s718] ss:$2 sm:$0x3]
      %v721 = vlaneseq
      %v722 = vshrl.u32 %v721, 7
      %v723 = vsub.s32 0, %v722
      %v724 = vrot.slane %v717, %v723
      %v725 = vlaneseq
      %v726 = vshrl.u32 %v725, 7
      %v727 = vsub.s32 1, %v726
      %v728 = vrot.slane %v717, %v727
      %729 = vrot.lane.b32.xlu0 %v724, 111
      %v730 = vpop.permute.xlu0 %729
      %731 = vrot.lane.b32.xlu0 %v728, 111
      %v732 = vpop.permute.xlu0 %731
      %vm733 = vcmask 908288
      %v734 = vsel %vm733, %v730, %v732
      %v738 = vmul.f32 %v730, 0.0
      %v739 = vmul.f32 %v715, %v734
      %v740 = vmul.f32 %v716, %v732
      %744 = vrot.lane.b32.xlu0 %v738, 17
      %v745 = vpop.permute.xlu0 %744
      %746 = vrot.lane.b32.xlu0 %v739, 17
      %v747 = vpop.permute.xlu0 %746
      %748 = vrot.lane.b32.xlu0 %v740, 17
      %v749 = vpop.permute.xlu0 %748
      %vm750 = vcmask 138240
      %v751 = vsel %vm750, %v745, %v747
      %v752 = vsel %vm750, %v747, %v749
      %755 = vst [vmem:[#allocation2] sm:$0xff] %v751
      %756 = vst [vmem:[#allocation2 + $0x8] sm:$0xff] %v752
      %760 = vrot.lane.b32.xlu0 0.0, 16
      %v761 = vpop.permute.xlu0 %760
      %762 = vrot.lane.b32.xlu0 %v715, 16
      %v763 = vpop.permute.xlu0 %762
      %764 = vrot.lane.b32.xlu0 %v716, 16
      %v765 = vpop.permute.xlu0 %764
      %v766 = vsel %vm605, %v761, %v763
      %v767 = vsel %vm605, %v763, %v765
      %770 = vst [vmem:[#allocation2 + $0x40] sm:$0xff] %v766
      %771 = vst [vmem:[#allocation2 + $0x48] sm:$0xff] %v767
      %v773 = vlaneseq
      %v774 = vshrl.u32 %v773, 7
      %v775 = vsub.s32 0, %v774
      %v776 = vrot.slane %v719, %v775
      %v777 = vlaneseq
      %v778 = vshrl.u32 %v777, 7
      %v779 = vsub.s32 1, %v778
      %v780 = vrot.slane %v719, %v779
      %781 = vrot.lane.b32.xlu0 %v776, 113
      %v782 = vpop.permute.xlu0 %781
      %783 = vrot.lane.b32.xlu0 %v780, 113
      %v784 = vpop.permute.xlu0 %783
      %vm785 = vcmask 924672
      %v786 = vsel %vm785, %v782, %v784
      %v790 = vmul.f32 %v782, 0.0
      %v791 = vmul.f32 %v715, %v786
      %v792 = vmul.f32 %v716, %v784
      %796 = vrot.lane.b32.xlu0 %v790, 15
      %v797 = vpop.permute.xlu0 %796
      %798 = vrot.lane.b32.xlu0 %v791, 15
      %v799 = vpop.permute.xlu0 %798
      %800 = vrot.lane.b32.xlu0 %v792, 15
      %v801 = vpop.permute.xlu0 %800
      %vm802 = vcmask 121856
      %v803 = vsel %vm802, %v797, %v799
      %v804 = vsel %vm802, %v799, %v801
      %807 = vst [vmem:[#allocation2 + $0x80] sm:$0xff] %v803
      %808 = vst [vmem:[#allocation2 + $0x88] sm:$0xff] %v804
      %809 = vrot.lane.b32.xlu0 %v724, 127
      %v810 = vpop.permute.xlu0 %809
      %811 = vrot.lane.b32.xlu0 %v728, 127
      %v812 = vpop.permute.xlu0 %811
      %vm813 = vcmask 1039360
      %v814 = vsel %vm813, %v810, %v812
      %v818 = vmul.f32 %v810, 0.0
      %v819 = vmul.f32 %v715, %v814
      %v820 = vmul.f32 %v716, %v812
      %824 = vrot.lane.b32.xlu0 %v818, 1
      %v825 = vpop.permute.xlu0 %824
      %826 = vrot.lane.b32.xlu0 %v819, 1
      %v827 = vpop.permute.xlu0 %826
      %828 = vrot.lane.b32.xlu0 %v820, 1
      %v829 = vpop.permute.xlu0 %828
      %vm830 = vcmask 7168
      %v831 = vsel %vm830, %v825, %v827
      %v832 = vsel %vm830, %v827, %v829
      %835 = vst [vmem:[#allocation2 + $0xc0] sm:$0xff] %v831
      %836 = vst [vmem:[#allocation2 + $0xc8] sm:$0xff] %v832
      %837 = vst [vmem:[#allocation2 + $0x100] sm:$0xff] %v715
      %838 = vst [vmem:[#allocation2 + $0x108] sm:$0xff] %v716
      %839 = vrot.lane.b32.xlu0 %v776, 1
      %v840 = vpop.permute.xlu0 %839
      %841 = vrot.lane.b32.xlu0 %v780, 1
      %v842 = vpop.permute.xlu0 %841
      %v843 = vsel %vm830, %v840, %v842
      %v847 = vmul.f32 %v715, %v840
      %v848 = vmul.f32 %v716, %v843
      %v849 = vmul.f32 %v842, 0.0
      %853 = vrot.lane.b32.xlu0 %v847, 127
      %v854 = vpop.permute.xlu0 %853
      %855 = vrot.lane.b32.xlu0 %v848, 127
      %v856 = vpop.permute.xlu0 %855
      %857 = vrot.lane.b32.xlu0 %v849, 127
      %v858 = vpop.permute.xlu0 %857
      %v859 = vsel %vm813, %v854, %v856
      %v860 = vsel %vm813, %v856, %v858
      %863 = vst [vmem:[#allocation2 + $0x140] sm:$0xff] %v859
      %864 = vst [vmem:[#allocation2 + $0x148] sm:$0xff] %v860
      %865 = vrot.lane.b32.xlu0 %v724, 15
      %v866 = vpop.permute.xlu0 %865
      %867 = vrot.lane.b32.xlu0 %v728, 15
      %v868 = vpop.permute.xlu0 %867
      %v869 = vsel %vm802, %v866, %v868
      %v873 = vmul.f32 %v715, %v866
      %v874 = vmul.f32 %v716, %v869
      %v875 = vmul.f32 %v868, 0.0
      %879 = vrot.lane.b32.xlu0 %v873, 113
      %v880 = vpop.permute.xlu0 %879
      %881 = vrot.lane.b32.xlu0 %v874, 113
      %v882 = vpop.permute.xlu0 %881
      %883 = vrot.lane.b32.xlu0 %v875, 113
      %v884 = vpop.permute.xlu0 %883
      %v885 = vsel %vm785, %v880, %v882
      %v886 = vsel %vm785, %v882, %v884
      %889 = vst [vmem:[#allocation2 + $0x180] sm:$0xff] %v885
      %890 = vst [vmem:[#allocation2 + $0x188] sm:$0xff] %v886
      %891 = vrot.lane.b32.xlu0 %v715, 112
      %v892 = vpop.permute.xlu0 %891
      %893 = vrot.lane.b32.xlu0 %v716, 112
      %v894 = vpop.permute.xlu0 %893
      %895 = vrot.lane.b32.xlu0 0.0, 112
      %v896 = vpop.permute.xlu0 %895
      %vm897 = vcmask 916480
      %v898 = vsel %vm897, %v892, %v894
      %v899 = vsel %vm897, %v894, %v896
      %902 = vst [vmem:[#allocation2 + $0x1c0] sm:$0xff] %v898
      %903 = vst [vmem:[#allocation2 + $0x1c8] sm:$0xff] %v899
      %904 = vrot.lane.b32.xlu0 %v776, 17
      %v905 = vpop.permute.xlu0 %904
      %906 = vrot.lane.b32.xlu0 %v780, 17
      %v907 = vpop.permute.xlu0 %906
      %v908 = vsel %vm750, %v905, %v907
      %v912 = vmul.f32 %v715, %v905
      %v913 = vmul.f32 %v716, %v908
      %v914 = vmul.f32 %v907, 0.0
      %918 = vrot.lane.b32.xlu0 %v912, 111
      %v919 = vpop.permute.xlu0 %918
      %920 = vrot.lane.b32.xlu0 %v913, 111
      %v921 = vpop.permute.xlu0 %920
      %922 = vrot.lane.b32.xlu0 %v914, 111
      %v923 = vpop.permute.xlu0 %922
      %v924 = vsel %vm733, %v919, %v921
      %v925 = vsel %vm733, %v921, %v923
      %928 = vst [vmem:[#allocation2 + $0x200] sm:$0xff] %v924
      %929 = vst [vmem:[#allocation2 + $0x208] sm:$0xff] %v925
      %v930 = vld [vmem:[#allocation2] sm:$0xff]
      %v931 = vld [vmem:[#allocation2 + $0x8] sm:$0xff]
      %v932 = vld [vmem:[#allocation2 + $0x40] sm:$0xff]
      %v933 = vld [vmem:[#allocation2 + $0x48] sm:$0xff]
      %v934 = vld [vmem:[#allocation2 + $0x80] sm:$0xff]
      %v935 = vld [vmem:[#allocation2 + $0x88] sm:$0xff]
      %v936 = vld [vmem:[#allocation2 + $0xc0] sm:$0xff]
      %v937 = vld [vmem:[#allocation2 + $0xc8] sm:$0xff]
      %v938 = vld [vmem:[#allocation2 + $0x100] sm:$0xff]
      %v939 = vld [vmem:[#allocation2 + $0x108] sm:$0xff]
      %v940 = vld [vmem:[#allocation2 + $0x140] sm:$0xff]
      %v941 = vld [vmem:[#allocation2 + $0x148] sm:$0xff]
      %v942 = vld [vmem:[#allocation2 + $0x180] sm:$0xff]
      %v943 = vld [vmem:[#allocation2 + $0x188] sm:$0xff]
      %v944 = vld [vmem:[#allocation2 + $0x1c0] sm:$0xff]
      %v945 = vld [vmem:[#allocation2 + $0x1c8] sm:$0xff]
      %v946 = vld [vmem:[#allocation2 + $0x200] sm:$0xff]
      %v947 = vld [vmem:[#allocation2 + $0x208] sm:$0xff]
      %v948 = vpack.c.bf16 %v932, %v930
      %v949 = vpack.c.bf16 %v933, %v931
      %v950 = vpack.c.bf16 %v936, %v934
      %v951 = vpack.c.bf16 %v937, %v935
      %v952 = vpack.c.bf16 %v940, %v938
      %v953 = vpack.c.bf16 %v941, %v939
      %v954 = vpack.c.bf16 %v944, %v942
      %v955 = vpack.c.bf16 %v945, %v943
      %v956 = vpack.c.bf16 %v946, %v946
      %v957 = vpack.c.bf16 %v947, %v947
      %v958 = vld [vmem:[%s4] sm:$0x3]
      %vm959 = vcmask 588800
      %v961 = vsel %vm959, %v958, 0
      %v964 = vsel %vm536, %v956, 0
      %v967 = vsel %vm536, %v957, 0
      %969 = vmatprep.subr.bf16.mxu0 %v949
      %970 = vmatpush1.bf16.msra.mxu0 %v948
      %971 = vmatprep.subr.bf16.mxu0 %v951
      %972 = vmatpush1.bf16.msra.mxu0 %v950
      %973 = vmatprep.subr.bf16.mxu0 %v953
      %974 = vmatpush1.bf16.msra.mxu0 %v952
      %975 = vmatprep.subr.bf16.mxu0 %v955
      %976 = vmatpush1.bf16.msra.mxu0 %v954
      %977 = vmatprep.subr.bf16.mxu0 %v967
      %978 = vmatpush1.bf16.msra.mxu0 %v964
      %979 = vmatprep.subr.bf16.mxu0 0
      %980 = vmatpush1.bf16.msra.mxu0 0
      %981 = vmatprep.subr.bf16.mxu0 0
      %982 = vmatpush1.bf16.msra.mxu0 0
      %983 = vmatprep.subr.bf16.mxu0 0
      %984 = vmatpush1.bf16.msra.mxu0 0
      %985 = vmatprep.subr.bf16.mxu0 0
      %986 = vmatpush1.bf16.msra.mxu0 0
      %987 = vmatprep.subr.bf16.mxu0 0
      %988 = vmatpush1.bf16.msra.mxu0 0
      %989 = vmatprep.subr.bf16.mxu0 0
      %990 = vmatpush1.bf16.msra.mxu0 0
      %991 = vmatprep.subr.bf16.mxu0 0
      %992 = vmatpush1.bf16.msra.mxu0 0
      %993 = vmatprep.subr.bf16.mxu0 0
      %994 = vmatpush1.bf16.msra.mxu0 0
      %995 = vmatprep.subr.bf16.mxu0 0
      %996 = vmatpush1.bf16.msra.mxu0 0
      %997 = vmatprep.subr.bf16.mxu0 0
      %998 = vmatpush1.bf16.msra.mxu0 0
      %999 = vmatprep.subr.bf16.mxu0 0
      %1000 = vmatpush1.bf16.msra.mxu0 0
      %1001 = vmatprep.mubr.bf16.mxu0 0
      %1002 = vmatmul.mubr.bf16.gmra.mrb[0].mxu0 %v961
      %v1003 = vpop.f32.mrb[0].mxu0
      %v1004 = vadd.f32 0.0, %v1003
      %v1005 = vpop.f32.mrb[0].mxu0
      %v1006 = vadd.f32 0.0, %v1005
      %v1007 = vpop.f32.mrb[0].mxu0
      %v1008 = vpop.f32.mrb[0].mxu0
      %1009 = vdwg.mxu0
      %v1010 = vld [vmem:[%s467] sm:$0xff]
      %v1012 = vcombine.high %v1010, %v1010
      %v1014 = vmul.f32 %v1004, %v734
      %v1015 = vmul.f32 %v1006, %v732
      %1018 = vrot.lane.b32.xlu0 %v1014, 17
      %v1019 = vpop.permute.xlu0 %1018
      %1020 = vrot.lane.b32.xlu0 %v1015, 17
      %v1021 = vpop.permute.xlu0 %1020
      %v1022 = vsel %vm750, %v745, %v1019
      %v1023 = vsel %vm750, %v1019, %v1021
      %1026 = vst [vmem:[#allocation2] sm:$0xf] %v1022
      %1027 = vst [vmem:[#allocation2 + $0x8] sm:$0xf] %v1023
      %v1028 = vmul.f32 %v1010, %v734
      %v1029 = vmul.f32 %v1012, %v732
      %v1032 = vrot.slane %v738, 4
      %v1033 = vrot.slane %v1028, 4
      %v1034 = vrot.slane %v1029, 4
      %1035 = vrot.lane.b32.xlu0 %v1032, 17
      %v1036 = vpop.permute.xlu0 %1035
      %1037 = vrot.lane.b32.xlu0 %v1033, 17
      %v1038 = vpop.permute.xlu0 %1037
      %1039 = vrot.lane.b32.xlu0 %v1034, 17
      %v1040 = vpop.permute.xlu0 %1039
      %v1041 = vsel %vm750, %v1036, %v1038
      %v1042 = vsel %vm750, %v1038, %v1040
      %1045 = vst [vmem:[#allocation2] sm:$0xf0] %v1041
      %1046 = vst [vmem:[#allocation2 + $0x8] sm:$0xf0] %v1042
      %1049 = vrot.lane.b32.xlu0 %v1004, 16
      %v1050 = vpop.permute.xlu0 %1049
      %1051 = vrot.lane.b32.xlu0 %v1006, 16
      %v1052 = vpop.permute.xlu0 %1051
      %v1053 = vsel %vm605, %v761, %v1050
      %v1054 = vsel %vm605, %v1050, %v1052
      %1057 = vst [vmem:[#allocation2 + $0x40] sm:$0xf] %v1053
      %1058 = vst [vmem:[#allocation2 + $0x48] sm:$0xf] %v1054
      %v1059 = vrot.slane 0.0, 4
      %v1060 = vrot.slane %v1010, 4
      %v1061 = vrot.slane %v1012, 4
      %1062 = vrot.lane.b32.xlu0 %v1059, 16
      %v1063 = vpop.permute.xlu0 %1062
      %1064 = vrot.lane.b32.xlu0 %v1060, 16
      %v1065 = vpop.permute.xlu0 %1064
      %1066 = vrot.lane.b32.xlu0 %v1061, 16
      %v1067 = vpop.permute.xlu0 %1066
      %v1068 = vsel %vm605, %v1063, %v1065
      %v1069 = vsel %vm605, %v1065, %v1067
      %1072 = vst [vmem:[#allocation2 + $0x40] sm:$0xf0] %v1068
      %1073 = vst [vmem:[#allocation2 + $0x48] sm:$0xf0] %v1069
      %v1074 = vmul.f32 %v1004, %v786
      %v1075 = vmul.f32 %v1006, %v784
      %1078 = vrot.lane.b32.xlu0 %v1074, 15
      %v1079 = vpop.permute.xlu0 %1078
      %1080 = vrot.lane.b32.xlu0 %v1075, 15
      %v1081 = vpop.permute.xlu0 %1080
      %v1082 = vsel %vm802, %v797, %v1079
      %v1083 = vsel %vm802, %v1079, %v1081
      %1086 = vst [vmem:[#allocation2 + $0x80] sm:$0xf] %v1082
      %1087 = vst [vmem:[#allocation2 + $0x88] sm:$0xf] %v1083
      %v1088 = vmul.f32 %v1010, %v786
      %v1089 = vmul.f32 %v1012, %v784
      %v1092 = vrot.slane %v790, 4
      %v1093 = vrot.slane %v1088, 4
      %v1094 = vrot.slane %v1089, 4
      %1095 = vrot.lane.b32.xlu0 %v1092, 15
      %v1096 = vpop.permute.xlu0 %1095
      %1097 = vrot.lane.b32.xlu0 %v1093, 15
      %v1098 = vpop.permute.xlu0 %1097
      %1099 = vrot.lane.b32.xlu0 %v1094, 15
      %v1100 = vpop.permute.xlu0 %1099
      %v1101 = vsel %vm802, %v1096, %v1098
      %v1102 = vsel %vm802, %v1098, %v1100
      %1105 = vst [vmem:[#allocation2 + $0x80] sm:$0xf0] %v1101
      %1106 = vst [vmem:[#allocation2 + $0x88] sm:$0xf0] %v1102
      %v1107 = vmul.f32 %v1004, %v814
      %v1108 = vmul.f32 %v1006, %v812
      %1111 = vrot.lane.b32.xlu0 %v1107, 1
      %v1112 = vpop.permute.xlu0 %1111
      %1113 = vrot.lane.b32.xlu0 %v1108, 1
      %v1114 = vpop.permute.xlu0 %1113
      %v1115 = vsel %vm830, %v825, %v1112
      %v1116 = vsel %vm830, %v1112, %v1114
      %1119 = vst [vmem:[#allocation2 + $0xc0] sm:$0xf] %v1115
      %1120 = vst [vmem:[#allocation2 + $0xc8] sm:$0xf] %v1116
      %v1121 = vmul.f32 %v1010, %v814
      %v1122 = vmul.f32 %v1012, %v812
      %v1125 = vrot.slane %v818, 4
      %v1126 = vrot.slane %v1121, 4
      %v1127 = vrot.slane %v1122, 4
      %1128 = vrot.lane.b32.xlu0 %v1125, 1
      %v1129 = vpop.permute.xlu0 %1128
      %1130 = vrot.lane.b32.xlu0 %v1126, 1
      %v1131 = vpop.permute.xlu0 %1130
      %1132 = vrot.lane.b32.xlu0 %v1127, 1
      %v1133 = vpop.permute.xlu0 %1132
      %v1134 = vsel %vm830, %v1129, %v1131
      %v1135 = vsel %vm830, %v1131, %v1133
      %1138 = vst [vmem:[#allocation2 + $0xc0] sm:$0xf0] %v1134
      %1139 = vst [vmem:[#allocation2 + $0xc8] sm:$0xf0] %v1135
      %1140 = vst [vmem:[#allocation2 + $0x100] sm:$0xf] %v1004
      %1141 = vst [vmem:[#allocation2 + $0x108] sm:$0xf] %v1006
      %1144 = vst [vmem:[#allocation2 + $0x100] sm:$0xf0] %v1060
      %1145 = vst [vmem:[#allocation2 + $0x108] sm:$0xf0] %v1061
      %v1146 = vmul.f32 %v1004, %v840
      %v1147 = vmul.f32 %v1006, %v843
      %1150 = vrot.lane.b32.xlu0 %v1146, 127
      %v1151 = vpop.permute.xlu0 %1150
      %1152 = vrot.lane.b32.xlu0 %v1147, 127
      %v1153 = vpop.permute.xlu0 %1152
      %v1154 = vsel %vm813, %v1151, %v1153
      %v1155 = vsel %vm813, %v1153, %v858
      %1158 = vst [vmem:[#allocation2 + $0x140] sm:$0xf] %v1154
      %1159 = vst [vmem:[#allocation2 + $0x148] sm:$0xf] %v1155
      %v1160 = vmul.f32 %v1010, %v840
      %v1161 = vmul.f32 %v1012, %v843
      %v1164 = vrot.slane %v1160, 4
      %v1165 = vrot.slane %v1161, 4
      %v1166 = vrot.slane %v849, 4
      %1167 = vrot.lane.b32.xlu0 %v1164, 127
      %v1168 = vpop.permute.xlu0 %1167
      %1169 = vrot.lane.b32.xlu0 %v1165, 127
      %v1170 = vpop.permute.xlu0 %1169
      %1171 = vrot.lane.b32.xlu0 %v1166, 127
      %v1172 = vpop.permute.xlu0 %1171
      %v1173 = vsel %vm813, %v1168, %v1170
      %v1174 = vsel %vm813, %v1170, %v1172
      %1177 = vst [vmem:[#allocation2 + $0x140] sm:$0xf0] %v1173
      %1178 = vst [vmem:[#allocation2 + $0x148] sm:$0xf0] %v1174
      %v1179 = vmul.f32 %v1004, %v866
      %v1180 = vmul.f32 %v1006, %v869
      %1183 = vrot.lane.b32.xlu0 %v1179, 113
      %v1184 = vpop.permute.xlu0 %1183
      %1185 = vrot.lane.b32.xlu0 %v1180, 113
      %v1186 = vpop.permute.xlu0 %1185
      %v1187 = vsel %vm785, %v1184, %v1186
      %v1188 = vsel %vm785, %v1186, %v884
      %1191 = vst [vmem:[#allocation2 + $0x180] sm:$0xf] %v1187
      %1192 = vst [vmem:[#allocation2 + $0x188] sm:$0xf] %v1188
      %v1193 = vmul.f32 %v1010, %v866
      %v1194 = vmul.f32 %v1012, %v869
      %v1197 = vrot.slane %v1193, 4
      %v1198 = vrot.slane %v1194, 4
      %v1199 = vrot.slane %v875, 4
      %1200 = vrot.lane.b32.xlu0 %v1197, 113
      %v1201 = vpop.permute.xlu0 %1200
      %1202 = vrot.lane.b32.xlu0 %v1198, 113
      %v1203 = vpop.permute.xlu0 %1202
      %1204 = vrot.lane.b32.xlu0 %v1199, 113
      %v1205 = vpop.permute.xlu0 %1204
      %v1206 = vsel %vm785, %v1201, %v1203
      %v1207 = vsel %vm785, %v1203, %v1205
      %1210 = vst [vmem:[#allocation2 + $0x180] sm:$0xf0] %v1206
      %1211 = vst [vmem:[#allocation2 + $0x188] sm:$0xf0] %v1207
      %1212 = vrot.lane.b32.xlu0 %v1004, 112
      %v1213 = vpop.permute.xlu0 %1212
      %1214 = vrot.lane.b32.xlu0 %v1006, 112
      %v1215 = vpop.permute.xlu0 %1214
      %v1216 = vsel %vm897, %v1213, %v1215
      %v1217 = vsel %vm897, %v1215, %v896
      %1220 = vst [vmem:[#allocation2 + $0x1c0] sm:$0xf] %v1216
      %1221 = vst [vmem:[#allocation2 + $0x1c8] sm:$0xf] %v1217
      %1222 = vrot.lane.b32.xlu0 %v1060, 112
      %v1223 = vpop.permute.xlu0 %1222
      %1224 = vrot.lane.b32.xlu0 %v1061, 112
      %v1225 = vpop.permute.xlu0 %1224
      %1226 = vrot.lane.b32.xlu0 %v1059, 112
      %v1227 = vpop.permute.xlu0 %1226
      %v1228 = vsel %vm897, %v1223, %v1225
      %v1229 = vsel %vm897, %v1225, %v1227
      %1232 = vst [vmem:[#allocation2 + $0x1c0] sm:$0xf0] %v1228
      %1233 = vst [vmem:[#allocation2 + $0x1c8] sm:$0xf0] %v1229
      %v1234 = vmul.f32 %v1004, %v905
      %v1235 = vmul.f32 %v1006, %v908
      %1238 = vrot.lane.b32.xlu0 %v1234, 111
      %v1239 = vpop.permute.xlu0 %1238
      %1240 = vrot.lane.b32.xlu0 %v1235, 111
      %v1241 = vpop.permute.xlu0 %1240
      %v1242 = vsel %vm733, %v1239, %v1241
      %v1243 = vsel %vm733, %v1241, %v923
      %1246 = vst [vmem:[#allocation2 + $0x200] sm:$0xf] %v1242
      %1247 = vst [vmem:[#allocation2 + $0x208] sm:$0xf] %v1243
      %v1248 = vmul.f32 %v1010, %v905
      %v1249 = vmul.f32 %v1012, %v908
      %v1252 = vrot.slane %v1248, 4
      %v1253 = vrot.slane %v1249, 4
      %v1254 = vrot.slane %v914, 4
      %1255 = vrot.lane.b32.xlu0 %v1252, 111
      %v1256 = vpop.permute.xlu0 %1255
      %1257 = vrot.lane.b32.xlu0 %v1253, 111
      %v1258 = vpop.permute.xlu0 %1257
      %1259 = vrot.lane.b32.xlu0 %v1254, 111
      %v1260 = vpop.permute.xlu0 %1259
      %v1261 = vsel %vm733, %v1256, %v1258
      %v1262 = vsel %vm733, %v1258, %v1260
      %1265 = vst [vmem:[#allocation2 + $0x200] sm:$0xf0] %v1261
      %1266 = vst [vmem:[#allocation2 + $0x208] sm:$0xf0] %v1262
      %v1267 = vld [vmem:[#allocation2] sm:$0xff]
      %v1268 = vld [vmem:[#allocation2 + $0x8] sm:$0xff]
      %v1269 = vld [vmem:[#allocation2 + $0x40] sm:$0xff]
      %v1270 = vld [vmem:[#allocation2 + $0x48] sm:$0xff]
      %v1271 = vld [vmem:[#allocation2 + $0x80] sm:$0xff]
      %v1272 = vld [vmem:[#allocation2 + $0x88] sm:$0xff]
      %v1273 = vld [vmem:[#allocation2 + $0xc0] sm:$0xff]
      %v1274 = vld [vmem:[#allocation2 + $0xc8] sm:$0xff]
      %v1275 = vld [vmem:[#allocation2 + $0x100] sm:$0xff]
      %v1276 = vld [vmem:[#allocation2 + $0x108] sm:$0xff]
      %v1277 = vld [vmem:[#allocation2 + $0x140] sm:$0xff]
      %v1278 = vld [vmem:[#allocation2 + $0x148] sm:$0xff]
      %v1279 = vld [vmem:[#allocation2 + $0x180] sm:$0xff]
      %v1280 = vld [vmem:[#allocation2 + $0x188] sm:$0xff]
      %v1281 = vld [vmem:[#allocation2 + $0x1c0] sm:$0xff]
      %v1282 = vld [vmem:[#allocation2 + $0x1c8] sm:$0xff]
      %v1283 = vld [vmem:[#allocation2 + $0x200] sm:$0xff]
      %v1284 = vld [vmem:[#allocation2 + $0x208] sm:$0xff]
      %v1285 = vpack.c.bf16 %v1269, %v1267
      %v1286 = vpack.c.bf16 %v1270, %v1268
      %v1287 = vpack.c.bf16 %v1273, %v1271
      %v1288 = vpack.c.bf16 %v1274, %v1272
      %v1289 = vpack.c.bf16 %v1277, %v1275
      %v1290 = vpack.c.bf16 %v1278, %v1276
      %v1291 = vpack.c.bf16 %v1281, %v1279
      %v1292 = vpack.c.bf16 %v1282, %v1280
      %v1293 = vpack.c.bf16 %v1283, %v1283
      %v1294 = vpack.c.bf16 %v1284, %v1284
      %v1295 = vld [vmem:[%s5] sm:$0x3]
      %v1297 = vsel %vm959, %v1295, 0
      %v1300 = vsel %vm536, %v1293, 0
      %v1303 = vsel %vm536, %v1294, 0
      %1305 = vmatprep.subr.bf16.mxu0 %v1286
      %1306 = vmatpush1.bf16.msra.mxu0 %v1285
      %1307 = vmatprep.subr.bf16.mxu0 %v1288
      %1308 = vmatpush1.bf16.msra.mxu0 %v1287
      %1309 = vmatprep.subr.bf16.mxu0 %v1290
      %1310 = vmatpush1.bf16.msra.mxu0 %v1289
      %1311 = vmatprep.subr.bf16.mxu0 %v1292
      %1312 = vmatpush1.bf16.msra.mxu0 %v1291
      %1313 = vmatprep.subr.bf16.mxu0 %v1303
      %1314 = vmatpush1.bf16.msra.mxu0 %v1300
      %1315 = vmatprep.subr.bf16.mxu0 0
      %1316 = vmatpush1.bf16.msra.mxu0 0
      %1317 = vmatprep.subr.bf16.mxu0 0
      %1318 = vmatpush1.bf16.msra.mxu0 0
      %1319 = vmatprep.subr.bf16.mxu0 0
      %1320 = vmatpush1.bf16.msra.mxu0 0
      %1321 = vmatprep.subr.bf16.mxu0 0
      %1322 = vmatpush1.bf16.msra.mxu0 0
      %1323 = vmatprep.subr.bf16.mxu0 0
      %1324 = vmatpush1.bf16.msra.mxu0 0
      %1325 = vmatprep.subr.bf16.mxu0 0
      %1326 = vmatpush1.bf16.msra.mxu0 0
      %1327 = vmatprep.subr.bf16.mxu0 0
      %1328 = vmatpush1.bf16.msra.mxu0 0
      %1329 = vmatprep.subr.bf16.mxu0 0
      %1330 = vmatpush1.bf16.msra.mxu0 0
      %1331 = vmatprep.subr.bf16.mxu0 0
      %1332 = vmatpush1.bf16.msra.mxu0 0
      %1333 = vmatprep.subr.bf16.mxu0 0
      %1334 = vmatpush1.bf16.msra.mxu0 0
      %1335 = vmatprep.subr.bf16.mxu0 0
      %1336 = vmatpush1.bf16.msra.mxu0 0
      %1337 = vmatprep.mubr.bf16.mxu0 0
      %1338 = vmatmul.mubr.bf16.gmra.mrb[0].mxu0 %v1297
      %v1339 = vpop.f32.mrb[0].mxu0
      %v1340 = vadd.f32 0.0, %v1339
      %v1341 = vpop.f32.mrb[0].mxu0
      %v1342 = vadd.f32 0.0, %v1341
      %v1343 = vpop.f32.mrb[0].mxu0
      %v1344 = vpop.f32.mrb[0].mxu0
      %1345 = vdwg.mxu0
      %vm1346 = vcmp.ge.f32.partialorder %v1340, 0.0
      %vm1347 = vcmp.ge.f32.partialorder %v1342, 0.0
      %v1348 = vmul.f32 %v1340, 0.01
      %v1349 = vmul.f32 %v1342, 0.01
      %v1350 = vsel %vm1346, %v1340, %v1348
      %v1351 = vsel %vm1347, %v1342, %v1349
      %v1352 = vmul.f32 %v1350, %v734
      %v1353 = vmul.f32 %v1351, %v732
      %1356 = vrot.lane.b32.xlu0 %v1352, 17
      %v1357 = vpop.permute.xlu0 %1356
      %1358 = vrot.lane.b32.xlu0 %v1353, 17
      %v1359 = vpop.permute.xlu0 %1358
      %v1360 = vsel %vm750, %v745, %v1357
      %v1361 = vsel %vm750, %v1357, %v1359
      %1364 = vst [vmem:[#allocation2] sm:$0xf] %v1360
      %1365 = vst [vmem:[#allocation2 + $0x8] sm:$0xf] %v1361
      %v1368 = vrot.slane %v1350, 4
      %v1369 = vrot.slane %v1351, 4
      %1370 = vrot.lane.b32.xlu0 %v1368, 16
      %v1371 = vpop.permute.xlu0 %1370
      %1372 = vrot.lane.b32.xlu0 %v1369, 16
      %v1373 = vpop.permute.xlu0 %1372
      %v1374 = vsel %vm605, %v1063, %v1371
      %v1375 = vsel %vm605, %v1371, %v1373
      %1378 = vst [vmem:[#allocation2] sm:$0xf0] %v1374
      %1379 = vst [vmem:[#allocation2 + $0x8] sm:$0xf0] %v1375
      %v1380 = vmul.f32 %v1350, %v786
      %v1381 = vmul.f32 %v1351, %v784
      %1384 = vrot.lane.b32.xlu0 %v1380, 15
      %v1385 = vpop.permute.xlu0 %1384
      %1386 = vrot.lane.b32.xlu0 %v1381, 15
      %v1387 = vpop.permute.xlu0 %1386
      %v1388 = vsel %vm802, %v797, %v1385
      %v1389 = vsel %vm802, %v1385, %v1387
      %1392 = vst [vmem:[#allocation2 + $0x40] sm:$0xf] %v1388
      %1393 = vst [vmem:[#allocation2 + $0x48] sm:$0xf] %v1389
      %v1394 = vmul.f32 %v1350, %v814
      %v1395 = vmul.f32 %v1351, %v812
      %v1398 = vrot.slane %v1394, 4
      %v1399 = vrot.slane %v1395, 4
      %1400 = vrot.lane.b32.xlu0 %v1398, 1
      %v1401 = vpop.permute.xlu0 %1400
      %1402 = vrot.lane.b32.xlu0 %v1399, 1
      %v1403 = vpop.permute.xlu0 %1402
      %v1404 = vsel %vm830, %v1129, %v1401
      %v1405 = vsel %vm830, %v1401, %v1403
      %1408 = vst [vmem:[#allocation2 + $0x40] sm:$0xf0] %v1404
      %1409 = vst [vmem:[#allocation2 + $0x48] sm:$0xf0] %v1405
      %1410 = vst [vmem:[#allocation2 + $0x80] sm:$0xf] %v1350
      %1411 = vst [vmem:[#allocation2 + $0x88] sm:$0xf] %v1351
      %v1412 = vmul.f32 %v1350, %v840
      %v1413 = vmul.f32 %v1351, %v843
      %v1416 = vrot.slane %v1412, 4
      %v1417 = vrot.slane %v1413, 4
      %1418 = vrot.lane.b32.xlu0 %v1416, 127
      %v1419 = vpop.permute.xlu0 %1418
      %1420 = vrot.lane.b32.xlu0 %v1417, 127
      %v1421 = vpop.permute.xlu0 %1420
      %v1422 = vsel %vm813, %v1419, %v1421
      %v1423 = vsel %vm813, %v1421, %v1172
      %1426 = vst [vmem:[#allocation2 + $0x80] sm:$0xf0] %v1422
      %1427 = vst [vmem:[#allocation2 + $0x88] sm:$0xf0] %v1423
      %v1428 = vmul.f32 %v1350, %v866
      %v1429 = vmul.f32 %v1351, %v869
      %1432 = vrot.lane.b32.xlu0 %v1428, 113
      %v1433 = vpop.permute.xlu0 %1432
      %1434 = vrot.lane.b32.xlu0 %v1429, 113
      %v1435 = vpop.permute.xlu0 %1434
      %v1436 = vsel %vm785, %v1433, %v1435
      %v1437 = vsel %vm785, %v1435, %v884
      %1440 = vst [vmem:[#allocation2 + $0xc0] sm:$0xf] %v1436
      %1441 = vst [vmem:[#allocation2 + $0xc8] sm:$0xf] %v1437
      %1442 = vrot.lane.b32.xlu0 %v1368, 112
      %v1443 = vpop.permute.xlu0 %1442
      %1444 = vrot.lane.b32.xlu0 %v1369, 112
      %v1445 = vpop.permute.xlu0 %1444
      %v1446 = vsel %vm897, %v1443, %v1445
      %v1447 = vsel %vm897, %v1445, %v1227
      %1450 = vst [vmem:[#allocation2 + $0xc0] sm:$0xf0] %v1446
      %1451 = vst [vmem:[#allocation2 + $0xc8] sm:$0xf0] %v1447
      %v1452 = vmul.f32 %v1350, %v905
      %v1453 = vmul.f32 %v1351, %v908
      %1456 = vrot.lane.b32.xlu0 %v1452, 111
      %v1457 = vpop.permute.xlu0 %1456
      %1458 = vrot.lane.b32.xlu0 %v1453, 111
      %v1459 = vpop.permute.xlu0 %1458
      %v1460 = vsel %vm733, %v1457, %v1459
      %v1461 = vsel %vm733, %v1459, %v923
      %1464 = vst [vmem:[#allocation2 + $0x100] sm:$0xf] %v1460
      %1465 = vst [vmem:[#allocation2 + $0x108] sm:$0xf] %v1461
      %v1466 = vld [vmem:[#allocation2] sm:$0xff]
      %v1467 = vld [vmem:[#allocation2 + $0x8] sm:$0xff]
      %v1468 = vld [vmem:[#allocation2 + $0x40] sm:$0xff]
      %v1469 = vld [vmem:[#allocation2 + $0x48] sm:$0xff]
      %v1470 = vld [vmem:[#allocation2 + $0x80] sm:$0xff]
      %v1471 = vld [vmem:[#allocation2 + $0x88] sm:$0xff]
      %v1472 = vld [vmem:[#allocation2 + $0xc0] sm:$0xff]
      %v1473 = vld [vmem:[#allocation2 + $0xc8] sm:$0xff]
      %v1474 = vld [vmem:[#allocation2 + $0x100] sm:$0xf]
      %v1475 = vld [vmem:[#allocation2 + $0x108] sm:$0xf]
      %v1476 = vpack.c.bf16 %v1468, %v1466
      %v1477 = vpack.c.bf16 %v1469, %v1467
      %v1478 = vpack.c.bf16 %v1472, %v1470
      %v1479 = vpack.c.bf16 %v1473, %v1471
      %v1480 = vpack.c.bf16 %v1474, %v1474
      %v1481 = vpack.c.bf16 %v1475, %v1475
      %v1482 = vld [vmem:[%s6] sm:$0x3]
      %vm1483 = vcmask 293888
      %v1485 = vsel %vm1483, %v1482, 0
      %vm1487 = vcmask 1041408
      %v1489 = vsel %vm1487, %v1480, 0
      %v1492 = vsel %vm1487, %v1481, 0
      %1494 = vmatprep.subr.bf16.mxu0 %v1477
      %1495 = vmatpush1.bf16.msra.mxu0 %v1476
      %1496 = vmatprep.subr.bf16.mxu0 %v1479
      %1497 = vmatpush1.bf16.msra.mxu0 %v1478
      %1498 = vmatprep.subr.bf16.mxu0 %v1492
      %1499 = vmatpush1.bf16.msra.mxu0 %v1489
      %1500 = vmatprep.subr.bf16.mxu0 0
      %1501 = vmatpush1.bf16.msra.mxu0 0
      %1502 = vmatprep.subr.bf16.mxu0 0
      %1503 = vmatpush1.bf16.msra.mxu0 0
      %1504 = vmatprep.subr.bf16.mxu0 0
      %1505 = vmatpush1.bf16.msra.mxu0 0
      %1506 = vmatprep.subr.bf16.mxu0 0
      %1507 = vmatpush1.bf16.msra.mxu0 0
      %1508 = vmatprep.subr.bf16.mxu0 0
      %1509 = vmatpush1.bf16.msra.mxu0 0
      %1510 = vmatprep.subr.bf16.mxu0 0
      %1511 = vmatpush1.bf16.msra.mxu0 0
      %1512 = vmatprep.subr.bf16.mxu0 0
      %1513 = vmatpush1.bf16.msra.mxu0 0
      %1514 = vmatprep.subr.bf16.mxu0 0
      %1515 = vmatpush1.bf16.msra.mxu0 0
      %1516 = vmatprep.subr.bf16.mxu0 0
      %1517 = vmatpush1.bf16.msra.mxu0 0
      %1518 = vmatprep.subr.bf16.mxu0 0
      %1519 = vmatpush1.bf16.msra.mxu0 0
      %1520 = vmatprep.subr.bf16.mxu0 0
      %1521 = vmatpush1.bf16.msra.mxu0 0
      %1522 = vmatprep.subr.bf16.mxu0 0
      %1523 = vmatpush1.bf16.msra.mxu0 0
      %1524 = vmatprep.subr.bf16.mxu0 0
      %1525 = vmatpush1.bf16.msra.mxu0 0
      %1526 = vmatprep.mubr.bf16.mxu0 0
      %1527 = vmatmul.mubr.bf16.gmra.mrb[0].mxu0 %v1485
      %v1528 = vpop.f32.mrb[0].mxu0
      %v1529 = vadd.f32 0.0, %v1528
      %v1530 = vpop.f32.mrb[0].mxu0
      %v1531 = vadd.f32 0.0, %v1530
      %v1532 = vpop.f32.mrb[0].mxu0
      %v1533 = vpop.f32.mrb[0].mxu0
      %1534 = vdwg.mxu0
      %vm1535 = vcmp.ge.f32.partialorder %v1529, 0.0
      %vm1536 = vcmp.ge.f32.partialorder %v1531, 0.0
      %v1537 = vmul.f32 %v1529, 0.01
      %v1538 = vmul.f32 %v1531, 0.01
      %v1539 = vsel %vm1535, %v1529, %v1537
      %v1540 = vsel %vm1536, %v1531, %v1538
      %vm1541 = vcmask 125952
      %1542 = vst.msk [vmem:[#allocation2] sm:$0xf] %vm1541, %v1539
      %v1544 = vrot.slane %v1539, 4
      %1545 = vrot.lane.b32.xlu0 %v1544, 112
      %v1546 = vpop.permute.xlu0 %1545
      %vm1548 = vcmask 130052
      %1549 = vst.msk [vmem:[#allocation2] sm:$0xf0] %vm1548, %v1546
      %1550 = vrot.lane.b32.xlu0 %v1539, 96
      %v1551 = vpop.permute.xlu0 %1550
      %1553 = vst.msk [vmem:[#allocation2 + $0x40] sm:$0xf] %vm1541, %v1551
      %1554 = vrot.lane.b32.xlu0 %v1544, 80
      %v1555 = vpop.permute.xlu0 %1554
      %1557 = vst.msk [vmem:[#allocation2 + $0x40] sm:$0xf0] %vm1548, %v1555
      %1558 = vrot.lane.b32.xlu0 %v1539, 64
      %v1559 = vpop.permute.xlu0 %1558
      %1561 = vst.msk [vmem:[#allocation2 + $0x80] sm:$0xf] %vm1541, %v1559
      %1562 = vrot.lane.b32.xlu0 %v1544, 48
      %v1563 = vpop.permute.xlu0 %1562
      %1565 = vst.msk [vmem:[#allocation2 + $0x80] sm:$0xf0] %vm1548, %v1563
      %1566 = vrot.lane.b32.xlu0 %v1539, 32
      %v1567 = vpop.permute.xlu0 %1566
      %1569 = vst.msk [vmem:[#allocation2 + $0xc0] sm:$0xf] %vm1541, %v1567
      %1570 = vrot.lane.b32.xlu0 %v1544, 16
      %v1571 = vpop.permute.xlu0 %1570
      %1573 = vst.msk [vmem:[#allocation2 + $0xc0] sm:$0xf0] %vm1548, %v1571
      %1574 = vst.msk [vmem:[#allocation2 + $0x100] sm:$0xf] %vm1541, %v1540
      %v1576 = vrot.slane %v1540, 4
      %1577 = vrot.lane.b32.xlu0 %v1576, 112
      %v1578 = vpop.permute.xlu0 %1577
      %1580 = vst.msk [vmem:[#allocation2 + $0x100] sm:$0xf0] %vm1548, %v1578
      %1581 = vrot.lane.b32.xlu0 %v1540, 96
      %v1582 = vpop.permute.xlu0 %1581
      %1584 = vst.msk [vmem:[#allocation2 + $0x140] sm:$0xf] %vm1541, %v1582
      %1585 = vrot.lane.b32.xlu0 %v1576, 80
      %v1586 = vpop.permute.xlu0 %1585
      %1588 = vst.msk [vmem:[#allocation2 + $0x140] sm:$0xf0] %vm1548, %v1586
      %1589 = vrot.lane.b32.xlu0 %v1540, 64
      %v1590 = vpop.permute.xlu0 %1589
      %1592 = vst.msk [vmem:[#allocation2 + $0x180] sm:$0xf] %vm1541, %v1590
      %1593 = vrot.lane.b32.xlu0 %v1576, 48
      %v1594 = vpop.permute.xlu0 %1593
      %1596 = vst.msk [vmem:[#allocation2 + $0x180] sm:$0xf0] %vm1548, %v1594
      %1597 = vrot.lane.b32.xlu0 %v1540, 32
      %v1598 = vpop.permute.xlu0 %1597
      %1600 = vst.msk [vmem:[#allocation2 + $0x1c0] sm:$0xf] %vm1541, %v1598
      %1601 = vrot.lane.b32.xlu0 %v1576, 16
      %v1602 = vpop.permute.xlu0 %1601
      %1604 = vst.msk [vmem:[#allocation2 + $0x1c0] sm:$0xf0] %vm1548, %v1602
      %v1605 = vld [vmem:[#allocation2] sm:$0xff]
      %v1606 = vld [vmem:[#allocation2 + $0x40] sm:$0xff]
      %v1607 = vld [vmem:[#allocation2 + $0x80] sm:$0xff]
      %v1608 = vld [vmem:[#allocation2 + $0xc0] sm:$0xff]
      %v1609 = vld [vmem:[#allocation2 + $0x100] sm:$0xff]
      %v1610 = vld [vmem:[#allocation2 + $0x140] sm:$0xff]
      %v1611 = vld [vmem:[#allocation2 + $0x180] sm:$0xff]
      %v1612 = vld [vmem:[#allocation2 + $0x1c0] sm:$0xff]
      %v1613 = vpack.c.bf16 %v1606, %v1605
      %v1614 = vpack.c.bf16 %v1608, %v1607
      %v1615 = vpack.c.bf16 %v1610, %v1609
      %v1616 = vpack.c.bf16 %v1612, %v1611
      %v1617 = vld [vmem:[%s8] sm:$0xf]
      %v1618 = vld [vmem:[%s8 + $0x4] sm:$0xf]
      %v1621 = vunpack.c.l.b16 %v1617
      %v1622 = vunpack.c.l.b16 %v1618
      %v1623 = vpack.c.b16 %v1622, %v1621
      %v1626 = vsel %vm605, %v1613, 0
      %v1629 = vsel %vm605, %v1614, 0
      %v1632 = vsel %vm605, %v1615, 0
      %v1635 = vsel %vm605, %v1616, 0
      %1637 = vmatprep.subr.bf16.mxu0 0
      %1638 = vmatpush1.bf16.msra.mxu0 %v1623
      %1639 = vmatprep.subr.bf16.mxu0 0
      %1640 = vmatpush1.bf16.msra.mxu0 0
      %1641 = vmatprep.subr.bf16.mxu0 0
      %1642 = vmatpush1.bf16.msra.mxu0 0
      %1643 = vmatprep.subr.bf16.mxu0 0
      %1644 = vmatpush1.bf16.msra.mxu0 0
      %1645 = vmatprep.subr.bf16.mxu0 0
      %1646 = vmatpush1.bf16.msra.mxu0 0
      %1647 = vmatprep.subr.bf16.mxu0 0
      %1648 = vmatpush1.bf16.msra.mxu0 0
      %1649 = vmatprep.subr.bf16.mxu0 0
      %1650 = vmatpush1.bf16.msra.mxu0 0
      %1651 = vmatprep.subr.bf16.mxu0 0
      %1652 = vmatpush1.bf16.msra.mxu0 0
      %1653 = vmatprep.subr.bf16.mxu0 0
      %1654 = vmatpush1.bf16.msra.mxu0 0
      %1655 = vmatprep.subr.bf16.mxu0 0
      %1656 = vmatpush1.bf16.msra.mxu0 0
      %1657 = vmatprep.subr.bf16.mxu0 0
      %1658 = vmatpush1.bf16.msra.mxu0 0
      %1659 = vmatprep.subr.bf16.mxu0 0
      %1660 = vmatpush1.bf16.msra.mxu0 0
      %1661 = vmatprep.subr.bf16.mxu0 0
      %1662 = vmatpush1.bf16.msra.mxu0 0
      %1663 = vmatprep.subr.bf16.mxu0 0
      %1664 = vmatpush1.bf16.msra.mxu0 0
      %1665 = vmatprep.subr.bf16.mxu0 0
      %1666 = vmatpush1.bf16.msra.mxu0 0
      %1667 = vmatprep.subr.bf16.mxu0 0
      %1668 = vmatpush1.bf16.msra.mxu0 0
      %1669 = vmatprep.mubr.bf16.mxu0 0
      %1670 = vmatmul.mubr.bf16.gmra.mrb[0].mxu0 %v1626
      %v1671 = vpop.f32.mrb[0].mxu0
      %v1672 = vadd.f32 0.0, %v1671
      %v1673 = vpop.f32.mrb[0].mxu0
      %v1674 = vpop.f32.mrb[0].mxu0
      %v1675 = vadd.f32 0.0, %v1674
      %v1676 = vpop.f32.mrb[0].mxu0
      %1677 = vmatprep.mubr.bf16.mxu0 0
      %1678 = vmatmul.mubr.bf16.gmra.mrb[0].mxu0 %v1629
      %v1679 = vpop.f32.mrb[0].mxu0
      %v1680 = vadd.f32 0.0, %v1679
      %v1681 = vpop.f32.mrb[0].mxu0
      %v1682 = vpop.f32.mrb[0].mxu0
      %v1683 = vadd.f32 0.0, %v1682
      %v1684 = vpop.f32.mrb[0].mxu0
      %1685 = vmatprep.mubr.bf16.mxu0 0
      %1686 = vmatmul.mubr.bf16.gmra.mrb[0].mxu0 %v1632
      %v1687 = vpop.f32.mrb[0].mxu0
      %v1688 = vadd.f32 0.0, %v1687
      %v1689 = vpop.f32.mrb[0].mxu0
      %v1690 = vpop.f32.mrb[0].mxu0
      %v1691 = vadd.f32 0.0, %v1690
      %v1692 = vpop.f32.mrb[0].mxu0
      %1693 = vmatprep.mubr.bf16.mxu0 0
      %1694 = vmatmul.mubr.bf16.gmra.mrb[0].mxu0 %v1635
      %v1695 = vpop.f32.mrb[0].mxu0
      %v1696 = vadd.f32 0.0, %v1695
      %v1697 = vpop.f32.mrb[0].mxu0
      %v1698 = vpop.f32.mrb[0].mxu0
      %v1699 = vadd.f32 0.0, %v1698
      %v1700 = vpop.f32.mrb[0].mxu0
      %1701 = vdwg.mxu0
      %vm1702 = vcmask 257024
      %1703 = vst.msk [vmem:[#allocation3] sm:$0xf] %vm1702, %v1672
      %v1704 = vmul.f32 %v1672, 0.75
      %v1705 = vmul.f32 %v1672, 0.25
      %v1707 = vrot.slane %v1705, 4
      %v1709 = vadd.f32 %v1704, %v1707
      %1711 = vrot.lane.b32.xlu0 %v1709, 32
      %v1712 = vpop.permute.xlu0 %1711
      %vm1714 = vcmask 519424
      %1715 = vst.msk [vmem:[#allocation3] sm:$0xf] %vm1714, %v1712
      %v1717 = vrot.slane %v1704, 4
      %v1719 = vadd.f32 %v1705, %v1717
      %1721 = vrot.lane.b32.xlu0 %v1719, 64
      %v1722 = vpop.permute.xlu0 %1721
      %vm1724 = vcmask 781824
      %1725 = vst.msk [vmem:[#allocation3] sm:$0xf] %vm1724, %v1722
      %v1726 = vmul.f32 %v1675, 0.25
      %v1728 = vrot.slane %v1726, 4
      %v1730 = vadd.f32 %v1704, %v1728
      %v1732 = vrot.slane %v1730, 4
      %1733 = vrot.lane.b32.xlu0 %v1732, 96
      %v1734 = vpop.permute.xlu0 %1733
      %vm1736 = vcmask 1044224
      %1737 = vst.msk [vmem:[#allocation3] sm:$0xf] %vm1736, %v1734
      %v1738 = vmul.f32 %v1675, 0.75
      %v1740 = vrot.slane %v1738, 4
      %v1742 = vadd.f32 %v1705, %v1740
      %v1744 = vrot.slane %v1742, 4
      %1746 = vst.msk [vmem:[#allocation3 + $0x8] sm:$0xf] %vm1702, %v1744
      %v1747 = vadd.f32 %v1738, %v1728
      %1749 = vrot.lane.b32.xlu0 %v1747, 32
      %v1750 = vpop.permute.xlu0 %1749
      %1752 = vst.msk [vmem:[#allocation3 + $0x8] sm:$0xf] %vm1714, %v1750
      %v1753 = vadd.f32 %v1726, %v1740
      %1755 = vrot.lane.b32.xlu0 %v1753, 64
      %v1756 = vpop.permute.xlu0 %1755
      %1758 = vst.msk [vmem:[#allocation3 + $0x8] sm:$0xf] %vm1724, %v1756
      %v1759 = vmul.f32 %v1680, 0.25
      %v1761 = vrot.slane %v1759, 4
      %v1763 = vadd.f32 %v1738, %v1761
      %v1765 = vrot.slane %v1763, 4
      %1766 = vrot.lane.b32.xlu0 %v1765, 96
      %v1767 = vpop.permute.xlu0 %1766
      %1769 = vst.msk [vmem:[#allocation3 + $0x8] sm:$0xf] %vm1736, %v1767
      %v1770 = vmul.f32 %v1680, 0.75
      %v1772 = vrot.slane %v1770, 4
      %v1774 = vadd.f32 %v1726, %v1772
      %v1776 = vrot.slane %v1774, 4
      %1778 = vst.msk [vmem:[#allocation3 + $0x10] sm:$0xf] %vm1702, %v1776
      %v1779 = vadd.f32 %v1770, %v1761
      %1781 = vrot.lane.b32.xlu0 %v1779, 32
      %v1782 = vpop.permute.xlu0 %1781
      %1784 = vst.msk [vmem:[#allocation3 + $0x10] sm:$0xf] %vm1714, %v1782
      %v1785 = vadd.f32 %v1759, %v1772
      %1787 = vrot.lane.b32.xlu0 %v1785, 64
      %v1788 = vpop.permute.xlu0 %1787
      %1790 = vst.msk [vmem:[#allocation3 + $0x10] sm:$0xf] %vm1724, %v1788
      %v1791 = vmul.f32 %v1683, 0.25
      %v1793 = vrot.slane %v1791, 4
      %v1795 = vadd.f32 %v1770, %v1793
      %v1797 = vrot.slane %v1795, 4
      %1798 = vrot.lane.b32.xlu0 %v1797, 96
      %v1799 = vpop.permute.xlu0 %1798
      %1801 = vst.msk [vmem:[#allocation3 + $0x10] sm:$0xf] %vm1736, %v1799
      %v1802 = vmul.f32 %v1683, 0.75
      %v1804 = vrot.slane %v1802, 4
      %v1806 = vadd.f32 %v1759, %v1804
      %v1808 = vrot.slane %v1806, 4
      %1810 = vst.msk [vmem:[#allocation3 + $0x18] sm:$0xf] %vm1702, %v1808
      %v1811 = vadd.f32 %v1802, %v1793
      %1813 = vrot.lane.b32.xlu0 %v1811, 32
      %v1814 = vpop.permute.xlu0 %1813
      %1816 = vst.msk [vmem:[#allocation3 + $0x18] sm:$0xf] %vm1714, %v1814
      %v1817 = vadd.f32 %v1791, %v1804
      %1819 = vrot.lane.b32.xlu0 %v1817, 64
      %v1820 = vpop.permute.xlu0 %1819
      %1822 = vst.msk [vmem:[#allocation3 + $0x18] sm:$0xf] %vm1724, %v1820
      %v1823 = vmul.f32 %v1688, 0.25
      %v1825 = vrot.slane %v1823, 4
      %v1827 = vadd.f32 %v1802, %v1825
      %v1829 = vrot.slane %v1827, 4
      %1830 = vrot.lane.b32.xlu0 %v1829, 96
      %v1831 = vpop.permute.xlu0 %1830
      %1833 = vst.msk [vmem:[#allocation3 + $0x18] sm:$0xf] %vm1736, %v1831
      %v1834 = vmul.f32 %v1688, 0.75
      %v1836 = vrot.slane %v1834, 4
      %v1838 = vadd.f32 %v1791, %v1836
      %v1840 = vrot.slane %v1838, 4
      %1842 = vst.msk [vmem:[#allocation3 + $0x20] sm:$0xf] %vm1702, %v1840
      %v1843 = vadd.f32 %v1834, %v1825
      %1845 = vrot.lane.b32.xlu0 %v1843, 32
      %v1846 = vpop.permute.xlu0 %1845
      %1848 = vst.msk [vmem:[#allocation3 + $0x20] sm:$0xf] %vm1714, %v1846
      %v1849 = vadd.f32 %v1823, %v1836
      %1851 = vrot.lane.b32.xlu0 %v1849, 64
      %v1852 = vpop.permute.xlu0 %1851
      %1854 = vst.msk [vmem:[#allocation3 + $0x20] sm:$0xf] %vm1724, %v1852
      %v1855 = vmul.f32 %v1691, 0.25
      %v1857 = vrot.slane %v1855, 4
      %v1859 = vadd.f32 %v1834, %v1857
      %v1861 = vrot.slane %v1859, 4
      %1862 = vrot.lane.b32.xlu0 %v1861, 96
      %v1863 = vpop.permute.xlu0 %1862
      %1865 = vst.msk [vmem:[#allocation3 + $0x20] sm:$0xf] %vm1736, %v1863
      %v1866 = vmul.f32 %v1691, 0.75
      %v1868 = vrot.slane %v1866, 4
      %v1870 = vadd.f32 %v1823, %v1868
      %v1872 = vrot.slane %v1870, 4
      %1874 = vst.msk [vmem:[#allocation3 + $0x28] sm:$0xf] %vm1702, %v1872
      %v1875 = vadd.f32 %v1866, %v1857
      %1877 = vrot.lane.b32.xlu0 %v1875, 32
      %v1878 = vpop.permute.xlu0 %1877
      %1880 = vst.msk [vmem:[#allocation3 + $0x28] sm:$0xf] %vm1714, %v1878
      %v1881 = vadd.f32 %v1855, %v1868
      %1883 = vrot.lane.b32.xlu0 %v1881, 64
      %v1884 = vpop.permute.xlu0 %1883
      %1886 = vst.msk [vmem:[#allocation3 + $0x28] sm:$0xf] %vm1724, %v1884
      %v1887 = vmul.f32 %v1696, 0.25
      %v1889 = vrot.slane %v1887, 4
      %v1891 = vadd.f32 %v1866, %v1889
      %v1893 = vrot.slane %v1891, 4
      %1894 = vrot.lane.b32.xlu0 %v1893, 96
      %v1895 = vpop.permute.xlu0 %1894
      %1897 = vst.msk [vmem:[#allocation3 + $0x28] sm:$0xf] %vm1736, %v1895
      %v1898 = vmul.f32 %v1696, 0.75
      %v1900 = vrot.slane %v1898, 4
      %v1902 = vadd.f32 %v1855, %v1900
      %v1904 = vrot.slane %v1902, 4
      %1906 = vst.msk [vmem:[#allocation3 + $0x30] sm:$0xf] %vm1702, %v1904
      %v1907 = vadd.f32 %v1898, %v1889
      %1909 = vrot.lane.b32.xlu0 %v1907, 32
      %v1910 = vpop.permute.xlu0 %1909
      %1912 = vst.msk [vmem:[#allocation3 + $0x30] sm:$0xf] %vm1714, %v1910
      %v1913 = vadd.f32 %v1887, %v1900
      %1915 = vrot.lane.b32.xlu0 %v1913, 64
      %v1916 = vpop.permute.xlu0 %1915
      %1918 = vst.msk [vmem:[#allocation3 + $0x30] sm:$0xf] %vm1724, %v1916
      %v1919 = vmul.f32 %v1699, 0.25
      %v1921 = vrot.slane %v1919, 4
      %v1923 = vadd.f32 %v1898, %v1921
      %v1925 = vrot.slane %v1923, 4
      %1926 = vrot.lane.b32.xlu0 %v1925, 96
      %v1927 = vpop.permute.xlu0 %1926
      %1929 = vst.msk [vmem:[#allocation3 + $0x30] sm:$0xf] %vm1736, %v1927
      %v1930 = vmul.f32 %v1699, 0.75
      %v1932 = vrot.slane %v1930, 4
      %v1934 = vadd.f32 %v1887, %v1932
      %v1936 = vrot.slane %v1934, 4
      %1938 = vst.msk [vmem:[#allocation3 + $0x38] sm:$0xf] %vm1702, %v1936
      %v1939 = vadd.f32 %v1930, %v1921
      %1941 = vrot.lane.b32.xlu0 %v1939, 32
      %v1942 = vpop.permute.xlu0 %1941
      %1944 = vst.msk [vmem:[#allocation3 + $0x38] sm:$0xf] %vm1714, %v1942
      %v1945 = vadd.f32 %v1919, %v1932
      %1947 = vrot.lane.b32.xlu0 %v1945, 64
      %v1948 = vpop.permute.xlu0 %1947
      %1950 = vst.msk [vmem:[#allocation3 + $0x38] sm:$0xf] %vm1724, %v1948
      %v1952 = vrot.slane %v1699, 4
      %1953 = vrot.lane.b32.xlu0 %v1952, 96
      %v1954 = vpop.permute.xlu0 %1953
      %1956 = vst.msk [vmem:[#allocation3 + $0x38] sm:$0xf] %vm1736, %v1954
      %v1957 = vld [vmem:[#allocation3] sm:$0xf]
      %v1958 = vld [vmem:[#allocation3 + $0x8] sm:$0xf]
      %v1959 = vld [vmem:[#allocation3 + $0x10] sm:$0xf]
      %v1960 = vld [vmem:[#allocation3 + $0x18] sm:$0xf]
      %v1961 = vld [vmem:[#allocation3 + $0x20] sm:$0xf]
      %v1962 = vld [vmem:[#allocation3 + $0x28] sm:$0xf]
      %v1963 = vld [vmem:[#allocation3 + $0x30] sm:$0xf]
      %v1964 = vld [vmem:[#allocation3 + $0x38] sm:$0xf]
      %v1965 = vld [vmem:[%s9] ss:$2 sm:$0xff]
      %s1966 = scalar_lea.vmem %s9, 1
      %v1967 = vld [vmem:[%s1966] ss:$2 sm:$0xff]
      %v1969 = vlaneseq
      %v1970 = vshrl.u32 %v1969, 7
      %v1971 = vsub.s32 0, %v1970
      %v1972 = vrot.slane %v1965, %v1971
      %v1973 = vlaneseq
      %v1974 = vshrl.u32 %v1973, 7
      %v1975 = vsub.s32 1, %v1974
      %v1976 = vrot.slane %v1965, %v1975
      %v1977 = vlaneseq
      %v1978 = vshrl.u32 %v1977, 7
      %v1979 = vsub.s32 2, %v1978
      %v1980 = vrot.slane %v1965, %v1979
      %v1981 = vlaneseq
      %v1982 = vshrl.u32 %v1981, 7
      %v1983 = vsub.s32 3, %v1982
      %v1984 = vrot.slane %v1965, %v1983
      %v1985 = vlaneseq
      %v1986 = vshrl.u32 %v1985, 7
      %v1987 = vsub.s32 4, %v1986
      %v1988 = vrot.slane %v1965, %v1987
      %v1989 = vlaneseq
      %v1990 = vshrl.u32 %v1989, 7
      %v1991 = vsub.s32 5, %v1990
      %v1992 = vrot.slane %v1965, %v1991
      %v1993 = vlaneseq
      %v1994 = vshrl.u32 %v1993, 7
      %v1995 = vsub.s32 6, %v1994
      %v1996 = vrot.slane %v1965, %v1995
      %v1997 = vlaneseq
      %v1998 = vshrl.u32 %v1997, 7
      %v1999 = vsub.s32 7, %v1998
      %v2000 = vrot.slane %v1965, %v1999
      %2001 = vrot.lane.b32.xlu0 %v1972, 95
      %v2002 = vpop.permute.xlu0 %2001
      %2003 = vrot.lane.b32.xlu0 %v1976, 95
      %v2004 = vpop.permute.xlu0 %2003
      %2005 = vrot.lane.b32.xlu0 %v1980, 95
      %v2006 = vpop.permute.xlu0 %2005
      %2007 = vrot.lane.b32.xlu0 %v1984, 95
      %v2008 = vpop.permute.xlu0 %2007
      %2009 = vrot.lane.b32.xlu0 %v1988, 95
      %v2010 = vpop.permute.xlu0 %2009
      %2011 = vrot.lane.b32.xlu0 %v1992, 95
      %v2012 = vpop.permute.xlu0 %2011
      %2013 = vrot.lane.b32.xlu0 %v1996, 95
      %v2014 = vpop.permute.xlu0 %2013
      %2015 = vrot.lane.b32.xlu0 %v2000, 95
      %v2016 = vpop.permute.xlu0 %2015
      %vm2017 = vcmask 777216
      %v2018 = vsel %vm2017, %v2002, %v2004
      %v2019 = vsel %vm2017, %v2004, %v2006
      %v2020 = vsel %vm2017, %v2006, %v2008
      %v2021 = vsel %vm2017, %v2008, %v2010
      %v2022 = vsel %vm2017, %v2010, %v2012
      %v2023 = vsel %vm2017, %v2012, %v2014
      %v2024 = vsel %vm2017, %v2014, %v2016
      %v2034 = vmul.f32 %v2002, 0.0
      %v2035 = vmul.f32 %v1957, %v2018
      %v2036 = vmul.f32 %v1958, %v2019
      %v2037 = vmul.f32 %v1959, %v2020
      %v2038 = vmul.f32 %v1960, %v2021
      %v2039 = vmul.f32 %v1961, %v2022
      %v2040 = vmul.f32 %v1962, %v2023
      %v2041 = vmul.f32 %v1963, %v2024
      %v2042 = vmul.f32 %v1964, %v2016
      %2052 = vrot.lane.b32.xlu0 %v2034, 33
      %v2053 = vpop.permute.xlu0 %2052
      %2054 = vrot.lane.b32.xlu0 %v2035, 33
      %v2055 = vpop.permute.xlu0 %2054
      %2056 = vrot.lane.b32.xlu0 %v2036, 33
      %v2057 = vpop.permute.xlu0 %2056
      %2058 = vrot.lane.b32.xlu0 %v2037, 33
      %v2059 = vpop.permute.xlu0 %2058
      %2060 = vrot.lane.b32.xlu0 %v2038, 33
      %v2061 = vpop.permute.xlu0 %2060
      %2062 = vrot.lane.b32.xlu0 %v2039, 33
      %v2063 = vpop.permute.xlu0 %2062
      %2064 = vrot.lane.b32.xlu0 %v2040, 33
      %v2065 = vpop.permute.xlu0 %2064
      %2066 = vrot.lane.b32.xlu0 %v2041, 33
      %v2067 = vpop.permute.xlu0 %2066
      %2068 = vrot.lane.b32.xlu0 %v2042, 33
      %v2069 = vpop.permute.xlu0 %2068
      %vm2070 = vcmask 269312
      %v2071 = vsel %vm2070, %v2053, %v2055
      %v2072 = vsel %vm2070, %v2055, %v2057
      %v2073 = vsel %vm2070, %v2057, %v2059
      %v2074 = vsel %vm2070, %v2059, %v2061
      %v2075 = vsel %vm2070, %v2061, %v2063
      %v2076 = vsel %vm2070, %v2063, %v2065
      %v2077 = vsel %vm2070, %v2065, %v2067
      %v2078 = vsel %vm2070, %v2067, %v2069
      %2087 = vst [vmem:[#allocation2] sm:$0xf] %v2071
      %2088 = vst [vmem:[#allocation2 + $0x8] sm:$0xf] %v2072
      %2089 = vst [vmem:[#allocation2 + $0x10] sm:$0xf] %v2073
      %2090 = vst [vmem:[#allocation2 + $0x18] sm:$0xf] %v2074
      %2091 = vst [vmem:[#allocation2 + $0x20] sm:$0xf] %v2075
      %2092 = vst [vmem:[#allocation2 + $0x28] sm:$0xf] %v2076
      %2093 = vst [vmem:[#allocation2 + $0x30] sm:$0xf] %v2077
      %2094 = vst [vmem:[#allocation2 + $0x38] sm:$0xf] %v2078
      %v2103 = vrot.slane %v1957, 4
      %v2104 = vrot.slane %v1958, 4
      %v2105 = vrot.slane %v1959, 4
      %v2106 = vrot.slane %v1960, 4
      %v2107 = vrot.slane %v1961, 4
      %v2108 = vrot.slane %v1962, 4
      %v2109 = vrot.slane %v1963, 4
      %v2110 = vrot.slane %v1964, 4
      %2111 = vrot.lane.b32.xlu0 %v1059, 32
      %v2112 = vpop.permute.xlu0 %2111
      %2113 = vrot.lane.b32.xlu0 %v2103, 32
      %v2114 = vpop.permute.xlu0 %2113
      %2115 = vrot.lane.b32.xlu0 %v2104, 32
      %v2116 = vpop.permute.xlu0 %2115
      %2117 = vrot.lane.b32.xlu0 %v2105, 32
      %v2118 = vpop.permute.xlu0 %2117
      %2119 = vrot.lane.b32.xlu0 %v2106, 32
      %v2120 = vpop.permute.xlu0 %2119
      %2121 = vrot.lane.b32.xlu0 %v2107, 32
      %v2122 = vpop.permute.xlu0 %2121
      %2123 = vrot.lane.b32.xlu0 %v2108, 32
      %v2124 = vpop.permute.xlu0 %2123
      %2125 = vrot.lane.b32.xlu0 %v2109, 32
      %v2126 = vpop.permute.xlu0 %2125
      %2127 = vrot.lane.b32.xlu0 %v2110, 32
      %v2128 = vpop.permute.xlu0 %2127
      %vm2129 = vcmask 261120
      %v2130 = vsel %vm2129, %v2112, %v2114
      %v2131 = vsel %vm2129, %v2114, %v2116
      %v2132 = vsel %vm2129, %v2116, %v2118
      %v2133 = vsel %vm2129, %v2118, %v2120
      %v2134 = vsel %vm2129, %v2120, %v2122
      %v2135 = vsel %vm2129, %v2122, %v2124
      %v2136 = vsel %vm2129, %v2124, %v2126
      %v2137 = vsel %vm2129, %v2126, %v2128
      %2146 = vst [vmem:[#allocation2] sm:$0xf0] %v2130
      %2147 = vst [vmem:[#allocation2 + $0x8] sm:$0xf0] %v2131
      %2148 = vst [vmem:[#allocation2 + $0x10] sm:$0xf0] %v2132
      %2149 = vst [vmem:[#allocation2 + $0x18] sm:$0xf0] %v2133
      %2150 = vst [vmem:[#allocation2 + $0x20] sm:$0xf0] %v2134
      %2151 = vst [vmem:[#allocation2 + $0x28] sm:$0xf0] %v2135
      %2152 = vst [vmem:[#allocation2 + $0x30] sm:$0xf0] %v2136
      %2153 = vst [vmem:[#allocation2 + $0x38] sm:$0xf0] %v2137
      %v2155 = vlaneseq
      %v2156 = vshrl.u32 %v2155, 7
      %v2157 = vsub.s32 0, %v2156
      %v2158 = vrot.slane %v1967, %v2157
      %v2159 = vlaneseq
      %v2160 = vshrl.u32 %v2159, 7
      %v2161 = vsub.s32 1, %v2160
      %v2162 = vrot.slane %v1967, %v2161
      %v2163 = vlaneseq
      %v2164 = vshrl.u32 %v2163, 7
      %v2165 = vsub.s32 2, %v2164
      %v2166 = vrot.slane %v1967, %v2165
      %v2167 = vlaneseq
      %v2168 = vshrl.u32 %v2167, 7
      %v2169 = vsub.s32 3, %v2168
      %v2170 = vrot.slane %v1967, %v2169
      %v2171 = vlaneseq
      %v2172 = vshrl.u32 %v2171, 7
      %v2173 = vsub.s32 4, %v2172
      %v2174 = vrot.slane %v1967, %v2173
      %v2175 = vlaneseq
      %v2176 = vshrl.u32 %v2175, 7
      %v2177 = vsub.s32 5, %v2176
      %v2178 = vrot.slane %v1967, %v2177
      %v2179 = vlaneseq
      %v2180 = vshrl.u32 %v2179, 7
      %v2181 = vsub.s32 6, %v2180
      %v2182 = vrot.slane %v1967, %v2181
      %v2183 = vlaneseq
      %v2184 = vshrl.u32 %v2183, 7
      %v2185 = vsub.s32 7, %v2184
      %v2186 = vrot.slane %v1967, %v2185
      %2187 = vrot.lane.b32.xlu0 %v2158, 97
      %v2188 = vpop.permute.xlu0 %2187
      %2189 = vrot.lane.b32.xlu0 %v2162, 97
      %v2190 = vpop.permute.xlu0 %2189
      %2191 = vrot.lane.b32.xlu0 %v2166, 97
      %v2192 = vpop.permute.xlu0 %2191
      %2193 = vrot.lane.b32.xlu0 %v2170, 97
      %v2194 = vpop.permute.xlu0 %2193
      %2195 = vrot.lane.b32.xlu0 %v2174, 97
      %v2196 = vpop.permute.xlu0 %2195
      %2197 = vrot.lane.b32.xlu0 %v2178, 97
      %v2198 = vpop.permute.xlu0 %2197
      %2199 = vrot.lane.b32.xlu0 %v2182, 97
      %v2200 = vpop.permute.xlu0 %2199
      %2201 = vrot.lane.b32.xlu0 %v2186, 97
      %v2202 = vpop.permute.xlu0 %2201
      %vm2203 = vcmask 793600
      %v2204 = vsel %vm2203, %v2188, %v2190
      %v2205 = vsel %vm2203, %v2190, %v2192
      %v2206 = vsel %vm2203, %v2192, %v2194
      %v2207 = vsel %vm2203, %v2194, %v2196
      %v2208 = vsel %vm2203, %v2196, %v2198
      %v2209 = vsel %vm2203, %v2198, %v2200
      %v2210 = vsel %vm2203, %v2200, %v2202
      %v2220 = vmul.f32 %v2188, 0.0
      %v2221 = vmul.f32 %v1957, %v2204
      %v2222 = vmul.f32 %v1958, %v2205
      %v2223 = vmul.f32 %v1959, %v2206
      %v2224 = vmul.f32 %v1960, %v2207
      %v2225 = vmul.f32 %v1961, %v2208
      %v2226 = vmul.f32 %v1962, %v2209
      %v2227 = vmul.f32 %v1963, %v2210
      %v2228 = vmul.f32 %v1964, %v2202
      %2238 = vrot.lane.b32.xlu0 %v2220, 31
      %v2239 = vpop.permute.xlu0 %2238
      %2240 = vrot.lane.b32.xlu0 %v2221, 31
      %v2241 = vpop.permute.xlu0 %2240
      %2242 = vrot.lane.b32.xlu0 %v2222, 31
      %v2243 = vpop.permute.xlu0 %2242
      %2244 = vrot.lane.b32.xlu0 %v2223, 31
      %v2245 = vpop.permute.xlu0 %2244
      %2246 = vrot.lane.b32.xlu0 %v2224, 31
      %v2247 = vpop.permute.xlu0 %2246
      %2248 = vrot.lane.b32.xlu0 %v2225, 31
      %v2249 = vpop.permute.xlu0 %2248
      %2250 = vrot.lane.b32.xlu0 %v2226, 31
      %v2251 = vpop.permute.xlu0 %2250
      %2252 = vrot.lane.b32.xlu0 %v2227, 31
      %v2253 = vpop.permute.xlu0 %2252
      %2254 = vrot.lane.b32.xlu0 %v2228, 31
      %v2255 = vpop.permute.xlu0 %2254
      %vm2256 = vcmask 252928
      %v2257 = vsel %vm2256, %v2239, %v2241
      %v2258 = vsel %vm2256, %v2241, %v2243
      %v2259 = vsel %vm2256, %v2243, %v2245
      %v2260 = vsel %vm2256, %v2245, %v2247
      %v2261 = vsel %vm2256, %v2247, %v2249
      %v2262 = vsel %vm2256, %v2249, %v2251
      %v2263 = vsel %vm2256, %v2251, %v2253
      %v2264 = vsel %vm2256, %v2253, %v2255
      %2273 = vst [vmem:[#allocation2 + $0x40] sm:$0xf] %v2257
      %2274 = vst [vmem:[#allocation2 + $0x48] sm:$0xf] %v2258
      %2275 = vst [vmem:[#allocation2 + $0x50] sm:$0xf] %v2259
      %2276 = vst [vmem:[#allocation2 + $0x58] sm:$0xf] %v2260
      %2277 = vst [vmem:[#allocation2 + $0x60] sm:$0xf] %v2261
      %2278 = vst [vmem:[#allocation2 + $0x68] sm:$0xf] %v2262
      %2279 = vst [vmem:[#allocation2 + $0x70] sm:$0xf] %v2263
      %2280 = vst [vmem:[#allocation2 + $0x78] sm:$0xf] %v2264
      %2281 = vrot.lane.b32.xlu0 %v1972, 127
      %v2282 = vpop.permute.xlu0 %2281
      %2283 = vrot.lane.b32.xlu0 %v1976, 127
      %v2284 = vpop.permute.xlu0 %2283
      %2285 = vrot.lane.b32.xlu0 %v1980, 127
      %v2286 = vpop.permute.xlu0 %2285
      %2287 = vrot.lane.b32.xlu0 %v1984, 127
      %v2288 = vpop.permute.xlu0 %2287
      %2289 = vrot.lane.b32.xlu0 %v1988, 127
      %v2290 = vpop.permute.xlu0 %2289
      %2291 = vrot.lane.b32.xlu0 %v1992, 127
      %v2292 = vpop.permute.xlu0 %2291
      %2293 = vrot.lane.b32.xlu0 %v1996, 127
      %v2294 = vpop.permute.xlu0 %2293
      %2295 = vrot.lane.b32.xlu0 %v2000, 127
      %v2296 = vpop.permute.xlu0 %2295
      %v2297 = vsel %vm813, %v2282, %v2284
      %v2298 = vsel %vm813, %v2284, %v2286
      %v2299 = vsel %vm813, %v2286, %v2288
      %v2300 = vsel %vm813, %v2288, %v2290
      %v2301 = vsel %vm813, %v2290, %v2292
      %v2302 = vsel %vm813, %v2292, %v2294
      %v2303 = vsel %vm813, %v2294, %v2296
      %v2313 = vmul.f32 %v2282, 0.0
      %v2314 = vmul.f32 %v1957, %v2297
      %v2315 = vmul.f32 %v1958, %v2298
      %v2316 = vmul.f32 %v1959, %v2299
      %v2317 = vmul.f32 %v1960, %v2300
      %v2318 = vmul.f32 %v1961, %v2301
      %v2319 = vmul.f32 %v1962, %v2302
      %v2320 = vmul.f32 %v1963, %v2303
      %v2321 = vmul.f32 %v1964, %v2296
      %v2331 = vrot.slane %v2313, 4
      %v2332 = vrot.slane %v2314, 4
      %v2333 = vrot.slane %v2315, 4
      %v2334 = vrot.slane %v2316, 4
      %v2335 = vrot.slane %v2317, 4
      %v2336 = vrot.slane %v2318, 4
      %v2337 = vrot.slane %v2319, 4
      %v2338 = vrot.slane %v2320, 4
      %v2339 = vrot.slane %v2321, 4
      %2340 = vrot.lane.b32.xlu0 %v2331, 1
      %v2341 = vpop.permute.xlu0 %2340
      %2342 = vrot.lane.b32.xlu0 %v2332, 1
      %v2343 = vpop.permute.xlu0 %2342
      %2344 = vrot.lane.b32.xlu0 %v2333, 1
      %v2345 = vpop.permute.xlu0 %2344
      %2346 = vrot.lane.b32.xlu0 %v2334, 1
      %v2347 = vpop.permute.xlu0 %2346
      %2348 = vrot.lane.b32.xlu0 %v2335, 1
      %v2349 = vpop.permute.xlu0 %2348
      %2350 = vrot.lane.b32.xlu0 %v2336, 1
      %v2351 = vpop.permute.xlu0 %2350
      %2352 = vrot.lane.b32.xlu0 %v2337, 1
      %v2353 = vpop.permute.xlu0 %2352
      %2354 = vrot.lane.b32.xlu0 %v2338, 1
      %v2355 = vpop.permute.xlu0 %2354
      %2356 = vrot.lane.b32.xlu0 %v2339, 1
      %v2357 = vpop.permute.xlu0 %2356
      %v2358 = vsel %vm830, %v2341, %v2343
      %v2359 = vsel %vm830, %v2343, %v2345
      %v2360 = vsel %vm830, %v2345, %v2347
      %v2361 = vsel %vm830, %v2347, %v2349
      %v2362 = vsel %vm830, %v2349, %v2351
      %v2363 = vsel %vm830, %v2351, %v2353
      %v2364 = vsel %vm830, %v2353, %v2355
      %v2365 = vsel %vm830, %v2355, %v2357
      %2374 = vst [vmem:[#allocation2 + $0x40] sm:$0xf0] %v2358
      %2375 = vst [vmem:[#allocation2 + $0x48] sm:$0xf0] %v2359
      %2376 = vst [vmem:[#allocation2 + $0x50] sm:$0xf0] %v2360
      %2377 = vst [vmem:[#allocation2 + $0x58] sm:$0xf0] %v2361
      %2378 = vst [vmem:[#allocation2 + $0x60] sm:$0xf0] %v2362
      %2379 = vst [vmem:[#allocation2 + $0x68] sm:$0xf0] %v2363
      %2380 = vst [vmem:[#allocation2 + $0x70] sm:$0xf0] %v2364
      %2381 = vst [vmem:[#allocation2 + $0x78] sm:$0xf0] %v2365
      %2382 = vst [vmem:[#allocation2 + $0x80] sm:$0xf] %v1957
      %2383 = vst [vmem:[#allocation2 + $0x88] sm:$0xf] %v1958
      %2384 = vst [vmem:[#allocation2 + $0x90] sm:$0xf] %v1959
      %2385 = vst [vmem:[#allocation2 + $0x98] sm:$0xf] %v1960
      %2386 = vst [vmem:[#allocation2 + $0xa0] sm:$0xf] %v1961
      %2387 = vst [vmem:[#allocation2 + $0xa8] sm:$0xf] %v1962
      %2388 = vst [vmem:[#allocation2 + $0xb0] sm:$0xf] %v1963
      %2389 = vst [vmem:[#allocation2 + $0xb8] sm:$0xf] %v1964
      %2390 = vrot.lane.b32.xlu0 %v2158, 1
      %v2391 = vpop.permute.xlu0 %2390
      %2392 = vrot.lane.b32.xlu0 %v2162, 1
      %v2393 = vpop.permute.xlu0 %2392
      %2394 = vrot.lane.b32.xlu0 %v2166, 1
      %v2395 = vpop.permute.xlu0 %2394
      %2396 = vrot.lane.b32.xlu0 %v2170, 1
      %v2397 = vpop.permute.xlu0 %2396
      %2398 = vrot.lane.b32.xlu0 %v2174, 1
      %v2399 = vpop.permute.xlu0 %2398
      %2400 = vrot.lane.b32.xlu0 %v2178, 1
      %v2401 = vpop.permute.xlu0 %2400
      %2402 = vrot.lane.b32.xlu0 %v2182, 1
      %v2403 = vpop.permute.xlu0 %2402
      %2404 = vrot.lane.b32.xlu0 %v2186, 1
      %v2405 = vpop.permute.xlu0 %2404
      %v2406 = vsel %vm830, %v2391, %v2393
      %v2407 = vsel %vm830, %v2393, %v2395
      %v2408 = vsel %vm830, %v2395, %v2397
      %v2409 = vsel %vm830, %v2397, %v2399
      %v2410 = vsel %vm830, %v2399, %v2401
      %v2411 = vsel %vm830, %v2401, %v2403
      %v2412 = vsel %vm830, %v2403, %v2405
      %v2422 = vmul.f32 %v1957, %v2391
      %v2423 = vmul.f32 %v1958, %v2406
      %v2424 = vmul.f32 %v1959, %v2407
      %v2425 = vmul.f32 %v1960, %v2408
      %v2426 = vmul.f32 %v1961, %v2409
      %v2427 = vmul.f32 %v1962, %v2410
      %v2428 = vmul.f32 %v1963, %v2411
      %v2429 = vmul.f32 %v1964, %v2412
      %v2430 = vmul.f32 %v2405, 0.0
      %v2440 = vrot.slane %v2422, 4
      %v2441 = vrot.slane %v2423, 4
      %v2442 = vrot.slane %v2424, 4
      %v2443 = vrot.slane %v2425, 4
      %v2444 = vrot.slane %v2426, 4
      %v2445 = vrot.slane %v2427, 4
      %v2446 = vrot.slane %v2428, 4
      %v2447 = vrot.slane %v2429, 4
      %v2448 = vrot.slane %v2430, 4
      %2449 = vrot.lane.b32.xlu0 %v2440, 127
      %v2450 = vpop.permute.xlu0 %2449
      %2451 = vrot.lane.b32.xlu0 %v2441, 127
      %v2452 = vpop.permute.xlu0 %2451
      %2453 = vrot.lane.b32.xlu0 %v2442, 127
      %v2454 = vpop.permute.xlu0 %2453
      %2455 = vrot.lane.b32.xlu0 %v2443, 127
      %v2456 = vpop.permute.xlu0 %2455
      %2457 = vrot.lane.b32.xlu0 %v2444, 127
      %v2458 = vpop.permute.xlu0 %2457
      %2459 = vrot.lane.b32.xlu0 %v2445, 127
      %v2460 = vpop.permute.xlu0 %2459
      %2461 = vrot.lane.b32.xlu0 %v2446, 127
      %v2462 = vpop.permute.xlu0 %2461
      %2463 = vrot.lane.b32.xlu0 %v2447, 127
      %v2464 = vpop.permute.xlu0 %2463
      %2465 = vrot.lane.b32.xlu0 %v2448, 127
      %v2466 = vpop.permute.xlu0 %2465
      %v2467 = vsel %vm813, %v2450, %v2452
      %v2468 = vsel %vm813, %v2452, %v2454
      %v2469 = vsel %vm813, %v2454, %v2456
      %v2470 = vsel %vm813, %v2456, %v2458
      %v2471 = vsel %vm813, %v2458, %v2460
      %v2472 = vsel %vm813, %v2460, %v2462
      %v2473 = vsel %vm813, %v2462, %v2464
      %v2474 = vsel %vm813, %v2464, %v2466
      %2483 = vst [vmem:[#allocation2 + $0x80] sm:$0xf0] %v2467
      %2484 = vst [vmem:[#allocation2 + $0x88] sm:$0xf0] %v2468
      %2485 = vst [vmem:[#allocation2 + $0x90] sm:$0xf0] %v2469
      %2486 = vst [vmem:[#allocation2 + $0x98] sm:$0xf0] %v2470
      %2487 = vst [vmem:[#allocation2 + $0xa0] sm:$0xf0] %v2471
      %2488 = vst [vmem:[#allocation2 + $0xa8] sm:$0xf0] %v2472
      %2489 = vst [vmem:[#allocation2 + $0xb0] sm:$0xf0] %v2473
      %2490 = vst [vmem:[#allocation2 + $0xb8] sm:$0xf0] %v2474
      %2491 = vrot.lane.b32.xlu0 %v1972, 31
      %v2492 = vpop.permute.xlu0 %2491
      %2493 = vrot.lane.b32.xlu0 %v1976, 31
      %v2494 = vpop.permute.xlu0 %2493
      %2495 = vrot.lane.b32.xlu0 %v1980, 31
      %v2496 = vpop.permute.xlu0 %2495
      %2497 = vrot.lane.b32.xlu0 %v1984, 31
      %v2498 = vpop.permute.xlu0 %2497
      %2499 = vrot.lane.b32.xlu0 %v1988, 31
      %v2500 = vpop.permute.xlu0 %2499
      %2501 = vrot.lane.b32.xlu0 %v1992, 31
      %v2502 = vpop.permute.xlu0 %2501
      %2503 = vrot.lane.b32.xlu0 %v1996, 31
      %v2504 = vpop.permute.xlu0 %2503
      %2505 = vrot.lane.b32.xlu0 %v2000, 31
      %v2506 = vpop.permute.xlu0 %2505
      %v2507 = vsel %vm2256, %v2492, %v2494
      %v2508 = vsel %vm2256, %v2494, %v2496
      %v2509 = vsel %vm2256, %v2496, %v2498
      %v2510 = vsel %vm2256, %v2498, %v2500
      %v2511 = vsel %vm2256, %v2500, %v2502
      %v2512 = vsel %vm2256, %v2502, %v2504
      %v2513 = vsel %vm2256, %v2504, %v2506
      %v2523 = vmul.f32 %v1957, %v2492
      %v2524 = vmul.f32 %v1958, %v2507
      %v2525 = vmul.f32 %v1959, %v2508
      %v2526 = vmul.f32 %v1960, %v2509
      %v2527 = vmul.f32 %v1961, %v2510
      %v2528 = vmul.f32 %v1962, %v2511
      %v2529 = vmul.f32 %v1963, %v2512
      %v2530 = vmul.f32 %v1964, %v2513
      %v2531 = vmul.f32 %v2506, 0.0
      %2541 = vrot.lane.b32.xlu0 %v2523, 97
      %v2542 = vpop.permute.xlu0 %2541
      %2543 = vrot.lane.b32.xlu0 %v2524, 97
      %v2544 = vpop.permute.xlu0 %2543
      %2545 = vrot.lane.b32.xlu0 %v2525, 97
      %v2546 = vpop.permute.xlu0 %2545
      %2547 = vrot.lane.b32.xlu0 %v2526, 97
      %v2548 = vpop.permute.xlu0 %2547
      %2549 = vrot.lane.b32.xlu0 %v2527, 97
      %v2550 = vpop.permute.xlu0 %2549
      %2551 = vrot.lane.b32.xlu0 %v2528, 97
      %v2552 = vpop.permute.xlu0 %2551
      %2553 = vrot.lane.b32.xlu0 %v2529, 97
      %v2554 = vpop.permute.xlu0 %2553
      %2555 = vrot.lane.b32.xlu0 %v2530, 97
      %v2556 = vpop.permute.xlu0 %2555
      %2557 = vrot.lane.b32.xlu0 %v2531, 97
      %v2558 = vpop.permute.xlu0 %2557
      %v2559 = vsel %vm2203, %v2542, %v2544
      %v2560 = vsel %vm2203, %v2544, %v2546
      %v2561 = vsel %vm2203, %v2546, %v2548
      %v2562 = vsel %vm2203, %v2548, %v2550
      %v2563 = vsel %vm2203, %v2550, %v2552
      %v2564 = vsel %vm2203, %v2552, %v2554
      %v2565 = vsel %vm2203, %v2554, %v2556
      %v2566 = vsel %vm2203, %v2556, %v2558
      %2575 = vst [vmem:[#allocation2 + $0xc0] sm:$0xf] %v2559
      %2576 = vst [vmem:[#allocation2 + $0xc8] sm:$0xf] %v2560
      %2577 = vst [vmem:[#allocation2 + $0xd0] sm:$0xf] %v2561
      %2578 = vst [vmem:[#allocation2 + $0xd8] sm:$0xf] %v2562
      %2579 = vst [vmem:[#allocation2 + $0xe0] sm:$0xf] %v2563
      %2580 = vst [vmem:[#allocation2 + $0xe8] sm:$0xf] %v2564
      %2581 = vst [vmem:[#allocation2 + $0xf0] sm:$0xf] %v2565
      %2582 = vst [vmem:[#allocation2 + $0xf8] sm:$0xf] %v2566
      %2583 = vrot.lane.b32.xlu0 %v2103, 96
      %v2584 = vpop.permute.xlu0 %2583
      %2585 = vrot.lane.b32.xlu0 %v2104, 96
      %v2586 = vpop.permute.xlu0 %2585
      %2587 = vrot.lane.b32.xlu0 %v2105, 96
      %v2588 = vpop.permute.xlu0 %2587
      %2589 = vrot.lane.b32.xlu0 %v2106, 96
      %v2590 = vpop.permute.xlu0 %2589
      %2591 = vrot.lane.b32.xlu0 %v2107, 96
      %v2592 = vpop.permute.xlu0 %2591
      %2593 = vrot.lane.b32.xlu0 %v2108, 96
      %v2594 = vpop.permute.xlu0 %2593
      %2595 = vrot.lane.b32.xlu0 %v2109, 96
      %v2596 = vpop.permute.xlu0 %2595
      %2597 = vrot.lane.b32.xlu0 %v2110, 96
      %v2598 = vpop.permute.xlu0 %2597
      %2599 = vrot.lane.b32.xlu0 %v1059, 96
      %v2600 = vpop.permute.xlu0 %2599
      %vm2601 = vcmask 785408
      %v2602 = vsel %vm2601, %v2584, %v2586
      %v2603 = vsel %vm2601, %v2586, %v2588
      %v2604 = vsel %vm2601, %v2588, %v2590
      %v2605 = vsel %vm2601, %v2590, %v2592
      %v2606 = vsel %vm2601, %v2592, %v2594
      %v2607 = vsel %vm2601, %v2594, %v2596
      %v2608 = vsel %vm2601, %v2596, %v2598
      %v2609 = vsel %vm2601, %v2598, %v2600
      %2618 = vst [vmem:[#allocation2 + $0xc0] sm:$0xf0] %v2602
      %2619 = vst [vmem:[#allocation2 + $0xc8] sm:$0xf0] %v2603
      %2620 = vst [vmem:[#allocation2 + $0xd0] sm:$0xf0] %v2604
      %2621 = vst [vmem:[#allocation2 + $0xd8] sm:$0xf0] %v2605
      %2622 = vst [vmem:[#allocation2 + $0xe0] sm:$0xf0] %v2606
      %2623 = vst [vmem:[#allocation2 + $0xe8] sm:$0xf0] %v2607
      %2624 = vst [vmem:[#allocation2 + $0xf0] sm:$0xf0] %v2608
      %2625 = vst [vmem:[#allocation2 + $0xf8] sm:$0xf0] %v2609
      %2626 = vrot.lane.b32.xlu0 %v2158, 33
      %v2627 = vpop.permute.xlu0 %2626
      %2628 = vrot.lane.b32.xlu0 %v2162, 33
      %v2629 = vpop.permute.xlu0 %2628
      %2630 = vrot.lane.b32.xlu0 %v2166, 33
      %v2631 = vpop.permute.xlu0 %2630
      %2632 = vrot.lane.b32.xlu0 %v2170, 33
      %v2633 = vpop.permute.xlu0 %2632
      %2634 = vrot.lane.b32.xlu0 %v2174, 33
      %v2635 = vpop.permute.xlu0 %2634
      %2636 = vrot.lane.b32.xlu0 %v2178, 33
      %v2637 = vpop.permute.xlu0 %2636
      %2638 = vrot.lane.b32.xlu0 %v2182, 33
      %v2639 = vpop.permute.xlu0 %2638
      %2640 = vrot.lane.b32.xlu0 %v2186, 33
      %v2641 = vpop.permute.xlu0 %2640
      %v2642 = vsel %vm2070, %v2627, %v2629
      %v2643 = vsel %vm2070, %v2629, %v2631
      %v2644 = vsel %vm2070, %v2631, %v2633
      %v2645 = vsel %vm2070, %v2633, %v2635
      %v2646 = vsel %vm2070, %v2635, %v2637
      %v2647 = vsel %vm2070, %v2637, %v2639
      %v2648 = vsel %vm2070, %v2639, %v2641
      %v2658 = vmul.f32 %v1957, %v2627
      %v2659 = vmul.f32 %v1958, %v2642
      %v2660 = vmul.f32 %v1959, %v2643
      %v2661 = vmul.f32 %v1960, %v2644
      %v2662 = vmul.f32 %v1961, %v2645
      %v2663 = vmul.f32 %v1962, %v2646
      %v2664 = vmul.f32 %v1963, %v2647
      %v2665 = vmul.f32 %v1964, %v2648
      %v2666 = vmul.f32 %v2641, 0.0
      %2676 = vrot.lane.b32.xlu0 %v2658, 95
      %v2677 = vpop.permute.xlu0 %2676
      %2678 = vrot.lane.b32.xlu0 %v2659, 95
      %v2679 = vpop.permute.xlu0 %2678
      %2680 = vrot.lane.b32.xlu0 %v2660, 95
      %v2681 = vpop.permute.xlu0 %2680
      %2682 = vrot.lane.b32.xlu0 %v2661, 95
      %v2683 = vpop.permute.xlu0 %2682
      %2684 = vrot.lane.b32.xlu0 %v2662, 95
      %v2685 = vpop.permute.xlu0 %2684
      %2686 = vrot.lane.b32.xlu0 %v2663, 95
      %v2687 = vpop.permute.xlu0 %2686
      %2688 = vrot.lane.b32.xlu0 %v2664, 95
      %v2689 = vpop.permute.xlu0 %2688
      %2690 = vrot.lane.b32.xlu0 %v2665, 95
      %v2691 = vpop.permute.xlu0 %2690
      %2692 = vrot.lane.b32.xlu0 %v2666, 95
      %v2693 = vpop.permute.xlu0 %2692
      %v2694 = vsel %vm2017, %v2677, %v2679
      %v2695 = vsel %vm2017, %v2679, %v2681
      %v2696 = vsel %vm2017, %v2681, %v2683
      %v2697 = vsel %vm2017, %v2683, %v2685
      %v2698 = vsel %vm2017, %v2685, %v2687
      %v2699 = vsel %vm2017, %v2687, %v2689
      %v2700 = vsel %vm2017, %v2689, %v2691
      %v2701 = vsel %vm2017, %v2691, %v2693
      %2710 = vst [vmem:[#allocation2 + $0x100] sm:$0xf] %v2694
      %2711 = vst [vmem:[#allocation2 + $0x108] sm:$0xf] %v2695
      %2712 = vst [vmem:[#allocation2 + $0x110] sm:$0xf] %v2696
      %2713 = vst [vmem:[#allocation2 + $0x118] sm:$0xf] %v2697
      %2714 = vst [vmem:[#allocation2 + $0x120] sm:$0xf] %v2698
      %2715 = vst [vmem:[#allocation2 + $0x128] sm:$0xf] %v2699
      %2716 = vst [vmem:[#allocation2 + $0x130] sm:$0xf] %v2700
      %2717 = vst [vmem:[#allocation2 + $0x138] sm:$0xf] %v2701
      %v2718 = vld [vmem:[#allocation2] sm:$0xff]
      %v2719 = vld [vmem:[#allocation2 + $0x8] sm:$0xff]
      %v2720 = vld [vmem:[#allocation2 + $0x10] sm:$0xff]
      %v2721 = vld [vmem:[#allocation2 + $0x18] sm:$0xff]
      %v2722 = vld [vmem:[#allocation2 + $0x20] sm:$0xff]
      %v2723 = vld [vmem:[#allocation2 + $0x28] sm:$0xff]
      %v2724 = vld [vmem:[#allocation2 + $0x30] sm:$0xff]
      %v2725 = vld [vmem:[#allocation2 + $0x38] sm:$0xff]
      %v2726 = vld [vmem:[#allocation2 + $0x40] sm:$0xff]
      %v2727 = vld [vmem:[#allocation2 + $0x48] sm:$0xff]
      %v2728 = vld [vmem:[#allocation2 + $0x50] sm:$0xff]
      %v2729 = vld [vmem:[#allocation2 + $0x58] sm:$0xff]
      %v2730 = vld [vmem:[#allocation2 + $0x60] sm:$0xff]
      %v2731 = vld [vmem:[#allocation2 + $0x68] sm:$0xff]
      %v2732 = vld [vmem:[#allocation2 + $0x70] sm:$0xff]
      %v2733 = vld [vmem:[#allocation2 + $0x78] sm:$0xff]
      %v2734 = vld [vmem:[#allocation2 + $0x80] sm:$0xff]
      %v2735 = vld [vmem:[#allocation2 + $0x88] sm:$0xff]
      %v2736 = vld [vmem:[#allocation2 + $0x90] sm:$0xff]
      %v2737 = vld [vmem:[#allocation2 + $0x98] sm:$0xff]
      %v2738 = vld [vmem:[#allocation2 + $0xa0] sm:$0xff]
      %v2739 = vld [vmem:[#allocation2 + $0xa8] sm:$0xff]
      %v2740 = vld [vmem:[#allocation2 + $0xb0] sm:$0xff]
      %v2741 = vld [vmem:[#allocation2 + $0xb8] sm:$0xff]
      %v2742 = vld [vmem:[#allocation2 + $0xc0] sm:$0xff]
      %v2743 = vld [vmem:[#allocation2 + $0xc8] sm:$0xff]
      %v2744 = vld [vmem:[#allocation2 + $0xd0] sm:$0xff]
      %v2745 = vld [vmem:[#allocation2 + $0xd8] sm:$0xff]
      %v2746 = vld [vmem:[#allocation2 + $0xe0] sm:$0xff]
      %v2747 = vld [vmem:[#allocation2 + $0xe8] sm:$0xff]
      %v2748 = vld [vmem:[#allocation2 + $0xf0] sm:$0xff]
      %v2749 = vld [vmem:[#allocation2 + $0xf8] sm:$0xff]
      %v2750 = vld [vmem:[#allocation2 + $0x100] sm:$0xf]
      %v2751 = vld [vmem:[#allocation2 + $0x108] sm:$0xf]
      %v2752 = vld [vmem:[#allocation2 + $0x110] sm:$0xf]
      %v2753 = vld [vmem:[#allocation2 + $0x118] sm:$0xf]
      %v2754 = vld [vmem:[#allocation2 + $0x120] sm:$0xf]
      %v2755 = vld [vmem:[#allocation2 + $0x128] sm:$0xf]
      %v2756 = vld [vmem:[#allocation2 + $0x130] sm:$0xf]
      %v2757 = vld [vmem:[#allocation2 + $0x138] sm:$0xf]
      %v2758 = vpack.c.bf16 %v2726, %v2718
      %v2759 = vpack.c.bf16 %v2727, %v2719
      %v2760 = vpack.c.bf16 %v2728, %v2720
      %v2761 = vpack.c.bf16 %v2729, %v2721
      %v2762 = vpack.c.bf16 %v2730, %v2722
      %v2763 = vpack.c.bf16 %v2731, %v2723
      %v2764 = vpack.c.bf16 %v2732, %v2724
      %v2765 = vpack.c.bf16 %v2733, %v2725
      %v2766 = vpack.c.bf16 %v2742, %v2734
      %v2767 = vpack.c.bf16 %v2743, %v2735
      %v2768 = vpack.c.bf16 %v2744, %v2736
      %v2769 = vpack.c.bf16 %v2745, %v2737
      %v2770 = vpack.c.bf16 %v2746, %v2738
      %v2771 = vpack.c.bf16 %v2747, %v2739
      %v2772 = vpack.c.bf16 %v2748, %v2740
      %v2773 = vpack.c.bf16 %v2749, %v2741
      %v2774 = vpack.c.bf16 %v2750, %v2750
      %v2775 = vpack.c.bf16 %v2751, %v2751
      %v2776 = vpack.c.bf16 %v2752, %v2752
      %v2777 = vpack.c.bf16 %v2753, %v2753
      %v2778 = vpack.c.bf16 %v2754, %v2754
      %v2779 = vpack.c.bf16 %v2755, %v2755
      %v2780 = vpack.c.bf16 %v2756, %v2756
      %v2781 = vpack.c.bf16 %v2757, %v2757
      %v2782 = vld [vmem:[%s10] sm:$0x1]
      %v2784 = vsel %vm1483, %v2782, 0
      %v2787 = vsel %vm1487, %v2774, 0
      %v2790 = vsel %vm1487, %v2775, 0
      %v2793 = vsel %vm1487, %v2776, 0
      %v2796 = vsel %vm1487, %v2777, 0
      %v2799 = vsel %vm1487, %v2778, 0
      %v2802 = vsel %vm1487, %v2779, 0
      %v2805 = vsel %vm1487, %v2780, 0
      %v2808 = vsel %vm1487, %v2781, 0
      %2810 = vmatprep.subr.bf16.mxu0 %v2759
      %2811 = vmatpush1.bf16.msra.mxu0 %v2758
      %2812 = vmatprep.subr.bf16.mxu0 %v2767
      %2813 = vmatpush1.bf16.msra.mxu0 %v2766
      %2814 = vmatprep.subr.bf16.mxu0 %v2790
      %2815 = vmatpush1.bf16.msra.mxu0 %v2787
      %2816 = vmatprep.subr.bf16.mxu0 0
      %2817 = vmatpush1.bf16.msra.mxu0 0
      %2818 = vmatprep.subr.bf16.mxu0 0
      %2819 = vmatpush1.bf16.msra.mxu0 0
      %2820 = vmatprep.subr.bf16.mxu0 0
      %2821 = vmatpush1.bf16.msra.mxu0 0
      %2822 = vmatprep.subr.bf16.mxu0 0
      %2823 = vmatpush1.bf16.msra.mxu0 0
      %2824 = vmatprep.subr.bf16.mxu0 0
      %2825 = vmatpush1.bf16.msra.mxu0 0
      %2826 = vmatprep.subr.bf16.mxu0 0
      %2827 = vmatpush1.bf16.msra.mxu0 0
      %2828 = vmatprep.subr.bf16.mxu0 0
      %2829 = vmatpush1.bf16.msra.mxu0 0
      %2830 = vmatprep.subr.bf16.mxu0 0
      %2831 = vmatpush1.bf16.msra.mxu0 0
      %2832 = vmatprep.subr.bf16.mxu0 0
      %2833 = vmatpush1.bf16.msra.mxu0 0
      %2834 = vmatprep.subr.bf16.mxu0 0
      %2835 = vmatpush1.bf16.msra.mxu0 0
      %2836 = vmatprep.subr.bf16.mxu0 0
      %2837 = vmatpush1.bf16.msra.mxu0 0
      %2838 = vmatprep.subr.bf16.mxu0 0
      %2839 = vmatpush1.bf16.msra.mxu0 0
      %2840 = vmatprep.subr.bf16.mxu0 0
      %2841 = vmatpush1.bf16.msra.mxu0 0
      %2842 = vmatprep.mubr.bf16.mxu0 0
      %2843 = vmatmul.mubr.bf16.gmra.mrb[0].mxu0 %v2784
      %v2844 = vpop.f32.mrb[0].mxu0
      %v2845 = vadd.f32 0.0, %v2844
      %v2846 = vpop.f32.mrb[0].mxu0
      %v2847 = vadd.f32 0.0, %v2846
      %v2848 = vpop.f32.mrb[0].mxu0
      %v2849 = vpop.f32.mrb[0].mxu0
      %2850 = vdwg.mxu0
      %2851 = vmatprep.subr.bf16.mxu0 %v2761
      %2852 = vmatpush1.bf16.msra.mxu0 %v2760
      %2853 = vmatprep.subr.bf16.mxu0 %v2769
      %2854 = vmatpush1.bf16.msra.mxu0 %v2768
      %2855 = vmatprep.subr.bf16.mxu0 %v2796
      %2856 = vmatpush1.bf16.msra.mxu0 %v2793
      %2857 = vmatprep.subr.bf16.mxu0 0
      %2858 = vmatpush1.bf16.msra.mxu0 0
      %2859 = vmatprep.subr.bf16.mxu0 0
      %2860 = vmatpush1.bf16.msra.mxu0 0
      %2861 = vmatprep.subr.bf16.mxu0 0
      %2862 = vmatpush1.bf16.msra.mxu0 0
      %2863 = vmatprep.subr.bf16.mxu0 0
      %2864 = vmatpush1.bf16.msra.mxu0 0
      %2865 = vmatprep.subr.bf16.mxu0 0
      %2866 = vmatpush1.bf16.msra.mxu0 0
      %2867 = vmatprep.subr.bf16.mxu0 0
      %2868 = vmatpush1.bf16.msra.mxu0 0
      %2869 = vmatprep.subr.bf16.mxu0 0
      %2870 = vmatpush1.bf16.msra.mxu0 0
      %2871 = vmatprep.subr.bf16.mxu0 0
      %2872 = vmatpush1.bf16.msra.mxu0 0
      %2873 = vmatprep.subr.bf16.mxu0 0
      %2874 = vmatpush1.bf16.msra.mxu0 0
      %2875 = vmatprep.subr.bf16.mxu0 0
      %2876 = vmatpush1.bf16.msra.mxu0 0
      %2877 = vmatprep.subr.bf16.mxu0 0
      %2878 = vmatpush1.bf16.msra.mxu0 0
      %2879 = vmatprep.subr.bf16.mxu0 0
      %2880 = vmatpush1.bf16.msra.mxu0 0
      %2881 = vmatprep.subr.bf16.mxu0 0
      %2882 = vmatpush1.bf16.msra.mxu0 0
      %2883 = vmatprep.mubr.bf16.mxu0 0
      %2884 = vmatmul.mubr.bf16.gmra.mrb[0].mxu0 %v2784
      %v2885 = vpop.f32.mrb[0].mxu0
      %v2886 = vadd.f32 0.0, %v2885
      %v2887 = vpop.f32.mrb[0].mxu0
      %v2888 = vadd.f32 0.0, %v2887
      %v2889 = vpop.f32.mrb[0].mxu0
      %v2890 = vpop.f32.mrb[0].mxu0
      %2891 = vdwg.mxu0
      %2892 = vmatprep.subr.bf16.mxu0 %v2763
      %2893 = vmatpush1.bf16.msra.mxu0 %v2762
      %2894 = vmatprep.subr.bf16.mxu0 %v2771
      %2895 = vmatpush1.bf16.msra.mxu0 %v2770
      %2896 = vmatprep.subr.bf16.mxu0 %v2802
      %2897 = vmatpush1.bf16.msra.mxu0 %v2799
      %2898 = vmatprep.subr.bf16.mxu0 0
      %2899 = vmatpush1.bf16.msra.mxu0 0
      %2900 = vmatprep.subr.bf16.mxu0 0
      %2901 = vmatpush1.bf16.msra.mxu0 0
      %2902 = vmatprep.subr.bf16.mxu0 0
      %2903 = vmatpush1.bf16.msra.mxu0 0
      %2904 = vmatprep.subr.bf16.mxu0 0
      %2905 = vmatpush1.bf16.msra.mxu0 0
      %2906 = vmatprep.subr.bf16.mxu0 0
      %2907 = vmatpush1.bf16.msra.mxu0 0
      %2908 = vmatprep.subr.bf16.mxu0 0
      %2909 = vmatpush1.bf16.msra.mxu0 0
      %2910 = vmatprep.subr.bf16.mxu0 0
      %2911 = vmatpush1.bf16.msra.mxu0 0
      %2912 = vmatprep.subr.bf16.mxu0 0
      %2913 = vmatpush1.bf16.msra.mxu0 0
      %2914 = vmatprep.subr.bf16.mxu0 0
      %2915 = vmatpush1.bf16.msra.mxu0 0
      %2916 = vmatprep.subr.bf16.mxu0 0
      %2917 = vmatpush1.bf16.msra.mxu0 0
      %2918 = vmatprep.subr.bf16.mxu0 0
      %2919 = vmatpush1.bf16.msra.mxu0 0
      %2920 = vmatprep.subr.bf16.mxu0 0
      %2921 = vmatpush1.bf16.msra.mxu0 0
      %2922 = vmatprep.subr.bf16.mxu0 0
      %2923 = vmatpush1.bf16.msra.mxu0 0
      %2924 = vmatprep.mubr.bf16.mxu0 0
      %2925 = vmatmul.mubr.bf16.gmra.mrb[0].mxu0 %v2784
      %v2926 = vpop.f32.mrb[0].mxu0
      %v2927 = vadd.f32 0.0, %v2926
      %v2928 = vpop.f32.mrb[0].mxu0
      %v2929 = vadd.f32 0.0, %v2928
      %v2930 = vpop.f32.mrb[0].mxu0
      %v2931 = vpop.f32.mrb[0].mxu0
      %2932 = vdwg.mxu0
      %2933 = vmatprep.subr.bf16.mxu0 %v2765
      %2934 = vmatpush1.bf16.msra.mxu0 %v2764
      %2935 = vmatprep.subr.bf16.mxu0 %v2773
      %2936 = vmatpush1.bf16.msra.mxu0 %v2772
      %2937 = vmatprep.subr.bf16.mxu0 %v2808
      %2938 = vmatpush1.bf16.msra.mxu0 %v2805
      %2939 = vmatprep.subr.bf16.mxu0 0
      %2940 = vmatpush1.bf16.msra.mxu0 0
      %2941 = vmatprep.subr.bf16.mxu0 0
      %2942 = vmatpush1.bf16.msra.mxu0 0
      %2943 = vmatprep.subr.bf16.mxu0 0
      %2944 = vmatpush1.bf16.msra.mxu0 0
      %2945 = vmatprep.subr.bf16.mxu0 0
      %2946 = vmatpush1.bf16.msra.mxu0 0
      %2947 = vmatprep.subr.bf16.mxu0 0
      %2948 = vmatpush1.bf16.msra.mxu0 0
      %2949 = vmatprep.subr.bf16.mxu0 0
      %2950 = vmatpush1.bf16.msra.mxu0 0
      %2951 = vmatprep.subr.bf16.mxu0 0
      %2952 = vmatpush1.bf16.msra.mxu0 0
      %2953 = vmatprep.subr.bf16.mxu0 0
      %2954 = vmatpush1.bf16.msra.mxu0 0
      %2955 = vmatprep.subr.bf16.mxu0 0
      %2956 = vmatpush1.bf16.msra.mxu0 0
      %2957 = vmatprep.subr.bf16.mxu0 0
      %2958 = vmatpush1.bf16.msra.mxu0 0
      %2959 = vmatprep.subr.bf16.mxu0 0
      %2960 = vmatpush1.bf16.msra.mxu0 0
      %2961 = vmatprep.subr.bf16.mxu0 0
      %2962 = vmatpush1.bf16.msra.mxu0 0
      %2963 = vmatprep.subr.bf16.mxu0 0
      %2964 = vmatpush1.bf16.msra.mxu0 0
      %2965 = vmatprep.mubr.bf16.mxu0 0
      %2966 = vmatmul.mubr.bf16.gmra.mrb[0].mxu0 %v2784
      %v2967 = vpop.f32.mrb[0].mxu0
      %v2968 = vadd.f32 0.0, %v2967
      %v2969 = vpop.f32.mrb[0].mxu0
      %v2970 = vadd.f32 0.0, %v2969
      %v2971 = vpop.f32.mrb[0].mxu0
      %v2972 = vpop.f32.mrb[0].mxu0
      %2973 = vdwg.mxu0
      %v2974 = vld [vmem:[%s472] sm:$0xff]
      %v2975 = vld [vmem:[%s472 + $0x8] sm:$0xff]
      %v2978 = vcombine.high %v2974, %v2974
      %v2980 = vunpack.c.l.s4 1983009808
      %v2981 = vunpack.c.0.s8 %v2980
      %v2982 = vlaneseq
      %v2983 = vshrl.u32 %v2982, 7
      %v2984 = vsub.s32 %v2981, %v2983
      %v2985 = vrot.slane %v2974, %v2984
      %v2987 = vunpack.c.l.s4 1983009808
      %v2988 = vunpack.c.0.s8 %v2987
      %v2989 = vlaneseq
      %v2990 = vshrl.u32 %v2989, 7
      %v2991 = vsub.s32 %v2988, %v2990
      %v2992 = vrot.slane %v2978, %v2991
      %v2993 = vcombine.high %v2985, %v2985
      %v2994 = vcombine.high %v2992, %v2992
      %v2995 = vcombine.high %v2975, %v2975
      %v2997 = vunpack.c.l.s4 1983009808
      %v2998 = vunpack.c.0.s8 %v2997
      %v2999 = vlaneseq
      %v3000 = vshrl.u32 %v2999, 7
      %v3001 = vsub.s32 %v2998, %v3000
      %v3002 = vrot.slane %v2975, %v3001
      %v3004 = vunpack.c.l.s4 1983009808
      %v3005 = vunpack.c.0.s8 %v3004
      %v3006 = vlaneseq
      %v3007 = vshrl.u32 %v3006, 7
      %v3008 = vsub.s32 %v3005, %v3007
      %v3009 = vrot.slane %v2995, %v3008
      %v3010 = vcombine.high %v3002, %v3002
      %v3011 = vcombine.high %v3009, %v3009
      %v3020 = vmul.f32 %v2845, %v2018
      %v3021 = vmul.f32 %v2847, %v2019
      %v3022 = vmul.f32 %v2886, %v2020
      %v3023 = vmul.f32 %v2888, %v2021
      %v3024 = vmul.f32 %v2927, %v2022
      %v3025 = vmul.f32 %v2929, %v2023
      %v3026 = vmul.f32 %v2968, %v2024
      %v3027 = vmul.f32 %v2970, %v2016
      %3036 = vrot.lane.b32.xlu0 %v3020, 33
      %v3037 = vpop.permute.xlu0 %3036
      %3038 = vrot.lane.b32.xlu0 %v3021, 33
      %v3039 = vpop.permute.xlu0 %3038
      %3040 = vrot.lane.b32.xlu0 %v3022, 33
      %v3041 = vpop.permute.xlu0 %3040
      %3042 = vrot.lane.b32.xlu0 %v3023, 33
      %v3043 = vpop.permute.xlu0 %3042
      %3044 = vrot.lane.b32.xlu0 %v3024, 33
      %v3045 = vpop.permute.xlu0 %3044
      %3046 = vrot.lane.b32.xlu0 %v3025, 33
      %v3047 = vpop.permute.xlu0 %3046
      %3048 = vrot.lane.b32.xlu0 %v3026, 33
      %v3049 = vpop.permute.xlu0 %3048
      %3050 = vrot.lane.b32.xlu0 %v3027, 33
      %v3051 = vpop.permute.xlu0 %3050
      %v3052 = vsel %vm2070, %v2053, %v3037
      %v3053 = vsel %vm2070, %v3037, %v3039
      %v3054 = vsel %vm2070, %v3039, %v3041
      %v3055 = vsel %vm2070, %v3041, %v3043
      %v3056 = vsel %vm2070, %v3043, %v3045
      %v3057 = vsel %vm2070, %v3045, %v3047
      %v3058 = vsel %vm2070, %v3047, %v3049
      %v3059 = vsel %vm2070, %v3049, %v3051
      %3068 = vst [vmem:[#allocation2] sm:$0x3] %v3052
      %3069 = vst [vmem:[#allocation2 + $0x8] sm:$0x3] %v3053
      %3070 = vst [vmem:[#allocation2 + $0x10] sm:$0x3] %v3054
      %3071 = vst [vmem:[#allocation2 + $0x18] sm:$0x3] %v3055
      %3072 = vst [vmem:[#allocation2 + $0x20] sm:$0x3] %v3056
      %3073 = vst [vmem:[#allocation2 + $0x28] sm:$0x3] %v3057
      %3074 = vst [vmem:[#allocation2 + $0x30] sm:$0x3] %v3058
      %3075 = vst [vmem:[#allocation2 + $0x38] sm:$0x3] %v3059
      %v3076 = vmul.f32 %v2985, %v2018
      %v3077 = vmul.f32 %v2993, %v2019
      %v3078 = vmul.f32 %v2992, %v2020
      %v3079 = vmul.f32 %v2994, %v2021
      %v3080 = vmul.f32 %v3002, %v2022
      %v3081 = vmul.f32 %v3010, %v2023
      %v3082 = vmul.f32 %v3009, %v2024
      %v3083 = vmul.f32 %v3011, %v2016
      %v3092 = vrot.slane %v2034, 6
      %v3093 = vrot.slane %v3076, 6
      %v3094 = vrot.slane %v3077, 6
      %v3095 = vrot.slane %v3078, 6
      %v3096 = vrot.slane %v3079, 6
      %v3097 = vrot.slane %v3080, 6
      %v3098 = vrot.slane %v3081, 6
      %v3099 = vrot.slane %v3082, 6
      %v3100 = vrot.slane %v3083, 6
      %3101 = vrot.lane.b32.xlu0 %v3092, 33
      %v3102 = vpop.permute.xlu0 %3101
      %3103 = vrot.lane.b32.xlu0 %v3093, 33
      %v3104 = vpop.permute.xlu0 %3103
      %3105 = vrot.lane.b32.xlu0 %v3094, 33
      %v3106 = vpop.permute.xlu0 %3105
      %3107 = vrot.lane.b32.xlu0 %v3095, 33
      %v3108 = vpop.permute.xlu0 %3107
      %3109 = vrot.lane.b32.xlu0 %v3096, 33
      %v3110 = vpop.permute.xlu0 %3109
      %3111 = vrot.lane.b32.xlu0 %v3097, 33
      %v3112 = vpop.permute.xlu0 %3111
      %3113 = vrot.lane.b32.xlu0 %v3098, 33
      %v3114 = vpop.permute.xlu0 %3113
      %3115 = vrot.lane.b32.xlu0 %v3099, 33
      %v3116 = vpop.permute.xlu0 %3115
      %3117 = vrot.lane.b32.xlu0 %v3100, 33
      %v3118 = vpop.permute.xlu0 %3117
      %v3119 = vsel %vm2070, %v3102, %v3104
      %v3120 = vsel %vm2070, %v3104, %v3106
      %v3121 = vsel %vm2070, %v3106, %v3108
      %v3122 = vsel %vm2070, %v3108, %v3110
      %v3123 = vsel %vm2070, %v3110, %v3112
      %v3124 = vsel %vm2070, %v3112, %v3114
      %v3125 = vsel %vm2070, %v3114, %v3116
      %v3126 = vsel %vm2070, %v3116, %v3118
      %3135 = vst [vmem:[#allocation2] sm:$0xc] %v3119
      %3136 = vst [vmem:[#allocation2 + $0x8] sm:$0xc] %v3120
      %3137 = vst [vmem:[#allocation2 + $0x10] sm:$0xc] %v3121
      %3138 = vst [vmem:[#allocation2 + $0x18] sm:$0xc] %v3122
      %3139 = vst [vmem:[#allocation2 + $0x20] sm:$0xc] %v3123
      %3140 = vst [vmem:[#allocation2 + $0x28] sm:$0xc] %v3124
      %3141 = vst [vmem:[#allocation2 + $0x30] sm:$0xc] %v3125
      %3142 = vst [vmem:[#allocation2 + $0x38] sm:$0xc] %v3126
      %v3151 = vrot.slane %v2845, 4
      %v3152 = vrot.slane %v2847, 4
      %v3153 = vrot.slane %v2886, 4
      %v3154 = vrot.slane %v2888, 4
      %v3155 = vrot.slane %v2927, 4
      %v3156 = vrot.slane %v2929, 4
      %v3157 = vrot.slane %v2968, 4
      %v3158 = vrot.slane %v2970, 4
      %3159 = vrot.lane.b32.xlu0 %v3151, 32
      %v3160 = vpop.permute.xlu0 %3159
      %3161 = vrot.lane.b32.xlu0 %v3152, 32
      %v3162 = vpop.permute.xlu0 %3161
      %3163 = vrot.lane.b32.xlu0 %v3153, 32
      %v3164 = vpop.permute.xlu0 %3163
      %3165 = vrot.lane.b32.xlu0 %v3154, 32
      %v3166 = vpop.permute.xlu0 %3165
      %3167 = vrot.lane.b32.xlu0 %v3155, 32
      %v3168 = vpop.permute.xlu0 %3167
      %3169 = vrot.lane.b32.xlu0 %v3156, 32
      %v3170 = vpop.permute.xlu0 %3169
      %3171 = vrot.lane.b32.xlu0 %v3157, 32
      %v3172 = vpop.permute.xlu0 %3171
      %3173 = vrot.lane.b32.xlu0 %v3158, 32
      %v3174 = vpop.permute.xlu0 %3173
      %v3175 = vsel %vm2129, %v2112, %v3160
      %v3176 = vsel %vm2129, %v3160, %v3162
      %v3177 = vsel %vm2129, %v3162, %v3164
      %v3178 = vsel %vm2129, %v3164, %v3166
      %v3179 = vsel %vm2129, %v3166, %v3168
      %v3180 = vsel %vm2129, %v3168, %v3170
      %v3181 = vsel %vm2129, %v3170, %v3172
      %v3182 = vsel %vm2129, %v3172, %v3174
      %3191 = vst [vmem:[#allocation2] sm:$0x30] %v3175
      %3192 = vst [vmem:[#allocation2 + $0x8] sm:$0x30] %v3176
      %3193 = vst [vmem:[#allocation2 + $0x10] sm:$0x30] %v3177
      %3194 = vst [vmem:[#allocation2 + $0x18] sm:$0x30] %v3178
      %3195 = vst [vmem:[#allocation2 + $0x20] sm:$0x30] %v3179
      %3196 = vst [vmem:[#allocation2 + $0x28] sm:$0x30] %v3180
      %3197 = vst [vmem:[#allocation2 + $0x30] sm:$0x30] %v3181
      %3198 = vst [vmem:[#allocation2 + $0x38] sm:$0x30] %v3182
      %v3199 = vrot.slane 0.0, 2
      %v3200 = vrot.slane %v2985, 2
      %v3201 = vrot.slane %v2993, 2
      %v3202 = vrot.slane %v2992, 2
      %v3203 = vrot.slane %v2994, 2
      %v3204 = vrot.slane %v3002, 2
      %v3205 = vrot.slane %v3010, 2
      %v3206 = vrot.slane %v3009, 2
      %v3207 = vrot.slane %v3011, 2
      %3208 = vrot.lane.b32.xlu0 %v3199, 32
      %v3209 = vpop.permute.xlu0 %3208
      %3210 = vrot.lane.b32.xlu0 %v3200, 32
      %v3211 = vpop.permute.xlu0 %3210
      %3212 = vrot.lane.b32.xlu0 %v3201, 32
      %v3213 = vpop.permute.xlu0 %3212
      %3214 = vrot.lane.b32.xlu0 %v3202, 32
      %v3215 = vpop.permute.xlu0 %3214
      %3216 = vrot.lane.b32.xlu0 %v3203, 32
      %v3217 = vpop.permute.xlu0 %3216
      %3218 = vrot.lane.b32.xlu0 %v3204, 32
      %v3219 = vpop.permute.xlu0 %3218
      %3220 = vrot.lane.b32.xlu0 %v3205, 32
      %v3221 = vpop.permute.xlu0 %3220
      %3222 = vrot.lane.b32.xlu0 %v3206, 32
      %v3223 = vpop.permute.xlu0 %3222
      %3224 = vrot.lane.b32.xlu0 %v3207, 32
      %v3225 = vpop.permute.xlu0 %3224
      %v3226 = vsel %vm2129, %v3209, %v3211
      %v3227 = vsel %vm2129, %v3211, %v3213
      %v3228 = vsel %vm2129, %v3213, %v3215
      %v3229 = vsel %vm2129, %v3215, %v3217
      %v3230 = vsel %vm2129, %v3217, %v3219
      %v3231 = vsel %vm2129, %v3219, %v3221
      %v3232 = vsel %vm2129, %v3221, %v3223
      %v3233 = vsel %vm2129, %v3223, %v3225
      %3242 = vst [vmem:[#allocation2] sm:$0xc0] %v3226
      %3243 = vst [vmem:[#allocation2 + $0x8] sm:$0xc0] %v3227
      %3244 = vst [vmem:[#allocation2 + $0x10] sm:$0xc0] %v3228
      %3245 = vst [vmem:[#allocation2 + $0x18] sm:$0xc0] %v3229
      %3246 = vst [vmem:[#allocation2 + $0x20] sm:$0xc0] %v3230
      %3247 = vst [vmem:[#allocation2 + $0x28] sm:$0xc0] %v3231
      %3248 = vst [vmem:[#allocation2 + $0x30] sm:$0xc0] %v3232
      %3249 = vst [vmem:[#allocation2 + $0x38] sm:$0xc0] %v3233
      %v3250 = vmul.f32 %v2845, %v2204
      %v3251 = vmul.f32 %v2847, %v2205
      %v3252 = vmul.f32 %v2886, %v2206
      %v3253 = vmul.f32 %v2888, %v2207
      %v3254 = vmul.f32 %v2927, %v2208
      %v3255 = vmul.f32 %v2929, %v2209
      %v3256 = vmul.f32 %v2968, %v2210
      %v3257 = vmul.f32 %v2970, %v2202
      %3266 = vrot.lane.b32.xlu0 %v3250, 31
      %v3267 = vpop.permute.xlu0 %3266
      %3268 = vrot.lane.b32.xlu0 %v3251, 31
      %v3269 = vpop.permute.xlu0 %3268
      %3270 = vrot.lane.b32.xlu0 %v3252, 31
      %v3271 = vpop.permute.xlu0 %3270
      %3272 = vrot.lane.b32.xlu0 %v3253, 31
      %v3273 = vpop.permute.xlu0 %3272
      %3274 = vrot.lane.b32.xlu0 %v3254, 31
      %v3275 = vpop.permute.xlu0 %3274
      %3276 = vrot.lane.b32.xlu0 %v3255, 31
      %v3277 = vpop.permute.xlu0 %3276
      %3278 = vrot.lane.b32.xlu0 %v3256, 31
      %v3279 = vpop.permute.xlu0 %3278
      %3280 = vrot.lane.b32.xlu0 %v3257, 31
      %v3281 = vpop.permute.xlu0 %3280
      %v3282 = vsel %vm2256, %v2239, %v3267
      %v3283 = vsel %vm2256, %v3267, %v3269
      %v3284 = vsel %vm2256, %v3269, %v3271
      %v3285 = vsel %vm2256, %v3271, %v3273
      %v3286 = vsel %vm2256, %v3273, %v3275
      %v3287 = vsel %vm2256, %v3275, %v3277
      %v3288 = vsel %vm2256, %v3277, %v3279
      %v3289 = vsel %vm2256, %v3279, %v3281
      %3298 = vst [vmem:[#allocation2 + $0x40] sm:$0x3] %v3282
      %3299 = vst [vmem:[#allocation2 + $0x48] sm:$0x3] %v3283
      %3300 = vst [vmem:[#allocation2 + $0x50] sm:$0x3] %v3284
      %3301 = vst [vmem:[#allocation2 + $0x58] sm:$0x3] %v3285
      %3302 = vst [vmem:[#allocation2 + $0x60] sm:$0x3] %v3286
      %3303 = vst [vmem:[#allocation2 + $0x68] sm:$0x3] %v3287
      %3304 = vst [vmem:[#allocation2 + $0x70] sm:$0x3] %v3288
      %3305 = vst [vmem:[#allocation2 + $0x78] sm:$0x3] %v3289
      %v3306 = vmul.f32 %v2985, %v2204
      %v3307 = vmul.f32 %v2993, %v2205
      %v3308 = vmul.f32 %v2992, %v2206
      %v3309 = vmul.f32 %v2994, %v2207
      %v3310 = vmul.f32 %v3002, %v2208
      %v3311 = vmul.f32 %v3010, %v2209
      %v3312 = vmul.f32 %v3009, %v2210
      %v3313 = vmul.f32 %v3011, %v2202
      %v3322 = vrot.slane %v2220, 6
      %v3323 = vrot.slane %v3306, 6
      %v3324 = vrot.slane %v3307, 6
      %v3325 = vrot.slane %v3308, 6
      %v3326 = vrot.slane %v3309, 6
      %v3327 = vrot.slane %v3310, 6
      %v3328 = vrot.slane %v3311, 6
      %v3329 = vrot.slane %v3312, 6
      %v3330 = vrot.slane %v3313, 6
      %3331 = vrot.lane.b32.xlu0 %v3322, 31
      %v3332 = vpop.permute.xlu0 %3331
      %3333 = vrot.lane.b32.xlu0 %v3323, 31
      %v3334 = vpop.permute.xlu0 %3333
      %3335 = vrot.lane.b32.xlu0 %v3324, 31
      %v3336 = vpop.permute.xlu0 %3335
      %3337 = vrot.lane.b32.xlu0 %v3325, 31
      %v3338 = vpop.permute.xlu0 %3337
      %3339 = vrot.lane.b32.xlu0 %v3326, 31
      %v3340 = vpop.permute.xlu0 %3339
      %3341 = vrot.lane.b32.xlu0 %v3327, 31
      %v3342 = vpop.permute.xlu0 %3341
      %3343 = vrot.lane.b32.xlu0 %v3328, 31
      %v3344 = vpop.permute.xlu0 %3343
      %3345 = vrot.lane.b32.xlu0 %v3329, 31
      %v3346 = vpop.permute.xlu0 %3345
      %3347 = vrot.lane.b32.xlu0 %v3330, 31
      %v3348 = vpop.permute.xlu0 %3347
      %v3349 = vsel %vm2256, %v3332, %v3334
      %v3350 = vsel %vm2256, %v3334, %v3336
      %v3351 = vsel %vm2256, %v3336, %v3338
      %v3352 = vsel %vm2256, %v3338, %v3340
      %v3353 = vsel %vm2256, %v3340, %v3342
      %v3354 = vsel %vm2256, %v3342, %v3344
      %v3355 = vsel %vm2256, %v3344, %v3346
      %v3356 = vsel %vm2256, %v3346, %v3348
      %3365 = vst [vmem:[#allocation2 + $0x40] sm:$0xc] %v3349
      %3366 = vst [vmem:[#allocation2 + $0x48] sm:$0xc] %v3350
      %3367 = vst [vmem:[#allocation2 + $0x50] sm:$0xc] %v3351
      %3368 = vst [vmem:[#allocation2 + $0x58] sm:$0xc] %v3352
      %3369 = vst [vmem:[#allocation2 + $0x60] sm:$0xc] %v3353
      %3370 = vst [vmem:[#allocation2 + $0x68] sm:$0xc] %v3354
      %3371 = vst [vmem:[#allocation2 + $0x70] sm:$0xc] %v3355
      %3372 = vst [vmem:[#allocation2 + $0x78] sm:$0xc] %v3356
      %v3373 = vmul.f32 %v2845, %v2297
      %v3374 = vmul.f32 %v2847, %v2298
      %v3375 = vmul.f32 %v2886, %v2299
      %v3376 = vmul.f32 %v2888, %v2300
      %v3377 = vmul.f32 %v2927, %v2301
      %v3378 = vmul.f32 %v2929, %v2302
      %v3379 = vmul.f32 %v2968, %v2303
      %v3380 = vmul.f32 %v2970, %v2296
      %v3389 = vrot.slane %v3373, 4
      %v3390 = vrot.slane %v3374, 4
      %v3391 = vrot.slane %v3375, 4
      %v3392 = vrot.slane %v3376, 4
      %v3393 = vrot.slane %v3377, 4
      %v3394 = vrot.slane %v3378, 4
      %v3395 = vrot.slane %v3379, 4
      %v3396 = vrot.slane %v3380, 4
      %3397 = vrot.lane.b32.xlu0 %v3389, 1
      %v3398 = vpop.permute.xlu0 %3397
      %3399 = vrot.lane.b32.xlu0 %v3390, 1
      %v3400 = vpop.permute.xlu0 %3399
      %3401 = vrot.lane.b32.xlu0 %v3391, 1
      %v3402 = vpop.permute.xlu0 %3401
      %3403 = vrot.lane.b32.xlu0 %v3392, 1
      %v3404 = vpop.permute.xlu0 %3403
      %3405 = vrot.lane.b32.xlu0 %v3393, 1
      %v3406 = vpop.permute.xlu0 %3405
      %3407 = vrot.lane.b32.xlu0 %v3394, 1
      %v3408 = vpop.permute.xlu0 %3407
      %3409 = vrot.lane.b32.xlu0 %v3395, 1
      %v3410 = vpop.permute.xlu0 %3409
      %3411 = vrot.lane.b32.xlu0 %v3396, 1
      %v3412 = vpop.permute.xlu0 %3411
      %v3413 = vsel %vm830, %v2341, %v3398
      %v3414 = vsel %vm830, %v3398, %v3400
      %v3415 = vsel %vm830, %v3400, %v3402
      %v3416 = vsel %vm830, %v3402, %v3404
      %v3417 = vsel %vm830, %v3404, %v3406
      %v3418 = vsel %vm830, %v3406, %v3408
      %v3419 = vsel %vm830, %v3408, %v3410
      %v3420 = vsel %vm830, %v3410, %v3412
      %3429 = vst [vmem:[#allocation2 + $0x40] sm:$0x30] %v3413
      %3430 = vst [vmem:[#allocation2 + $0x48] sm:$0x30] %v3414
      %3431 = vst [vmem:[#allocation2 + $0x50] sm:$0x30] %v3415
      %3432 = vst [vmem:[#allocation2 + $0x58] sm:$0x30] %v3416
      %3433 = vst [vmem:[#allocation2 + $0x60] sm:$0x30] %v3417
      %3434 = vst [vmem:[#allocation2 + $0x68] sm:$0x30] %v3418
      %3435 = vst [vmem:[#allocation2 + $0x70] sm:$0x30] %v3419
      %3436 = vst [vmem:[#allocation2 + $0x78] sm:$0x30] %v3420
      %v3437 = vmul.f32 %v2985, %v2297
      %v3438 = vmul.f32 %v2993, %v2298
      %v3439 = vmul.f32 %v2992, %v2299
      %v3440 = vmul.f32 %v2994, %v2300
      %v3441 = vmul.f32 %v3002, %v2301
      %v3442 = vmul.f32 %v3010, %v2302
      %v3443 = vmul.f32 %v3009, %v2303
      %v3444 = vmul.f32 %v3011, %v2296
      %v3453 = vrot.slane %v2313, 2
      %v3454 = vrot.slane %v3437, 2
      %v3455 = vrot.slane %v3438, 2
      %v3456 = vrot.slane %v3439, 2
      %v3457 = vrot.slane %v3440, 2
      %v3458 = vrot.slane %v3441, 2
      %v3459 = vrot.slane %v3442, 2
      %v3460 = vrot.slane %v3443, 2
      %v3461 = vrot.slane %v3444, 2
      %3462 = vrot.lane.b32.xlu0 %v3453, 1
      %v3463 = vpop.permute.xlu0 %3462
      %3464 = vrot.lane.b32.xlu0 %v3454, 1
      %v3465 = vpop.permute.xlu0 %3464
      %3466 = vrot.lane.b32.xlu0 %v3455, 1
      %v3467 = vpop.permute.xlu0 %3466
      %3468 = vrot.lane.b32.xlu0 %v3456, 1
      %v3469 = vpop.permute.xlu0 %3468
      %3470 = vrot.lane.b32.xlu0 %v3457, 1
      %v3471 = vpop.permute.xlu0 %3470
      %3472 = vrot.lane.b32.xlu0 %v3458, 1
      %v3473 = vpop.permute.xlu0 %3472
      %3474 = vrot.lane.b32.xlu0 %v3459, 1
      %v3475 = vpop.permute.xlu0 %3474
      %3476 = vrot.lane.b32.xlu0 %v3460, 1
      %v3477 = vpop.permute.xlu0 %3476
      %3478 = vrot.lane.b32.xlu0 %v3461, 1
      %v3479 = vpop.permute.xlu0 %3478
      %v3480 = vsel %vm830, %v3463, %v3465
      %v3481 = vsel %vm830, %v3465, %v3467
      %v3482 = vsel %vm830, %v3467, %v3469
      %v3483 = vsel %vm830, %v3469, %v3471
      %v3484 = vsel %vm830, %v3471, %v3473
      %v3485 = vsel %vm830, %v3473, %v3475
      %v3486 = vsel %vm830, %v3475, %v3477
      %v3487 = vsel %vm830, %v3477, %v3479
      %3496 = vst [vmem:[#allocation2 + $0x40] sm:$0xc0] %v3480
      %3497 = vst [vmem:[#allocation2 + $0x48] sm:$0xc0] %v3481
      %3498 = vst [vmem:[#allocation2 + $0x50] sm:$0xc0] %v3482
      %3499 = vst [vmem:[#allocation2 + $0x58] sm:$0xc0] %v3483
      %3500 = vst [vmem:[#allocation2 + $0x60] sm:$0xc0] %v3484
      %3501 = vst [vmem:[#allocation2 + $0x68] sm:$0xc0] %v3485
      %3502 = vst [vmem:[#allocation2 + $0x70] sm:$0xc0] %v3486
      %3503 = vst [vmem:[#allocation2 + $0x78] sm:$0xc0] %v3487
      %3504 = vst [vmem:[#allocation2 + $0x80] sm:$0x3] %v2845
      %3505 = vst [vmem:[#allocation2 + $0x88] sm:$0x3] %v2847
      %3506 = vst [vmem:[#allocation2 + $0x90] sm:$0x3] %v2886
      %3507 = vst [vmem:[#allocation2 + $0x98] sm:$0x3] %v2888
      %3508 = vst [vmem:[#allocation2 + $0xa0] sm:$0x3] %v2927
      %3509 = vst [vmem:[#allocation2 + $0xa8] sm:$0x3] %v2929
      %3510 = vst [vmem:[#allocation2 + $0xb0] sm:$0x3] %v2968
      %3511 = vst [vmem:[#allocation2 + $0xb8] sm:$0x3] %v2970
      %v3512 = vrot.slane %v2985, 6
      %v3513 = vrot.slane %v2993, 6
      %v3514 = vrot.slane %v2992, 6
      %v3515 = vrot.slane %v2994, 6
      %v3516 = vrot.slane %v3002, 6
      %v3517 = vrot.slane %v3010, 6
      %v3518 = vrot.slane %v3009, 6
      %v3519 = vrot.slane %v3011, 6
      %3528 = vst [vmem:[#allocation2 + $0x80] sm:$0xc] %v3512
      %3529 = vst [vmem:[#allocation2 + $0x88] sm:$0xc] %v3513
      %3530 = vst [vmem:[#allocation2 + $0x90] sm:$0xc] %v3514
      %3531 = vst [vmem:[#allocation2 + $0x98] sm:$0xc] %v3515
      %3532 = vst [vmem:[#allocation2 + $0xa0] sm:$0xc] %v3516
      %3533 = vst [vmem:[#allocation2 + $0xa8] sm:$0xc] %v3517
      %3534 = vst [vmem:[#allocation2 + $0xb0] sm:$0xc] %v3518
      %3535 = vst [vmem:[#allocation2 + $0xb8] sm:$0xc] %v3519
      %v3536 = vmul.f32 %v2845, %v2391
      %v3537 = vmul.f32 %v2847, %v2406
      %v3538 = vmul.f32 %v2886, %v2407
      %v3539 = vmul.f32 %v2888, %v2408
      %v3540 = vmul.f32 %v2927, %v2409
      %v3541 = vmul.f32 %v2929, %v2410
      %v3542 = vmul.f32 %v2968, %v2411
      %v3543 = vmul.f32 %v2970, %v2412
      %v3552 = vrot.slane %v3536, 4
      %v3553 = vrot.slane %v3537, 4
      %v3554 = vrot.slane %v3538, 4
      %v3555 = vrot.slane %v3539, 4
      %v3556 = vrot.slane %v3540, 4
      %v3557 = vrot.slane %v3541, 4
      %v3558 = vrot.slane %v3542, 4
      %v3559 = vrot.slane %v3543, 4
      %3560 = vrot.lane.b32.xlu0 %v3552, 127
      %v3561 = vpop.permute.xlu0 %3560
      %3562 = vrot.lane.b32.xlu0 %v3553, 127
      %v3563 = vpop.permute.xlu0 %3562
      %3564 = vrot.lane.b32.xlu0 %v3554, 127
      %v3565 = vpop.permute.xlu0 %3564
      %3566 = vrot.lane.b32.xlu0 %v3555, 127
      %v3567 = vpop.permute.xlu0 %3566
      %3568 = vrot.lane.b32.xlu0 %v3556, 127
      %v3569 = vpop.permute.xlu0 %3568
      %3570 = vrot.lane.b32.xlu0 %v3557, 127
      %v3571 = vpop.permute.xlu0 %3570
      %3572 = vrot.lane.b32.xlu0 %v3558, 127
      %v3573 = vpop.permute.xlu0 %3572
      %3574 = vrot.lane.b32.xlu0 %v3559, 127
      %v3575 = vpop.permute.xlu0 %3574
      %v3576 = vsel %vm813, %v3561, %v3563
      %v3577 = vsel %vm813, %v3563, %v3565
      %v3578 = vsel %vm813, %v3565, %v3567
      %v3579 = vsel %vm813, %v3567, %v3569
      %v3580 = vsel %vm813, %v3569, %v3571
      %v3581 = vsel %vm813, %v3571, %v3573
      %v3582 = vsel %vm813, %v3573, %v3575
      %v3583 = vsel %vm813, %v3575, %v2466
      %3592 = vst [vmem:[#allocation2 + $0x80] sm:$0x30] %v3576
      %3593 = vst [vmem:[#allocation2 + $0x88] sm:$0x30] %v3577
      %3594 = vst [vmem:[#allocation2 + $0x90] sm:$0x30] %v3578
      %3595 = vst [vmem:[#allocation2 + $0x98] sm:$0x30] %v3579
      %3596 = vst [vmem:[#allocation2 + $0xa0] sm:$0x30] %v3580
      %3597 = vst [vmem:[#allocation2 + $0xa8] sm:$0x30] %v3581
      %3598 = vst [vmem:[#allocation2 + $0xb0] sm:$0x30] %v3582
      %3599 = vst [vmem:[#allocation2 + $0xb8] sm:$0x30] %v3583
      %v3600 = vmul.f32 %v2985, %v2391
      %v3601 = vmul.f32 %v2993, %v2406
      %v3602 = vmul.f32 %v2992, %v2407
      %v3603 = vmul.f32 %v2994, %v2408
      %v3604 = vmul.f32 %v3002, %v2409
      %v3605 = vmul.f32 %v3010, %v2410
      %v3606 = vmul.f32 %v3009, %v2411
      %v3607 = vmul.f32 %v3011, %v2412
      %v3616 = vrot.slane %v3600, 2
      %v3617 = vrot.slane %v3601, 2
      %v3618 = vrot.slane %v3602, 2
      %v3619 = vrot.slane %v3603, 2
      %v3620 = vrot.slane %v3604, 2
      %v3621 = vrot.slane %v3605, 2
      %v3622 = vrot.slane %v3606, 2
      %v3623 = vrot.slane %v3607, 2
      %v3624 = vrot.slane %v2430, 2
      %3625 = vrot.lane.b32.xlu0 %v3616, 127
      %v3626 = vpop.permute.xlu0 %3625
      %3627 = vrot.lane.b32.xlu0 %v3617, 127
      %v3628 = vpop.permute.xlu0 %3627
      %3629 = vrot.lane.b32.xlu0 %v3618, 127
      %v3630 = vpop.permute.xlu0 %3629
      %3631 = vrot.lane.b32.xlu0 %v3619, 127
      %v3632 = vpop.permute.xlu0 %3631
      %3633 = vrot.lane.b32.xlu0 %v3620, 127
      %v3634 = vpop.permute.xlu0 %3633
      %3635 = vrot.lane.b32.xlu0 %v3621, 127
      %v3636 = vpop.permute.xlu0 %3635
      %3637 = vrot.lane.b32.xlu0 %v3622, 127
      %v3638 = vpop.permute.xlu0 %3637
      %3639 = vrot.lane.b32.xlu0 %v3623, 127
      %v3640 = vpop.permute.xlu0 %3639
      %3641 = vrot.lane.b32.xlu0 %v3624, 127
      %v3642 = vpop.permute.xlu0 %3641
      %v3643 = vsel %vm813, %v3626, %v3628
      %v3644 = vsel %vm813, %v3628, %v3630
      %v3645 = vsel %vm813, %v3630, %v3632
      %v3646 = vsel %vm813, %v3632, %v3634
      %v3647 = vsel %vm813, %v3634, %v3636
      %v3648 = vsel %vm813, %v3636, %v3638
      %v3649 = vsel %vm813, %v3638, %v3640
      %v3650 = vsel %vm813, %v3640, %v3642
      %3659 = vst [vmem:[#allocation2 + $0x80] sm:$0xc0] %v3643
      %3660 = vst [vmem:[#allocation2 + $0x88] sm:$0xc0] %v3644
      %3661 = vst [vmem:[#allocation2 + $0x90] sm:$0xc0] %v3645
      %3662 = vst [vmem:[#allocation2 + $0x98] sm:$0xc0] %v3646
      %3663 = vst [vmem:[#allocation2 + $0xa0] sm:$0xc0] %v3647
      %3664 = vst [vmem:[#allocation2 + $0xa8] sm:$0xc0] %v3648
      %3665 = vst [vmem:[#allocation2 + $0xb0] sm:$0xc0] %v3649
      %3666 = vst [vmem:[#allocation2 + $0xb8] sm:$0xc0] %v3650
      %v3667 = vmul.f32 %v2845, %v2492
      %v3668 = vmul.f32 %v2847, %v2507
      %v3669 = vmul.f32 %v2886, %v2508
      %v3670 = vmul.f32 %v2888, %v2509
      %v3671 = vmul.f32 %v2927, %v2510
      %v3672 = vmul.f32 %v2929, %v2511
      %v3673 = vmul.f32 %v2968, %v2512
      %v3674 = vmul.f32 %v2970, %v2513
      %3683 = vrot.lane.b32.xlu0 %v3667, 97
      %v3684 = vpop.permute.xlu0 %3683
      %3685 = vrot.lane.b32.xlu0 %v3668, 97
      %v3686 = vpop.permute.xlu0 %3685
      %3687 = vrot.lane.b32.xlu0 %v3669, 97
      %v3688 = vpop.permute.xlu0 %3687
      %3689 = vrot.lane.b32.xlu0 %v3670, 97
      %v3690 = vpop.permute.xlu0 %3689
      %3691 = vrot.lane.b32.xlu0 %v3671, 97
      %v3692 = vpop.permute.xlu0 %3691
      %3693 = vrot.lane.b32.xlu0 %v3672, 97
      %v3694 = vpop.permute.xlu0 %3693
      %3695 = vrot.lane.b32.xlu0 %v3673, 97
      %v3696 = vpop.permute.xlu0 %3695
      %3697 = vrot.lane.b32.xlu0 %v3674, 97
      %v3698 = vpop.permute.xlu0 %3697
      %v3699 = vsel %vm2203, %v3684, %v3686
      %v3700 = vsel %vm2203, %v3686, %v3688
      %v3701 = vsel %vm2203, %v3688, %v3690
      %v3702 = vsel %vm2203, %v3690, %v3692
      %v3703 = vsel %vm2203, %v3692, %v3694
      %v3704 = vsel %vm2203, %v3694, %v3696
      %v3705 = vsel %vm2203, %v3696, %v3698
      %v3706 = vsel %vm2203, %v3698, %v2558
      %3715 = vst [vmem:[#allocation2 + $0xc0] sm:$0x3] %v3699
      %3716 = vst [vmem:[#allocation2 + $0xc8] sm:$0x3] %v3700
      %3717 = vst [vmem:[#allocation2 + $0xd0] sm:$0x3] %v3701
      %3718 = vst [vmem:[#allocation2 + $0xd8] sm:$0x3] %v3702
      %3719 = vst [vmem:[#allocation2 + $0xe0] sm:$0x3] %v3703
      %3720 = vst [vmem:[#allocation2 + $0xe8] sm:$0x3] %v3704
      %3721 = vst [vmem:[#allocation2 + $0xf0] sm:$0x3] %v3705
      %3722 = vst [vmem:[#allocation2 + $0xf8] sm:$0x3] %v3706
      %v3723 = vmul.f32 %v2985, %v2492
      %v3724 = vmul.f32 %v2993, %v2507
      %v3725 = vmul.f32 %v2992, %v2508
      %v3726 = vmul.f32 %v2994, %v2509
      %v3727 = vmul.f32 %v3002, %v2510
      %v3728 = vmul.f32 %v3010, %v2511
      %v3729 = vmul.f32 %v3009, %v2512
      %v3730 = vmul.f32 %v3011, %v2513
      %v3739 = vrot.slane %v3723, 6
      %v3740 = vrot.slane %v3724, 6
      %v3741 = vrot.slane %v3725, 6
      %v3742 = vrot.slane %v3726, 6
      %v3743 = vrot.slane %v3727, 6
      %v3744 = vrot.slane %v3728, 6
      %v3745 = vrot.slane %v3729, 6
      %v3746 = vrot.slane %v3730, 6
      %v3747 = vrot.slane %v2531, 6
      %3748 = vrot.lane.b32.xlu0 %v3739, 97
      %v3749 = vpop.permute.xlu0 %3748
      %3750 = vrot.lane.b32.xlu0 %v3740, 97
      %v3751 = vpop.permute.xlu0 %3750
      %3752 = vrot.lane.b32.xlu0 %v3741, 97
      %v3753 = vpop.permute.xlu0 %3752
      %3754 = vrot.lane.b32.xlu0 %v3742, 97
      %v3755 = vpop.permute.xlu0 %3754
      %3756 = vrot.lane.b32.xlu0 %v3743, 97
      %v3757 = vpop.permute.xlu0 %3756
      %3758 = vrot.lane.b32.xlu0 %v3744, 97
      %v3759 = vpop.permute.xlu0 %3758
      %3760 = vrot.lane.b32.xlu0 %v3745, 97
      %v3761 = vpop.permute.xlu0 %3760
      %3762 = vrot.lane.b32.xlu0 %v3746, 97
      %v3763 = vpop.permute.xlu0 %3762
      %3764 = vrot.lane.b32.xlu0 %v3747, 97
      %v3765 = vpop.permute.xlu0 %3764
      %v3766 = vsel %vm2203, %v3749, %v3751
      %v3767 = vsel %vm2203, %v3751, %v3753
      %v3768 = vsel %vm2203, %v3753, %v3755
      %v3769 = vsel %vm2203, %v3755, %v3757
      %v3770 = vsel %vm2203, %v3757, %v3759
      %v3771 = vsel %vm2203, %v3759, %v3761
      %v3772 = vsel %vm2203, %v3761, %v3763
      %v3773 = vsel %vm2203, %v3763, %v3765
      %3782 = vst [vmem:[#allocation2 + $0xc0] sm:$0xc] %v3766
      %3783 = vst [vmem:[#allocation2 + $0xc8] sm:$0xc] %v3767
      %3784 = vst [vmem:[#allocation2 + $0xd0] sm:$0xc] %v3768
      %3785 = vst [vmem:[#allocation2 + $0xd8] sm:$0xc] %v3769
      %3786 = vst [vmem:[#allocation2 + $0xe0] sm:$0xc] %v3770
      %3787 = vst [vmem:[#allocation2 + $0xe8] sm:$0xc] %v3771
      %3788 = vst [vmem:[#allocation2 + $0xf0] sm:$0xc] %v3772
      %3789 = vst [vmem:[#allocation2 + $0xf8] sm:$0xc] %v3773
      %3790 = vrot.lane.b32.xlu0 %v3151, 96
      %v3791 = vpop.permute.xlu0 %3790
      %3792 = vrot.lane.b32.xlu0 %v3152, 96
      %v3793 = vpop.permute.xlu0 %3792
      %3794 = vrot.lane.b32.xlu0 %v3153, 96
      %v3795 = vpop.permute.xlu0 %3794
      %3796 = vrot.lane.b32.xlu0 %v3154, 96
      %v3797 = vpop.permute.xlu0 %3796
      %3798 = vrot.lane.b32.xlu0 %v3155, 96
      %v3799 = vpop.permute.xlu0 %3798
      %3800 = vrot.lane.b32.xlu0 %v3156, 96
      %v3801 = vpop.permute.xlu0 %3800
      %3802 = vrot.lane.b32.xlu0 %v3157, 96
      %v3803 = vpop.permute.xlu0 %3802
      %3804 = vrot.lane.b32.xlu0 %v3158, 96
      %v3805 = vpop.permute.xlu0 %3804
      %v3806 = vsel %vm2601, %v3791, %v3793
      %v3807 = vsel %vm2601, %v3793, %v3795
      %v3808 = vsel %vm2601, %v3795, %v3797
      %v3809 = vsel %vm2601, %v3797, %v3799
      %v3810 = vsel %vm2601, %v3799, %v3801
      %v3811 = vsel %vm2601, %v3801, %v3803
      %v3812 = vsel %vm2601, %v3803, %v3805
      %v3813 = vsel %vm2601, %v3805, %v2600
      %3822 = vst [vmem:[#allocation2 + $0xc0] sm:$0x30] %v3806
      %3823 = vst [vmem:[#allocation2 + $0xc8] sm:$0x30] %v3807
      %3824 = vst [vmem:[#allocation2 + $0xd0] sm:$0x30] %v3808
      %3825 = vst [vmem:[#allocation2 + $0xd8] sm:$0x30] %v3809
      %3826 = vst [vmem:[#allocation2 + $0xe0] sm:$0x30] %v3810
      %3827 = vst [vmem:[#allocation2 + $0xe8] sm:$0x30] %v3811
      %3828 = vst [vmem:[#allocation2 + $0xf0] sm:$0x30] %v3812
      %3829 = vst [vmem:[#allocation2 + $0xf8] sm:$0x30] %v3813
      %3830 = vrot.lane.b32.xlu0 %v3200, 96
      %v3831 = vpop.permute.xlu0 %3830
      %3832 = vrot.lane.b32.xlu0 %v3201, 96
      %v3833 = vpop.permute.xlu0 %3832
      %3834 = vrot.lane.b32.xlu0 %v3202, 96
      %v3835 = vpop.permute.xlu0 %3834
      %3836 = vrot.lane.b32.xlu0 %v3203, 96
      %v3837 = vpop.permute.xlu0 %3836
      %3838 = vrot.lane.b32.xlu0 %v3204, 96
      %v3839 = vpop.permute.xlu0 %3838
      %3840 = vrot.lane.b32.xlu0 %v3205, 96
      %v3841 = vpop.permute.xlu0 %3840
      %3842 = vrot.lane.b32.xlu0 %v3206, 96
      %v3843 = vpop.permute.xlu0 %3842
      %3844 = vrot.lane.b32.xlu0 %v3207, 96
      %v3845 = vpop.permute.xlu0 %3844
      %3846 = vrot.lane.b32.xlu0 %v3199, 96
      %v3847 = vpop.permute.xlu0 %3846
      %v3848 = vsel %vm2601, %v3831, %v3833
      %v3849 = vsel %vm2601, %v3833, %v3835
      %v3850 = vsel %vm2601, %v3835, %v3837
      %v3851 = vsel %vm2601, %v3837, %v3839
      %v3852 = vsel %vm2601, %v3839, %v3841
      %v3853 = vsel %vm2601, %v3841, %v3843
      %v3854 = vsel %vm2601, %v3843, %v3845
      %v3855 = vsel %vm2601, %v3845, %v3847
      %3864 = vst [vmem:[#allocation2 + $0xc0] sm:$0xc0] %v3848
      %3865 = vst [vmem:[#allocation2 + $0xc8] sm:$0xc0] %v3849
      %3866 = vst [vmem:[#allocation2 + $0xd0] sm:$0xc0] %v3850
      %3867 = vst [vmem:[#allocation2 + $0xd8] sm:$0xc0] %v3851
      %3868 = vst [vmem:[#allocation2 + $0xe0] sm:$0xc0] %v3852
      %3869 = vst [vmem:[#allocation2 + $0xe8] sm:$0xc0] %v3853
      %3870 = vst [vmem:[#allocation2 + $0xf0] sm:$0xc0] %v3854
      %3871 = vst [vmem:[#allocation2 + $0xf8] sm:$0xc0] %v3855
      %v3872 = vmul.f32 %v2845, %v2627
      %v3873 = vmul.f32 %v2847, %v2642
      %v3874 = vmul.f32 %v2886, %v2643
      %v3875 = vmul.f32 %v2888, %v2644
      %v3876 = vmul.f32 %v2927, %v2645
      %v3877 = vmul.f32 %v2929, %v2646
      %v3878 = vmul.f32 %v2968, %v2647
      %v3879 = vmul.f32 %v2970, %v2648
      %3888 = vrot.lane.b32.xlu0 %v3872, 95
      %v3889 = vpop.permute.xlu0 %3888
      %3890 = vrot.lane.b32.xlu0 %v3873, 95
      %v3891 = vpop.permute.xlu0 %3890
      %3892 = vrot.lane.b32.xlu0 %v3874, 95
      %v3893 = vpop.permute.xlu0 %3892
      %3894 = vrot.lane.b32.xlu0 %v3875, 95
      %v3895 = vpop.permute.xlu0 %3894
      %3896 = vrot.lane.b32.xlu0 %v3876, 95
      %v3897 = vpop.permute.xlu0 %3896
      %3898 = vrot.lane.b32.xlu0 %v3877, 95
      %v3899 = vpop.permute.xlu0 %3898
      %3900 = vrot.lane.b32.xlu0 %v3878, 95
      %v3901 = vpop.permute.xlu0 %3900
      %3902 = vrot.lane.b32.xlu0 %v3879, 95
      %v3903 = vpop.permute.xlu0 %3902
      %v3904 = vsel %vm2017, %v3889, %v3891
      %v3905 = vsel %vm2017, %v3891, %v3893
      %v3906 = vsel %vm2017, %v3893, %v3895
      %v3907 = vsel %vm2017, %v3895, %v3897
      %v3908 = vsel %vm2017, %v3897, %v3899
      %v3909 = vsel %vm2017, %v3899, %v3901
      %v3910 = vsel %vm2017, %v3901, %v3903
      %v3911 = vsel %vm2017, %v3903, %v2693
      %3920 = vst [vmem:[#allocation2 + $0x100] sm:$0x3] %v3904
      %3921 = vst [vmem:[#allocation2 + $0x108] sm:$0x3] %v3905
      %3922 = vst [vmem:[#allocation2 + $0x110] sm:$0x3] %v3906
      %3923 = vst [vmem:[#allocation2 + $0x118] sm:$0x3] %v3907
      %3924 = vst [vmem:[#allocation2 + $0x120] sm:$0x3] %v3908
      %3925 = vst [vmem:[#allocation2 + $0x128] sm:$0x3] %v3909
      %3926 = vst [vmem:[#allocation2 + $0x130] sm:$0x3] %v3910
      %3927 = vst [vmem:[#allocation2 + $0x138] sm:$0x3] %v3911
      %v3928 = vmul.f32 %v2985, %v2627
      %v3929 = vmul.f32 %v2993, %v2642
      %v3930 = vmul.f32 %v2992, %v2643
      %v3931 = vmul.f32 %v2994, %v2644
      %v3932 = vmul.f32 %v3002, %v2645
      %v3933 = vmul.f32 %v3010, %v2646
      %v3934 = vmul.f32 %v3009, %v2647
      %v3935 = vmul.f32 %v3011, %v2648
      %v3944 = vrot.slane %v3928, 6
      %v3945 = vrot.slane %v3929, 6
      %v3946 = vrot.slane %v3930, 6
      %v3947 = vrot.slane %v3931, 6
      %v3948 = vrot.slane %v3932, 6
      %v3949 = vrot.slane %v3933, 6
      %v3950 = vrot.slane %v3934, 6
      %v3951 = vrot.slane %v3935, 6
      %v3952 = vrot.slane %v2666, 6
      %3953 = vrot.lane.b32.xlu0 %v3944, 95
      %v3954 = vpop.permute.xlu0 %3953
      %3955 = vrot.lane.b32.xlu0 %v3945, 95
      %v3956 = vpop.permute.xlu0 %3955
      %3957 = vrot.lane.b32.xlu0 %v3946, 95
      %v3958 = vpop.permute.xlu0 %3957
      %3959 = vrot.lane.b32.xlu0 %v3947, 95
      %v3960 = vpop.permute.xlu0 %3959
      %3961 = vrot.lane.b32.xlu0 %v3948, 95
      %v3962 = vpop.permute.xlu0 %3961
      %3963 = vrot.lane.b32.xlu0 %v3949, 95
      %v3964 = vpop.permute.xlu0 %3963
      %3965 = vrot.lane.b32.xlu0 %v3950, 95
      %v3966 = vpop.permute.xlu0 %3965
      %3967 = vrot.lane.b32.xlu0 %v3951, 95
      %v3968 = vpop.permute.xlu0 %3967
      %3969 = vrot.lane.b32.xlu0 %v3952, 95
      %v3970 = vpop.permute.xlu0 %3969
      %v3971 = vsel %vm2017, %v3954, %v3956
      %v3972 = vsel %vm2017, %v3956, %v3958
      %v3973 = vsel %vm2017, %v3958, %v3960
      %v3974 = vsel %vm2017, %v3960, %v3962
      %v3975 = vsel %vm2017, %v3962, %v3964
      %v3976 = vsel %vm2017, %v3964, %v3966
      %v3977 = vsel %vm2017, %v3966, %v3968
      %v3978 = vsel %vm2017, %v3968, %v3970
      %3987 = vst [vmem:[#allocation2 + $0x100] sm:$0xc] %v3971
      %3988 = vst [vmem:[#allocation2 + $0x108] sm:$0xc] %v3972
      %3989 = vst [vmem:[#allocation2 + $0x110] sm:$0xc] %v3973
      %3990 = vst [vmem:[#allocation2 + $0x118] sm:$0xc] %v3974
      %3991 = vst [vmem:[#allocation2 + $0x120] sm:$0xc] %v3975
      %3992 = vst [vmem:[#allocation2 + $0x128] sm:$0xc] %v3976
      %3993 = vst [vmem:[#allocation2 + $0x130] sm:$0xc] %v3977
      %3994 = vst [vmem:[#allocation2 + $0x138] sm:$0xc] %v3978
      %v3995 = vld [vmem:[#allocation2] sm:$0xff]
      %v3996 = vld [vmem:[#allocation2 + $0x8] sm:$0xff]
      %v3997 = vld [vmem:[#allocation2 + $0x10] sm:$0xff]
      %v3998 = vld [vmem:[#allocation2 + $0x18] sm:$0xff]
      %v3999 = vld [vmem:[#allocation2 + $0x20] sm:$0xff]
      %v4000 = vld [vmem:[#allocation2 + $0x28] sm:$0xff]
      %v4001 = vld [vmem:[#allocation2 + $0x30] sm:$0xff]
      %v4002 = vld [vmem:[#allocation2 + $0x38] sm:$0xff]
      %v4003 = vld [vmem:[#allocation2 + $0x40] sm:$0xff]
      %v4004 = vld [vmem:[#allocation2 + $0x48] sm:$0xff]
      %v4005 = vld [vmem:[#allocation2 + $0x50] sm:$0xff]
      %v4006 = vld [vmem:[#allocation2 + $0x58] sm:$0xff]
      %v4007 = vld [vmem:[#allocation2 + $0x60] sm:$0xff]
      %v4008 = vld [vmem:[#allocation2 + $0x68] sm:$0xff]
      %v4009 = vld [vmem:[#allocation2 + $0x70] sm:$0xff]
      %v4010 = vld [vmem:[#allocation2 + $0x78] sm:$0xff]
      %v4011 = vld [vmem:[#allocation2 + $0x80] sm:$0xff]
      %v4012 = vld [vmem:[#allocation2 + $0x88] sm:$0xff]
      %v4013 = vld [vmem:[#allocation2 + $0x90] sm:$0xff]
      %v4014 = vld [vmem:[#allocation2 + $0x98] sm:$0xff]
      %v4015 = vld [vmem:[#allocation2 + $0xa0] sm:$0xff]
      %v4016 = vld [vmem:[#allocation2 + $0xa8] sm:$0xff]
      %v4017 = vld [vmem:[#allocation2 + $0xb0] sm:$0xff]
      %v4018 = vld [vmem:[#allocation2 + $0xb8] sm:$0xff]
      %v4019 = vld [vmem:[#allocation2 + $0xc0] sm:$0xff]
      %v4020 = vld [vmem:[#allocation2 + $0xc8] sm:$0xff]
      %v4021 = vld [vmem:[#allocation2 + $0xd0] sm:$0xff]
      %v4022 = vld [vmem:[#allocation2 + $0xd8] sm:$0xff]
      %v4023 = vld [vmem:[#allocation2 + $0xe0] sm:$0xff]
      %v4024 = vld [vmem:[#allocation2 + $0xe8] sm:$0xff]
      %v4025 = vld [vmem:[#allocation2 + $0xf0] sm:$0xff]
      %v4026 = vld [vmem:[#allocation2 + $0xf8] sm:$0xff]
      %v4027 = vld [vmem:[#allocation2 + $0x100] sm:$0xf]
      %v4028 = vld [vmem:[#allocation2 + $0x108] sm:$0xf]
      %v4029 = vld [vmem:[#allocation2 + $0x110] sm:$0xf]
      %v4030 = vld [vmem:[#allocation2 + $0x118] sm:$0xf]
      %v4031 = vld [vmem:[#allocation2 + $0x120] sm:$0xf]
      %v4032 = vld [vmem:[#allocation2 + $0x128] sm:$0xf]
      %v4033 = vld [vmem:[#allocation2 + $0x130] sm:$0xf]
      %v4034 = vld [vmem:[#allocation2 + $0x138] sm:$0xf]
      %v4035 = vpack.c.bf16 %v4003, %v3995
      %v4036 = vpack.c.bf16 %v4004, %v3996
      %v4037 = vpack.c.bf16 %v4005, %v3997
      %v4038 = vpack.c.bf16 %v4006, %v3998
      %v4039 = vpack.c.bf16 %v4007, %v3999
      %v4040 = vpack.c.bf16 %v4008, %v4000
      %v4041 = vpack.c.bf16 %v4009, %v4001
      %v4042 = vpack.c.bf16 %v4010, %v4002
      %v4043 = vpack.c.bf16 %v4019, %v4011
      %v4044 = vpack.c.bf16 %v4020, %v4012
      %v4045 = vpack.c.bf16 %v4021, %v4013
      %v4046 = vpack.c.bf16 %v4022, %v4014
      %v4047 = vpack.c.bf16 %v4023, %v4015
      %v4048 = vpack.c.bf16 %v4024, %v4016
      %v4049 = vpack.c.bf16 %v4025, %v4017
      %v4050 = vpack.c.bf16 %v4026, %v4018
      %v4051 = vpack.c.bf16 %v4027, %v4027
      %v4052 = vpack.c.bf16 %v4028, %v4028
      %v4053 = vpack.c.bf16 %v4029, %v4029
      %v4054 = vpack.c.bf16 %v4030, %v4030
      %v4055 = vpack.c.bf16 %v4031, %v4031
      %v4056 = vpack.c.bf16 %v4032, %v4032
      %v4057 = vpack.c.bf16 %v4033, %v4033
      %v4058 = vpack.c.bf16 %v4034, %v4034
      %v4059 = vld [vmem:[%s11] sm:$0x1]
      %v4061 = vsel %vm1483, %v4059, 0
      %v4064 = vsel %vm1487, %v4051, 0
      %v4067 = vsel %vm1487, %v4052, 0
      %v4070 = vsel %vm1487, %v4053, 0
      %v4073 = vsel %vm1487, %v4054, 0
      %v4076 = vsel %vm1487, %v4055, 0
      %v4079 = vsel %vm1487, %v4056, 0
      %v4082 = vsel %vm1487, %v4057, 0
      %v4085 = vsel %vm1487, %v4058, 0
      %4087 = vmatprep.subr.bf16.mxu0 %v4036
      %4088 = vmatpush1.bf16.msra.mxu0 %v4035
      %4089 = vmatprep.subr.bf16.mxu0 %v4044
      %4090 = vmatpush1.bf16.msra.mxu0 %v4043
      %4091 = vmatprep.subr.bf16.mxu0 %v4067
      %4092 = vmatpush1.bf16.msra.mxu0 %v4064
      %4093 = vmatprep.subr.bf16.mxu0 0
      %4094 = vmatpush1.bf16.msra.mxu0 0
      %4095 = vmatprep.subr.bf16.mxu0 0
      %4096 = vmatpush1.bf16.msra.mxu0 0
      %4097 = vmatprep.subr.bf16.mxu0 0
      %4098 = vmatpush1.bf16.msra.mxu0 0
      %4099 = vmatprep.subr.bf16.mxu0 0
      %4100 = vmatpush1.bf16.msra.mxu0 0
      %4101 = vmatprep.subr.bf16.mxu0 0
      %4102 = vmatpush1.bf16.msra.mxu0 0
      %4103 = vmatprep.subr.bf16.mxu0 0
      %4104 = vmatpush1.bf16.msra.mxu0 0
      %4105 = vmatprep.subr.bf16.mxu0 0
      %4106 = vmatpush1.bf16.msra.mxu0 0
      %4107 = vmatprep.subr.bf16.mxu0 0
      %4108 = vmatpush1.bf16.msra.mxu0 0
      %4109 = vmatprep.subr.bf16.mxu0 0
      %4110 = vmatpush1.bf16.msra.mxu0 0
      %4111 = vmatprep.subr.bf16.mxu0 0
      %4112 = vmatpush1.bf16.msra.mxu0 0
      %4113 = vmatprep.subr.bf16.mxu0 0
      %4114 = vmatpush1.bf16.msra.mxu0 0
      %4115 = vmatprep.subr.bf16.mxu0 0
      %4116 = vmatpush1.bf16.msra.mxu0 0
      %4117 = vmatprep.subr.bf16.mxu0 0
      %4118 = vmatpush1.bf16.msra.mxu0 0
      %4119 = vmatprep.mubr.bf16.mxu0 0
      %4120 = vmatmul.mubr.bf16.gmra.mrb[0].mxu0 %v4061
      %v4121 = vpop.f32.mrb[0].mxu0
      %v4122 = vadd.f32 0.0, %v4121
      %v4123 = vpop.f32.mrb[0].mxu0
      %v4124 = vadd.f32 0.0, %v4123
      %v4125 = vpop.f32.mrb[0].mxu0
      %v4126 = vpop.f32.mrb[0].mxu0
      %4127 = vdwg.mxu0
      %4128 = vmatprep.subr.bf16.mxu0 %v4038
      %4129 = vmatpush1.bf16.msra.mxu0 %v4037
      %4130 = vmatprep.subr.bf16.mxu0 %v4046
      %4131 = vmatpush1.bf16.msra.mxu0 %v4045
      %4132 = vmatprep.subr.bf16.mxu0 %v4073
      %4133 = vmatpush1.bf16.msra.mxu0 %v4070
      %4134 = vmatprep.subr.bf16.mxu0 0
      %4135 = vmatpush1.bf16.msra.mxu0 0
      %4136 = vmatprep.subr.bf16.mxu0 0
      %4137 = vmatpush1.bf16.msra.mxu0 0
      %4138 = vmatprep.subr.bf16.mxu0 0
      %4139 = vmatpush1.bf16.msra.mxu0 0
      %4140 = vmatprep.subr.bf16.mxu0 0
      %4141 = vmatpush1.bf16.msra.mxu0 0
      %4142 = vmatprep.subr.bf16.mxu0 0
      %4143 = vmatpush1.bf16.msra.mxu0 0
      %4144 = vmatprep.subr.bf16.mxu0 0
      %4145 = vmatpush1.bf16.msra.mxu0 0
      %4146 = vmatprep.subr.bf16.mxu0 0
      %4147 = vmatpush1.bf16.msra.mxu0 0
      %4148 = vmatprep.subr.bf16.mxu0 0
      %4149 = vmatpush1.bf16.msra.mxu0 0
      %4150 = vmatprep.subr.bf16.mxu0 0
      %4151 = vmatpush1.bf16.msra.mxu0 0
      %4152 = vmatprep.subr.bf16.mxu0 0
      %4153 = vmatpush1.bf16.msra.mxu0 0
      %4154 = vmatprep.subr.bf16.mxu0 0
      %4155 = vmatpush1.bf16.msra.mxu0 0
      %4156 = vmatprep.subr.bf16.mxu0 0
      %4157 = vmatpush1.bf16.msra.mxu0 0
      %4158 = vmatprep.subr.bf16.mxu0 0
      %4159 = vmatpush1.bf16.msra.mxu0 0
      %4160 = vmatprep.mubr.bf16.mxu0 0
      %4161 = vmatmul.mubr.bf16.gmra.mrb[0].mxu0 %v4061
      %v4162 = vpop.f32.mrb[0].mxu0
      %v4163 = vadd.f32 0.0, %v4162
      %v4164 = vpop.f32.mrb[0].mxu0
      %v4165 = vadd.f32 0.0, %v4164
      %v4166 = vpop.f32.mrb[0].mxu0
      %v4167 = vpop.f32.mrb[0].mxu0
      %4168 = vdwg.mxu0
      %4169 = vmatprep.subr.bf16.mxu0 %v4040
      %4170 = vmatpush1.bf16.msra.mxu0 %v4039
      %4171 = vmatprep.subr.bf16.mxu0 %v4048
      %4172 = vmatpush1.bf16.msra.mxu0 %v4047
      %4173 = vmatprep.subr.bf16.mxu0 %v4079
      %4174 = vmatpush1.bf16.msra.mxu0 %v4076
      %4175 = vmatprep.subr.bf16.mxu0 0
      %4176 = vmatpush1.bf16.msra.mxu0 0
      %4177 = vmatprep.subr.bf16.mxu0 0
      %4178 = vmatpush1.bf16.msra.mxu0 0
      %4179 = vmatprep.subr.bf16.mxu0 0
      %4180 = vmatpush1.bf16.msra.mxu0 0
      %4181 = vmatprep.subr.bf16.mxu0 0
      %4182 = vmatpush1.bf16.msra.mxu0 0
      %4183 = vmatprep.subr.bf16.mxu0 0
      %4184 = vmatpush1.bf16.msra.mxu0 0
      %4185 = vmatprep.subr.bf16.mxu0 0
      %4186 = vmatpush1.bf16.msra.mxu0 0
      %4187 = vmatprep.subr.bf16.mxu0 0
      %4188 = vmatpush1.bf16.msra.mxu0 0
      %4189 = vmatprep.subr.bf16.mxu0 0
      %4190 = vmatpush1.bf16.msra.mxu0 0
      %4191 = vmatprep.subr.bf16.mxu0 0
      %4192 = vmatpush1.bf16.msra.mxu0 0
      %4193 = vmatprep.subr.bf16.mxu0 0
      %4194 = vmatpush1.bf16.msra.mxu0 0
      %4195 = vmatprep.subr.bf16.mxu0 0
      %4196 = vmatpush1.bf16.msra.mxu0 0
      %4197 = vmatprep.subr.bf16.mxu0 0
      %4198 = vmatpush1.bf16.msra.mxu0 0
      %4199 = vmatprep.subr.bf16.mxu0 0
      %4200 = vmatpush1.bf16.msra.mxu0 0
      %4201 = vmatprep.mubr.bf16.mxu0 0
      %4202 = vmatmul.mubr.bf16.gmra.mrb[0].mxu0 %v4061
      %v4203 = vpop.f32.mrb[0].mxu0
      %v4204 = vadd.f32 0.0, %v4203
      %v4205 = vpop.f32.mrb[0].mxu0
      %v4206 = vadd.f32 0.0, %v4205
      %v4207 = vpop.f32.mrb[0].mxu0
      %v4208 = vpop.f32.mrb[0].mxu0
      %4209 = vdwg.mxu0
      %4210 = vmatprep.subr.bf16.mxu0 %v4042
      %4211 = vmatpush1.bf16.msra.mxu0 %v4041
      %4212 = vmatprep.subr.bf16.mxu0 %v4050
      %4213 = vmatpush1.bf16.msra.mxu0 %v4049
      %4214 = vmatprep.subr.bf16.mxu0 %v4085
      %4215 = vmatpush1.bf16.msra.mxu0 %v4082
      %4216 = vmatprep.subr.bf16.mxu0 0
      %4217 = vmatpush1.bf16.msra.mxu0 0
      %4218 = vmatprep.subr.bf16.mxu0 0
      %4219 = vmatpush1.bf16.msra.mxu0 0
      %4220 = vmatprep.subr.bf16.mxu0 0
      %4221 = vmatpush1.bf16.msra.mxu0 0
      %4222 = vmatprep.subr.bf16.mxu0 0
      %4223 = vmatpush1.bf16.msra.mxu0 0
      %4224 = vmatprep.subr.bf16.mxu0 0
      %4225 = vmatpush1.bf16.msra.mxu0 0
      %4226 = vmatprep.subr.bf16.mxu0 0
      %4227 = vmatpush1.bf16.msra.mxu0 0
      %4228 = vmatprep.subr.bf16.mxu0 0
      %4229 = vmatpush1.bf16.msra.mxu0 0
      %4230 = vmatprep.subr.bf16.mxu0 0
      %4231 = vmatpush1.bf16.msra.mxu0 0
      %4232 = vmatprep.subr.bf16.mxu0 0
      %4233 = vmatpush1.bf16.msra.mxu0 0
      %4234 = vmatprep.subr.bf16.mxu0 0
      %4235 = vmatpush1.bf16.msra.mxu0 0
      %4236 = vmatprep.subr.bf16.mxu0 0
      %4237 = vmatpush1.bf16.msra.mxu0 0
      %4238 = vmatprep.subr.bf16.mxu0 0
      %4239 = vmatpush1.bf16.msra.mxu0 0
      %4240 = vmatprep.subr.bf16.mxu0 0
      %4241 = vmatpush1.bf16.msra.mxu0 0
      %4242 = vmatprep.mubr.bf16.mxu0 0
      %4243 = vmatmul.mubr.bf16.gmra.mrb[0].mxu0 %v4061
      %v4244 = vpop.f32.mrb[0].mxu0
      %v4245 = vadd.f32 0.0, %v4244
      %v4246 = vpop.f32.mrb[0].mxu0
      %v4247 = vadd.f32 0.0, %v4246
      %v4248 = vpop.f32.mrb[0].mxu0
      %v4249 = vpop.f32.mrb[0].mxu0
      %4250 = vdwg.mxu0
      %vm4251 = vcmp.ge.f32.partialorder %v4122, 0.0
      %vm4252 = vcmp.ge.f32.partialorder %v4124, 0.0
      %vm4253 = vcmp.ge.f32.partialorder %v4163, 0.0
      %vm4254 = vcmp.ge.f32.partialorder %v4165, 0.0
      %vm4255 = vcmp.ge.f32.partialorder %v4204, 0.0
      %vm4256 = vcmp.ge.f32.partialorder %v4206, 0.0
      %vm4257 = vcmp.ge.f32.partialorder %v4245, 0.0
      %vm4258 = vcmp.ge.f32.partialorder %v4247, 0.0
      %v4259 = vmul.f32 %v4122, 0.01
      %v4260 = vmul.f32 %v4124, 0.01
      %v4261 = vmul.f32 %v4163, 0.01
      %v4262 = vmul.f32 %v4165, 0.01
      %v4263 = vmul.f32 %v4204, 0.01
      %v4264 = vmul.f32 %v4206, 0.01
      %v4265 = vmul.f32 %v4245, 0.01
      %v4266 = vmul.f32 %v4247, 0.01
      %v4267 = vsel %vm4251, %v4122, %v4259
      %v4268 = vsel %vm4252, %v4124, %v4260
      %v4269 = vsel %vm4253, %v4163, %v4261
      %v4270 = vsel %vm4254, %v4165, %v4262
      %v4271 = vsel %vm4255, %v4204, %v4263
      %v4272 = vsel %vm4256, %v4206, %v4264
      %v4273 = vsel %vm4257, %v4245, %v4265
      %v4274 = vsel %vm4258, %v4247, %v4266
      %v4275 = vmul.f32 %v4267, %v2018
      %v4276 = vmul.f32 %v4268, %v2019
      %v4277 = vmul.f32 %v4269, %v2020
      %v4278 = vmul.f32 %v4270, %v2021
      %v4279 = vmul.f32 %v4271, %v2022
      %v4280 = vmul.f32 %v4272, %v2023
      %v4281 = vmul.f32 %v4273, %v2024
      %v4282 = vmul.f32 %v4274, %v2016
      %4291 = vrot.lane.b32.xlu0 %v4275, 33
      %v4292 = vpop.permute.xlu0 %4291
      %4293 = vrot.lane.b32.xlu0 %v4276, 33
      %v4294 = vpop.permute.xlu0 %4293
      %4295 = vrot.lane.b32.xlu0 %v4277, 33
      %v4296 = vpop.permute.xlu0 %4295
      %4297 = vrot.lane.b32.xlu0 %v4278, 33
      %v4298 = vpop.permute.xlu0 %4297
      %4299 = vrot.lane.b32.xlu0 %v4279, 33
      %v4300 = vpop.permute.xlu0 %4299
      %4301 = vrot.lane.b32.xlu0 %v4280, 33
      %v4302 = vpop.permute.xlu0 %4301
      %4303 = vrot.lane.b32.xlu0 %v4281, 33
      %v4304 = vpop.permute.xlu0 %4303
      %4305 = vrot.lane.b32.xlu0 %v4282, 33
      %v4306 = vpop.permute.xlu0 %4305
      %v4307 = vsel %vm2070, %v2053, %v4292
      %v4308 = vsel %vm2070, %v4292, %v4294
      %v4309 = vsel %vm2070, %v4294, %v4296
      %v4310 = vsel %vm2070, %v4296, %v4298
      %v4311 = vsel %vm2070, %v4298, %v4300
      %v4312 = vsel %vm2070, %v4300, %v4302
      %v4313 = vsel %vm2070, %v4302, %v4304
      %v4314 = vsel %vm2070, %v4304, %v4306
      %4323 = vst [vmem:[#allocation2] sm:$0x3] %v4307
      %4324 = vst [vmem:[#allocation2 + $0x8] sm:$0x3] %v4308
      %4325 = vst [vmem:[#allocation2 + $0x10] sm:$0x3] %v4309
      %4326 = vst [vmem:[#allocation2 + $0x18] sm:$0x3] %v4310
      %4327 = vst [vmem:[#allocation2 + $0x20] sm:$0x3] %v4311
      %4328 = vst [vmem:[#allocation2 + $0x28] sm:$0x3] %v4312
      %4329 = vst [vmem:[#allocation2 + $0x30] sm:$0x3] %v4313
      %4330 = vst [vmem:[#allocation2 + $0x38] sm:$0x3] %v4314
      %v4339 = vrot.slane 0.0, 6
      %v4340 = vrot.slane %v4267, 6
      %v4341 = vrot.slane %v4268, 6
      %v4342 = vrot.slane %v4269, 6
      %v4343 = vrot.slane %v4270, 6
      %v4344 = vrot.slane %v4271, 6
      %v4345 = vrot.slane %v4272, 6
      %v4346 = vrot.slane %v4273, 6
      %v4347 = vrot.slane %v4274, 6
      %4348 = vrot.lane.b32.xlu0 %v4339, 32
      %v4349 = vpop.permute.xlu0 %4348
      %4350 = vrot.lane.b32.xlu0 %v4340, 32
      %v4351 = vpop.permute.xlu0 %4350
      %4352 = vrot.lane.b32.xlu0 %v4341, 32
      %v4353 = vpop.permute.xlu0 %4352
      %4354 = vrot.lane.b32.xlu0 %v4342, 32
      %v4355 = vpop.permute.xlu0 %4354
      %4356 = vrot.lane.b32.xlu0 %v4343, 32
      %v4357 = vpop.permute.xlu0 %4356
      %4358 = vrot.lane.b32.xlu0 %v4344, 32
      %v4359 = vpop.permute.xlu0 %4358
      %4360 = vrot.lane.b32.xlu0 %v4345, 32
      %v4361 = vpop.permute.xlu0 %4360
      %4362 = vrot.lane.b32.xlu0 %v4346, 32
      %v4363 = vpop.permute.xlu0 %4362
      %4364 = vrot.lane.b32.xlu0 %v4347, 32
      %v4365 = vpop.permute.xlu0 %4364
      %v4366 = vsel %vm2129, %v4349, %v4351
      %v4367 = vsel %vm2129, %v4351, %v4353
      %v4368 = vsel %vm2129, %v4353, %v4355
      %v4369 = vsel %vm2129, %v4355, %v4357
      %v4370 = vsel %vm2129, %v4357, %v4359
      %v4371 = vsel %vm2129, %v4359, %v4361
      %v4372 = vsel %vm2129, %v4361, %v4363
      %v4373 = vsel %vm2129, %v4363, %v4365
      %4382 = vst [vmem:[#allocation2] sm:$0xc] %v4366
      %4383 = vst [vmem:[#allocation2 + $0x8] sm:$0xc] %v4367
      %4384 = vst [vmem:[#allocation2 + $0x10] sm:$0xc] %v4368
      %4385 = vst [vmem:[#allocation2 + $0x18] sm:$0xc] %v4369
      %4386 = vst [vmem:[#allocation2 + $0x20] sm:$0xc] %v4370
      %4387 = vst [vmem:[#allocation2 + $0x28] sm:$0xc] %v4371
      %4388 = vst [vmem:[#allocation2 + $0x30] sm:$0xc] %v4372
      %4389 = vst [vmem:[#allocation2 + $0x38] sm:$0xc] %v4373
      %v4390 = vmul.f32 %v4267, %v2204
      %v4391 = vmul.f32 %v4268, %v2205
      %v4392 = vmul.f32 %v4269, %v2206
      %v4393 = vmul.f32 %v4270, %v2207
      %v4394 = vmul.f32 %v4271, %v2208
      %v4395 = vmul.f32 %v4272, %v2209
      %v4396 = vmul.f32 %v4273, %v2210
      %v4397 = vmul.f32 %v4274, %v2202
      %v4406 = vrot.slane %v2220, 4
      %v4407 = vrot.slane %v4390, 4
      %v4408 = vrot.slane %v4391, 4
      %v4409 = vrot.slane %v4392, 4
      %v4410 = vrot.slane %v4393, 4
      %v4411 = vrot.slane %v4394, 4
      %v4412 = vrot.slane %v4395, 4
      %v4413 = vrot.slane %v4396, 4
      %v4414 = vrot.slane %v4397, 4
      %4415 = vrot.lane.b32.xlu0 %v4406, 31
      %v4416 = vpop.permute.xlu0 %4415
      %4417 = vrot.lane.b32.xlu0 %v4407, 31
      %v4418 = vpop.permute.xlu0 %4417
      %4419 = vrot.lane.b32.xlu0 %v4408, 31
      %v4420 = vpop.permute.xlu0 %4419
      %4421 = vrot.lane.b32.xlu0 %v4409, 31
      %v4422 = vpop.permute.xlu0 %4421
      %4423 = vrot.lane.b32.xlu0 %v4410, 31
      %v4424 = vpop.permute.xlu0 %4423
      %4425 = vrot.lane.b32.xlu0 %v4411, 31
      %v4426 = vpop.permute.xlu0 %4425
      %4427 = vrot.lane.b32.xlu0 %v4412, 31
      %v4428 = vpop.permute.xlu0 %4427
      %4429 = vrot.lane.b32.xlu0 %v4413, 31
      %v4430 = vpop.permute.xlu0 %4429
      %4431 = vrot.lane.b32.xlu0 %v4414, 31
      %v4432 = vpop.permute.xlu0 %4431
      %v4433 = vsel %vm2256, %v4416, %v4418
      %v4434 = vsel %vm2256, %v4418, %v4420
      %v4435 = vsel %vm2256, %v4420, %v4422
      %v4436 = vsel %vm2256, %v4422, %v4424
      %v4437 = vsel %vm2256, %v4424, %v4426
      %v4438 = vsel %vm2256, %v4426, %v4428
      %v4439 = vsel %vm2256, %v4428, %v4430
      %v4440 = vsel %vm2256, %v4430, %v4432
      %4449 = vst [vmem:[#allocation2] sm:$0x30] %v4433
      %4450 = vst [vmem:[#allocation2 + $0x8] sm:$0x30] %v4434
      %4451 = vst [vmem:[#allocation2 + $0x10] sm:$0x30] %v4435
      %4452 = vst [vmem:[#allocation2 + $0x18] sm:$0x30] %v4436
      %4453 = vst [vmem:[#allocation2 + $0x20] sm:$0x30] %v4437
      %4454 = vst [vmem:[#allocation2 + $0x28] sm:$0x30] %v4438
      %4455 = vst [vmem:[#allocation2 + $0x30] sm:$0x30] %v4439
      %4456 = vst [vmem:[#allocation2 + $0x38] sm:$0x30] %v4440
      %v4457 = vmul.f32 %v4267, %v2297
      %v4458 = vmul.f32 %v4268, %v2298
      %v4459 = vmul.f32 %v4269, %v2299
      %v4460 = vmul.f32 %v4270, %v2300
      %v4461 = vmul.f32 %v4271, %v2301
      %v4462 = vmul.f32 %v4272, %v2302
      %v4463 = vmul.f32 %v4273, %v2303
      %v4464 = vmul.f32 %v4274, %v2296
      %v4473 = vrot.slane %v4457, 2
      %v4474 = vrot.slane %v4458, 2
      %v4475 = vrot.slane %v4459, 2
      %v4476 = vrot.slane %v4460, 2
      %v4477 = vrot.slane %v4461, 2
      %v4478 = vrot.slane %v4462, 2
      %v4479 = vrot.slane %v4463, 2
      %v4480 = vrot.slane %v4464, 2
      %4481 = vrot.lane.b32.xlu0 %v4473, 1
      %v4482 = vpop.permute.xlu0 %4481
      %4483 = vrot.lane.b32.xlu0 %v4474, 1
      %v4484 = vpop.permute.xlu0 %4483
      %4485 = vrot.lane.b32.xlu0 %v4475, 1
      %v4486 = vpop.permute.xlu0 %4485
      %4487 = vrot.lane.b32.xlu0 %v4476, 1
      %v4488 = vpop.permute.xlu0 %4487
      %4489 = vrot.lane.b32.xlu0 %v4477, 1
      %v4490 = vpop.permute.xlu0 %4489
      %4491 = vrot.lane.b32.xlu0 %v4478, 1
      %v4492 = vpop.permute.xlu0 %4491
      %4493 = vrot.lane.b32.xlu0 %v4479, 1
      %v4494 = vpop.permute.xlu0 %4493
      %4495 = vrot.lane.b32.xlu0 %v4480, 1
      %v4496 = vpop.permute.xlu0 %4495
      %v4497 = vsel %vm830, %v3463, %v4482
      %v4498 = vsel %vm830, %v4482, %v4484
      %v4499 = vsel %vm830, %v4484, %v4486
      %v4500 = vsel %vm830, %v4486, %v4488
      %v4501 = vsel %vm830, %v4488, %v4490
      %v4502 = vsel %vm830, %v4490, %v4492
      %v4503 = vsel %vm830, %v4492, %v4494
      %v4504 = vsel %vm830, %v4494, %v4496
      %4513 = vst [vmem:[#allocation2] sm:$0xc0] %v4497
      %4514 = vst [vmem:[#allocation2 + $0x8] sm:$0xc0] %v4498
      %4515 = vst [vmem:[#allocation2 + $0x10] sm:$0xc0] %v4499
      %4516 = vst [vmem:[#allocation2 + $0x18] sm:$0xc0] %v4500
      %4517 = vst [vmem:[#allocation2 + $0x20] sm:$0xc0] %v4501
      %4518 = vst [vmem:[#allocation2 + $0x28] sm:$0xc0] %v4502
      %4519 = vst [vmem:[#allocation2 + $0x30] sm:$0xc0] %v4503
      %4520 = vst [vmem:[#allocation2 + $0x38] sm:$0xc0] %v4504
      %4521 = vst [vmem:[#allocation2 + $0x40] sm:$0x3] %v4267
      %4522 = vst [vmem:[#allocation2 + $0x48] sm:$0x3] %v4268
      %4523 = vst [vmem:[#allocation2 + $0x50] sm:$0x3] %v4269
      %4524 = vst [vmem:[#allocation2 + $0x58] sm:$0x3] %v4270
      %4525 = vst [vmem:[#allocation2 + $0x60] sm:$0x3] %v4271
      %4526 = vst [vmem:[#allocation2 + $0x68] sm:$0x3] %v4272
      %4527 = vst [vmem:[#allocation2 + $0x70] sm:$0x3] %v4273
      %4528 = vst [vmem:[#allocation2 + $0x78] sm:$0x3] %v4274
      %v4529 = vmul.f32 %v4267, %v2391
      %v4530 = vmul.f32 %v4268, %v2406
      %v4531 = vmul.f32 %v4269, %v2407
      %v4532 = vmul.f32 %v4270, %v2408
      %v4533 = vmul.f32 %v4271, %v2409
      %v4534 = vmul.f32 %v4272, %v2410
      %v4535 = vmul.f32 %v4273, %v2411
      %v4536 = vmul.f32 %v4274, %v2412
      %v4545 = vrot.slane %v4529, 6
      %v4546 = vrot.slane %v4530, 6
      %v4547 = vrot.slane %v4531, 6
      %v4548 = vrot.slane %v4532, 6
      %v4549 = vrot.slane %v4533, 6
      %v4550 = vrot.slane %v4534, 6
      %v4551 = vrot.slane %v4535, 6
      %v4552 = vrot.slane %v4536, 6
      %v4553 = vrot.slane %v2430, 6
      %4554 = vrot.lane.b32.xlu0 %v4545, 127
      %v4555 = vpop.permute.xlu0 %4554
      %4556 = vrot.lane.b32.xlu0 %v4546, 127
      %v4557 = vpop.permute.xlu0 %4556
      %4558 = vrot.lane.b32.xlu0 %v4547, 127
      %v4559 = vpop.permute.xlu0 %4558
      %4560 = vrot.lane.b32.xlu0 %v4548, 127
      %v4561 = vpop.permute.xlu0 %4560
      %4562 = vrot.lane.b32.xlu0 %v4549, 127
      %v4563 = vpop.permute.xlu0 %4562
      %4564 = vrot.lane.b32.xlu0 %v4550, 127
      %v4565 = vpop.permute.xlu0 %4564
      %4566 = vrot.lane.b32.xlu0 %v4551, 127
      %v4567 = vpop.permute.xlu0 %4566
      %4568 = vrot.lane.b32.xlu0 %v4552, 127
      %v4569 = vpop.permute.xlu0 %4568
      %4570 = vrot.lane.b32.xlu0 %v4553, 127
      %v4571 = vpop.permute.xlu0 %4570
      %v4572 = vsel %vm813, %v4555, %v4557
      %v4573 = vsel %vm813, %v4557, %v4559
      %v4574 = vsel %vm813, %v4559, %v4561
      %v4575 = vsel %vm813, %v4561, %v4563
      %v4576 = vsel %vm813, %v4563, %v4565
      %v4577 = vsel %vm813, %v4565, %v4567
      %v4578 = vsel %vm813, %v4567, %v4569
      %v4579 = vsel %vm813, %v4569, %v4571
      %4588 = vst [vmem:[#allocation2 + $0x40] sm:$0xc] %v4572
      %4589 = vst [vmem:[#allocation2 + $0x48] sm:$0xc] %v4573
      %4590 = vst [vmem:[#allocation2 + $0x50] sm:$0xc] %v4574
      %4591 = vst [vmem:[#allocation2 + $0x58] sm:$0xc] %v4575
      %4592 = vst [vmem:[#allocation2 + $0x60] sm:$0xc] %v4576
      %4593 = vst [vmem:[#allocation2 + $0x68] sm:$0xc] %v4577
      %4594 = vst [vmem:[#allocation2 + $0x70] sm:$0xc] %v4578
      %4595 = vst [vmem:[#allocation2 + $0x78] sm:$0xc] %v4579
      %v4596 = vmul.f32 %v4267, %v2492
      %v4597 = vmul.f32 %v4268, %v2507
      %v4598 = vmul.f32 %v4269, %v2508
      %v4599 = vmul.f32 %v4270, %v2509
      %v4600 = vmul.f32 %v4271, %v2510
      %v4601 = vmul.f32 %v4272, %v2511
      %v4602 = vmul.f32 %v4273, %v2512
      %v4603 = vmul.f32 %v4274, %v2513
      %v4612 = vrot.slane %v4596, 4
      %v4613 = vrot.slane %v4597, 4
      %v4614 = vrot.slane %v4598, 4
      %v4615 = vrot.slane %v4599, 4
      %v4616 = vrot.slane %v4600, 4
      %v4617 = vrot.slane %v4601, 4
      %v4618 = vrot.slane %v4602, 4
      %v4619 = vrot.slane %v4603, 4
      %v4620 = vrot.slane %v2531, 4
      %4621 = vrot.lane.b32.xlu0 %v4612, 97
      %v4622 = vpop.permute.xlu0 %4621
      %4623 = vrot.lane.b32.xlu0 %v4613, 97
      %v4624 = vpop.permute.xlu0 %4623
      %4625 = vrot.lane.b32.xlu0 %v4614, 97
      %v4626 = vpop.permute.xlu0 %4625
      %4627 = vrot.lane.b32.xlu0 %v4615, 97
      %v4628 = vpop.permute.xlu0 %4627
      %4629 = vrot.lane.b32.xlu0 %v4616, 97
      %v4630 = vpop.permute.xlu0 %4629
      %4631 = vrot.lane.b32.xlu0 %v4617, 97
      %v4632 = vpop.permute.xlu0 %4631
      %4633 = vrot.lane.b32.xlu0 %v4618, 97
      %v4634 = vpop.permute.xlu0 %4633
      %4635 = vrot.lane.b32.xlu0 %v4619, 97
      %v4636 = vpop.permute.xlu0 %4635
      %4637 = vrot.lane.b32.xlu0 %v4620, 97
      %v4638 = vpop.permute.xlu0 %4637
      %v4639 = vsel %vm2203, %v4622, %v4624
      %v4640 = vsel %vm2203, %v4624, %v4626
      %v4641 = vsel %vm2203, %v4626, %v4628
      %v4642 = vsel %vm2203, %v4628, %v4630
      %v4643 = vsel %vm2203, %v4630, %v4632
      %v4644 = vsel %vm2203, %v4632, %v4634
      %v4645 = vsel %vm2203, %v4634, %v4636
      %v4646 = vsel %vm2203, %v4636, %v4638
      %4655 = vst [vmem:[#allocation2 + $0x40] sm:$0x30] %v4639
      %4656 = vst [vmem:[#allocation2 + $0x48] sm:$0x30] %v4640
      %4657 = vst [vmem:[#allocation2 + $0x50] sm:$0x30] %v4641
      %4658 = vst [vmem:[#allocation2 + $0x58] sm:$0x30] %v4642
      %4659 = vst [vmem:[#allocation2 + $0x60] sm:$0x30] %v4643
      %4660 = vst [vmem:[#allocation2 + $0x68] sm:$0x30] %v4644
      %4661 = vst [vmem:[#allocation2 + $0x70] sm:$0x30] %v4645
      %4662 = vst [vmem:[#allocation2 + $0x78] sm:$0x30] %v4646
      %v4663 = vrot.slane %v4267, 2
      %v4664 = vrot.slane %v4268, 2
      %v4665 = vrot.slane %v4269, 2
      %v4666 = vrot.slane %v4270, 2
      %v4667 = vrot.slane %v4271, 2
      %v4668 = vrot.slane %v4272, 2
      %v4669 = vrot.slane %v4273, 2
      %v4670 = vrot.slane %v4274, 2
      %4671 = vrot.lane.b32.xlu0 %v4663, 96
      %v4672 = vpop.permute.xlu0 %4671
      %4673 = vrot.lane.b32.xlu0 %v4664, 96
      %v4674 = vpop.permute.xlu0 %4673
      %4675 = vrot.lane.b32.xlu0 %v4665, 96
      %v4676 = vpop.permute.xlu0 %4675
      %4677 = vrot.lane.b32.xlu0 %v4666, 96
      %v4678 = vpop.permute.xlu0 %4677
      %4679 = vrot.lane.b32.xlu0 %v4667, 96
      %v4680 = vpop.permute.xlu0 %4679
      %4681 = vrot.lane.b32.xlu0 %v4668, 96
      %v4682 = vpop.permute.xlu0 %4681
      %4683 = vrot.lane.b32.xlu0 %v4669, 96
      %v4684 = vpop.permute.xlu0 %4683
      %4685 = vrot.lane.b32.xlu0 %v4670, 96
      %v4686 = vpop.permute.xlu0 %4685
      %v4687 = vsel %vm2601, %v4672, %v4674
      %v4688 = vsel %vm2601, %v4674, %v4676
      %v4689 = vsel %vm2601, %v4676, %v4678
      %v4690 = vsel %vm2601, %v4678, %v4680
      %v4691 = vsel %vm2601, %v4680, %v4682
      %v4692 = vsel %vm2601, %v4682, %v4684
      %v4693 = vsel %vm2601, %v4684, %v4686
      %v4694 = vsel %vm2601, %v4686, %v3847
      %4703 = vst [vmem:[#allocation2 + $0x40] sm:$0xc0] %v4687
      %4704 = vst [vmem:[#allocation2 + $0x48] sm:$0xc0] %v4688
      %4705 = vst [vmem:[#allocation2 + $0x50] sm:$0xc0] %v4689
      %4706 = vst [vmem:[#allocation2 + $0x58] sm:$0xc0] %v4690
      %4707 = vst [vmem:[#allocation2 + $0x60] sm:$0xc0] %v4691
      %4708 = vst [vmem:[#allocation2 + $0x68] sm:$0xc0] %v4692
      %4709 = vst [vmem:[#allocation2 + $0x70] sm:$0xc0] %v4693
      %4710 = vst [vmem:[#allocation2 + $0x78] sm:$0xc0] %v4694
      %v4711 = vmul.f32 %v4267, %v2627
      %v4712 = vmul.f32 %v4268, %v2642
      %v4713 = vmul.f32 %v4269, %v2643
      %v4714 = vmul.f32 %v4270, %v2644
      %v4715 = vmul.f32 %v4271, %v2645
      %v4716 = vmul.f32 %v4272, %v2646
      %v4717 = vmul.f32 %v4273, %v2647
      %v4718 = vmul.f32 %v4274, %v2648
      %4727 = vrot.lane.b32.xlu0 %v4711, 95
      %v4728 = vpop.permute.xlu0 %4727
      %4729 = vrot.lane.b32.xlu0 %v4712, 95
      %v4730 = vpop.permute.xlu0 %4729
      %4731 = vrot.lane.b32.xlu0 %v4713, 95
      %v4732 = vpop.permute.xlu0 %4731
      %4733 = vrot.lane.b32.xlu0 %v4714, 95
      %v4734 = vpop.permute.xlu0 %4733
      %4735 = vrot.lane.b32.xlu0 %v4715, 95
      %v4736 = vpop.permute.xlu0 %4735
      %4737 = vrot.lane.b32.xlu0 %v4716, 95
      %v4738 = vpop.permute.xlu0 %4737
      %4739 = vrot.lane.b32.xlu0 %v4717, 95
      %v4740 = vpop.permute.xlu0 %4739
      %4741 = vrot.lane.b32.xlu0 %v4718, 95
      %v4742 = vpop.permute.xlu0 %4741
      %v4743 = vsel %vm2017, %v4728, %v4730
      %v4744 = vsel %vm2017, %v4730, %v4732
      %v4745 = vsel %vm2017, %v4732, %v4734
      %v4746 = vsel %vm2017, %v4734, %v4736
      %v4747 = vsel %vm2017, %v4736, %v4738
      %v4748 = vsel %vm2017, %v4738, %v4740
      %v4749 = vsel %vm2017, %v4740, %v4742
      %v4750 = vsel %vm2017, %v4742, %v2693
      %4759 = vst [vmem:[#allocation2 + $0x80] sm:$0x3] %v4743
      %4760 = vst [vmem:[#allocation2 + $0x88] sm:$0x3] %v4744
      %4761 = vst [vmem:[#allocation2 + $0x90] sm:$0x3] %v4745
      %4762 = vst [vmem:[#allocation2 + $0x98] sm:$0x3] %v4746
      %4763 = vst [vmem:[#allocation2 + $0xa0] sm:$0x3] %v4747
      %4764 = vst [vmem:[#allocation2 + $0xa8] sm:$0x3] %v4748
      %4765 = vst [vmem:[#allocation2 + $0xb0] sm:$0x3] %v4749
      %4766 = vst [vmem:[#allocation2 + $0xb8] sm:$0x3] %v4750
      %v4767 = vld [vmem:[#allocation2] sm:$0xff]
      %v4768 = vld [vmem:[#allocation2 + $0x8] sm:$0xff]
      %v4769 = vld [vmem:[#allocation2 + $0x10] sm:$0xff]
      %v4770 = vld [vmem:[#allocation2 + $0x18] sm:$0xff]
      %v4771 = vld [vmem:[#allocation2 + $0x20] sm:$0xff]
      %v4772 = vld [vmem:[#allocation2 + $0x28] sm:$0xff]
      %v4773 = vld [vmem:[#allocation2 + $0x30] sm:$0xff]
      %v4774 = vld [vmem:[#allocation2 + $0x38] sm:$0xff]
      %v4775 = vld [vmem:[#allocation2 + $0x40] sm:$0xff]
      %v4776 = vld [vmem:[#allocation2 + $0x48] sm:$0xff]
      %v4777 = vld [vmem:[#allocation2 + $0x50] sm:$0xff]
      %v4778 = vld [vmem:[#allocation2 + $0x58] sm:$0xff]
      %v4779 = vld [vmem:[#allocation2 + $0x60] sm:$0xff]
      %v4780 = vld [vmem:[#allocation2 + $0x68] sm:$0xff]
      %v4781 = vld [vmem:[#allocation2 + $0x70] sm:$0xff]
      %v4782 = vld [vmem:[#allocation2 + $0x78] sm:$0xff]
      %v4783 = vld [vmem:[#allocation2 + $0x80] sm:$0x3]
      %v4784 = vld [vmem:[#allocation2 + $0x88] sm:$0x3]
      %v4785 = vld [vmem:[#allocation2 + $0x90] sm:$0x3]
      %v4786 = vld [vmem:[#allocation2 + $0x98] sm:$0x3]
      %v4787 = vld [vmem:[#allocation2 + $0xa0] sm:$0x3]
      %v4788 = vld [vmem:[#allocation2 + $0xa8] sm:$0x3]
      %v4789 = vld [vmem:[#allocation2 + $0xb0] sm:$0x3]
      %v4790 = vld [vmem:[#allocation2 + $0xb8] sm:$0x3]
      %v4791 = vpack.c.bf16 %v4775, %v4767
      %v4792 = vpack.c.bf16 %v4776, %v4768
      %v4793 = vpack.c.bf16 %v4777, %v4769
      %v4794 = vpack.c.bf16 %v4778, %v4770
      %v4795 = vpack.c.bf16 %v4779, %v4771
      %v4796 = vpack.c.bf16 %v4780, %v4772
      %v4797 = vpack.c.bf16 %v4781, %v4773
      %v4798 = vpack.c.bf16 %v4782, %v4774
      %v4799 = vpack.c.bf16 %v4783, %v4783
      %v4800 = vpack.c.bf16 %v4784, %v4784
      %v4801 = vpack.c.bf16 %v4785, %v4785
      %v4802 = vpack.c.bf16 %v4786, %v4786
      %v4803 = vpack.c.bf16 %v4787, %v4787
      %v4804 = vpack.c.bf16 %v4788, %v4788
      %v4805 = vpack.c.bf16 %v4789, %v4789
      %v4806 = vpack.c.bf16 %v4790, %v4790
      %v4807 = vld [vmem:[%s12] sm:$0x1]
      %vm4808 = vcmask 146432
      %v4810 = vsel %vm4808, %v4807, 0
      %vm4812 = vcmask 1040384
      %v4814 = vsel %vm4812, %v4799, 0
      %v4817 = vsel %vm4812, %v4800, 0
      %v4820 = vsel %vm4812, %v4801, 0
      %v4823 = vsel %vm4812, %v4802, 0
      %v4826 = vsel %vm4812, %v4803, 0
      %v4829 = vsel %vm4812, %v4804, 0
      %v4832 = vsel %vm4812, %v4805, 0
      %v4835 = vsel %vm4812, %v4806, 0
      %4837 = vmatprep.subr.bf16.mxu0 %v4792
      %4838 = vmatpush1.bf16.msra.mxu0 %v4791
      %4839 = vmatprep.subr.bf16.mxu0 %v4817
      %4840 = vmatpush1.bf16.msra.mxu0 %v4814
      %4841 = vmatprep.subr.bf16.mxu0 0
      %4842 = vmatpush1.bf16.msra.mxu0 0
      %4843 = vmatprep.subr.bf16.mxu0 0
      %4844 = vmatpush1.bf16.msra.mxu0 0
      %4845 = vmatprep.subr.bf16.mxu0 0
      %4846 = vmatpush1.bf16.msra.mxu0 0
      %4847 = vmatprep.subr.bf16.mxu0 0
      %4848 = vmatpush1.bf16.msra.mxu0 0
      %4849 = vmatprep.subr.bf16.mxu0 0
      %4850 = vmatpush1.bf16.msra.mxu0 0
      %4851 = vmatprep.subr.bf16.mxu0 0
      %4852 = vmatpush1.bf16.msra.mxu0 0
      %4853 = vmatprep.subr.bf16.mxu0 0
      %4854 = vmatpush1.bf16.msra.mxu0 0
      %4855 = vmatprep.subr.bf16.mxu0 0
      %4856 = vmatpush1.bf16.msra.mxu0 0
      %4857 = vmatprep.subr.bf16.mxu0 0
      %4858 = vmatpush1.bf16.msra.mxu0 0
      %4859 = vmatprep.subr.bf16.mxu0 0
      %4860 = vmatpush1.bf16.msra.mxu0 0
      %4861 = vmatprep.subr.bf16.mxu0 0
      %4862 = vmatpush1.bf16.msra.mxu0 0
      %4863 = vmatprep.subr.bf16.mxu0 0
      %4864 = vmatpush1.bf16.msra.mxu0 0
      %4865 = vmatprep.subr.bf16.mxu0 0
      %4866 = vmatpush1.bf16.msra.mxu0 0
      %4867 = vmatprep.subr.bf16.mxu0 0
      %4868 = vmatpush1.bf16.msra.mxu0 0
      %4869 = vmatprep.mubr.bf16.mxu0 0
      %4870 = vmatmul.mubr.bf16.gmra.mrb[0].mxu0 %v4810
      %v4871 = vpop.f32.mrb[0].mxu0
      %v4872 = vadd.f32 0.0, %v4871
      %v4873 = vpop.f32.mrb[0].mxu0
      %v4874 = vadd.f32 0.0, %v4873
      %v4875 = vpop.f32.mrb[0].mxu0
      %v4876 = vpop.f32.mrb[0].mxu0
      %4877 = vdwg.mxu0
      %4878 = vmatprep.subr.bf16.mxu0 %v4794
      %4879 = vmatpush1.bf16.msra.mxu0 %v4793
      %4880 = vmatprep.subr.bf16.mxu0 %v4823
      %4881 = vmatpush1.bf16.msra.mxu0 %v4820
      %4882 = vmatprep.subr.bf16.mxu0 0
      %4883 = vmatpush1.bf16.msra.mxu0 0
      %4884 = vmatprep.subr.bf16.mxu0 0
      %4885 = vmatpush1.bf16.msra.mxu0 0
      %4886 = vmatprep.subr.bf16.mxu0 0
      %4887 = vmatpush1.bf16.msra.mxu0 0
      %4888 = vmatprep.subr.bf16.mxu0 0
      %4889 = vmatpush1.bf16.msra.mxu0 0
      %4890 = vmatprep.subr.bf16.mxu0 0
      %4891 = vmatpush1.bf16.msra.mxu0 0
      %4892 = vmatprep.subr.bf16.mxu0 0
      %4893 = vmatpush1.bf16.msra.mxu0 0
      %4894 = vmatprep.subr.bf16.mxu0 0
      %4895 = vmatpush1.bf16.msra.mxu0 0
      %4896 = vmatprep.subr.bf16.mxu0 0
      %4897 = vmatpush1.bf16.msra.mxu0 0
      %4898 = vmatprep.subr.bf16.mxu0 0
      %4899 = vmatpush1.bf16.msra.mxu0 0
      %4900 = vmatprep.subr.bf16.mxu0 0
      %4901 = vmatpush1.bf16.msra.mxu0 0
      %4902 = vmatprep.subr.bf16.mxu0 0
      %4903 = vmatpush1.bf16.msra.mxu0 0
      %4904 = vmatprep.subr.bf16.mxu0 0
      %4905 = vmatpush1.bf16.msra.mxu0 0
      %4906 = vmatprep.subr.bf16.mxu0 0
      %4907 = vmatpush1.bf16.msra.mxu0 0
      %4908 = vmatprep.subr.bf16.mxu0 0
      %4909 = vmatpush1.bf16.msra.mxu0 0
      %4910 = vmatprep.mubr.bf16.mxu0 0
      %4911 = vmatmul.mubr.bf16.gmra.mrb[0].mxu0 %v4810
      %v4912 = vpop.f32.mrb[0].mxu0
      %v4913 = vadd.f32 0.0, %v4912
      %v4914 = vpop.f32.mrb[0].mxu0
      %v4915 = vadd.f32 0.0, %v4914
      %v4916 = vpop.f32.mrb[0].mxu0
      %v4917 = vpop.f32.mrb[0].mxu0
      %4918 = vdwg.mxu0
      %4919 = vmatprep.subr.bf16.mxu0 %v4796
      %4920 = vmatpush1.bf16.msra.mxu0 %v4795
      %4921 = vmatprep.subr.bf16.mxu0 %v4829
      %4922 = vmatpush1.bf16.msra.mxu0 %v4826
      %4923 = vmatprep.subr.bf16.mxu0 0
      %4924 = vmatpush1.bf16.msra.mxu0 0
      %4925 = vmatprep.subr.bf16.mxu0 0
      %4926 = vmatpush1.bf16.msra.mxu0 0
      %4927 = vmatprep.subr.bf16.mxu0 0
      %4928 = vmatpush1.bf16.msra.mxu0 0
      %4929 = vmatprep.subr.bf16.mxu0 0
      %4930 = vmatpush1.bf16.msra.mxu0 0
      %4931 = vmatprep.subr.bf16.mxu0 0
      %4932 = vmatpush1.bf16.msra.mxu0 0
      %4933 = vmatprep.subr.bf16.mxu0 0
      %4934 = vmatpush1.bf16.msra.mxu0 0
      %4935 = vmatprep.subr.bf16.mxu0 0
      %4936 = vmatpush1.bf16.msra.mxu0 0
      %4937 = vmatprep.subr.bf16.mxu0 0
      %4938 = vmatpush1.bf16.msra.mxu0 0
      %4939 = vmatprep.subr.bf16.mxu0 0
      %4940 = vmatpush1.bf16.msra.mxu0 0
      %4941 = vmatprep.subr.bf16.mxu0 0
      %4942 = vmatpush1.bf16.msra.mxu0 0
      %4943 = vmatprep.subr.bf16.mxu0 0
      %4944 = vmatpush1.bf16.msra.mxu0 0
      %4945 = vmatprep.subr.bf16.mxu0 0
      %4946 = vmatpush1.bf16.msra.mxu0 0
      %4947 = vmatprep.subr.bf16.mxu0 0
      %4948 = vmatpush1.bf16.msra.mxu0 0
      %4949 = vmatprep.subr.bf16.mxu0 0
      %4950 = vmatpush1.bf16.msra.mxu0 0
      %4951 = vmatprep.mubr.bf16.mxu0 0
      %4952 = vmatmul.mubr.bf16.gmra.mrb[0].mxu0 %v4810
      %v4953 = vpop.f32.mrb[0].mxu0
      %v4954 = vadd.f32 0.0, %v4953
      %v4955 = vpop.f32.mrb[0].mxu0
      %v4956 = vadd.f32 0.0, %v4955
      %v4957 = vpop.f32.mrb[0].mxu0
      %v4958 = vpop.f32.mrb[0].mxu0
      %4959 = vdwg.mxu0
      %4960 = vmatprep.subr.bf16.mxu0 %v4798
      %4961 = vmatpush1.bf16.msra.mxu0 %v4797
      %4962 = vmatprep.subr.bf16.mxu0 %v4835
      %4963 = vmatpush1.bf16.msra.mxu0 %v4832
      %4964 = vmatprep.subr.bf16.mxu0 0
      %4965 = vmatpush1.bf16.msra.mxu0 0
      %4966 = vmatprep.subr.bf16.mxu0 0
      %4967 = vmatpush1.bf16.msra.mxu0 0
      %4968 = vmatprep.subr.bf16.mxu0 0
      %4969 = vmatpush1.bf16.msra.mxu0 0
      %4970 = vmatprep.subr.bf16.mxu0 0
      %4971 = vmatpush1.bf16.msra.mxu0 0
      %4972 = vmatprep.subr.bf16.mxu0 0
      %4973 = vmatpush1.bf16.msra.mxu0 0
      %4974 = vmatprep.subr.bf16.mxu0 0
      %4975 = vmatpush1.bf16.msra.mxu0 0
      %4976 = vmatprep.subr.bf16.mxu0 0
      %4977 = vmatpush1.bf16.msra.mxu0 0
      %4978 = vmatprep.subr.bf16.mxu0 0
      %4979 = vmatpush1.bf16.msra.mxu0 0
      %4980 = vmatprep.subr.bf16.mxu0 0
      %4981 = vmatpush1.bf16.msra.mxu0 0
      %4982 = vmatprep.subr.bf16.mxu0 0
      %4983 = vmatpush1.bf16.msra.mxu0 0
      %4984 = vmatprep.subr.bf16.mxu0 0
      %4985 = vmatpush1.bf16.msra.mxu0 0
      %4986 = vmatprep.subr.bf16.mxu0 0
      %4987 = vmatpush1.bf16.msra.mxu0 0
      %4988 = vmatprep.subr.bf16.mxu0 0
      %4989 = vmatpush1.bf16.msra.mxu0 0
      %4990 = vmatprep.subr.bf16.mxu0 0
      %4991 = vmatpush1.bf16.msra.mxu0 0
      %4992 = vmatprep.mubr.bf16.mxu0 0
      %4993 = vmatmul.mubr.bf16.gmra.mrb[0].mxu0 %v4810
      %v4994 = vpop.f32.mrb[0].mxu0
      %v4995 = vadd.f32 0.0, %v4994
      %v4996 = vpop.f32.mrb[0].mxu0
      %v4997 = vadd.f32 0.0, %v4996
      %v4998 = vpop.f32.mrb[0].mxu0
      %v4999 = vpop.f32.mrb[0].mxu0
      %5000 = vdwg.mxu0
      %vm5001 = vcmp.ge.f32.partialorder %v4872, 0.0
      %vm5002 = vcmp.ge.f32.partialorder %v4874, 0.0
      %vm5003 = vcmp.ge.f32.partialorder %v4913, 0.0
      %vm5004 = vcmp.ge.f32.partialorder %v4915, 0.0
      %vm5005 = vcmp.ge.f32.partialorder %v4954, 0.0
      %vm5006 = vcmp.ge.f32.partialorder %v4956, 0.0
      %vm5007 = vcmp.ge.f32.partialorder %v4995, 0.0
      %vm5008 = vcmp.ge.f32.partialorder %v4997, 0.0
      %v5009 = vmul.f32 %v4872, 0.01
      %v5010 = vmul.f32 %v4874, 0.01
      %v5011 = vmul.f32 %v4913, 0.01
      %v5012 = vmul.f32 %v4915, 0.01
      %v5013 = vmul.f32 %v4954, 0.01
      %v5014 = vmul.f32 %v4956, 0.01
      %v5015 = vmul.f32 %v4995, 0.01
      %v5016 = vmul.f32 %v4997, 0.01
      %v5017 = vsel %vm5001, %v4872, %v5009
      %v5018 = vsel %vm5002, %v4874, %v5010
      %v5019 = vsel %vm5003, %v4913, %v5011
      %v5020 = vsel %vm5004, %v4915, %v5012
      %v5021 = vsel %vm5005, %v4954, %v5013
      %v5022 = vsel %vm5006, %v4956, %v5014
      %v5023 = vsel %vm5007, %v4995, %v5015
      %v5024 = vsel %vm5008, %v4997, %v5016
      %v5033 = vcombine.low %v5017, %v5018
      %v5034 = vcombine.low %v5019, %v5020
      %v5036 = vunpack.c.l.s4 1983009808
      %v5037 = vunpack.c.0.s8 %v5036
      %v5038 = vlaneseq
      %v5039 = vshrl.u32 %v5038, 7
      %v5040 = vsub.s32 %v5037, %v5039
      %v5041 = vrot.slane %v5033, %v5040
      %v5043 = vunpack.c.l.s4 1983009808
      %v5044 = vunpack.c.0.s8 %v5043
      %v5045 = vlaneseq
      %v5046 = vshrl.u32 %v5045, 7
      %v5047 = vsub.s32 %v5044, %v5046
      %v5048 = vrot.slane %v5034, %v5047
      %v5049 = vcombine.low %v5041, %v5048
      %v5050 = vcombine.low %v5021, %v5022
      %v5051 = vcombine.low %v5023, %v5024
      %v5053 = vunpack.c.l.s4 1983009808
      %v5054 = vunpack.c.0.s8 %v5053
      %v5055 = vlaneseq
      %v5056 = vshrl.u32 %v5055, 7
      %v5057 = vsub.s32 %v5054, %v5056
      %v5058 = vrot.slane %v5050, %v5057
      %v5060 = vunpack.c.l.s4 1983009808
      %v5061 = vunpack.c.0.s8 %v5060
      %v5062 = vlaneseq
      %v5063 = vshrl.u32 %v5062, 7
      %v5064 = vsub.s32 %v5061, %v5063
      %v5065 = vrot.slane %v5051, %v5064
      %v5066 = vcombine.low %v5058, %v5065
      %5069 = vst [vmem:[%s477] sm:$0xff] %v5049
      %5070 = vst [vmem:[%s477 + $0x8] sm:$0xff] %v5066
      %p5071 = scmp.lt.s32.totalorder %s24, 1
      %s5072 = scalar_select %p5071, %s24, 1
      %s5073 = smul.addr %s5072, 8
      %s5074 = smul.addr %s5073, 2
      %s5075 = scalar_lea.vmem %s13, %s5074
      // Predicated region
      $region73: #{_decoder_forward.1} parent=71 // pred_check
        %p5076 = pneg %p330
      $region74: #{_decoder_forward.1} parent=71 // pred_check_branch
        %5078 = sbr.rel (%p5076) target = $region76
      $region75: #{_decoder_forward.1} parent=71 // pred_region
        _
      $region76: #{_decoder_forward.1} parent=71 // pred_fallthru
        _
    $region72: #{_decoder_forward.1} parent=5 // pred_fallthru
      _
    %p5079 = scmp.le.s32.totalorder 2, %s19
    // Predicated region
    $region77: #{_decoder_forward.1} parent=5 // pred_check
      %p5080 = pneg %p5079
    $region78: #{_decoder_forward.1} parent=5 // pred_check_branch
      %5082 = sbr.rel (%p5080) target = $region80
    $region79: #{_decoder_forward.1} parent=5 // pred_region
      %s5083 = ssub.s32 %s19, 2
      // Predicated region
      $region81: #{_decoder_forward.1} parent=79 // pred_check
        %p5084 = pneg %p336
      $region82: #{_decoder_forward.1} parent=79 // pred_check_branch
        %5086 = sbr.rel (%p5084) target = $region84
      $region83: #{_decoder_forward.1} parent=79 // pred_region
        %p5087 = scmp.lt.s32.totalorder %s25, 1
        %s5088 = scalar_select %p5087, %s25, 1
        %s5089 = smul.addr %s5088, 8
        %s5090 = smul.addr %s5089, 2
        %s5091 = scalar_lea.vmem %s13, %s5090
      $region84: #{_decoder_forward.1} parent=79 // pred_fallthru
        _
    $region80: #{_decoder_forward.1} parent=5 // pred_fallthru
      _
  $region6: #{_decoder_forward.1} parent=0 // loop_footer
    %s23 = sadd.s32 1, %s19
  $region7: #{_decoder_forward.1} parent=0 // loop_footer_branch
    %18 = sbr.rel target = $region3
  $region8: #{_decoder_forward.1} parent=0 // loop_exit
    _

</llo_original>
